<compile_context>
chip_gen: v6e
topology: v6e:2x2x1
jax: 0.10.0
libtpu: 0.0.40
codegen_flags: <defaults>
</compile_context>

<pallas_src>
import math

import jax
import jax.numpy as jnp
from jax import lax
from jax.experimental import pallas as pl
from jax.experimental.pallas import tpu as pltpu

DIM = 192
DEPTH = 12
HEAD_SIZE = 32
NUM_HEADS = DIM // HEAD_SIZE          # 6
FFN_DIM = 4 * DIM                     # 768
LN_EPS = 1e-5
PROJ_PAD = 128                        # lane-dense padded output width (true out dim = 2)


# ----------------------------------------------------------------------------- helpers
def _layernorm(x, w, b):
    # PyTorch LayerNorm (biased variance)
    mu = jnp.mean(x, axis=-1, keepdims=True)
    var = jnp.mean((x - mu) ** 2, axis=-1, keepdims=True)
    return (x - mu) * lax.rsqrt(var + LN_EPS) * w + b


def _gelu_exact(x):
    # nn.GELU() default (approximate='none'): 0.5 * x * (1 + erf(x / sqrt(2)))
    return 0.5 * x * (1.0 + lax.erf(x * (1.0 / math.sqrt(2.0))))


# ----------------------------------------------------------------------------- fused kernel
def fused_encoder_kernel(x_ref, maskb_ref,
                         ln1w_ref, ln1b_ref,
                         wqkv_ref, bqkv_ref,
                         wo_ref, bo_ref,
                         ln2w_ref, ln2b_ref,
                         w1_ref, b1_ref, w2_ref, b2_ref,
                         projw_ref, projb_ref,
                         out_ref,
                         x_sc):
    """One (batch-element, layer) grid step. Activation carried in VMEM scratch x_sc."""
    d = pl.program_id(1)

    @pl.when(d == 0)
    def _():
        x_sc[...] = x_ref[0]                        # (L, D) f32

    x = x_sc[...]                                   # (L, D) f32
    mask_bias = maskb_ref[0]                        # (1, L): 0 valid key, -1e30 padded key

    # ---- self-attention block (norm_first) ----
    h = _layernorm(x, ln1w_ref[0], ln1b_ref[0])
    qkv = jnp.dot(h.astype(jnp.bfloat16), wqkv_ref[0],
                  preferred_element_type=jnp.float32) + bqkv_ref[0]     # (L, 3D) f32

    scale = 1.0 / math.sqrt(HEAD_SIZE)
    head_outs = []
    for hh in range(NUM_HEADS):
        lo = hh * HEAD_SIZE
        hi = lo + HEAD_SIZE
        # fold the 1/sqrt(hd) scale into Q (L*32 muls instead of L*L)
        qs = (qkv[:, lo:hi] * scale).astype(jnp.bfloat16)
        ks = qkv[:, DIM + lo:DIM + hi].astype(jnp.bfloat16)
        vs = qkv[:, 2 * DIM + lo:2 * DIM + hi].astype(jnp.bfloat16)
        s = jnp.dot(qs, ks.T, preferred_element_type=jnp.float32)          # (L, L) f32
        s = s + mask_bias                                                   # mask padded keys
        m = jnp.max(s, axis=-1, keepdims=True)
        e = jnp.exp(s - m)
        p = e * pl.reciprocal(jnp.sum(e, axis=-1, keepdims=True), approx=True)
        head_outs.append(jnp.dot(p.astype(jnp.bfloat16), vs,
                                 preferred_element_type=jnp.float32))
    attn = jnp.concatenate(head_outs, axis=-1)                              # (L, D) f32
    attn = jnp.dot(attn.astype(jnp.bfloat16), wo_ref[0],
                   preferred_element_type=jnp.float32) + bo_ref[0]
    x = x + attn

    # ---- feed-forward block (norm_first) ----
    h2 = _layernorm(x, ln2w_ref[0], ln2b_ref[0])
    ff = jnp.dot(h2.astype(jnp.bfloat16), w1_ref[0],
                 preferred_element_type=jnp.float32) + b1_ref[0]
    ff = _gelu_exact(ff)
    ff = jnp.dot(ff.astype(jnp.bfloat16), w2_ref[0],
                 preferred_element_type=jnp.float32) + b2_ref[0]
    x = x + ff

    x_sc[...] = x

    # ---- fused final projection (padded to 128 lanes), only on the last layer ----
    @pl.when(d == DEPTH - 1)
    def _():
        out_ref[0] = (jnp.dot(x.astype(jnp.bfloat16), projw_ref[...],
                              preferred_element_type=jnp.float32)
                      + projb_ref[...])


# ----------------------------------------------------------------------------- wrapper
def run_fused(x, mask_bias, p):
    """x: (B, L, D) f32, mask_bias: (B, 1, L) f32, p: dict of stacked params."""
    B, L, D = x.shape
    OP = PROJ_PAD

    depth_spec = lambda s1, s2: pl.BlockSpec((1, s1, s2), lambda b, d: (d, 0, 0))
    shared_spec = lambda s1, s2: pl.BlockSpec((s1, s2), lambda b, d: (0, 0))

    return pl.pallas_call(
        fused_encoder_kernel,
        out_shape=jax.ShapeDtypeStruct((B, L, OP), jnp.float32),
        grid_spec=pltpu.PrefetchScalarGridSpec(
            num_scalar_prefetch=0,
            grid=(B, DEPTH),
            in_specs=[
                pl.BlockSpec((1, L, D), lambda b, d: (b, 0, 0)),    # x (resident across depth)
                pl.BlockSpec((1, 1, L), lambda b, d: (b, 0, 0)),    # mask bias
                depth_spec(1, D), depth_spec(1, D),                 # ln1 w/b
                depth_spec(D, 3 * D), depth_spec(1, 3 * D),         # fused Wqkv / bqkv
                depth_spec(D, D), depth_spec(1, D),                 # Wo / bo
                depth_spec(1, D), depth_spec(1, D),                 # ln2 w/b
                depth_spec(D, FFN_DIM), depth_spec(1, FFN_DIM),     # W1 / b1
                depth_spec(FFN_DIM, D), depth_spec(1, D),           # W2 / b2
                shared_spec(D, OP), shared_spec(1, OP),             # proj W / b (padded)
            ],
            out_specs=pl.BlockSpec((1, L, OP), lambda b, d: (b, 0, 0)),
            scratch_shapes=[pltpu.VMEM((L, D), jnp.float32)],
        ),
        compiler_params=pltpu.CompilerParams(
            dimension_semantics=("parallel", "arbitrary"),
            vmem_limit_bytes=64 * 1024 * 1024),
    )(x, mask_bias,
      p["ln1_w"], p["ln1_b"],
      p["wqkv"], p["bqkv"],
      p["wo"], p["bo"],
      p["ln2_w"], p["ln2_b"],
      p["w1"], p["b1"], p["w2"], p["b2"],
      p["proj_w"], p["proj_b"])


def sinusoidal_pos_emb(pos, dim=DIM, M=10000):
    # pos: (1, L) float32 -> (1, L, dim)
    half = dim // 2
    freqs = jnp.exp(jnp.arange(half, dtype=jnp.float32) * (-math.log(M) / half))
    e = pos[..., None] * freqs[None, None, :]
    return jnp.concatenate([jnp.sin(e), jnp.cos(e)], axis=-1)


def init_params(key):
    ks = jax.random.split(key, 2 + DEPTH * 4)
    it = iter(ks)
    norm = lambda k, shape: (0.02 * jax.random.normal(k, shape)).astype(jnp.float32)

    emb = norm(next(it), (5, DIM))
    wqkv_l, wo_l, w1_l, w2_l = [], [], [], []
    for _ in range(DEPTH):
        wqkv_l.append(norm(next(it), (DIM, 3 * DIM)))
        wo_l.append(norm(next(it), (DIM, DIM)))
        w1_l.append(norm(next(it), (DIM, FFN_DIM)))
        w2_l.append(norm(next(it), (FFN_DIM, DIM)))

    proj_w = norm(next(it), (DIM, 2))
    proj_w_pad = jnp.pad(proj_w, ((0, 0), (0, PROJ_PAD - 2)))      # lane-dense padded

    params = {
        "emb": emb,
        "ln1_w": jnp.ones((DEPTH, 1, DIM), jnp.float32),
        "ln1_b": jnp.zeros((DEPTH, 1, DIM), jnp.float32),
        "wqkv": jnp.stack(wqkv_l).astype(jnp.bfloat16),            # (DEPTH, D, 3D)
        "bqkv": jnp.zeros((DEPTH, 1, 3 * DIM), jnp.float32),
        "wo": jnp.stack(wo_l).astype(jnp.bfloat16),                # (DEPTH, D, D)
        "bo": jnp.zeros((DEPTH, 1, DIM), jnp.float32),
        "ln2_w": jnp.ones((DEPTH, 1, DIM), jnp.float32),
        "ln2_b": jnp.zeros((DEPTH, 1, DIM), jnp.float32),
        "w1": jnp.stack(w1_l).astype(jnp.bfloat16),                # (DEPTH, D, FFN)
        "b1": jnp.zeros((DEPTH, 1, FFN_DIM), jnp.float32),
        "w2": jnp.stack(w2_l).astype(jnp.bfloat16),                # (DEPTH, FFN, D)
        "b2": jnp.zeros((DEPTH, 1, DIM), jnp.float32),
        "proj_w": proj_w_pad.astype(jnp.bfloat16),                 # (D, 128)
        "proj_b": jnp.zeros((1, PROJ_PAD), jnp.float32),
    }
    return params


def rna_model_forward(params, seq, mask):
    """seq: (B, L0) int32 tokens in [0, 5); mask: (B, L0) bool. Dropout is eval-mode (identity)."""
    # Dynamic Lmax truncation (matches mask.sum(-1).max() semantics of the PyTorch model).
    # TODO(synk): the int() forces one device->host sync; padding L to a 128 bucket below
    # keeps block shapes static and limits recompiles to one per bucket.
    Lmax = int(jnp.max(jnp.sum(mask.astype(jnp.int32), axis=-1)))
    Lpad = max(128, ((Lmax + 127) // 128) * 128)

    seq_t = seq[:, :Lmax]
    mask_t = mask[:, :Lmax]
    pad = Lpad - Lmax
    seq_p = jnp.pad(seq_t, ((0, 0), (0, pad)))                     # pad with token 0
    mask_p = jnp.pad(mask_t, ((0, 0), (0, pad)))                   # pad with False

    # Embedding + sinusoidal positional encoding (glue).
    pos = jnp.arange(Lpad, dtype=jnp.float32)[None, :]             # (1, Lpad)
    pe = sinusoidal_pos_emb(pos)                                   # (1, Lpad, DIM)
    x = jnp.take(params["emb"], seq_p, axis=0) + pe                # (B, Lpad, DIM)
    x = x.astype(jnp.float32)

    # Additive key-padding bias: 0 for valid keys, -1e30 for padded keys.
    mask_bias = jnp.where(mask_p[:, None, :], 0.0, -1e30).astype(jnp.float32)   # (B, 1, Lpad)

    out_pad = run_fused(x, mask_bias, params)                      # (B, Lpad, 128)
    return out_pad[:, :Lmax, :2]                                   # (B, Lmax, 2)


# ----------------------------------------------------------------------------- main
if __name__ == "__main__":
    key = jax.random.PRNGKey(0)
    pkey, skey = jax.random.split(key)
    params = init_params(pkey)

    B, L0 = 2, 40
    lengths = jnp.array([32, 28], dtype=jnp.int32)                 # Lmax = 32
    seq = jax.random.randint(skey, (B, L0), 0, 5, dtype=jnp.int32)
    mask = jnp.arange(L0)[None, :] < lengths[:, None]              # (B, L0) bool

    out = rna_model_forward(params, seq, mask)
    out = jax.block_until_ready(out)
    assert out.shape == (2, 32, 2) and out.dtype == jnp.float32
    assert bool(jnp.all(jnp.isfinite(out)))
    print("KERNEL_OK")
</pallas_src>

<mosaic_0001>
module attributes {stable_mosaic.version = 11 : i64} {
  func.func @fused_encoder_kernel(%arg0: i32, %arg1: i32, %arg2: memref<1x128x192xf32, #tpu.memory_space<vmem>>, %arg3: memref<1x1x128xf32, #tpu.memory_space<vmem>>, %arg4: memref<1x1x192xf32, #tpu.memory_space<vmem>>, %arg5: memref<1x1x192xf32, #tpu.memory_space<vmem>>, %arg6: memref<1x192x576xbf16, #tpu.memory_space<vmem>>, %arg7: memref<1x1x576xf32, #tpu.memory_space<vmem>>, %arg8: memref<1x192x192xbf16, #tpu.memory_space<vmem>>, %arg9: memref<1x1x192xf32, #tpu.memory_space<vmem>>, %arg10: memref<1x1x192xf32, #tpu.memory_space<vmem>>, %arg11: memref<1x1x192xf32, #tpu.memory_space<vmem>>, %arg12: memref<1x192x768xbf16, #tpu.memory_space<vmem>>, %arg13: memref<1x1x768xf32, #tpu.memory_space<vmem>>, %arg14: memref<1x768x192xbf16, #tpu.memory_space<vmem>>, %arg15: memref<1x1x192xf32, #tpu.memory_space<vmem>>, %arg16: memref<192x128xbf16, #tpu.memory_space<vmem>>, %arg17: memref<1x128xf32, #tpu.memory_space<vmem>>, %arg18: memref<1x128x128xf32, #tpu.memory_space<vmem>>, %arg19: memref<128x192xf32, #tpu.memory_space<vmem>>) attributes {dimension_semantics = [#tpu.dimension_semantics<parallel>, #tpu.dimension_semantics<arbitrary>], iteration_bounds = array<i64: 2, 12>, scalar_prefetch = 0 : i64, scratch_operands = 1 : i64, tpu.core_type = #tpu.core_type<tc>, window_params = [{transform_indices = @transform_0, window_bounds = array<i64: 1, 128, 192>}, {transform_indices = @transform_1, window_bounds = array<i64: 1, 1, 128>}, {transform_indices = @transform_2, window_bounds = array<i64: 1, 1, 192>}, {transform_indices = @transform_3, window_bounds = array<i64: 1, 1, 192>}, {transform_indices = @transform_4, window_bounds = array<i64: 1, 192, 576>}, {transform_indices = @transform_5, window_bounds = array<i64: 1, 1, 576>}, {transform_indices = @transform_6, window_bounds = array<i64: 1, 192, 192>}, {transform_indices = @transform_7, window_bounds = array<i64: 1, 1, 192>}, {transform_indices = @transform_8, window_bounds = array<i64: 1, 1, 192>}, {transform_indices = @transform_9, window_bounds = array<i64: 1, 1, 192>}, {transform_indices = @transform_10, window_bounds = array<i64: 1, 192, 768>}, {transform_indices = @transform_11, window_bounds = array<i64: 1, 1, 768>}, {transform_indices = @transform_12, window_bounds = array<i64: 1, 768, 192>}, {transform_indices = @transform_13, window_bounds = array<i64: 1, 1, 192>}, {pipeline_mode = #tpu.pipeline_mode<synchronous>, transform_indices = @transform_14, window_bounds = array<i64: 192, 128>}, {pipeline_mode = #tpu.pipeline_mode<synchronous>, transform_indices = @transform_15, window_bounds = array<i64: 1, 128>}, {transform_indices = @transform_16, window_bounds = array<i64: 1, 128, 128>}]} {
    %c0_i32 = arith.constant 0 : i32
    %0 = arith.cmpi eq, %arg1, %c0_i32 : i32
    %1 = arith.extui %0 : i1 to i32
    %c0_i32_0 = arith.constant 0 : i32
    %2 = arith.cmpi ne, %1, %c0_i32_0 : i32
    scf.if %2 {
      %c0_90 = arith.constant 0 : index
      %c0_91 = arith.constant 0 : index
      %c0_92 = arith.constant 0 : index
      %249 = vector.load %arg2[%c0_90, %c0_91, %c0_92] : memref<1x128x192xf32, #tpu.memory_space<vmem>>, vector<1x128x192xf32>
      %250 = vector.shape_cast %249 : vector<1x128x192xf32> to vector<128x192xf32>
      %c0_93 = arith.constant 0 : index
      %c0_94 = arith.constant 0 : index
      %251 = vector.load %arg19[%c0_93, %c0_94] : memref<128x192xf32, #tpu.memory_space<vmem>>, vector<128x192xf32>
      tpu.vector_store %arg19[%c0_93, %c0_94], %250 {strides = array<i32>} : memref<128x192xf32, #tpu.memory_space<vmem>>, vector<128x192xf32>,
    } else {
    }
    %c0 = arith.constant 0 : index
    %c0_1 = arith.constant 0 : index
    %3 = vector.load %arg19[%c0, %c0_1] : memref<128x192xf32, #tpu.memory_space<vmem>>, vector<128x192xf32>
    %c0_2 = arith.constant 0 : index
    %c0_3 = arith.constant 0 : index
    %c0_4 = arith.constant 0 : index
    %4 = vector.load %arg3[%c0_2, %c0_3, %c0_4] : memref<1x1x128xf32, #tpu.memory_space<vmem>>, vector<1x1x128xf32>
    %5 = vector.shape_cast %4 : vector<1x1x128xf32> to vector<1x128xf32>
    %c0_5 = arith.constant 0 : index
    %c0_6 = arith.constant 0 : index
    %c0_7 = arith.constant 0 : index
    %6 = vector.load %arg4[%c0_5, %c0_6, %c0_7] : memref<1x1x192xf32, #tpu.memory_space<vmem>>, vector<1x1x192xf32>
    %7 = vector.shape_cast %6 : vector<1x1x192xf32> to vector<1x192xf32>
    %c0_8 = arith.constant 0 : index
    %c0_9 = arith.constant 0 : index
    %c0_10 = arith.constant 0 : index
    %8 = vector.load %arg5[%c0_8, %c0_9, %c0_10] : memref<1x1x192xf32, #tpu.memory_space<vmem>>, vector<1x1x192xf32>
    %9 = vector.shape_cast %8 : vector<1x1x192xf32> to vector<1x192xf32>
    %cst = arith.constant dense<0.000000e+00> : vector<128xf32>
    %10 = vector.multi_reduction <add>, %3, %cst [1] : vector<128x192xf32> to vector<128xf32>
    %11 = vector.shape_cast %10 : vector<128xf32> to vector<128x1xf32>
    %cst_11 = arith.constant 1.920000e+02 : f32
    %12 = vector.broadcast %cst_11 : f32 to vector<128x1xf32>
    %13 = arith.divf %11, %12 : vector<128x1xf32>
    %14 = vector.broadcast %13 : vector<128x1xf32> to vector<128x192xf32>
    %15 = arith.subf %3, %14 : vector<128x192xf32>
    %16 = arith.mulf %15, %15 : vector<128x192xf32>
    %cst_12 = arith.constant dense<0.000000e+00> : vector<128xf32>
    %17 = vector.multi_reduction <add>, %16, %cst_12 [1] : vector<128x192xf32> to vector<128xf32>
    %18 = vector.shape_cast %17 : vector<128xf32> to vector<128x1xf32>
    %cst_13 = arith.constant 1.920000e+02 : f32
    %19 = vector.broadcast %cst_13 : f32 to vector<128x1xf32>
    %20 = arith.divf %18, %19 : vector<128x1xf32>
    %21 = vector.broadcast %13 : vector<128x1xf32> to vector<128x192xf32>
    %22 = arith.subf %3, %21 : vector<128x192xf32>
    %cst_14 = arith.constant 9.99999974E-6 : f32
    %23 = vector.broadcast %cst_14 : f32 to vector<128x1xf32>
    %24 = arith.addf %20, %23 : vector<128x1xf32>
    %25 = math.rsqrt %24 : vector<128x1xf32>
    %26 = vector.broadcast %25 : vector<128x1xf32> to vector<128x192xf32>
    %27 = arith.mulf %22, %26 : vector<128x192xf32>
    %28 = vector.broadcast %7 : vector<1x192xf32> to vector<128x192xf32>
    %29 = arith.mulf %27, %28 : vector<128x192xf32>
    %30 = vector.broadcast %9 : vector<1x192xf32> to vector<128x192xf32>
    %31 = arith.addf %29, %30 : vector<128x192xf32>
    %32 = arith.truncf %31 : vector<128x192xf32> to vector<128x192xbf16>
    %c0_15 = arith.constant 0 : index
    %c0_16 = arith.constant 0 : index
    %c0_17 = arith.constant 0 : index
    %33 = vector.load %arg6[%c0_15, %c0_16, %c0_17] : memref<1x192x576xbf16, #tpu.memory_space<vmem>>, vector<1x192x576xbf16>
    %34 = vector.shape_cast %33 : vector<1x192x576xbf16> to vector<192x576xbf16>
    %cst_18 = arith.constant dense<0.000000e+00> : vector<128x576xf32>
    %35 = tpu.matmul %32, %34, %cst_18 {dimension_numbers = #tpu.dot_dimension_numbers<[1], [0], [0], [1], [0, 0, 1, 1], [], []>} : vector<128x192xbf16>, vector<192x576xbf16>, vector<128x576xf32> -> vector<128x576xf32>
    %c0_19 = arith.constant 0 : index
    %c0_20 = arith.constant 0 : index
    %c0_21 = arith.constant 0 : index
    %36 = vector.load %arg7[%c0_19, %c0_20, %c0_21] : memref<1x1x576xf32, #tpu.memory_space<vmem>>, vector<1x1x576xf32>
    %37 = vector.shape_cast %36 : vector<1x1x576xf32> to vector<1x576xf32>
    %38 = vector.broadcast %37 : vector<1x576xf32> to vector<128x576xf32>
    %39 = arith.addf %35, %38 : vector<128x576xf32>
    %40 = vector.extract_strided_slice %39 {offsets = [0, 0], sizes = [128, 32], strides = [1, 1]} : vector<128x576xf32> to vector<128x32xf32>
    %cst_22 = arith.constant 0.176776692 : f32
    %41 = vector.broadcast %cst_22 : f32 to vector<128x32xf32>
    %42 = arith.mulf %40, %41 : vector<128x32xf32>
    %43 = arith.truncf %42 : vector<128x32xf32> to vector<128x32xbf16>
    %44 = vector.extract_strided_slice %39 {offsets = [0, 192], sizes = [128, 32], strides = [1, 1]} : vector<128x576xf32> to vector<128x32xf32>
    %45 = arith.truncf %44 : vector<128x32xf32> to vector<128x32xbf16>
    %46 = vector.extract_strided_slice %39 {offsets = [0, 384], sizes = [128, 32], strides = [1, 1]} : vector<128x576xf32> to vector<128x32xf32>
    %47 = arith.truncf %46 : vector<128x32xf32> to vector<128x32xbf16>
    %48 = tpu.transpose %45, [1, 0] : vector<128x32xbf16> -> vector<32x128xbf16>
    %cst_23 = arith.constant dense<0.000000e+00> : vector<128x128xf32>
    %49 = tpu.matmul %43, %48, %cst_23 {dimension_numbers = #tpu.dot_dimension_numbers<[1], [0], [0], [1], [0, 0, 1, 1], [], []>} : vector<128x32xbf16>, vector<32x128xbf16>, vector<128x128xf32> -> vector<128x128xf32>
    %50 = vector.broadcast %5 : vector<1x128xf32> to vector<128x128xf32>
    %51 = arith.addf %49, %50 : vector<128x128xf32>
    %cst_24 = arith.constant dense<0xFF800000> : vector<128xf32>
    %52 = vector.multi_reduction <maximumf>, %51, %cst_24 [1] : vector<128x128xf32> to vector<128xf32>
    %53 = vector.shape_cast %52 : vector<128xf32> to vector<128x1xf32>
    %54 = vector.broadcast %53 : vector<128x1xf32> to vector<128x128xf32>
    %55 = arith.subf %51, %54 : vector<128x128xf32>
    %56 = math.exp %55 : vector<128x128xf32>
    %cst_25 = arith.constant dense<0.000000e+00> : vector<128xf32>
    %57 = vector.multi_reduction <add>, %56, %cst_25 [1] : vector<128x128xf32> to vector<128xf32>
    %58 = vector.shape_cast %57 : vector<128xf32> to vector<128x1xf32>
    %59 = tpu.reciprocal %58 {approx = true} : vector<128x1xf32> -> vector<128x1xf32>
    %60 = vector.broadcast %59 : vector<128x1xf32> to vector<128x128xf32>
    %61 = arith.mulf %56, %60 : vector<128x128xf32>
    %62 = arith.truncf %61 : vector<128x128xf32> to vector<128x128xbf16>
    %cst_26 = arith.constant dense<0.000000e+00> : vector<128x32xf32>
    %63 = tpu.matmul %62, %47, %cst_26 {dimension_numbers = #tpu.dot_dimension_numbers<[1], [0], [0], [1], [0, 0, 1, 1], [], []>} : vector<128x128xbf16>, vector<128x32xbf16>, vector<128x32xf32> -> vector<128x32xf32>
    %64 = vector.extract_strided_slice %39 {offsets = [0, 32], sizes = [128, 32], strides = [1, 1]} : vector<128x576xf32> to vector<128x32xf32>
    %cst_27 = arith.constant 0.176776692 : f32
    %65 = vector.broadcast %cst_27 : f32 to vector<128x32xf32>
    %66 = arith.mulf %64, %65 : vector<128x32xf32>
    %67 = arith.truncf %66 : vector<128x32xf32> to vector<128x32xbf16>
    %68 = vector.extract_strided_slice %39 {offsets = [0, 224], sizes = [128, 32], strides = [1, 1]} : vector<128x576xf32> to vector<128x32xf32>
    %69 = arith.truncf %68 : vector<128x32xf32> to vector<128x32xbf16>
    %70 = vector.extract_strided_slice %39 {offsets = [0, 416], sizes = [128, 32], strides = [1, 1]} : vector<128x576xf32> to vector<128x32xf32>
    %71 = arith.truncf %70 : vector<128x32xf32> to vector<128x32xbf16>
    %72 = tpu.transpose %69, [1, 0] : vector<128x32xbf16> -> vector<32x128xbf16>
    %cst_28 = arith.constant dense<0.000000e+00> : vector<128x128xf32>
    %73 = tpu.matmul %67, %72, %cst_28 {dimension_numbers = #tpu.dot_dimension_numbers<[1], [0], [0], [1], [0, 0, 1, 1], [], []>} : vector<128x32xbf16>, vector<32x128xbf16>, vector<128x128xf32> -> vector<128x128xf32>
    %74 = vector.broadcast %5 : vector<1x128xf32> to vector<128x128xf32>
    %75 = arith.addf %73, %74 : vector<128x128xf32>
    %cst_29 = arith.constant dense<0xFF800000> : vector<128xf32>
    %76 = vector.multi_reduction <maximumf>, %75, %cst_29 [1] : vector<128x128xf32> to vector<128xf32>
    %77 = vector.shape_cast %76 : vector<128xf32> to vector<128x1xf32>
    %78 = vector.broadcast %77 : vector<128x1xf32> to vector<128x128xf32>
    %79 = arith.subf %75, %78 : vector<128x128xf32>
    %80 = math.exp %79 : vector<128x128xf32>
    %cst_30 = arith.constant dense<0.000000e+00> : vector<128xf32>
    %81 = vector.multi_reduction <add>, %80, %cst_30 [1] : vector<128x128xf32> to vector<128xf32>
    %82 = vector.shape_cast %81 : vector<128xf32> to vector<128x1xf32>
    %83 = tpu.reciprocal %82 {approx = true} : vector<128x1xf32> -> vector<128x1xf32>
    %84 = vector.broadcast %83 : vector<128x1xf32> to vector<128x128xf32>
    %85 = arith.mulf %80, %84 : vector<128x128xf32>
    %86 = arith.truncf %85 : vector<128x128xf32> to vector<128x128xbf16>
    %cst_31 = arith.constant dense<0.000000e+00> : vector<128x32xf32>
    %87 = tpu.matmul %86, %71, %cst_31 {dimension_numbers = #tpu.dot_dimension_numbers<[1], [0], [0], [1], [0, 0, 1, 1], [], []>} : vector<128x128xbf16>, vector<128x32xbf16>, vector<128x32xf32> -> vector<128x32xf32>
    %88 = vector.extract_strided_slice %39 {offsets = [0, 64], sizes = [128, 32], strides = [1, 1]} : vector<128x576xf32> to vector<128x32xf32>
    %cst_32 = arith.constant 0.176776692 : f32
    %89 = vector.broadcast %cst_32 : f32 to vector<128x32xf32>
    %90 = arith.mulf %88, %89 : vector<128x32xf32>
    %91 = arith.truncf %90 : vector<128x32xf32> to vector<128x32xbf16>
    %92 = vector.extract_strided_slice %39 {offsets = [0, 256], sizes = [128, 32], strides = [1, 1]} : vector<128x576xf32> to vector<128x32xf32>
    %93 = arith.truncf %92 : vector<128x32xf32> to vector<128x32xbf16>
    %94 = vector.extract_strided_slice %39 {offsets = [0, 448], sizes = [128, 32], strides = [1, 1]} : vector<128x576xf32> to vector<128x32xf32>
    %95 = arith.truncf %94 : vector<128x32xf32> to vector<128x32xbf16>
    %96 = tpu.transpose %93, [1, 0] : vector<128x32xbf16> -> vector<32x128xbf16>
    %cst_33 = arith.constant dense<0.000000e+00> : vector<128x128xf32>
    %97 = tpu.matmul %91, %96, %cst_33 {dimension_numbers = #tpu.dot_dimension_numbers<[1], [0], [0], [1], [0, 0, 1, 1], [], []>} : vector<128x32xbf16>, vector<32x128xbf16>, vector<128x128xf32> -> vector<128x128xf32>
    %98 = vector.broadcast %5 : vector<1x128xf32> to vector<128x128xf32>
    %99 = arith.addf %97, %98 : vector<128x128xf32>
    %cst_34 = arith.constant dense<0xFF800000> : vector<128xf32>
    %100 = vector.multi_reduction <maximumf>, %99, %cst_34 [1] : vector<128x128xf32> to vector<128xf32>
    %101 = vector.shape_cast %100 : vector<128xf32> to vector<128x1xf32>
    %102 = vector.broadcast %101 : vector<128x1xf32> to vector<128x128xf32>
    %103 = arith.subf %99, %102 : vector<128x128xf32>
    %104 = math.exp %103 : vector<128x128xf32>
    %cst_35 = arith.constant dense<0.000000e+00> : vector<128xf32>
    %105 = vector.multi_reduction <add>, %104, %cst_35 [1] : vector<128x128xf32> to vector<128xf32>
    %106 = vector.shape_cast %105 : vector<128xf32> to vector<128x1xf32>
    %107 = tpu.reciprocal %106 {approx = true} : vector<128x1xf32> -> vector<128x1xf32>
    %108 = vector.broadcast %107 : vector<128x1xf32> to vector<128x128xf32>
    %109 = arith.mulf %104, %108 : vector<128x128xf32>
    %110 = arith.truncf %109 : vector<128x128xf32> to vector<128x128xbf16>
    %cst_36 = arith.constant dense<0.000000e+00> : vector<128x32xf32>
    %111 = tpu.matmul %110, %95, %cst_36 {dimension_numbers = #tpu.dot_dimension_numbers<[1], [0], [0], [1], [0, 0, 1, 1], [], []>} : vector<128x128xbf16>, vector<128x32xbf16>, vector<128x32xf32> -> vector<128x32xf32>
    %112 = vector.extract_strided_slice %39 {offsets = [0, 96], sizes = [128, 32], strides = [1, 1]} : vector<128x576xf32> to vector<128x32xf32>
    %cst_37 = arith.constant 0.176776692 : f32
    %113 = vector.broadcast %cst_37 : f32 to vector<128x32xf32>
    %114 = arith.mulf %112, %113 : vector<128x32xf32>
    %115 = arith.truncf %114 : vector<128x32xf32> to vector<128x32xbf16>
    %116 = vector.extract_strided_slice %39 {offsets = [0, 288], sizes = [128, 32], strides = [1, 1]} : vector<128x576xf32> to vector<128x32xf32>
    %117 = arith.truncf %116 : vector<128x32xf32> to vector<128x32xbf16>
    %118 = vector.extract_strided_slice %39 {offsets = [0, 480], sizes = [128, 32], strides = [1, 1]} : vector<128x576xf32> to vector<128x32xf32>
    %119 = arith.truncf %118 : vector<128x32xf32> to vector<128x32xbf16>
    %120 = tpu.transpose %117, [1, 0] : vector<128x32xbf16> -> vector<32x128xbf16>
    %cst_38 = arith.constant dense<0.000000e+00> : vector<128x128xf32>
    %121 = tpu.matmul %115, %120, %cst_38 {dimension_numbers = #tpu.dot_dimension_numbers<[1], [0], [0], [1], [0, 0, 1, 1], [], []>} : vector<128x32xbf16>, vector<32x128xbf16>, vector<128x128xf32> -> vector<128x128xf32>
    %122 = vector.broadcast %5 : vector<1x128xf32> to vector<128x128xf32>
    %123 = arith.addf %121, %122 : vector<128x128xf32>
    %cst_39 = arith.constant dense<0xFF800000> : vector<128xf32>
    %124 = vector.multi_reduction <maximumf>, %123, %cst_39 [1] : vector<128x128xf32> to vector<128xf32>
    %125 = vector.shape_cast %124 : vector<128xf32> to vector<128x1xf32>
    %126 = vector.broadcast %125 : vector<128x1xf32> to vector<128x128xf32>
    %127 = arith.subf %123, %126 : vector<128x128xf32>
    %128 = math.exp %127 : vector<128x128xf32>
    %cst_40 = arith.constant dense<0.000000e+00> : vector<128xf32>
    %129 = vector.multi_reduction <add>, %128, %cst_40 [1] : vector<128x128xf32> to vector<128xf32>
    %130 = vector.shape_cast %129 : vector<128xf32> to vector<128x1xf32>
    %131 = tpu.reciprocal %130 {approx = true} : vector<128x1xf32> -> vector<128x1xf32>
    %132 = vector.broadcast %131 : vector<128x1xf32> to vector<128x128xf32>
    %133 = arith.mulf %128, %132 : vector<128x128xf32>
    %134 = arith.truncf %133 : vector<128x128xf32> to vector<128x128xbf16>
    %cst_41 = arith.constant dense<0.000000e+00> : vector<128x32xf32>
    %135 = tpu.matmul %134, %119, %cst_41 {dimension_numbers = #tpu.dot_dimension_numbers<[1], [0], [0], [1], [0, 0, 1, 1], [], []>} : vector<128x128xbf16>, vector<128x32xbf16>, vector<128x32xf32> -> vector<128x32xf32>
    %136 = vector.extract_strided_slice %39 {offsets = [0, 128], sizes = [128, 32], strides = [1, 1]} : vector<128x576xf32> to vector<128x32xf32>
    %cst_42 = arith.constant 0.176776692 : f32
    %137 = vector.broadcast %cst_42 : f32 to vector<128x32xf32>
    %138 = arith.mulf %136, %137 : vector<128x32xf32>
    %139 = arith.truncf %138 : vector<128x32xf32> to vector<128x32xbf16>
    %140 = vector.extract_strided_slice %39 {offsets = [0, 320], sizes = [128, 32], strides = [1, 1]} : vector<128x576xf32> to vector<128x32xf32>
    %141 = arith.truncf %140 : vector<128x32xf32> to vector<128x32xbf16>
    %142 = vector.extract_strided_slice %39 {offsets = [0, 512], sizes = [128, 32], strides = [1, 1]} : vector<128x576xf32> to vector<128x32xf32>
    %143 = arith.truncf %142 : vector<128x32xf32> to vector<128x32xbf16>
    %144 = tpu.transpose %141, [1, 0] : vector<128x32xbf16> -> vector<32x128xbf16>
    %cst_43 = arith.constant dense<0.000000e+00> : vector<128x128xf32>
    %145 = tpu.matmul %139, %144, %cst_43 {dimension_numbers = #tpu.dot_dimension_numbers<[1], [0], [0], [1], [0, 0, 1, 1], [], []>} : vector<128x32xbf16>, vector<32x128xbf16>, vector<128x128xf32> -> vector<128x128xf32>
    %146 = vector.broadcast %5 : vector<1x128xf32> to vector<128x128xf32>
    %147 = arith.addf %145, %146 : vector<128x128xf32>
    %cst_44 = arith.constant dense<0xFF800000> : vector<128xf32>
    %148 = vector.multi_reduction <maximumf>, %147, %cst_44 [1] : vector<128x128xf32> to vector<128xf32>
    %149 = vector.shape_cast %148 : vector<128xf32> to vector<128x1xf32>
    %150 = vector.broadcast %149 : vector<128x1xf32> to vector<128x128xf32>
    %151 = arith.subf %147, %150 : vector<128x128xf32>
    %152 = math.exp %151 : vector<128x128xf32>
    %cst_45 = arith.constant dense<0.000000e+00> : vector<128xf32>
    %153 = vector.multi_reduction <add>, %152, %cst_45 [1] : vector<128x128xf32> to vector<128xf32>
    %154 = vector.shape_cast %153 : vector<128xf32> to vector<128x1xf32>
    %155 = tpu.reciprocal %154 {approx = true} : vector<128x1xf32> -> vector<128x1xf32>
    %156 = vector.broadcast %155 : vector<128x1xf32> to vector<128x128xf32>
    %157 = arith.mulf %152, %156 : vector<128x128xf32>
    %158 = arith.truncf %157 : vector<128x128xf32> to vector<128x128xbf16>
    %cst_46 = arith.constant dense<0.000000e+00> : vector<128x32xf32>
    %159 = tpu.matmul %158, %143, %cst_46 {dimension_numbers = #tpu.dot_dimension_numbers<[1], [0], [0], [1], [0, 0, 1, 1], [], []>} : vector<128x128xbf16>, vector<128x32xbf16>, vector<128x32xf32> -> vector<128x32xf32>
    %160 = vector.extract_strided_slice %39 {offsets = [0, 160], sizes = [128, 32], strides = [1, 1]} : vector<128x576xf32> to vector<128x32xf32>
    %cst_47 = arith.constant 0.176776692 : f32
    %161 = vector.broadcast %cst_47 : f32 to vector<128x32xf32>
    %162 = arith.mulf %160, %161 : vector<128x32xf32>
    %163 = arith.truncf %162 : vector<128x32xf32> to vector<128x32xbf16>
    %164 = vector.extract_strided_slice %39 {offsets = [0, 352], sizes = [128, 32], strides = [1, 1]} : vector<128x576xf32> to vector<128x32xf32>
    %165 = arith.truncf %164 : vector<128x32xf32> to vector<128x32xbf16>
    %166 = vector.extract_strided_slice %39 {offsets = [0, 544], sizes = [128, 32], strides = [1, 1]} : vector<128x576xf32> to vector<128x32xf32>
    %167 = arith.truncf %166 : vector<128x32xf32> to vector<128x32xbf16>
    %168 = tpu.transpose %165, [1, 0] : vector<128x32xbf16> -> vector<32x128xbf16>
    %cst_48 = arith.constant dense<0.000000e+00> : vector<128x128xf32>
    %169 = tpu.matmul %163, %168, %cst_48 {dimension_numbers = #tpu.dot_dimension_numbers<[1], [0], [0], [1], [0, 0, 1, 1], [], []>} : vector<128x32xbf16>, vector<32x128xbf16>, vector<128x128xf32> -> vector<128x128xf32>
    %170 = vector.broadcast %5 : vector<1x128xf32> to vector<128x128xf32>
    %171 = arith.addf %169, %170 : vector<128x128xf32>
    %cst_49 = arith.constant dense<0xFF800000> : vector<128xf32>
    %172 = vector.multi_reduction <maximumf>, %171, %cst_49 [1] : vector<128x128xf32> to vector<128xf32>
    %173 = vector.shape_cast %172 : vector<128xf32> to vector<128x1xf32>
    %174 = vector.broadcast %173 : vector<128x1xf32> to vector<128x128xf32>
    %175 = arith.subf %171, %174 : vector<128x128xf32>
    %176 = math.exp %175 : vector<128x128xf32>
    %cst_50 = arith.constant dense<0.000000e+00> : vector<128xf32>
    %177 = vector.multi_reduction <add>, %176, %cst_50 [1] : vector<128x128xf32> to vector<128xf32>
    %178 = vector.shape_cast %177 : vector<128xf32> to vector<128x1xf32>
    %179 = tpu.reciprocal %178 {approx = true} : vector<128x1xf32> -> vector<128x1xf32>
    %180 = vector.broadcast %179 : vector<128x1xf32> to vector<128x128xf32>
    %181 = arith.mulf %176, %180 : vector<128x128xf32>
    %182 = arith.truncf %181 : vector<128x128xf32> to vector<128x128xbf16>
    %cst_51 = arith.constant dense<0.000000e+00> : vector<128x32xf32>
    %183 = tpu.matmul %182, %167, %cst_51 {dimension_numbers = #tpu.dot_dimension_numbers<[1], [0], [0], [1], [0, 0, 1, 1], [], []>} : vector<128x128xbf16>, vector<128x32xbf16>, vector<128x32xf32> -> vector<128x32xf32>
    %184 = tpu.concatenate %63, %87, %111, %135, %159, %183 in 1 : vector<128x32xf32>, vector<128x32xf32>, vector<128x32xf32>, vector<128x32xf32>, vector<128x32xf32>, vector<128x32xf32> -> vector<128x192xf32>
    %185 = arith.truncf %184 : vector<128x192xf32> to vector<128x192xbf16>
    %c0_52 = arith.constant 0 : index
    %c0_53 = arith.constant 0 : index
    %c0_54 = arith.constant 0 : index
    %186 = vector.load %arg8[%c0_52, %c0_53, %c0_54] : memref<1x192x192xbf16, #tpu.memory_space<vmem>>, vector<1x192x192xbf16>
    %187 = vector.shape_cast %186 : vector<1x192x192xbf16> to vector<192x192xbf16>
    %cst_55 = arith.constant dense<0.000000e+00> : vector<128x192xf32>
    %188 = tpu.matmul %185, %187, %cst_55 {dimension_numbers = #tpu.dot_dimension_numbers<[1], [0], [0], [1], [0, 0, 1, 1], [], []>} : vector<128x192xbf16>, vector<192x192xbf16>, vector<128x192xf32> -> vector<128x192xf32>
    %c0_56 = arith.constant 0 : index
    %c0_57 = arith.constant 0 : index
    %c0_58 = arith.constant 0 : index
    %189 = vector.load %arg9[%c0_56, %c0_57, %c0_58] : memref<1x1x192xf32, #tpu.memory_space<vmem>>, vector<1x1x192xf32>
    %190 = vector.shape_cast %189 : vector<1x1x192xf32> to vector<1x192xf32>
    %191 = vector.broadcast %190 : vector<1x192xf32> to vector<128x192xf32>
    %192 = arith.addf %188, %191 : vector<128x192xf32>
    %193 = arith.addf %3, %192 : vector<128x192xf32>
    %c0_59 = arith.constant 0 : index
    %c0_60 = arith.constant 0 : index
    %c0_61 = arith.constant 0 : index
    %194 = vector.load %arg10[%c0_59, %c0_60, %c0_61] : memref<1x1x192xf32, #tpu.memory_space<vmem>>, vector<1x1x192xf32>
    %195 = vector.shape_cast %194 : vector<1x1x192xf32> to vector<1x192xf32>
    %c0_62 = arith.constant 0 : index
    %c0_63 = arith.constant 0 : index
    %c0_64 = arith.constant 0 : index
    %196 = vector.load %arg11[%c0_62, %c0_63, %c0_64] : memref<1x1x192xf32, #tpu.memory_space<vmem>>, vector<1x1x192xf32>
    %197 = vector.shape_cast %196 : vector<1x1x192xf32> to vector<1x192xf32>
    %cst_65 = arith.constant dense<0.000000e+00> : vector<128xf32>
    %198 = vector.multi_reduction <add>, %193, %cst_65 [1] : vector<128x192xf32> to vector<128xf32>
    %199 = vector.shape_cast %198 : vector<128xf32> to vector<128x1xf32>
    %cst_66 = arith.constant 1.920000e+02 : f32
    %200 = vector.broadcast %cst_66 : f32 to vector<128x1xf32>
    %201 = arith.divf %199, %200 : vector<128x1xf32>
    %202 = vector.broadcast %201 : vector<128x1xf32> to vector<128x192xf32>
    %203 = arith.subf %193, %202 : vector<128x192xf32>
    %204 = arith.mulf %203, %203 : vector<128x192xf32>
    %cst_67 = arith.constant dense<0.000000e+00> : vector<128xf32>
    %205 = vector.multi_reduction <add>, %204, %cst_67 [1] : vector<128x192xf32> to vector<128xf32>
    %206 = vector.shape_cast %205 : vector<128xf32> to vector<128x1xf32>
    %cst_68 = arith.constant 1.920000e+02 : f32
    %207 = vector.broadcast %cst_68 : f32 to vector<128x1xf32>
    %208 = arith.divf %206, %207 : vector<128x1xf32>
    %209 = vector.broadcast %201 : vector<128x1xf32> to vector<128x192xf32>
    %210 = arith.subf %193, %209 : vector<128x192xf32>
    %cst_69 = arith.constant 9.99999974E-6 : f32
    %211 = vector.broadcast %cst_69 : f32 to vector<128x1xf32>
    %212 = arith.addf %208, %211 : vector<128x1xf32>
    %213 = math.rsqrt %212 : vector<128x1xf32>
    %214 = vector.broadcast %213 : vector<128x1xf32> to vector<128x192xf32>
    %215 = arith.mulf %210, %214 : vector<128x192xf32>
    %216 = vector.broadcast %195 : vector<1x192xf32> to vector<128x192xf32>
    %217 = arith.mulf %215, %216 : vector<128x192xf32>
    %218 = vector.broadcast %197 : vector<1x192xf32> to vector<128x192xf32>
    %219 = arith.addf %217, %218 : vector<128x192xf32>
    %220 = arith.truncf %219 : vector<128x192xf32> to vector<128x192xbf16>
    %c0_70 = arith.constant 0 : index
    %c0_71 = arith.constant 0 : index
    %c0_72 = arith.constant 0 : index
    %221 = vector.load %arg12[%c0_70, %c0_71, %c0_72] : memref<1x192x768xbf16, #tpu.memory_space<vmem>>, vector<1x192x768xbf16>
    %222 = vector.shape_cast %221 : vector<1x192x768xbf16> to vector<192x768xbf16>
    %cst_73 = arith.constant dense<0.000000e+00> : vector<128x768xf32>
    %223 = tpu.matmul %220, %222, %cst_73 {dimension_numbers = #tpu.dot_dimension_numbers<[1], [0], [0], [1], [0, 0, 1, 1], [], []>} : vector<128x192xbf16>, vector<192x768xbf16>, vector<128x768xf32> -> vector<128x768xf32>
    %c0_74 = arith.constant 0 : index
    %c0_75 = arith.constant 0 : index
    %c0_76 = arith.constant 0 : index
    %224 = vector.load %arg13[%c0_74, %c0_75, %c0_76] : memref<1x1x768xf32, #tpu.memory_space<vmem>>, vector<1x1x768xf32>
    %225 = vector.shape_cast %224 : vector<1x1x768xf32> to vector<1x768xf32>
    %226 = vector.broadcast %225 : vector<1x768xf32> to vector<128x768xf32>
    %227 = arith.addf %223, %226 : vector<128x768xf32>
    %cst_77 = arith.constant 5.000000e-01 : f32
    %228 = vector.broadcast %cst_77 : f32 to vector<128x768xf32>
    %229 = arith.mulf %228, %227 : vector<128x768xf32>
    %cst_78 = arith.constant 0.707106769 : f32
    %230 = vector.broadcast %cst_78 : f32 to vector<128x768xf32>
    %231 = arith.mulf %227, %230 : vector<128x768xf32>
    %232 = math.erf %231 : vector<128x768xf32>
    %cst_79 = arith.constant 1.000000e+00 : f32
    %233 = vector.broadcast %cst_79 : f32 to vector<128x768xf32>
    %234 = arith.addf %233, %232 : vector<128x768xf32>
    %235 = arith.mulf %229, %234 : vector<128x768xf32>
    %236 = arith.truncf %235 : vector<128x768xf32> to vector<128x768xbf16>
    %c0_80 = arith.constant 0 : index
    %c0_81 = arith.constant 0 : index
    %c0_82 = arith.constant 0 : index
    %237 = vector.load %arg14[%c0_80, %c0_81, %c0_82] : memref<1x768x192xbf16, #tpu.memory_space<vmem>>, vector<1x768x192xbf16>
    %238 = vector.shape_cast %237 : vector<1x768x192xbf16> to vector<768x192xbf16>
    %cst_83 = arith.constant dense<0.000000e+00> : vector<128x192xf32>
    %239 = tpu.matmul %236, %238, %cst_83 {dimension_numbers = #tpu.dot_dimension_numbers<[1], [0], [0], [1], [0, 0, 1, 1], [], []>} : vector<128x768xbf16>, vector<768x192xbf16>, vector<128x192xf32> -> vector<128x192xf32>
    %c0_84 = arith.constant 0 : index
    %c0_85 = arith.constant 0 : index
    %c0_86 = arith.constant 0 : index
    %240 = vector.load %arg15[%c0_84, %c0_85, %c0_86] : memref<1x1x192xf32, #tpu.memory_space<vmem>>, vector<1x1x192xf32>
    %241 = vector.shape_cast %240 : vector<1x1x192xf32> to vector<1x192xf32>
    %242 = vector.broadcast %241 : vector<1x192xf32> to vector<128x192xf32>
    %243 = arith.addf %239, %242 : vector<128x192xf32>
    %244 = arith.addf %193, %243 : vector<128x192xf32>
    %c0_87 = arith.constant 0 : index
    %c0_88 = arith.constant 0 : index
    %245 = vector.load %arg19[%c0_87, %c0_88] : memref<128x192xf32, #tpu.memory_space<vmem>>, vector<128x192xf32>
    tpu.vector_store %arg19[%c0_87, %c0_88], %244 {strides = array<i32>} : memref<128x192xf32, #tpu.memory_space<vmem>>, vector<128x192xf32>,
    %c11_i32 = arith.constant 11 : i32
    %246 = arith.cmpi eq, %arg1, %c11_i32 : i32
    %247 = arith.extui %246 : i1 to i32
    %c0_i32_89 = arith.constant 0 : i32
    %248 = arith.cmpi ne, %247, %c0_i32_89 : i32
    scf.if %248 {
      %249 = arith.truncf %244 : vector<128x192xf32> to vector<128x192xbf16>
      %c0_90 = arith.constant 0 : index
      %c0_91 = arith.constant 0 : index
      %250 = vector.load %arg16[%c0_90, %c0_91] : memref<192x128xbf16, #tpu.memory_space<vmem>>, vector<192x128xbf16>
      %cst_92 = arith.constant dense<0.000000e+00> : vector<128x128xf32>
      %251 = tpu.matmul %249, %250, %cst_92 {dimension_numbers = #tpu.dot_dimension_numbers<[1], [0], [0], [1], [0, 0, 1, 1], [], []>} : vector<128x192xbf16>, vector<192x128xbf16>, vector<128x128xf32> -> vector<128x128xf32>
      %c0_93 = arith.constant 0 : index
      %c0_94 = arith.constant 0 : index
      %252 = vector.load %arg17[%c0_93, %c0_94] : memref<1x128xf32, #tpu.memory_space<vmem>>, vector<1x128xf32>
      %253 = vector.broadcast %252 : vector<1x128xf32> to vector<128x128xf32>
      %254 = arith.addf %251, %253 : vector<128x128xf32>
      %c0_95 = arith.constant 0 : index
      %c0_96 = arith.constant 0 : index
      %c0_97 = arith.constant 0 : index
      %255 = vector.load %arg18[%c0_95, %c0_96, %c0_97] : memref<1x128x128xf32, #tpu.memory_space<vmem>>, vector<1x128x128xf32>
      %256 = vector.shape_cast %255 : vector<1x128x128xf32> to vector<128x128xf32>
      %257 = vector.shape_cast %254 : vector<128x128xf32> to vector<1x128x128xf32>
      tpu.vector_store %arg18[%c0_95, %c0_96, %c0_97], %257 {strides = array<i32>} : memref<1x128x128xf32, #tpu.memory_space<vmem>>, vector<1x128x128xf32>,
    } else {
    }
    return
  }
  func.func @transform_0(%arg0: i32, %arg1: i32) -> (i32, i32, i32) {
    %c0_i32 = arith.constant 0 : i32
    %c0_i32_0 = arith.constant 0 : i32
    %c0_i32_1 = arith.constant 0 : i32
    return %arg0, %c0_i32, %c0_i32_0 : i32, i32, i32
  }
  func.func @transform_1(%arg0: i32, %arg1: i32) -> (i32, i32, i32) {
    %c0_i32 = arith.constant 0 : i32
    %c0_i32_0 = arith.constant 0 : i32
    %c0_i32_1 = arith.constant 0 : i32
    return %arg0, %c0_i32, %c0_i32_0 : i32, i32, i32
  }
  func.func @transform_2(%arg0: i32, %arg1: i32) -> (i32, i32, i32) {
    %c0_i32 = arith.constant 0 : i32
    %c0_i32_0 = arith.constant 0 : i32
    %c0_i32_1 = arith.constant 0 : i32
    return %arg1, %c0_i32, %c0_i32_0 : i32, i32, i32
  }
  func.func @transform_3(%arg0: i32, %arg1: i32) -> (i32, i32, i32) {
    %c0_i32 = arith.constant 0 : i32
    %c0_i32_0 = arith.constant 0 : i32
    %c0_i32_1 = arith.constant 0 : i32
    return %arg1, %c0_i32, %c0_i32_0 : i32, i32, i32
  }
  func.func @transform_4(%arg0: i32, %arg1: i32) -> (i32, i32, i32) {
    %c0_i32 = arith.constant 0 : i32
    %c0_i32_0 = arith.constant 0 : i32
    %c0_i32_1 = arith.constant 0 : i32
    return %arg1, %c0_i32, %c0_i32_0 : i32, i32, i32
  }
  func.func @transform_5(%arg0: i32, %arg1: i32) -> (i32, i32, i32) {
    %c0_i32 = arith.constant 0 : i32
    %c0_i32_0 = arith.constant 0 : i32
    %c0_i32_1 = arith.constant 0 : i32
    return %arg1, %c0_i32, %c0_i32_0 : i32, i32, i32
  }
  func.func @transform_6(%arg0: i32, %arg1: i32) -> (i32, i32, i32) {
    %c0_i32 = arith.constant 0 : i32
    %c0_i32_0 = arith.constant 0 : i32
    %c0_i32_1 = arith.constant 0 : i32
    return %arg1, %c0_i32, %c0_i32_0 : i32, i32, i32
  }
  func.func @transform_7(%arg0: i32, %arg1: i32) -> (i32, i32, i32) {
    %c0_i32 = arith.constant 0 : i32
    %c0_i32_0 = arith.constant 0 : i32
    %c0_i32_1 = arith.constant 0 : i32
    return %arg1, %c0_i32, %c0_i32_0 : i32, i32, i32
  }
  func.func @transform_8(%arg0: i32, %arg1: i32) -> (i32, i32, i32) {
    %c0_i32 = arith.constant 0 : i32
    %c0_i32_0 = arith.constant 0 : i32
    %c0_i32_1 = arith.constant 0 : i32
    return %arg1, %c0_i32, %c0_i32_0 : i32, i32, i32
  }
  func.func @transform_9(%arg0: i32, %arg1: i32) -> (i32, i32, i32) {
    %c0_i32 = arith.constant 0 : i32
    %c0_i32_0 = arith.constant 0 : i32
    %c0_i32_1 = arith.constant 0 : i32
    return %arg1, %c0_i32, %c0_i32_0 : i32, i32, i32
  }
  func.func @transform_10(%arg0: i32, %arg1: i32) -> (i32, i32, i32) {
    %c0_i32 = arith.constant 0 : i32
    %c0_i32_0 = arith.constant 0 : i32
    %c0_i32_1 = arith.constant 0 : i32
    return %arg1, %c0_i32, %c0_i32_0 : i32, i32, i32
  }
  func.func @transform_11(%arg0: i32, %arg1: i32) -> (i32, i32, i32) {
    %c0_i32 = arith.constant 0 : i32
    %c0_i32_0 = arith.constant 0 : i32
    %c0_i32_1 = arith.constant 0 : i32
    return %arg1, %c0_i32, %c0_i32_0 : i32, i32, i32
  }
  func.func @transform_12(%arg0: i32, %arg1: i32) -> (i32, i32, i32) {
    %c0_i32 = arith.constant 0 : i32
    %c0_i32_0 = arith.constant 0 : i32
    %c0_i32_1 = arith.constant 0 : i32
    return %arg1, %c0_i32, %c0_i32_0 : i32, i32, i32
  }
  func.func @transform_13(%arg0: i32, %arg1: i32) -> (i32, i32, i32) {
    %c0_i32 = arith.constant 0 : i32
    %c0_i32_0 = arith.constant 0 : i32
    %c0_i32_1 = arith.constant 0 : i32
    return %arg1, %c0_i32, %c0_i32_0 : i32, i32, i32
  }
  func.func @transform_14(%arg0: i32, %arg1: i32) -> (i32, i32) {
    %c0_i32 = arith.constant 0 : i32
    %c0_i32_0 = arith.constant 0 : i32
    %c0_i32_1 = arith.constant 0 : i32
    return %c0_i32, %c0_i32_0 : i32, i32
  }
  func.func @transform_15(%arg0: i32, %arg1: i32) -> (i32, i32) {
    %c0_i32 = arith.constant 0 : i32
    %c0_i32_0 = arith.constant 0 : i32
    %c0_i32_1 = arith.constant 0 : i32
    return %c0_i32, %c0_i32_0 : i32, i32
  }
  func.func @transform_16(%arg0: i32, %arg1: i32) -> (i32, i32, i32) {
    %c0_i32 = arith.constant 0 : i32
    %c0_i32_0 = arith.constant 0 : i32
    %c0_i32_1 = arith.constant 0 : i32
    return %arg0, %c0_i32, %c0_i32_0 : i32, i32, i32
  }
}

</mosaic_0001>

<llo_original>
// kernel: tpu_custom_call.1
$region0: #{tpu_custom_call.1}
  #allocation0 [shape = 'u32[]', space=smem, size = 0x4, offset = 0x4, fixed_abs, tag = 'smem constant byte address 0x4 - core index']
  #allocation1 [shape = 'u32[144,128]{1,0:T(1,128)}', space=vmem, size = 0x12000, scoped, tag = 'internal scratch']
  #allocation2 [shape = 'f32[128,192]{1,0:T(8,128)}', space=vmem, size = 0x20000, scoped, tag = 'scratch operand']
  %s0 = inlined_call_operand.vmem [shape: f32[2,128,192], index: 0, kind: input, shape index: {}]
  %s1 = inlined_call_operand.vmem [shape: f32[2,1,128], index: 1, kind: input, shape index: {}]
  %s2 = inlined_call_operand.vmem [shape: f32[12,1,192], index: 2, kind: input, shape index: {}]
  %s3 = inlined_call_operand.vmem [shape: f32[12,1,192], index: 3, kind: input, shape index: {}]
  %s4 = inlined_call_operand.vmem [shape: bf16[12,192,576], index: 4, kind: input, shape index: {}]
  %s5 = inlined_call_operand.vmem [shape: f32[12,1,576], index: 5, kind: input, shape index: {}]
  %s6 = inlined_call_operand.vmem [shape: bf16[12,192,192], index: 6, kind: input, shape index: {}]
  %s7 = inlined_call_operand.vmem [shape: f32[12,1,192], index: 7, kind: input, shape index: {}]
  %s8 = inlined_call_operand.vmem [shape: f32[12,1,192], index: 8, kind: input, shape index: {}]
  %s9 = inlined_call_operand.vmem [shape: f32[12,1,192], index: 9, kind: input, shape index: {}]
  %s10 = inlined_call_operand.vmem [shape: bf16[12,192,768], index: 10, kind: input, shape index: {}]
  %s11 = inlined_call_operand.vmem [shape: f32[12,1,768], index: 11, kind: input, shape index: {}]
  %s12 = inlined_call_operand.vmem [shape: bf16[12,768,192], index: 12, kind: input, shape index: {}]
  %s13 = inlined_call_operand.vmem [shape: f32[12,1,192], index: 13, kind: input, shape index: {}]
  %s14 = inlined_call_operand.vmem [shape: bf16[192,128], index: 14, kind: input, shape index: {}]
  %s15 = inlined_call_operand.vmem [shape: f32[1,128], index: 15, kind: input, shape index: {}]
  %s16 = inlined_call_operand.hbm [shape: f32[2,128,128], index: 16, kind: output, shape index: {}]
  %s17 = sld [smem:[#allocation0]]
  $region105: #{tpu_custom_call.1} parent=0
    _
  %s19 = ssub.s32 1, %s17
  %s20 = scalar_select 0, %s19, %s17
  $region1: #{tpu_custom_call.1} parent=0
    #allocation3 [shape = 'u8[131072]{0}', space=vmem, size = 0x20000, scoped, tag = 'output window, operand 0']
    #allocation4 [shape = 's32[2]{0}', space=sflag, size = 0x8, scoped, tag = 'scoped memory for tpu_custom_call.1']
    %21 = vsyncpa [#allocation4], 0
    %s22 = scalar_lea.sflag [#allocation4], 1
    %23 = vsyncpa %s22, 0
    loop: start=0, step=1, limit=26
    $region2: #{tpu_custom_call.1} parent=1 // loop_pre_header
      _
    $region3: #{tpu_custom_call.1} parent=1 // loop_header
      %s25 = sphi 0, %s29
      %p26 = scmp.ge.s32.totalorder %s25, 26
      %s32 = sphi 0, %s44
      %s33 = sphi 0, %s40
      %s34 = sphi 0, %s32
      %s35 = sphi 0, %s33
      %s36 = sphi 0, %s34
      %s37 = sphi 0, %s35
      %s47 = sphi 0, %s49
      %s50 = sphi 0, %s47
      %s51 = sphi 0, %s50
      %s67 = sphi 0, %s51
      %s73 = sphi 0, %s75
      %s76 = sphi 0, %s73
      %s77 = sphi 0, %s76
      %s93 = sphi 0, %s77
      %s99 = sphi 0, %s101
      %s102 = sphi 0, %s99
      %s103 = sphi 0, %s102
      %s119 = sphi 0, %s103
      %s125 = sphi 0, %s127
      %s128 = sphi 0, %s125
      %s129 = sphi 0, %s128
      %s145 = sphi 0, %s129
      %s151 = sphi 0, %s153
      %s154 = sphi 0, %s151
      %s155 = sphi 0, %s154
      %s171 = sphi 0, %s155
      %s177 = sphi 0, %s179
      %s180 = sphi 0, %s177
      %s181 = sphi 0, %s180
      %s197 = sphi 0, %s181
      %s203 = sphi 0, %s205
      %s206 = sphi 0, %s203
      %s207 = sphi 0, %s206
      %s223 = sphi 0, %s207
      %s229 = sphi 0, %s231
      %s232 = sphi 0, %s229
      %s233 = sphi 0, %s232
      %s249 = sphi 0, %s233
      %s255 = sphi 0, %s257
      %s258 = sphi 0, %s255
      %s259 = sphi 0, %s258
      %s275 = sphi 0, %s259
      %s281 = sphi 0, %s283
      %s284 = sphi 0, %s281
      %s285 = sphi 0, %s284
      %s301 = sphi 0, %s285
      %s307 = sphi 0, %s309
      %s310 = sphi 0, %s307
      %s311 = sphi 0, %s310
      %s327 = sphi 0, %s311
      %s333 = sphi 0, %s335
      %s336 = sphi 0, %s333
      %s337 = sphi 0, %s336
      %s353 = sphi 0, %s337
      %s359 = sphi 0, %s361
      %s362 = sphi 0, %s359
      %s363 = sphi 0, %s362
      %s379 = sphi 0, %s363
      %s385 = sphi 0, %s387
      %s388 = sphi 0, %s385
      %s389 = sphi 0, %s388
      %s405 = sphi 0, %s389
      %s409 = sphi 0, %s409
      %s411 = sphi 0, %s409
      %s412 = sphi 0, %s411
      %s426 = sphi 0, %s412
      %s430 = sphi 0, %s430
      %s432 = sphi 0, %s430
      %s433 = sphi 0, %s432
      %s447 = sphi 0, %s433
      %s453 = sphi 0, %s455
      %s456 = sphi 0, %s453
      %s457 = sphi 0, %s456
      %s473 = sphi 0, %s457
    $region4: #{tpu_custom_call.1} parent=1 // loop_header_branch
      %28 = sbr.rel (%p26) target = $region8
    $region5: #{tpu_custom_call.1} parent=1 // loop_body
      %s30 = ssub.s32 %s25, 1
      %s31 = ssub.s32 %s25, 2
      %s38 = sadd.s32 1, %s33
      %p39 = scmp.ge.s32.totalorder %s38, 12
      %s40 = scalar_select %p39, 0, %s38
      %s41 = sadd.s32 1, %s32
      %s42 = scalar_select %p39, %s41, %s32
      %p43 = scmp.ge.s32.totalorder %s42, 2
      %s44 = scalar_select %p43, 0, %s42
      %s45 = ssub.s32 %s32, %s44
      %p46 = scmp.eq.s32.totalorder %s45, 0
      %s48 = sadd.s32 %s47, 1
      %s49 = scalar_select %p46, %s47, %s48
      %p52 = pneg %p46
      %p53 = scmp.eq.s32.totalorder %s25, 23
      %p54 = por %p52, %p53
      %p55 = scmp.ne.s32.totalorder %s47, %s50
      %p56 = scmp.eq.s32.totalorder %s25, 0
      %p57 = por %p55, %p56
      %p58 = scmp.ne.s32.totalorder %s47, %s50
      %p59 = scmp.eq.s32.totalorder %s30, 23
      %p60 = por %p58, %p59
      %p61 = scmp.ne.s32.totalorder %s50, %s51
      %p62 = scmp.eq.s32.totalorder %s30, 0
      %p63 = por %p61, %p62
      %p64 = scmp.ne.s32.totalorder %s50, %s51
      %p65 = scmp.eq.s32.totalorder %s31, 23
      %p66 = por %p64, %p65
      %p68 = scmp.ne.s32.totalorder %s51, %s67
      %p69 = scmp.eq.s32.totalorder %s31, 0
      %p70 = por %p68, %p69
      %s71 = ssub.s32 %s32, %s44
      %p72 = scmp.eq.s32.totalorder %s71, 0
      %s74 = sadd.s32 %s73, 1
      %s75 = scalar_select %p72, %s73, %s74
      %p78 = pneg %p72
      %p79 = scmp.eq.s32.totalorder %s25, 23
      %p80 = por %p78, %p79
      %p81 = scmp.ne.s32.totalorder %s73, %s76
      %p82 = scmp.eq.s32.totalorder %s25, 0
      %p83 = por %p81, %p82
      %p84 = scmp.ne.s32.totalorder %s73, %s76
      %p85 = scmp.eq.s32.totalorder %s30, 23
      %p86 = por %p84, %p85
      %p87 = scmp.ne.s32.totalorder %s76, %s77
      %p88 = scmp.eq.s32.totalorder %s30, 0
      %p89 = por %p87, %p88
      %p90 = scmp.ne.s32.totalorder %s76, %s77
      %p91 = scmp.eq.s32.totalorder %s31, 23
      %p92 = por %p90, %p91
      %p94 = scmp.ne.s32.totalorder %s77, %s93
      %p95 = scmp.eq.s32.totalorder %s31, 0
      %p96 = por %p94, %p95
      %s97 = ssub.s32 %s33, %s40
      %p98 = scmp.eq.s32.totalorder %s97, 0
      %s100 = sadd.s32 %s99, 1
      %s101 = scalar_select %p98, %s99, %s100
      %p104 = pneg %p98
      %p105 = scmp.eq.s32.totalorder %s25, 23
      %p106 = por %p104, %p105
      %p107 = scmp.ne.s32.totalorder %s99, %s102
      %p108 = scmp.eq.s32.totalorder %s25, 0
      %p109 = por %p107, %p108
      %p110 = scmp.ne.s32.totalorder %s99, %s102
      %p111 = scmp.eq.s32.totalorder %s30, 23
      %p112 = por %p110, %p111
      %p113 = scmp.ne.s32.totalorder %s102, %s103
      %p114 = scmp.eq.s32.totalorder %s30, 0
      %p115 = por %p113, %p114
      %p116 = scmp.ne.s32.totalorder %s102, %s103
      %p117 = scmp.eq.s32.totalorder %s31, 23
      %p118 = por %p116, %p117
      %p120 = scmp.ne.s32.totalorder %s103, %s119
      %p121 = scmp.eq.s32.totalorder %s31, 0
      %p122 = por %p120, %p121
      %s123 = ssub.s32 %s33, %s40
      %p124 = scmp.eq.s32.totalorder %s123, 0
      %s126 = sadd.s32 %s125, 1
      %s127 = scalar_select %p124, %s125, %s126
      %p130 = pneg %p124
      %p131 = scmp.eq.s32.totalorder %s25, 23
      %p132 = por %p130, %p131
      %p133 = scmp.ne.s32.totalorder %s125, %s128
      %p134 = scmp.eq.s32.totalorder %s25, 0
      %p135 = por %p133, %p134
      %p136 = scmp.ne.s32.totalorder %s125, %s128
      %p137 = scmp.eq.s32.totalorder %s30, 23
      %p138 = por %p136, %p137
      %p139 = scmp.ne.s32.totalorder %s128, %s129
      %p140 = scmp.eq.s32.totalorder %s30, 0
      %p141 = por %p139, %p140
      %p142 = scmp.ne.s32.totalorder %s128, %s129
      %p143 = scmp.eq.s32.totalorder %s31, 23
      %p144 = por %p142, %p143
      %p146 = scmp.ne.s32.totalorder %s129, %s145
      %p147 = scmp.eq.s32.totalorder %s31, 0
      %p148 = por %p146, %p147
      %s149 = ssub.s32 %s33, %s40
      %p150 = scmp.eq.s32.totalorder %s149, 0
      %s152 = sadd.s32 %s151, 1
      %s153 = scalar_select %p150, %s151, %s152
      %p156 = pneg %p150
      %p157 = scmp.eq.s32.totalorder %s25, 23
      %p158 = por %p156, %p157
      %p159 = scmp.ne.s32.totalorder %s151, %s154
      %p160 = scmp.eq.s32.totalorder %s25, 0
      %p161 = por %p159, %p160
      %p162 = scmp.ne.s32.totalorder %s151, %s154
      %p163 = scmp.eq.s32.totalorder %s30, 23
      %p164 = por %p162, %p163
      %p165 = scmp.ne.s32.totalorder %s154, %s155
      %p166 = scmp.eq.s32.totalorder %s30, 0
      %p167 = por %p165, %p166
      %p168 = scmp.ne.s32.totalorder %s154, %s155
      %p169 = scmp.eq.s32.totalorder %s31, 23
      %p170 = por %p168, %p169
      %p172 = scmp.ne.s32.totalorder %s155, %s171
      %p173 = scmp.eq.s32.totalorder %s31, 0
      %p174 = por %p172, %p173
      %s175 = ssub.s32 %s33, %s40
      %p176 = scmp.eq.s32.totalorder %s175, 0
      %s178 = sadd.s32 %s177, 1
      %s179 = scalar_select %p176, %s177, %s178
      %p182 = pneg %p176
      %p183 = scmp.eq.s32.totalorder %s25, 23
      %p184 = por %p182, %p183
      %p185 = scmp.ne.s32.totalorder %s177, %s180
      %p186 = scmp.eq.s32.totalorder %s25, 0
      %p187 = por %p185, %p186
      %p188 = scmp.ne.s32.totalorder %s177, %s180
      %p189 = scmp.eq.s32.totalorder %s30, 23
      %p190 = por %p188, %p189
      %p191 = scmp.ne.s32.totalorder %s180, %s181
      %p192 = scmp.eq.s32.totalorder %s30, 0
      %p193 = por %p191, %p192
      %p194 = scmp.ne.s32.totalorder %s180, %s181
      %p195 = scmp.eq.s32.totalorder %s31, 23
      %p196 = por %p194, %p195
      %p198 = scmp.ne.s32.totalorder %s181, %s197
      %p199 = scmp.eq.s32.totalorder %s31, 0
      %p200 = por %p198, %p199
      %s201 = ssub.s32 %s33, %s40
      %p202 = scmp.eq.s32.totalorder %s201, 0
      %s204 = sadd.s32 %s203, 1
      %s205 = scalar_select %p202, %s203, %s204
      %p208 = pneg %p202
      %p209 = scmp.eq.s32.totalorder %s25, 23
      %p210 = por %p208, %p209
      %p211 = scmp.ne.s32.totalorder %s203, %s206
      %p212 = scmp.eq.s32.totalorder %s25, 0
      %p213 = por %p211, %p212
      %p214 = scmp.ne.s32.totalorder %s203, %s206
      %p215 = scmp.eq.s32.totalorder %s30, 23
      %p216 = por %p214, %p215
      %p217 = scmp.ne.s32.totalorder %s206, %s207
      %p218 = scmp.eq.s32.totalorder %s30, 0
      %p219 = por %p217, %p218
      %p220 = scmp.ne.s32.totalorder %s206, %s207
      %p221 = scmp.eq.s32.totalorder %s31, 23
      %p222 = por %p220, %p221
      %p224 = scmp.ne.s32.totalorder %s207, %s223
      %p225 = scmp.eq.s32.totalorder %s31, 0
      %p226 = por %p224, %p225
      %s227 = ssub.s32 %s33, %s40
      %p228 = scmp.eq.s32.totalorder %s227, 0
      %s230 = sadd.s32 %s229, 1
      %s231 = scalar_select %p228, %s229, %s230
      %p234 = pneg %p228
      %p235 = scmp.eq.s32.totalorder %s25, 23
      %p236 = por %p234, %p235
      %p237 = scmp.ne.s32.totalorder %s229, %s232
      %p238 = scmp.eq.s32.totalorder %s25, 0
      %p239 = por %p237, %p238
      %p240 = scmp.ne.s32.totalorder %s229, %s232
      %p241 = scmp.eq.s32.totalorder %s30, 23
      %p242 = por %p240, %p241
      %p243 = scmp.ne.s32.totalorder %s232, %s233
      %p244 = scmp.eq.s32.totalorder %s30, 0
      %p245 = por %p243, %p244
      %p246 = scmp.ne.s32.totalorder %s232, %s233
      %p247 = scmp.eq.s32.totalorder %s31, 23
      %p248 = por %p246, %p247
      %p250 = scmp.ne.s32.totalorder %s233, %s249
      %p251 = scmp.eq.s32.totalorder %s31, 0
      %p252 = por %p250, %p251
      %s253 = ssub.s32 %s33, %s40
      %p254 = scmp.eq.s32.totalorder %s253, 0
      %s256 = sadd.s32 %s255, 1
      %s257 = scalar_select %p254, %s255, %s256
      %p260 = pneg %p254
      %p261 = scmp.eq.s32.totalorder %s25, 23
      %p262 = por %p260, %p261
      %p263 = scmp.ne.s32.totalorder %s255, %s258
      %p264 = scmp.eq.s32.totalorder %s25, 0
      %p265 = por %p263, %p264
      %p266 = scmp.ne.s32.totalorder %s255, %s258
      %p267 = scmp.eq.s32.totalorder %s30, 23
      %p268 = por %p266, %p267
      %p269 = scmp.ne.s32.totalorder %s258, %s259
      %p270 = scmp.eq.s32.totalorder %s30, 0
      %p271 = por %p269, %p270
      %p272 = scmp.ne.s32.totalorder %s258, %s259
      %p273 = scmp.eq.s32.totalorder %s31, 23
      %p274 = por %p272, %p273
      %p276 = scmp.ne.s32.totalorder %s259, %s275
      %p277 = scmp.eq.s32.totalorder %s31, 0
      %p278 = por %p276, %p277
      %s279 = ssub.s32 %s33, %s40
      %p280 = scmp.eq.s32.totalorder %s279, 0
      %s282 = sadd.s32 %s281, 1
      %s283 = scalar_select %p280, %s281, %s282
      %p286 = pneg %p280
      %p287 = scmp.eq.s32.totalorder %s25, 23
      %p288 = por %p286, %p287
      %p289 = scmp.ne.s32.totalorder %s281, %s284
      %p290 = scmp.eq.s32.totalorder %s25, 0
      %p291 = por %p289, %p290
      %p292 = scmp.ne.s32.totalorder %s281, %s284
      %p293 = scmp.eq.s32.totalorder %s30, 23
      %p294 = por %p292, %p293
      %p295 = scmp.ne.s32.totalorder %s284, %s285
      %p296 = scmp.eq.s32.totalorder %s30, 0
      %p297 = por %p295, %p296
      %p298 = scmp.ne.s32.totalorder %s284, %s285
      %p299 = scmp.eq.s32.totalorder %s31, 23
      %p300 = por %p298, %p299
      %p302 = scmp.ne.s32.totalorder %s285, %s301
      %p303 = scmp.eq.s32.totalorder %s31, 0
      %p304 = por %p302, %p303
      %s305 = ssub.s32 %s33, %s40
      %p306 = scmp.eq.s32.totalorder %s305, 0
      %s308 = sadd.s32 %s307, 1
      %s309 = scalar_select %p306, %s307, %s308
      %p312 = pneg %p306
      %p313 = scmp.eq.s32.totalorder %s25, 23
      %p314 = por %p312, %p313
      %p315 = scmp.ne.s32.totalorder %s307, %s310
      %p316 = scmp.eq.s32.totalorder %s25, 0
      %p317 = por %p315, %p316
      %p318 = scmp.ne.s32.totalorder %s307, %s310
      %p319 = scmp.eq.s32.totalorder %s30, 23
      %p320 = por %p318, %p319
      %p321 = scmp.ne.s32.totalorder %s310, %s311
      %p322 = scmp.eq.s32.totalorder %s30, 0
      %p323 = por %p321, %p322
      %p324 = scmp.ne.s32.totalorder %s310, %s311
      %p325 = scmp.eq.s32.totalorder %s31, 23
      %p326 = por %p324, %p325
      %p328 = scmp.ne.s32.totalorder %s311, %s327
      %p329 = scmp.eq.s32.totalorder %s31, 0
      %p330 = por %p328, %p329
      %s331 = ssub.s32 %s33, %s40
      %p332 = scmp.eq.s32.totalorder %s331, 0
      %s334 = sadd.s32 %s333, 1
      %s335 = scalar_select %p332, %s333, %s334
      %p338 = pneg %p332
      %p339 = scmp.eq.s32.totalorder %s25, 23
      %p340 = por %p338, %p339
      %p341 = scmp.ne.s32.totalorder %s333, %s336
      %p342 = scmp.eq.s32.totalorder %s25, 0
      %p343 = por %p341, %p342
      %p344 = scmp.ne.s32.totalorder %s333, %s336
      %p345 = scmp.eq.s32.totalorder %s30, 23
      %p346 = por %p344, %p345
      %p347 = scmp.ne.s32.totalorder %s336, %s337
      %p348 = scmp.eq.s32.totalorder %s30, 0
      %p349 = por %p347, %p348
      %p350 = scmp.ne.s32.totalorder %s336, %s337
      %p351 = scmp.eq.s32.totalorder %s31, 23
      %p352 = por %p350, %p351
      %p354 = scmp.ne.s32.totalorder %s337, %s353
      %p355 = scmp.eq.s32.totalorder %s31, 0
      %p356 = por %p354, %p355
      %s357 = ssub.s32 %s33, %s40
      %p358 = scmp.eq.s32.totalorder %s357, 0
      %s360 = sadd.s32 %s359, 1
      %s361 = scalar_select %p358, %s359, %s360
      %p364 = pneg %p358
      %p365 = scmp.eq.s32.totalorder %s25, 23
      %p366 = por %p364, %p365
      %p367 = scmp.ne.s32.totalorder %s359, %s362
      %p368 = scmp.eq.s32.totalorder %s25, 0
      %p369 = por %p367, %p368
      %p370 = scmp.ne.s32.totalorder %s359, %s362
      %p371 = scmp.eq.s32.totalorder %s30, 23
      %p372 = por %p370, %p371
      %p373 = scmp.ne.s32.totalorder %s362, %s363
      %p374 = scmp.eq.s32.totalorder %s30, 0
      %p375 = por %p373, %p374
      %p376 = scmp.ne.s32.totalorder %s362, %s363
      %p377 = scmp.eq.s32.totalorder %s31, 23
      %p378 = por %p376, %p377
      %p380 = scmp.ne.s32.totalorder %s363, %s379
      %p381 = scmp.eq.s32.totalorder %s31, 0
      %p382 = por %p380, %p381
      %s383 = ssub.s32 %s33, %s40
      %p384 = scmp.eq.s32.totalorder %s383, 0
      %s386 = sadd.s32 %s385, 1
      %s387 = scalar_select %p384, %s385, %s386
      %p390 = pneg %p384
      %p391 = scmp.eq.s32.totalorder %s25, 23
      %p392 = por %p390, %p391
      %p393 = scmp.ne.s32.totalorder %s385, %s388
      %p394 = scmp.eq.s32.totalorder %s25, 0
      %p395 = por %p393, %p394
      %p396 = scmp.ne.s32.totalorder %s385, %s388
      %p397 = scmp.eq.s32.totalorder %s30, 23
      %p398 = por %p396, %p397
      %p399 = scmp.ne.s32.totalorder %s388, %s389
      %p400 = scmp.eq.s32.totalorder %s30, 0
      %p401 = por %p399, %p400
      %p402 = scmp.ne.s32.totalorder %s388, %s389
      %p403 = scmp.eq.s32.totalorder %s31, 23
      %p404 = por %p402, %p403
      %p406 = scmp.ne.s32.totalorder %s389, %s405
      %p407 = scmp.eq.s32.totalorder %s31, 0
      %p408 = por %p406, %p407
      %s410 = sadd.s32 %s409, 1
      %p413 = scmp.eq.s32.totalorder %s25, 23
      %p414 = scmp.ne.s32.totalorder %s409, %s411
      %p415 = scmp.eq.s32.totalorder %s25, 0
      %p416 = por %p414, %p415
      %p417 = scmp.ne.s32.totalorder %s409, %s411
      %p418 = scmp.eq.s32.totalorder %s30, 23
      %p419 = por %p417, %p418
      %p420 = scmp.ne.s32.totalorder %s411, %s412
      %p421 = scmp.eq.s32.totalorder %s30, 0
      %p422 = por %p420, %p421
      %p423 = scmp.ne.s32.totalorder %s411, %s412
      %p424 = scmp.eq.s32.totalorder %s31, 23
      %p425 = por %p423, %p424
      %p427 = scmp.ne.s32.totalorder %s412, %s426
      %p428 = scmp.eq.s32.totalorder %s31, 0
      %p429 = por %p427, %p428
      %s431 = sadd.s32 %s430, 1
      %p434 = scmp.eq.s32.totalorder %s25, 23
      %p435 = scmp.ne.s32.totalorder %s430, %s432
      %p436 = scmp.eq.s32.totalorder %s25, 0
      %p437 = por %p435, %p436
      %p438 = scmp.ne.s32.totalorder %s430, %s432
      %p439 = scmp.eq.s32.totalorder %s30, 23
      %p440 = por %p438, %p439
      %p441 = scmp.ne.s32.totalorder %s432, %s433
      %p442 = scmp.eq.s32.totalorder %s30, 0
      %p443 = por %p441, %p442
      %p444 = scmp.ne.s32.totalorder %s432, %s433
      %p445 = scmp.eq.s32.totalorder %s31, 23
      %p446 = por %p444, %p445
      %p448 = scmp.ne.s32.totalorder %s433, %s447
      %p449 = scmp.eq.s32.totalorder %s31, 0
      %p450 = por %p448, %p449
      %s451 = ssub.s32 %s32, %s44
      %p452 = scmp.eq.s32.totalorder %s451, 0
      %s454 = sadd.s32 %s453, 1
      %s455 = scalar_select %p452, %s453, %s454
      %p458 = pneg %p452
      %p459 = scmp.eq.s32.totalorder %s25, 23
      %p460 = por %p458, %p459
      %p461 = scmp.ne.s32.totalorder %s453, %s456
      %p462 = scmp.eq.s32.totalorder %s25, 0
      %p463 = por %p461, %p462
      %p464 = scmp.ne.s32.totalorder %s453, %s456
      %p465 = scmp.eq.s32.totalorder %s30, 23
      %p466 = por %p464, %p465
      %p467 = scmp.ne.s32.totalorder %s456, %s457
      %p468 = scmp.eq.s32.totalorder %s30, 0
      %p469 = por %p467, %p468
      %p470 = scmp.ne.s32.totalorder %s456, %s457
      %p471 = scmp.eq.s32.totalorder %s31, 23
      %p472 = por %p470, %p471
      %p474 = scmp.ne.s32.totalorder %s457, %s473
      %p475 = scmp.eq.s32.totalorder %s31, 0
      %p476 = por %p474, %p475
      %p477 = scmp.le.s32.totalorder 1, %s25
      %p478 = scmp.lt.s32.totalorder %s25, 25
      %p479 = pnand %p477, %p478
      %p480 = pneg %p479
      // Predicated region
      $region9: #{tpu_custom_call.1} parent=5 // pred_check
        _
      $region10: #{tpu_custom_call.1} parent=5 // pred_check_branch
        %482 = sbr.rel (%p479) target = $region12
      $region11: #{tpu_custom_call.1} parent=5 // pred_region
        %s483 = ssub.s32 %s25, 1
        // Predicated region
        $region13: #{tpu_custom_call.1} parent=11 // pred_check
          %p484 = pneg %p422
        $region14: #{tpu_custom_call.1} parent=11 // pred_check_branch
          %486 = sbr.rel (%p484) target = $region16
        $region15: #{tpu_custom_call.1} parent=11 // pred_region
          _
        $region16: #{tpu_custom_call.1} parent=11 // pred_fallthru
          _
        // Predicated region
        $region17: #{tpu_custom_call.1} parent=11 // pred_check
          %p487 = pneg %p443
        $region18: #{tpu_custom_call.1} parent=11 // pred_check_branch
          %489 = sbr.rel (%p487) target = $region20
        $region19: #{tpu_custom_call.1} parent=11 // pred_region
          _
        $region20: #{tpu_custom_call.1} parent=11 // pred_fallthru
          _
      $region12: #{tpu_custom_call.1} parent=5 // pred_fallthru
        _
      %p490 = scmp.lt.s32.totalorder %s25, 24
      // Predicated region
      $region21: #{tpu_custom_call.1} parent=5 // pred_check
        %p491 = pneg %p490
      $region22: #{tpu_custom_call.1} parent=5 // pred_check_branch
        %493 = sbr.rel (%p491) target = $region24
      $region23: #{tpu_custom_call.1} parent=5 // pred_region
        // Predicated region
        $region25: #{tpu_custom_call.1} parent=23 // pred_check
          %p494 = pneg %p57
        $region26: #{tpu_custom_call.1} parent=23 // pred_check_branch
          %496 = sbr.rel (%p494) target = $region28
        $region27: #{tpu_custom_call.1} parent=23 // pred_region
          %p497 = scmp.lt.s32.totalorder %s32, 1
          %s498 = scalar_select %p497, %s32, 1
          %s499 = smul.addr %s498, 32
          %s500 = smul.addr %s499, 8
          %s501 = scalar_lea.vmem %s0, %s500
        $region28: #{tpu_custom_call.1} parent=23 // pred_fallthru
          _
        // Predicated region
        $region29: #{tpu_custom_call.1} parent=23 // pred_check
          %p502 = pneg %p83
        $region30: #{tpu_custom_call.1} parent=23 // pred_check_branch
          %504 = sbr.rel (%p502) target = $region32
        $region31: #{tpu_custom_call.1} parent=23 // pred_region
          %p505 = scmp.lt.s32.totalorder %s32, 1
          %s506 = scalar_select %p505, %s32, 1
          %s507 = scalar_lea.vmem %s1, %s506
        $region32: #{tpu_custom_call.1} parent=23 // pred_fallthru
          _
        // Predicated region
        $region33: #{tpu_custom_call.1} parent=23 // pred_check
          %p508 = pneg %p109
        $region34: #{tpu_custom_call.1} parent=23 // pred_check_branch
          %510 = sbr.rel (%p508) target = $region36
        $region35: #{tpu_custom_call.1} parent=23 // pred_region
          %p511 = scmp.lt.s32.totalorder %s33, 11
          %s512 = scalar_select %p511, %s33, 11
          %s513 = smul.addr %s512, 2
          %s514 = scalar_lea.vmem %s2, %s513
        $region36: #{tpu_custom_call.1} parent=23 // pred_fallthru
          _
        // Predicated region
        $region37: #{tpu_custom_call.1} parent=23 // pred_check
          %p515 = pneg %p135
        $region38: #{tpu_custom_call.1} parent=23 // pred_check_branch
          %517 = sbr.rel (%p515) target = $region40
        $region39: #{tpu_custom_call.1} parent=23 // pred_region
          %p518 = scmp.lt.s32.totalorder %s33, 11
          %s519 = scalar_select %p518, %s33, 11
          %s520 = smul.addr %s519, 2
          %s521 = scalar_lea.vmem %s3, %s520
        $region40: #{tpu_custom_call.1} parent=23 // pred_fallthru
          _
        // Predicated region
        $region41: #{tpu_custom_call.1} parent=23 // pred_check
          %p522 = pneg %p161
        $region42: #{tpu_custom_call.1} parent=23 // pred_check_branch
          %524 = sbr.rel (%p522) target = $region44
        $region43: #{tpu_custom_call.1} parent=23 // pred_region
          %p525 = scmp.lt.s32.totalorder %s33, 11
          %s526 = scalar_select %p525, %s33, 11
          %s527 = smul.addr %s526, 120
          %s528 = smul.addr %s527, 4
          %s529 = scalar_lea.vmem %s4, %s528
        $region44: #{tpu_custom_call.1} parent=23 // pred_fallthru
          _
        // Predicated region
        $region45: #{tpu_custom_call.1} parent=23 // pred_check
          %p530 = pneg %p187
        $region46: #{tpu_custom_call.1} parent=23 // pred_check_branch
          %532 = sbr.rel (%p530) target = $region48
        $region47: #{tpu_custom_call.1} parent=23 // pred_region
          %p533 = scmp.lt.s32.totalorder %s33, 11
          %s534 = scalar_select %p533, %s33, 11
          %s535 = smul.addr %s534, 5
          %s536 = scalar_lea.vmem %s5, %s535
        $region48: #{tpu_custom_call.1} parent=23 // pred_fallthru
          _
        // Predicated region
        $region49: #{tpu_custom_call.1} parent=23 // pred_check
          %p537 = pneg %p213
        $region50: #{tpu_custom_call.1} parent=23 // pred_check_branch
          %539 = sbr.rel (%p537) target = $region52
        $region51: #{tpu_custom_call.1} parent=23 // pred_region
          %p540 = scmp.lt.s32.totalorder %s33, 11
          %s541 = scalar_select %p540, %s33, 11
          %s542 = smul.addr %s541, 48
          %s543 = smul.addr %s542, 4
          %s544 = scalar_lea.vmem %s6, %s543
        $region52: #{tpu_custom_call.1} parent=23 // pred_fallthru
          _
        // Predicated region
        $region53: #{tpu_custom_call.1} parent=23 // pred_check
          %p545 = pneg %p239
        $region54: #{tpu_custom_call.1} parent=23 // pred_check_branch
          %547 = sbr.rel (%p545) target = $region56
        $region55: #{tpu_custom_call.1} parent=23 // pred_region
          %p548 = scmp.lt.s32.totalorder %s33, 11
          %s549 = scalar_select %p548, %s33, 11
          %s550 = smul.addr %s549, 2
          %s551 = scalar_lea.vmem %s7, %s550
        $region56: #{tpu_custom_call.1} parent=23 // pred_fallthru
          _
        // Predicated region
        $region57: #{tpu_custom_call.1} parent=23 // pred_check
          %p552 = pneg %p265
        $region58: #{tpu_custom_call.1} parent=23 // pred_check_branch
          %554 = sbr.rel (%p552) target = $region60
        $region59: #{tpu_custom_call.1} parent=23 // pred_region
          %p555 = scmp.lt.s32.totalorder %s33, 11
          %s556 = scalar_select %p555, %s33, 11
          %s557 = smul.addr %s556, 2
          %s558 = scalar_lea.vmem %s8, %s557
        $region60: #{tpu_custom_call.1} parent=23 // pred_fallthru
          _
        // Predicated region
        $region61: #{tpu_custom_call.1} parent=23 // pred_check
          %p559 = pneg %p291
        $region62: #{tpu_custom_call.1} parent=23 // pred_check_branch
          %561 = sbr.rel (%p559) target = $region64
        $region63: #{tpu_custom_call.1} parent=23 // pred_region
          %p562 = scmp.lt.s32.totalorder %s33, 11
          %s563 = scalar_select %p562, %s33, 11
          %s564 = smul.addr %s563, 2
          %s565 = scalar_lea.vmem %s9, %s564
        $region64: #{tpu_custom_call.1} parent=23 // pred_fallthru
          _
        // Predicated region
        $region65: #{tpu_custom_call.1} parent=23 // pred_check
          %p566 = pneg %p317
        $region66: #{tpu_custom_call.1} parent=23 // pred_check_branch
          %568 = sbr.rel (%p566) target = $region68
        $region67: #{tpu_custom_call.1} parent=23 // pred_region
          %p569 = scmp.lt.s32.totalorder %s33, 11
          %s570 = scalar_select %p569, %s33, 11
          %s571 = smul.addr %s570, 144
          %s572 = smul.addr %s571, 4
          %s573 = scalar_lea.vmem %s10, %s572
        $region68: #{tpu_custom_call.1} parent=23 // pred_fallthru
          _
        // Predicated region
        $region69: #{tpu_custom_call.1} parent=23 // pred_check
          %p574 = pneg %p343
        $region70: #{tpu_custom_call.1} parent=23 // pred_check_branch
          %576 = sbr.rel (%p574) target = $region72
        $region71: #{tpu_custom_call.1} parent=23 // pred_region
          %p577 = scmp.lt.s32.totalorder %s33, 11
          %s578 = scalar_select %p577, %s33, 11
          %s579 = smul.addr %s578, 6
          %s580 = scalar_lea.vmem %s11, %s579
        $region72: #{tpu_custom_call.1} parent=23 // pred_fallthru
          _
        // Predicated region
        $region73: #{tpu_custom_call.1} parent=23 // pred_check
          %p581 = pneg %p369
        $region74: #{tpu_custom_call.1} parent=23 // pred_check_branch
          %583 = sbr.rel (%p581) target = $region76
        $region75: #{tpu_custom_call.1} parent=23 // pred_region
          %p584 = scmp.lt.s32.totalorder %s33, 11
          %s585 = scalar_select %p584, %s33, 11
          %s586 = smul.addr %s585, 192
          %s587 = smul.addr %s586, 4
          %s588 = scalar_lea.vmem %s12, %s587
        $region76: #{tpu_custom_call.1} parent=23 // pred_fallthru
          _
        // Predicated region
        $region77: #{tpu_custom_call.1} parent=23 // pred_check
          %p589 = pneg %p395
        $region78: #{tpu_custom_call.1} parent=23 // pred_check_branch
          %591 = sbr.rel (%p589) target = $region80
        $region79: #{tpu_custom_call.1} parent=23 // pred_region
          %p592 = scmp.lt.s32.totalorder %s33, 11
          %s593 = scalar_select %p592, %s33, 11
          %s594 = smul.addr %s593, 2
          %s595 = scalar_lea.vmem %s13, %s594
        $region80: #{tpu_custom_call.1} parent=23 // pred_fallthru
          _
      $region24: #{tpu_custom_call.1} parent=5 // pred_fallthru
        _
      %p596 = scmp.le.s32.totalorder 1, %s25
      %p597 = scmp.lt.s32.totalorder %s25, 25
      %p598 = pnand %p596, %p597
      %p599 = pneg %p598
      // Predicated region
      $region81: #{tpu_custom_call.1} parent=5 // pred_check
        _
      $region82: #{tpu_custom_call.1} parent=5 // pred_check_branch
        %601 = sbr.rel (%p598) target = $region84
      $region83: #{tpu_custom_call.1} parent=5 // pred_region
        %s602 = ssub.s32 %s25, 1
        %p603 = scmp.lt.s32.totalorder %s34, 1
        %s604 = scalar_select %p603, %s34, 1
        %s605 = smul.addr %s604, 32
        %s606 = smul.addr %s605, 8
        %s607 = scalar_lea.vmem %s0, %s606
        %p608 = pneg %p63
        %p609 = pneg %p60
        %p610 = scmp.lt.s32.totalorder %s34, 1
        %s611 = scalar_select %p610, %s34, 1
        %s612 = scalar_lea.vmem %s1, %s611
        %p613 = pneg %p89
        %p614 = pneg %p86
        %p615 = scmp.lt.s32.totalorder %s35, 11
        %s616 = scalar_select %p615, %s35, 11
        %s617 = smul.addr %s616, 2
        %s618 = scalar_lea.vmem %s2, %s617
        %p619 = pneg %p115
        %p620 = pneg %p112
        %p621 = scmp.lt.s32.totalorder %s35, 11
        %s622 = scalar_select %p621, %s35, 11
        %s623 = smul.addr %s622, 2
        %s624 = scalar_lea.vmem %s3, %s623
        %p625 = pneg %p141
        %p626 = pneg %p138
        %p627 = scmp.lt.s32.totalorder %s35, 11
        %s628 = scalar_select %p627, %s35, 11
        %s629 = smul.addr %s628, 120
        %s630 = smul.addr %s629, 4
        %s631 = scalar_lea.vmem %s4, %s630
        %p632 = pneg %p167
        %p633 = pneg %p164
        %p634 = scmp.lt.s32.totalorder %s35, 11
        %s635 = scalar_select %p634, %s35, 11
        %s636 = smul.addr %s635, 5
        %s637 = scalar_lea.vmem %s5, %s636
        %p638 = pneg %p193
        %p639 = pneg %p190
        %p640 = scmp.lt.s32.totalorder %s35, 11
        %s641 = scalar_select %p640, %s35, 11
        %s642 = smul.addr %s641, 48
        %s643 = smul.addr %s642, 4
        %s644 = scalar_lea.vmem %s6, %s643
        %p645 = pneg %p219
        %p646 = pneg %p216
        %p647 = scmp.lt.s32.totalorder %s35, 11
        %s648 = scalar_select %p647, %s35, 11
        %s649 = smul.addr %s648, 2
        %s650 = scalar_lea.vmem %s7, %s649
        %p651 = pneg %p245
        %p652 = pneg %p242
        %p653 = scmp.lt.s32.totalorder %s35, 11
        %s654 = scalar_select %p653, %s35, 11
        %s655 = smul.addr %s654, 2
        %s656 = scalar_lea.vmem %s8, %s655
        %p657 = pneg %p271
        %p658 = pneg %p268
        %p659 = scmp.lt.s32.totalorder %s35, 11
        %s660 = scalar_select %p659, %s35, 11
        %s661 = smul.addr %s660, 2
        %s662 = scalar_lea.vmem %s9, %s661
        %p663 = pneg %p297
        %p664 = pneg %p294
        %p665 = scmp.lt.s32.totalorder %s35, 11
        %s666 = scalar_select %p665, %s35, 11
        %s667 = smul.addr %s666, 144
        %s668 = smul.addr %s667, 4
        %s669 = scalar_lea.vmem %s10, %s668
        %p670 = pneg %p323
        %p671 = pneg %p320
        %p672 = scmp.lt.s32.totalorder %s35, 11
        %s673 = scalar_select %p672, %s35, 11
        %s674 = smul.addr %s673, 6
        %s675 = scalar_lea.vmem %s11, %s674
        %p676 = pneg %p349
        %p677 = pneg %p346
        %p678 = scmp.lt.s32.totalorder %s35, 11
        %s679 = scalar_select %p678, %s35, 11
        %s680 = smul.addr %s679, 192
        %s681 = smul.addr %s680, 4
        %s682 = scalar_lea.vmem %s12, %s681
        %p683 = pneg %p375
        %p684 = pneg %p372
        %p685 = scmp.lt.s32.totalorder %s35, 11
        %s686 = scalar_select %p685, %s35, 11
        %s687 = smul.addr %s686, 2
        %s688 = scalar_lea.vmem %s13, %s687
        %p689 = pneg %p401
        %p690 = pneg %p398
        %p691 = pneg %p422
        %p692 = pneg %p419
        %p693 = pneg %p443
        %p694 = pneg %p440
        %p695 = pneg %p469
        %p696 = pneg %p466
        %s697 = sand.u32 %s456, 1
        %s698 = scalar_lea.sflag [#allocation4], %s697
        %s699 = sand.u32 %s456, 1
        %s700 = smul.addr %s699, 128
        %s701 = scalar_lea.vmem [#allocation3], %s700
        %p702 = scmp.lt.s32.totalorder %s34, 1
        %s703 = scalar_select %p702, %s34, 1
        %s704 = smul.addr %s703, 32
        %s705 = smul.addr %s704, 8
        %s706 = scalar_lea.vmem %s0, %s705
        %p707 = scmp.lt.s32.totalorder %s34, 1
        %s708 = scalar_select %p707, %s34, 1
        %s709 = scalar_lea.vmem %s1, %s708
        %p710 = scmp.lt.s32.totalorder %s35, 11
        %s711 = scalar_select %p710, %s35, 11
        %s712 = smul.addr %s711, 2
        %s713 = scalar_lea.vmem %s2, %s712
        %p714 = scmp.lt.s32.totalorder %s35, 11
        %s715 = scalar_select %p714, %s35, 11
        %s716 = smul.addr %s715, 2
        %s717 = scalar_lea.vmem %s3, %s716
        %p718 = scmp.lt.s32.totalorder %s35, 11
        %s719 = scalar_select %p718, %s35, 11
        %s720 = smul.addr %s719, 120
        %s721 = smul.addr %s720, 4
        %s722 = scalar_lea.vmem %s4, %s721
        %p723 = scmp.lt.s32.totalorder %s35, 11
        %s724 = scalar_select %p723, %s35, 11
        %s725 = smul.addr %s724, 5
        %s726 = scalar_lea.vmem %s5, %s725
        %p727 = scmp.lt.s32.totalorder %s35, 11
        %s728 = scalar_select %p727, %s35, 11
        %s729 = smul.addr %s728, 48
        %s730 = smul.addr %s729, 4
        %s731 = scalar_lea.vmem %s6, %s730
        %p732 = scmp.lt.s32.totalorder %s35, 11
        %s733 = scalar_select %p732, %s35, 11
        %s734 = smul.addr %s733, 2
        %s735 = scalar_lea.vmem %s7, %s734
        %p736 = scmp.lt.s32.totalorder %s35, 11
        %s737 = scalar_select %p736, %s35, 11
        %s738 = smul.addr %s737, 2
        %s739 = scalar_lea.vmem %s8, %s738
        %p740 = scmp.lt.s32.totalorder %s35, 11
        %s741 = scalar_select %p740, %s35, 11
        %s742 = smul.addr %s741, 2
        %s743 = scalar_lea.vmem %s9, %s742
        %p744 = scmp.lt.s32.totalorder %s35, 11
        %s745 = scalar_select %p744, %s35, 11
        %s746 = smul.addr %s745, 144
        %s747 = smul.addr %s746, 4
        %s748 = scalar_lea.vmem %s10, %s747
        %p749 = scmp.lt.s32.totalorder %s35, 11
        %s750 = scalar_select %p749, %s35, 11
        %s751 = smul.addr %s750, 6
        %s752 = scalar_lea.vmem %s11, %s751
        %p753 = scmp.lt.s32.totalorder %s35, 11
        %s754 = scalar_select %p753, %s35, 11
        %s755 = smul.addr %s754, 192
        %s756 = smul.addr %s755, 4
        %s757 = scalar_lea.vmem %s12, %s756
        %p758 = scmp.lt.s32.totalorder %s35, 11
        %s759 = scalar_select %p758, %s35, 11
        %s760 = smul.addr %s759, 2
        %s761 = scalar_lea.vmem %s13, %s760
        %p763 = scmp.eq.s32.totalorder %s35, 0
        // Predicated region
        $region85: #{tpu_custom_call.1} parent=83 // pred_check
          %p764 = pneg %p763
        $region86: #{tpu_custom_call.1} parent=83 // pred_check_branch
          %766 = sbr.rel (%p764) target = $region88
        $region87: #{tpu_custom_call.1} parent=83 // pred_region
          %v767 = vld [vmem:[%s706] sm:$0xff]
          %v768 = vld [vmem:[%s706 + $0x8] sm:$0xff]
          %v769 = vld [vmem:[%s706 + $0x10] sm:$0xff]
          %v770 = vld [vmem:[%s706 + $0x18] sm:$0xff]
          %v771 = vld [vmem:[%s706 + $0x20] sm:$0xff]
          %v772 = vld [vmem:[%s706 + $0x28] sm:$0xff]
          %v773 = vld [vmem:[%s706 + $0x30] sm:$0xff]
          %v774 = vld [vmem:[%s706 + $0x38] sm:$0xff]
          %v775 = vld [vmem:[%s706 + $0x40] sm:$0xff]
          %v776 = vld [vmem:[%s706 + $0x48] sm:$0xff]
          %v777 = vld [vmem:[%s706 + $0x50] sm:$0xff]
          %v778 = vld [vmem:[%s706 + $0x58] sm:$0xff]
          %v779 = vld [vmem:[%s706 + $0x60] sm:$0xff]
          %v780 = vld [vmem:[%s706 + $0x68] sm:$0xff]
          %v781 = vld [vmem:[%s706 + $0x70] sm:$0xff]
          %v782 = vld [vmem:[%s706 + $0x78] sm:$0xff]
          %v783 = vld [vmem:[%s706 + $0x80] sm:$0xff]
          %v784 = vld [vmem:[%s706 + $0x88] sm:$0xff]
          %v785 = vld [vmem:[%s706 + $0x90] sm:$0xff]
          %v786 = vld [vmem:[%s706 + $0x98] sm:$0xff]
          %v787 = vld [vmem:[%s706 + $0xa0] sm:$0xff]
          %v788 = vld [vmem:[%s706 + $0xa8] sm:$0xff]
          %v789 = vld [vmem:[%s706 + $0xb0] sm:$0xff]
          %v790 = vld [vmem:[%s706 + $0xb8] sm:$0xff]
          %v791 = vld [vmem:[%s706 + $0xc0] sm:$0xff]
          %v792 = vld [vmem:[%s706 + $0xc8] sm:$0xff]
          %v793 = vld [vmem:[%s706 + $0xd0] sm:$0xff]
          %v794 = vld [vmem:[%s706 + $0xd8] sm:$0xff]
          %v795 = vld [vmem:[%s706 + $0xe0] sm:$0xff]
          %v796 = vld [vmem:[%s706 + $0xe8] sm:$0xff]
          %v797 = vld [vmem:[%s706 + $0xf0] sm:$0xff]
          %v798 = vld [vmem:[%s706 + $0xf8] sm:$0xff]
          %799 = vst [vmem:[#allocation2] sm:$0xff] %v767
          %vm800 = vcmask 523264
          %801 = vst.msk [vmem:[#allocation2 + $0x8] sm:$0xff] %vm800, %v768
          %802 = vst [vmem:[#allocation2 + $0x10] sm:$0xff] %v769
          %803 = vst.msk [vmem:[#allocation2 + $0x18] sm:$0xff] %vm800, %v770
          %804 = vst [vmem:[#allocation2 + $0x20] sm:$0xff] %v771
          %805 = vst.msk [vmem:[#allocation2 + $0x28] sm:$0xff] %vm800, %v772
          %806 = vst [vmem:[#allocation2 + $0x30] sm:$0xff] %v773
          %807 = vst.msk [vmem:[#allocation2 + $0x38] sm:$0xff] %vm800, %v774
          %808 = vst [vmem:[#allocation2 + $0x40] sm:$0xff] %v775
          %809 = vst.msk [vmem:[#allocation2 + $0x48] sm:$0xff] %vm800, %v776
          %810 = vst [vmem:[#allocation2 + $0x50] sm:$0xff] %v777
          %811 = vst.msk [vmem:[#allocation2 + $0x58] sm:$0xff] %vm800, %v778
          %812 = vst [vmem:[#allocation2 + $0x60] sm:$0xff] %v779
          %813 = vst.msk [vmem:[#allocation2 + $0x68] sm:$0xff] %vm800, %v780
          %814 = vst [vmem:[#allocation2 + $0x70] sm:$0xff] %v781
          %815 = vst.msk [vmem:[#allocation2 + $0x78] sm:$0xff] %vm800, %v782
          %816 = vst [vmem:[#allocation2 + $0x80] sm:$0xff] %v783
          %817 = vst.msk [vmem:[#allocation2 + $0x88] sm:$0xff] %vm800, %v784
          %818 = vst [vmem:[#allocation2 + $0x90] sm:$0xff] %v785
          %819 = vst.msk [vmem:[#allocation2 + $0x98] sm:$0xff] %vm800, %v786
          %820 = vst [vmem:[#allocation2 + $0xa0] sm:$0xff] %v787
          %821 = vst.msk [vmem:[#allocation2 + $0xa8] sm:$0xff] %vm800, %v788
          %822 = vst [vmem:[#allocation2 + $0xb0] sm:$0xff] %v789
          %823 = vst.msk [vmem:[#allocation2 + $0xb8] sm:$0xff] %vm800, %v790
          %824 = vst [vmem:[#allocation2 + $0xc0] sm:$0xff] %v791
          %825 = vst.msk [vmem:[#allocation2 + $0xc8] sm:$0xff] %vm800, %v792
          %826 = vst [vmem:[#allocation2 + $0xd0] sm:$0xff] %v793
          %827 = vst.msk [vmem:[#allocation2 + $0xd8] sm:$0xff] %vm800, %v794
          %828 = vst [vmem:[#allocation2 + $0xe0] sm:$0xff] %v795
          %829 = vst.msk [vmem:[#allocation2 + $0xe8] sm:$0xff] %vm800, %v796
          %830 = vst [vmem:[#allocation2 + $0xf0] sm:$0xff] %v797
          %831 = vst.msk [vmem:[#allocation2 + $0xf8] sm:$0xff] %vm800, %v798
        $region88: #{tpu_custom_call.1} parent=83 // pred_fallthru
          _
        %v832 = vld [vmem:[#allocation2] sm:$0xff]
        %v833 = vld [vmem:[#allocation2 + $0x8] sm:$0xff]
        %v834 = vld [vmem:[#allocation2 + $0x10] sm:$0xff]
        %v835 = vld [vmem:[#allocation2 + $0x18] sm:$0xff]
        %v836 = vld [vmem:[#allocation2 + $0x20] sm:$0xff]
        %v837 = vld [vmem:[#allocation2 + $0x28] sm:$0xff]
        %v838 = vld [vmem:[#allocation2 + $0x30] sm:$0xff]
        %v839 = vld [vmem:[#allocation2 + $0x38] sm:$0xff]
        %v840 = vld [vmem:[#allocation2 + $0x40] sm:$0xff]
        %v841 = vld [vmem:[#allocation2 + $0x48] sm:$0xff]
        %v842 = vld [vmem:[#allocation2 + $0x50] sm:$0xff]
        %v843 = vld [vmem:[#allocation2 + $0x58] sm:$0xff]
        %v844 = vld [vmem:[#allocation2 + $0x60] sm:$0xff]
        %v845 = vld [vmem:[#allocation2 + $0x68] sm:$0xff]
        %v846 = vld [vmem:[#allocation2 + $0x70] sm:$0xff]
        %v847 = vld [vmem:[#allocation2 + $0x78] sm:$0xff]
        %v848 = vld [vmem:[#allocation2 + $0x80] sm:$0xff]
        %v849 = vld [vmem:[#allocation2 + $0x88] sm:$0xff]
        %v850 = vld [vmem:[#allocation2 + $0x90] sm:$0xff]
        %v851 = vld [vmem:[#allocation2 + $0x98] sm:$0xff]
        %v852 = vld [vmem:[#allocation2 + $0xa0] sm:$0xff]
        %v853 = vld [vmem:[#allocation2 + $0xa8] sm:$0xff]
        %v854 = vld [vmem:[#allocation2 + $0xb0] sm:$0xff]
        %v855 = vld [vmem:[#allocation2 + $0xb8] sm:$0xff]
        %v856 = vld [vmem:[#allocation2 + $0xc0] sm:$0xff]
        %v857 = vld [vmem:[#allocation2 + $0xc8] sm:$0xff]
        %v858 = vld [vmem:[#allocation2 + $0xd0] sm:$0xff]
        %v859 = vld [vmem:[#allocation2 + $0xd8] sm:$0xff]
        %v860 = vld [vmem:[#allocation2 + $0xe0] sm:$0xff]
        %v861 = vld [vmem:[#allocation2 + $0xe8] sm:$0xff]
        %v862 = vld [vmem:[#allocation2 + $0xf0] sm:$0xff]
        %v863 = vld [vmem:[#allocation2 + $0xf8] sm:$0xff]
        %v864 = vld [vmem:[%s709] sm:$0x1]
        %v865 = vld [vmem:[%s713] sm:$0x3]
        %v866 = vld [vmem:[%s717] sm:$0x3]
        %vm867 = vcmask 523264
        %v868 = vsel %vm867, %v833, 0.0
        %v869 = vadd.f32 %v832, %v868
        %870 = vadd.xlane.f32.xlu0 %v869
        %v871 = vpop.xlane.xlu0 %870
        %v872 = vsel %vm867, %v835, 0.0
        %v873 = vadd.f32 %v834, %v872
        %874 = vadd.xlane.f32.xlu0 %v873
        %v875 = vpop.xlane.xlu0 %874
        %v876 = vsel %vm867, %v837, 0.0
        %v877 = vadd.f32 %v836, %v876
        %878 = vadd.xlane.f32.xlu0 %v877
        %v879 = vpop.xlane.xlu0 %878
        %v880 = vsel %vm867, %v839, 0.0
        %v881 = vadd.f32 %v838, %v880
        %882 = vadd.xlane.f32.xlu0 %v881
        %v883 = vpop.xlane.xlu0 %882
        %v884 = vsel %vm867, %v841, 0.0
        %v885 = vadd.f32 %v840, %v884
        %886 = vadd.xlane.f32.xlu0 %v885
        %v887 = vpop.xlane.xlu0 %886
        %v888 = vsel %vm867, %v843, 0.0
        %v889 = vadd.f32 %v842, %v888
        %890 = vadd.xlane.f32.xlu0 %v889
        %v891 = vpop.xlane.xlu0 %890
        %v892 = vsel %vm867, %v845, 0.0
        %v893 = vadd.f32 %v844, %v892
        %894 = vadd.xlane.f32.xlu0 %v893
        %v895 = vpop.xlane.xlu0 %894
        %v896 = vsel %vm867, %v847, 0.0
        %v897 = vadd.f32 %v846, %v896
        %898 = vadd.xlane.f32.xlu0 %v897
        %v899 = vpop.xlane.xlu0 %898
        %v900 = vsel %vm867, %v849, 0.0
        %v901 = vadd.f32 %v848, %v900
        %902 = vadd.xlane.f32.xlu0 %v901
        %v903 = vpop.xlane.xlu0 %902
        %v904 = vsel %vm867, %v851, 0.0
        %v905 = vadd.f32 %v850, %v904
        %906 = vadd.xlane.f32.xlu0 %v905
        %v907 = vpop.xlane.xlu0 %906
        %v908 = vsel %vm867, %v853, 0.0
        %v909 = vadd.f32 %v852, %v908
        %910 = vadd.xlane.f32.xlu0 %v909
        %v911 = vpop.xlane.xlu0 %910
        %v912 = vsel %vm867, %v855, 0.0
        %v913 = vadd.f32 %v854, %v912
        %914 = vadd.xlane.f32.xlu0 %v913
        %v915 = vpop.xlane.xlu0 %914
        %v916 = vsel %vm867, %v857, 0.0
        %v917 = vadd.f32 %v856, %v916
        %918 = vadd.xlane.f32.xlu0 %v917
        %v919 = vpop.xlane.xlu0 %918
        %v920 = vsel %vm867, %v859, 0.0
        %v921 = vadd.f32 %v858, %v920
        %922 = vadd.xlane.f32.xlu0 %v921
        %v923 = vpop.xlane.xlu0 %922
        %v924 = vsel %vm867, %v861, 0.0
        %v925 = vadd.f32 %v860, %v924
        %926 = vadd.xlane.f32.xlu0 %v925
        %v927 = vpop.xlane.xlu0 %926
        %v928 = vsel %vm867, %v863, 0.0
        %v929 = vadd.f32 %v862, %v928
        %930 = vadd.xlane.f32.xlu0 %v929
        %v931 = vpop.xlane.xlu0 %930
        %v932 = vrcp.pop 192.0
        %v933 = vmul.f32 %v871, %v932
        %v934 = vmul.f32 %v875, %v932
        %v935 = vmul.f32 %v879, %v932
        %v936 = vmul.f32 %v883, %v932
        %v937 = vmul.f32 %v887, %v932
        %v938 = vmul.f32 %v891, %v932
        %v939 = vmul.f32 %v895, %v932
        %v940 = vmul.f32 %v899, %v932
        %v941 = vmul.f32 %v903, %v932
        %v942 = vmul.f32 %v907, %v932
        %v943 = vmul.f32 %v911, %v932
        %v944 = vmul.f32 %v915, %v932
        %v945 = vmul.f32 %v919, %v932
        %v946 = vmul.f32 %v923, %v932
        %v947 = vmul.f32 %v927, %v932
        %v948 = vmul.f32 %v931, %v932
        %v949 = vsub.f32 %v832, %v933
        %v950 = vsub.f32 %v833, %v933
        %v951 = vsub.f32 %v834, %v934
        %v952 = vsub.f32 %v835, %v934
        %v953 = vsub.f32 %v836, %v935
        %v954 = vsub.f32 %v837, %v935
        %v955 = vsub.f32 %v838, %v936
        %v956 = vsub.f32 %v839, %v936
        %v957 = vsub.f32 %v840, %v937
        %v958 = vsub.f32 %v841, %v937
        %v959 = vsub.f32 %v842, %v938
        %v960 = vsub.f32 %v843, %v938
        %v961 = vsub.f32 %v844, %v939
        %v962 = vsub.f32 %v845, %v939
        %v963 = vsub.f32 %v846, %v940
        %v964 = vsub.f32 %v847, %v940
        %v965 = vsub.f32 %v848, %v941
        %v966 = vsub.f32 %v849, %v941
        %v967 = vsub.f32 %v850, %v942
        %v968 = vsub.f32 %v851, %v942
        %v969 = vsub.f32 %v852, %v943
        %v970 = vsub.f32 %v853, %v943
        %v971 = vsub.f32 %v854, %v944
        %v972 = vsub.f32 %v855, %v944
        %v973 = vsub.f32 %v856, %v945
        %v974 = vsub.f32 %v857, %v945
        %v975 = vsub.f32 %v858, %v946
        %v976 = vsub.f32 %v859, %v946
        %v977 = vsub.f32 %v860, %v947
        %v978 = vsub.f32 %v861, %v947
        %v979 = vsub.f32 %v862, %v948
        %v980 = vsub.f32 %v863, %v948
        %v981 = vmul.f32 %v949, %v949
        %v982 = vmul.f32 %v950, %v950
        %v983 = vmul.f32 %v951, %v951
        %v984 = vmul.f32 %v952, %v952
        %v985 = vmul.f32 %v953, %v953
        %v986 = vmul.f32 %v954, %v954
        %v987 = vmul.f32 %v955, %v955
        %v988 = vmul.f32 %v956, %v956
        %v989 = vmul.f32 %v957, %v957
        %v990 = vmul.f32 %v958, %v958
        %v991 = vmul.f32 %v959, %v959
        %v992 = vmul.f32 %v960, %v960
        %v993 = vmul.f32 %v961, %v961
        %v994 = vmul.f32 %v962, %v962
        %v995 = vmul.f32 %v963, %v963
        %v996 = vmul.f32 %v964, %v964
        %v997 = vmul.f32 %v965, %v965
        %v998 = vmul.f32 %v966, %v966
        %v999 = vmul.f32 %v967, %v967
        %v1000 = vmul.f32 %v968, %v968
        %v1001 = vmul.f32 %v969, %v969
        %v1002 = vmul.f32 %v970, %v970
        %v1003 = vmul.f32 %v971, %v971
        %v1004 = vmul.f32 %v972, %v972
        %v1005 = vmul.f32 %v973, %v973
        %v1006 = vmul.f32 %v974, %v974
        %v1007 = vmul.f32 %v975, %v975
        %v1008 = vmul.f32 %v976, %v976
        %v1009 = vmul.f32 %v977, %v977
        %v1010 = vmul.f32 %v978, %v978
        %v1011 = vmul.f32 %v979, %v979
        %v1012 = vmul.f32 %v980, %v980
        %v1013 = vsel %vm867, %v982, 0.0
        %v1014 = vadd.f32 %v981, %v1013
        %1015 = vadd.xlane.f32.xlu0 %v1014
        %v1016 = vpop.xlane.xlu0 %1015
        %v1017 = vsel %vm867, %v984, 0.0
        %v1018 = vadd.f32 %v983, %v1017
        %1019 = vadd.xlane.f32.xlu0 %v1018
        %v1020 = vpop.xlane.xlu0 %1019
        %v1021 = vsel %vm867, %v986, 0.0
        %v1022 = vadd.f32 %v985, %v1021
        %1023 = vadd.xlane.f32.xlu0 %v1022
        %v1024 = vpop.xlane.xlu0 %1023
        %v1025 = vsel %vm867, %v988, 0.0
        %v1026 = vadd.f32 %v987, %v1025
        %1027 = vadd.xlane.f32.xlu0 %v1026
        %v1028 = vpop.xlane.xlu0 %1027
        %v1029 = vsel %vm867, %v990, 0.0
        %v1030 = vadd.f32 %v989, %v1029
        %1031 = vadd.xlane.f32.xlu0 %v1030
        %v1032 = vpop.xlane.xlu0 %1031
        %v1033 = vsel %vm867, %v992, 0.0
        %v1034 = vadd.f32 %v991, %v1033
        %1035 = vadd.xlane.f32.xlu0 %v1034
        %v1036 = vpop.xlane.xlu0 %1035
        %v1037 = vsel %vm867, %v994, 0.0
        %v1038 = vadd.f32 %v993, %v1037
        %1039 = vadd.xlane.f32.xlu0 %v1038
        %v1040 = vpop.xlane.xlu0 %1039
        %v1041 = vsel %vm867, %v996, 0.0
        %v1042 = vadd.f32 %v995, %v1041
        %1043 = vadd.xlane.f32.xlu0 %v1042
        %v1044 = vpop.xlane.xlu0 %1043
        %v1045 = vsel %vm867, %v998, 0.0
        %v1046 = vadd.f32 %v997, %v1045
        %1047 = vadd.xlane.f32.xlu0 %v1046
        %v1048 = vpop.xlane.xlu0 %1047
        %v1049 = vsel %vm867, %v1000, 0.0
        %v1050 = vadd.f32 %v999, %v1049
        %1051 = vadd.xlane.f32.xlu0 %v1050
        %v1052 = vpop.xlane.xlu0 %1051
        %v1053 = vsel %vm867, %v1002, 0.0
        %v1054 = vadd.f32 %v1001, %v1053
        %1055 = vadd.xlane.f32.xlu0 %v1054
        %v1056 = vpop.xlane.xlu0 %1055
        %v1057 = vsel %vm867, %v1004, 0.0
        %v1058 = vadd.f32 %v1003, %v1057
        %1059 = vadd.xlane.f32.xlu0 %v1058
        %v1060 = vpop.xlane.xlu0 %1059
        %v1061 = vsel %vm867, %v1006, 0.0
        %v1062 = vadd.f32 %v1005, %v1061
        %1063 = vadd.xlane.f32.xlu0 %v1062
        %v1064 = vpop.xlane.xlu0 %1063
        %v1065 = vsel %vm867, %v1008, 0.0
        %v1066 = vadd.f32 %v1007, %v1065
        %1067 = vadd.xlane.f32.xlu0 %v1066
        %v1068 = vpop.xlane.xlu0 %1067
        %v1069 = vsel %vm867, %v1010, 0.0
        %v1070 = vadd.f32 %v1009, %v1069
        %1071 = vadd.xlane.f32.xlu0 %v1070
        %v1072 = vpop.xlane.xlu0 %1071
        %v1073 = vsel %vm867, %v1012, 0.0
        %v1074 = vadd.f32 %v1011, %v1073
        %1075 = vadd.xlane.f32.xlu0 %v1074
        %v1076 = vpop.xlane.xlu0 %1075
        %v1077 = vmul.f32 %v1016, %v932
        %v1078 = vmul.f32 %v1020, %v932
        %v1079 = vmul.f32 %v1024, %v932
        %v1080 = vmul.f32 %v1028, %v932
        %v1081 = vmul.f32 %v1032, %v932
        %v1082 = vmul.f32 %v1036, %v932
        %v1083 = vmul.f32 %v1040, %v932
        %v1084 = vmul.f32 %v1044, %v932
        %v1085 = vmul.f32 %v1048, %v932
        %v1086 = vmul.f32 %v1052, %v932
        %v1087 = vmul.f32 %v1056, %v932
        %v1088 = vmul.f32 %v1060, %v932
        %v1089 = vmul.f32 %v1064, %v932
        %v1090 = vmul.f32 %v1068, %v932
        %v1091 = vmul.f32 %v1072, %v932
        %v1092 = vmul.f32 %v1076, %v932
        %v1093 = vadd.f32 %v1077, 1e-05
        %v1094 = vadd.f32 %v1078, 1e-05
        %v1095 = vadd.f32 %v1079, 1e-05
        %v1096 = vadd.f32 %v1080, 1e-05
        %v1097 = vadd.f32 %v1081, 1e-05
        %v1098 = vadd.f32 %v1082, 1e-05
        %v1099 = vadd.f32 %v1083, 1e-05
        %v1100 = vadd.f32 %v1084, 1e-05
        %v1101 = vadd.f32 %v1085, 1e-05
        %v1102 = vadd.f32 %v1086, 1e-05
        %v1103 = vadd.f32 %v1087, 1e-05
        %v1104 = vadd.f32 %v1088, 1e-05
        %v1105 = vadd.f32 %v1089, 1e-05
        %v1106 = vadd.f32 %v1090, 1e-05
        %v1107 = vadd.f32 %v1091, 1e-05
        %v1108 = vadd.f32 %v1092, 1e-05
        %v1109 = vrsqrt.pop %v1093
        %v1110 = vrsqrt.pop %v1094
        %v1111 = vrsqrt.pop %v1095
        %v1112 = vrsqrt.pop %v1096
        %v1113 = vrsqrt.pop %v1097
        %v1114 = vrsqrt.pop %v1098
        %v1115 = vrsqrt.pop %v1099
        %v1116 = vrsqrt.pop %v1100
        %v1117 = vrsqrt.pop %v1101
        %v1118 = vrsqrt.pop %v1102
        %v1119 = vrsqrt.pop %v1103
        %v1120 = vrsqrt.pop %v1104
        %v1121 = vrsqrt.pop %v1105
        %v1122 = vrsqrt.pop %v1106
        %v1123 = vrsqrt.pop %v1107
        %v1124 = vrsqrt.pop %v1108
        %v1125 = vmul.f32 %v949, %v1109
        %v1126 = vmul.f32 %v950, %v1109
        %v1127 = vmul.f32 %v951, %v1110
        %v1128 = vmul.f32 %v952, %v1110
        %v1129 = vmul.f32 %v953, %v1111
        %v1130 = vmul.f32 %v954, %v1111
        %v1131 = vmul.f32 %v955, %v1112
        %v1132 = vmul.f32 %v956, %v1112
        %v1133 = vmul.f32 %v957, %v1113
        %v1134 = vmul.f32 %v958, %v1113
        %v1135 = vmul.f32 %v959, %v1114
        %v1136 = vmul.f32 %v960, %v1114
        %v1137 = vmul.f32 %v961, %v1115
        %v1138 = vmul.f32 %v962, %v1115
        %v1139 = vmul.f32 %v963, %v1116
        %v1140 = vmul.f32 %v964, %v1116
        %v1141 = vmul.f32 %v965, %v1117
        %v1142 = vmul.f32 %v966, %v1117
        %v1143 = vmul.f32 %v967, %v1118
        %v1144 = vmul.f32 %v968, %v1118
        %v1145 = vmul.f32 %v969, %v1119
        %v1146 = vmul.f32 %v970, %v1119
        %v1147 = vmul.f32 %v971, %v1120
        %v1148 = vmul.f32 %v972, %v1120
        %v1149 = vmul.f32 %v973, %v1121
        %v1150 = vmul.f32 %v974, %v1121
        %v1151 = vmul.f32 %v975, %v1122
        %v1152 = vmul.f32 %v976, %v1122
        %v1153 = vmul.f32 %v977, %v1123
        %v1154 = vmul.f32 %v978, %v1123
        %v1155 = vmul.f32 %v979, %v1124
        %v1156 = vmul.f32 %v980, %v1124
        %v1158 = vlaneseq
        %v1159 = vshrl.u32 %v1158, 7
        %v1160 = vsub.s32 0, %v1159
        %v1161 = vrot.slane %v865, %v1160
        %v1162 = vlaneseq
        %v1163 = vshrl.u32 %v1162, 7
        %v1164 = vsub.s32 1, %v1163
        %v1165 = vrot.slane %v865, %v1164
        %v1168 = vmul.f32 %v1125, %v1161
        %v1169 = vmul.f32 %v1126, %v1165
        %v1170 = vmul.f32 %v1127, %v1161
        %v1171 = vmul.f32 %v1128, %v1165
        %v1172 = vmul.f32 %v1129, %v1161
        %v1173 = vmul.f32 %v1130, %v1165
        %v1174 = vmul.f32 %v1131, %v1161
        %v1175 = vmul.f32 %v1132, %v1165
        %v1176 = vmul.f32 %v1133, %v1161
        %v1177 = vmul.f32 %v1134, %v1165
        %v1178 = vmul.f32 %v1135, %v1161
        %v1179 = vmul.f32 %v1136, %v1165
        %v1180 = vmul.f32 %v1137, %v1161
        %v1181 = vmul.f32 %v1138, %v1165
        %v1182 = vmul.f32 %v1139, %v1161
        %v1183 = vmul.f32 %v1140, %v1165
        %v1184 = vmul.f32 %v1141, %v1161
        %v1185 = vmul.f32 %v1142, %v1165
        %v1186 = vmul.f32 %v1143, %v1161
        %v1187 = vmul.f32 %v1144, %v1165
        %v1188 = vmul.f32 %v1145, %v1161
        %v1189 = vmul.f32 %v1146, %v1165
        %v1190 = vmul.f32 %v1147, %v1161
        %v1191 = vmul.f32 %v1148, %v1165
        %v1192 = vmul.f32 %v1149, %v1161
        %v1193 = vmul.f32 %v1150, %v1165
        %v1194 = vmul.f32 %v1151, %v1161
        %v1195 = vmul.f32 %v1152, %v1165
        %v1196 = vmul.f32 %v1153, %v1161
        %v1197 = vmul.f32 %v1154, %v1165
        %v1198 = vmul.f32 %v1155, %v1161
        %v1199 = vmul.f32 %v1156, %v1165
        %v1201 = vlaneseq
        %v1202 = vshrl.u32 %v1201, 7
        %v1203 = vsub.s32 0, %v1202
        %v1204 = vrot.slane %v866, %v1203
        %v1205 = vlaneseq
        %v1206 = vshrl.u32 %v1205, 7
        %v1207 = vsub.s32 1, %v1206
        %v1208 = vrot.slane %v866, %v1207
        %v1211 = vadd.f32 %v1168, %v1204
        %v1212 = vadd.f32 %v1169, %v1208
        %v1213 = vadd.f32 %v1170, %v1204
        %v1214 = vadd.f32 %v1171, %v1208
        %v1215 = vadd.f32 %v1172, %v1204
        %v1216 = vadd.f32 %v1173, %v1208
        %v1217 = vadd.f32 %v1174, %v1204
        %v1218 = vadd.f32 %v1175, %v1208
        %v1219 = vadd.f32 %v1176, %v1204
        %v1220 = vadd.f32 %v1177, %v1208
        %v1221 = vadd.f32 %v1178, %v1204
        %v1222 = vadd.f32 %v1179, %v1208
        %v1223 = vadd.f32 %v1180, %v1204
        %v1224 = vadd.f32 %v1181, %v1208
        %v1225 = vadd.f32 %v1182, %v1204
        %v1226 = vadd.f32 %v1183, %v1208
        %v1227 = vadd.f32 %v1184, %v1204
        %v1228 = vadd.f32 %v1185, %v1208
        %v1229 = vadd.f32 %v1186, %v1204
        %v1230 = vadd.f32 %v1187, %v1208
        %v1231 = vadd.f32 %v1188, %v1204
        %v1232 = vadd.f32 %v1189, %v1208
        %v1233 = vadd.f32 %v1190, %v1204
        %v1234 = vadd.f32 %v1191, %v1208
        %v1235 = vadd.f32 %v1192, %v1204
        %v1236 = vadd.f32 %v1193, %v1208
        %v1237 = vadd.f32 %v1194, %v1204
        %v1238 = vadd.f32 %v1195, %v1208
        %v1239 = vadd.f32 %v1196, %v1204
        %v1240 = vadd.f32 %v1197, %v1208
        %v1241 = vadd.f32 %v1198, %v1204
        %v1242 = vadd.f32 %v1199, %v1208
        %v1243 = vpack.c.bf16 %v1213, %v1211
        %v1244 = vpack.c.bf16 %v1214, %v1212
        %v1245 = vpack.c.bf16 %v1217, %v1215
        %v1246 = vpack.c.bf16 %v1218, %v1216
        %v1247 = vpack.c.bf16 %v1221, %v1219
        %v1248 = vpack.c.bf16 %v1222, %v1220
        %v1249 = vpack.c.bf16 %v1225, %v1223
        %v1250 = vpack.c.bf16 %v1226, %v1224
        %v1251 = vpack.c.bf16 %v1229, %v1227
        %v1252 = vpack.c.bf16 %v1230, %v1228
        %v1253 = vpack.c.bf16 %v1233, %v1231
        %v1254 = vpack.c.bf16 %v1234, %v1232
        %v1255 = vpack.c.bf16 %v1237, %v1235
        %v1256 = vpack.c.bf16 %v1238, %v1236
        %v1257 = vpack.c.bf16 %v1241, %v1239
        %v1258 = vpack.c.bf16 %v1242, %v1240
        %v1259 = vld [vmem:[%s722] sm:$0xff]
        %v1260 = vld [vmem:[%s722 + $0x8] sm:$0xff]
        %v1261 = vld [vmem:[%s722 + $0x10] sm:$0xf]
        %v1262 = vld [vmem:[%s722 + $0x14] sm:$0xff]
        %v1263 = vld [vmem:[%s722 + $0x1c] sm:$0xff]
        %v1264 = vld [vmem:[%s722 + $0x24] sm:$0xf]
        %v1265 = vld [vmem:[%s722 + $0x28] sm:$0xff]
        %v1266 = vld [vmem:[%s722 + $0x30] sm:$0xff]
        %v1267 = vld [vmem:[%s722 + $0x38] sm:$0xf]
        %v1268 = vld [vmem:[%s722 + $0x3c] sm:$0xff]
        %v1269 = vld [vmem:[%s722 + $0x44] sm:$0xff]
        %v1270 = vld [vmem:[%s722 + $0x4c] sm:$0xf]
        %v1271 = vld [vmem:[%s722 + $0x50] sm:$0xff]
        %v1272 = vld [vmem:[%s722 + $0x58] sm:$0xff]
        %v1273 = vld [vmem:[%s722 + $0x60] sm:$0xf]
        %v1274 = vld [vmem:[%s722 + $0x64] sm:$0xff]
        %v1275 = vld [vmem:[%s722 + $0x6c] sm:$0xff]
        %v1276 = vld [vmem:[%s722 + $0x74] sm:$0xf]
        %v1277 = vld [vmem:[%s722 + $0x78] sm:$0xff]
        %v1278 = vld [vmem:[%s722 + $0x80] sm:$0xff]
        %v1279 = vld [vmem:[%s722 + $0x88] sm:$0xf]
        %v1280 = vld [vmem:[%s722 + $0x8c] sm:$0xff]
        %v1281 = vld [vmem:[%s722 + $0x94] sm:$0xff]
        %v1282 = vld [vmem:[%s722 + $0x9c] sm:$0xf]
        %v1283 = vld [vmem:[%s722 + $0xa0] sm:$0xff]
        %v1284 = vld [vmem:[%s722 + $0xa8] sm:$0xff]
        %v1285 = vld [vmem:[%s722 + $0xb0] sm:$0xf]
        %v1286 = vld [vmem:[%s722 + $0xb4] sm:$0xff]
        %v1287 = vld [vmem:[%s722 + $0xbc] sm:$0xff]
        %v1288 = vld [vmem:[%s722 + $0xc4] sm:$0xf]
        %v1289 = vld [vmem:[%s722 + $0xc8] sm:$0xff]
        %v1290 = vld [vmem:[%s722 + $0xd0] sm:$0xff]
        %v1291 = vld [vmem:[%s722 + $0xd8] sm:$0xf]
        %v1292 = vld [vmem:[%s722 + $0xdc] sm:$0xff]
        %v1293 = vld [vmem:[%s722 + $0xe4] sm:$0xff]
        %v1294 = vld [vmem:[%s722 + $0xec] sm:$0xf]
        %v1295 = vld [vmem:[%s722 + $0xf0] sm:$0xff]
        %v1296 = vld [vmem:[%s722 + $0xf8] sm:$0xff]
        %v1297 = vld [vmem:[%s722 + $0x100] sm:$0xf]
        %v1298 = vld [vmem:[%s722 + $0x104] sm:$0xff]
        %v1299 = vld [vmem:[%s722 + $0x10c] sm:$0xff]
        %v1300 = vld [vmem:[%s722 + $0x114] sm:$0xf]
        %v1301 = vld [vmem:[%s722 + $0x118] sm:$0xff]
        %v1302 = vld [vmem:[%s722 + $0x120] sm:$0xff]
        %v1303 = vld [vmem:[%s722 + $0x128] sm:$0xf]
        %v1304 = vld [vmem:[%s722 + $0x12c] sm:$0xff]
        %v1305 = vld [vmem:[%s722 + $0x134] sm:$0xff]
        %v1306 = vld [vmem:[%s722 + $0x13c] sm:$0xf]
        %v1307 = vld [vmem:[%s722 + $0x140] sm:$0xff]
        %v1308 = vld [vmem:[%s722 + $0x148] sm:$0xff]
        %v1309 = vld [vmem:[%s722 + $0x150] sm:$0xf]
        %v1310 = vld [vmem:[%s722 + $0x154] sm:$0xff]
        %v1311 = vld [vmem:[%s722 + $0x15c] sm:$0xff]
        %v1312 = vld [vmem:[%s722 + $0x164] sm:$0xf]
        %v1313 = vld [vmem:[%s722 + $0x168] sm:$0xff]
        %v1314 = vld [vmem:[%s722 + $0x170] sm:$0xff]
        %v1315 = vld [vmem:[%s722 + $0x178] sm:$0xf]
        %v1316 = vld [vmem:[%s722 + $0x17c] sm:$0xff]
        %v1317 = vld [vmem:[%s722 + $0x184] sm:$0xff]
        %v1318 = vld [vmem:[%s722 + $0x18c] sm:$0xf]
        %v1319 = vld [vmem:[%s722 + $0x190] sm:$0xff]
        %v1320 = vld [vmem:[%s722 + $0x198] sm:$0xff]
        %v1321 = vld [vmem:[%s722 + $0x1a0] sm:$0xf]
        %v1322 = vld [vmem:[%s722 + $0x1a4] sm:$0xff]
        %v1323 = vld [vmem:[%s722 + $0x1ac] sm:$0xff]
        %v1324 = vld [vmem:[%s722 + $0x1b4] sm:$0xf]
        %v1325 = vld [vmem:[%s722 + $0x1b8] sm:$0xff]
        %v1326 = vld [vmem:[%s722 + $0x1c0] sm:$0xff]
        %v1327 = vld [vmem:[%s722 + $0x1c8] sm:$0xf]
        %v1328 = vld [vmem:[%s722 + $0x1cc] sm:$0xff]
        %v1329 = vld [vmem:[%s722 + $0x1d4] sm:$0xff]
        %v1330 = vld [vmem:[%s722 + $0x1dc] sm:$0xf]
        %v1331 = vld [vmem:[%s726] sm:$0x1f]
        %v1333 = vlaneseq
        %v1334 = vshrl.u32 %v1333, 7
        %v1335 = vsub.s32 0, %v1334
        %v1336 = vrot.slane %v1331, %v1335
        %v1337 = vlaneseq
        %v1338 = vshrl.u32 %v1337, 7
        %v1339 = vsub.s32 1, %v1338
        %v1340 = vrot.slane %v1331, %v1339
        %v1341 = vlaneseq
        %v1342 = vshrl.u32 %v1341, 7
        %v1343 = vsub.s32 2, %v1342
        %v1344 = vrot.slane %v1331, %v1343
        %v1345 = vlaneseq
        %v1346 = vshrl.u32 %v1345, 7
        %v1347 = vsub.s32 3, %v1346
        %v1348 = vrot.slane %v1331, %v1347
        %v1349 = vlaneseq
        %v1350 = vshrl.u32 %v1349, 7
        %v1351 = vsub.s32 4, %v1350
        %v1352 = vrot.slane %v1331, %v1351
        %v1430 = vunpack.c.l.b16 %v1259
        %v1431 = vunpack.c.h.b16 %v1259
        %v1432 = vunpack.c.l.b16 %v1260
        %v1433 = vunpack.c.h.b16 %v1260
        %v1434 = vunpack.c.l.b16 %v1261
        %v1435 = vunpack.c.l.b16 %v1262
        %v1436 = vunpack.c.h.b16 %v1262
        %v1437 = vunpack.c.l.b16 %v1263
        %v1438 = vunpack.c.h.b16 %v1263
        %v1439 = vunpack.c.l.b16 %v1264
        %v1440 = vunpack.c.l.b16 %v1265
        %v1441 = vunpack.c.h.b16 %v1265
        %v1442 = vunpack.c.l.b16 %v1266
        %v1443 = vunpack.c.h.b16 %v1266
        %v1444 = vunpack.c.l.b16 %v1267
        %v1445 = vunpack.c.l.b16 %v1268
        %v1446 = vunpack.c.h.b16 %v1268
        %v1447 = vunpack.c.l.b16 %v1269
        %v1448 = vunpack.c.h.b16 %v1269
        %v1449 = vunpack.c.l.b16 %v1270
        %v1450 = vunpack.c.l.b16 %v1271
        %v1451 = vunpack.c.h.b16 %v1271
        %v1452 = vunpack.c.l.b16 %v1272
        %v1453 = vunpack.c.h.b16 %v1272
        %v1454 = vunpack.c.l.b16 %v1273
        %v1455 = vunpack.c.l.b16 %v1274
        %v1456 = vunpack.c.h.b16 %v1274
        %v1457 = vunpack.c.l.b16 %v1275
        %v1458 = vunpack.c.h.b16 %v1275
        %v1459 = vunpack.c.l.b16 %v1276
        %v1460 = vunpack.c.l.b16 %v1277
        %v1461 = vunpack.c.h.b16 %v1277
        %v1462 = vunpack.c.l.b16 %v1278
        %v1463 = vunpack.c.h.b16 %v1278
        %v1464 = vunpack.c.l.b16 %v1279
        %v1465 = vunpack.c.l.b16 %v1280
        %v1466 = vunpack.c.h.b16 %v1280
        %v1467 = vunpack.c.l.b16 %v1281
        %v1468 = vunpack.c.h.b16 %v1281
        %v1469 = vunpack.c.l.b16 %v1282
        %v1470 = vunpack.c.l.b16 %v1283
        %v1471 = vunpack.c.h.b16 %v1283
        %v1472 = vunpack.c.l.b16 %v1284
        %v1473 = vunpack.c.h.b16 %v1284
        %v1474 = vunpack.c.l.b16 %v1285
        %v1475 = vunpack.c.l.b16 %v1286
        %v1476 = vunpack.c.h.b16 %v1286
        %v1477 = vunpack.c.l.b16 %v1287
        %v1478 = vunpack.c.h.b16 %v1287
        %v1479 = vunpack.c.l.b16 %v1288
        %v1480 = vunpack.c.l.b16 %v1289
        %v1481 = vunpack.c.h.b16 %v1289
        %v1482 = vunpack.c.l.b16 %v1290
        %v1483 = vunpack.c.h.b16 %v1290
        %v1484 = vunpack.c.l.b16 %v1291
        %v1485 = vunpack.c.l.b16 %v1292
        %v1486 = vunpack.c.h.b16 %v1292
        %v1487 = vunpack.c.l.b16 %v1293
        %v1488 = vunpack.c.h.b16 %v1293
        %v1489 = vunpack.c.l.b16 %v1294
        %v1490 = vunpack.c.l.b16 %v1295
        %v1491 = vunpack.c.h.b16 %v1295
        %v1492 = vunpack.c.l.b16 %v1296
        %v1493 = vunpack.c.h.b16 %v1296
        %v1494 = vunpack.c.l.b16 %v1297
        %v1495 = vunpack.c.l.b16 %v1298
        %v1496 = vunpack.c.h.b16 %v1298
        %v1497 = vunpack.c.l.b16 %v1299
        %v1498 = vunpack.c.h.b16 %v1299
        %v1499 = vunpack.c.l.b16 %v1300
        %v1500 = vunpack.c.l.b16 %v1301
        %v1501 = vunpack.c.h.b16 %v1301
        %v1502 = vunpack.c.l.b16 %v1302
        %v1503 = vunpack.c.h.b16 %v1302
        %v1504 = vunpack.c.l.b16 %v1303
        %v1505 = vunpack.c.l.b16 %v1304
        %v1506 = vunpack.c.h.b16 %v1304
        %v1507 = vunpack.c.l.b16 %v1305
        %v1508 = vunpack.c.h.b16 %v1305
        %v1509 = vunpack.c.l.b16 %v1306
        %v1510 = vunpack.c.l.b16 %v1307
        %v1511 = vunpack.c.h.b16 %v1307
        %v1512 = vunpack.c.l.b16 %v1308
        %v1513 = vunpack.c.h.b16 %v1308
        %v1514 = vunpack.c.l.b16 %v1309
        %v1515 = vunpack.c.l.b16 %v1310
        %v1516 = vunpack.c.h.b16 %v1310
        %v1517 = vunpack.c.l.b16 %v1311
        %v1518 = vunpack.c.h.b16 %v1311
        %v1519 = vunpack.c.l.b16 %v1312
        %v1520 = vunpack.c.l.b16 %v1313
        %v1521 = vunpack.c.h.b16 %v1313
        %v1522 = vunpack.c.l.b16 %v1314
        %v1523 = vunpack.c.h.b16 %v1314
        %v1524 = vunpack.c.l.b16 %v1315
        %v1525 = vunpack.c.l.b16 %v1316
        %v1526 = vunpack.c.h.b16 %v1316
        %v1527 = vunpack.c.l.b16 %v1317
        %v1528 = vunpack.c.h.b16 %v1317
        %v1529 = vunpack.c.l.b16 %v1318
        %v1530 = vunpack.c.l.b16 %v1319
        %v1531 = vunpack.c.h.b16 %v1319
        %v1532 = vunpack.c.l.b16 %v1320
        %v1533 = vunpack.c.h.b16 %v1320
        %v1534 = vunpack.c.l.b16 %v1321
        %v1535 = vunpack.c.l.b16 %v1322
        %v1536 = vunpack.c.h.b16 %v1322
        %v1537 = vunpack.c.l.b16 %v1323
        %v1538 = vunpack.c.h.b16 %v1323
        %v1539 = vunpack.c.l.b16 %v1324
        %v1540 = vunpack.c.l.b16 %v1325
        %v1541 = vunpack.c.h.b16 %v1325
        %v1542 = vunpack.c.l.b16 %v1326
        %v1543 = vunpack.c.h.b16 %v1326
        %v1544 = vunpack.c.l.b16 %v1327
        %v1545 = vunpack.c.l.b16 %v1328
        %v1546 = vunpack.c.h.b16 %v1328
        %v1547 = vunpack.c.l.b16 %v1329
        %v1548 = vunpack.c.h.b16 %v1329
        %v1549 = vunpack.c.l.b16 %v1330
        %v1550 = vpack.c.b16 %v1435, %v1430
        %v1551 = vpack.c.b16 %v1436, %v1431
        %v1552 = vpack.c.b16 %v1437, %v1432
        %v1553 = vpack.c.b16 %v1438, %v1433
        %v1554 = vpack.c.b16 %v1439, %v1434
        %v1555 = vpack.c.b16 %v1445, %v1440
        %v1556 = vpack.c.b16 %v1446, %v1441
        %v1557 = vpack.c.b16 %v1447, %v1442
        %v1558 = vpack.c.b16 %v1448, %v1443
        %v1559 = vpack.c.b16 %v1449, %v1444
        %v1560 = vpack.c.b16 %v1455, %v1450
        %v1561 = vpack.c.b16 %v1456, %v1451
        %v1562 = vpack.c.b16 %v1457, %v1452
        %v1563 = vpack.c.b16 %v1458, %v1453
        %v1564 = vpack.c.b16 %v1459, %v1454
        %v1565 = vpack.c.b16 %v1465, %v1460
        %v1566 = vpack.c.b16 %v1466, %v1461
        %v1567 = vpack.c.b16 %v1467, %v1462
        %v1568 = vpack.c.b16 %v1468, %v1463
        %v1569 = vpack.c.b16 %v1469, %v1464
        %v1570 = vpack.c.b16 %v1475, %v1470
        %v1571 = vpack.c.b16 %v1476, %v1471
        %v1572 = vpack.c.b16 %v1477, %v1472
        %v1573 = vpack.c.b16 %v1478, %v1473
        %v1574 = vpack.c.b16 %v1479, %v1474
        %v1575 = vpack.c.b16 %v1485, %v1480
        %v1576 = vpack.c.b16 %v1486, %v1481
        %v1577 = vpack.c.b16 %v1487, %v1482
        %v1578 = vpack.c.b16 %v1488, %v1483
        %v1579 = vpack.c.b16 %v1489, %v1484
        %v1580 = vpack.c.b16 %v1495, %v1490
        %v1581 = vpack.c.b16 %v1496, %v1491
        %v1582 = vpack.c.b16 %v1497, %v1492
        %v1583 = vpack.c.b16 %v1498, %v1493
        %v1584 = vpack.c.b16 %v1499, %v1494
        %v1585 = vpack.c.b16 %v1505, %v1500
        %v1586 = vpack.c.b16 %v1506, %v1501
        %v1587 = vpack.c.b16 %v1507, %v1502
        %v1588 = vpack.c.b16 %v1508, %v1503
        %v1589 = vpack.c.b16 %v1509, %v1504
        %v1590 = vpack.c.b16 %v1515, %v1510
        %v1591 = vpack.c.b16 %v1516, %v1511
        %v1592 = vpack.c.b16 %v1517, %v1512
        %v1593 = vpack.c.b16 %v1518, %v1513
        %v1594 = vpack.c.b16 %v1519, %v1514
        %v1595 = vpack.c.b16 %v1525, %v1520
        %v1596 = vpack.c.b16 %v1526, %v1521
        %v1597 = vpack.c.b16 %v1527, %v1522
        %v1598 = vpack.c.b16 %v1528, %v1523
        %v1599 = vpack.c.b16 %v1529, %v1524
        %v1600 = vpack.c.b16 %v1535, %v1530
        %v1601 = vpack.c.b16 %v1536, %v1531
        %v1602 = vpack.c.b16 %v1537, %v1532
        %v1603 = vpack.c.b16 %v1538, %v1533
        %v1604 = vpack.c.b16 %v1539, %v1534
        %v1605 = vpack.c.b16 %v1545, %v1540
        %v1606 = vpack.c.b16 %v1546, %v1541
        %v1607 = vpack.c.b16 %v1547, %v1542
        %v1608 = vpack.c.b16 %v1548, %v1543
        %v1609 = vpack.c.b16 %v1549, %v1544
        %v1671 = vsel %vm867, %v1244, 0
        %v1674 = vsel %vm867, %v1246, 0
        %v1677 = vsel %vm867, %v1248, 0
        %v1680 = vsel %vm867, %v1250, 0
        %v1683 = vsel %vm867, %v1252, 0
        %v1686 = vsel %vm867, %v1254, 0
        %v1689 = vsel %vm867, %v1256, 0
        %v1692 = vsel %vm867, %v1258, 0
        %1694 = vmatprep.subr.bf16.mxu0 %v1586
        %1695 = vmatpush1.bf16.msra.mxu0 %v1585
        %1696 = vmatprep.subr.bf16.mxu0 %v1581
        %1697 = vmatpush1.bf16.msra.mxu0 %v1580
        %1698 = vmatprep.subr.bf16.mxu0 %v1576
        %1699 = vmatpush1.bf16.msra.mxu0 %v1575
        %1700 = vmatprep.subr.bf16.mxu0 %v1571
        %1701 = vmatpush1.bf16.msra.mxu0 %v1570
        %1702 = vmatprep.subr.bf16.mxu0 %v1566
        %1703 = vmatpush1.bf16.msra.mxu0 %v1565
        %1704 = vmatprep.subr.bf16.mxu0 %v1561
        %1705 = vmatpush1.bf16.msra.mxu0 %v1560
        %1706 = vmatprep.subr.bf16.mxu0 %v1556
        %1707 = vmatpush1.bf16.msra.mxu0 %v1555
        %1708 = vmatprep.subr.bf16.mxu0 %v1551
        %1709 = vmatpush1.bf16.msra.mxu0 %v1550
        %1710 = vmatprep.subr.bf16.mxu0 0
        %1711 = vmatpush2.bf16.msra.mxu0 0
        %1712 = vmatprep.subr.bf16.mxu0 0
        %1713 = vmatpush2.bf16.msra.mxu0 0
        %1714 = vmatprep.subr.bf16.mxu0 0
        %1715 = vmatpush2.bf16.msra.mxu0 0
        %1716 = vmatprep.subr.bf16.mxu0 0
        %1717 = vmatpush2.bf16.msra.mxu0 0
        %1718 = vmatprep.subr.bf16.mxu0 %v1606
        %1719 = vmatpush2.bf16.msra.mxu0 %v1605
        %1720 = vmatprep.subr.bf16.mxu0 %v1601
        %1721 = vmatpush2.bf16.msra.mxu0 %v1600
        %1722 = vmatprep.subr.bf16.mxu0 %v1596
        %1723 = vmatpush2.bf16.msra.mxu0 %v1595
        %1724 = vmatprep.subr.bf16.mxu0 %v1591
        %1725 = vmatpush2.bf16.msra.mxu0 %v1590
        %1726 = vmatprep.mubr.bf16.mxu0 %v1671
        %1727 = vmatmul.mubr.bf16.gmra.mxu0 %v1243
        %v1728 = vpop.f32.mrf.mxu0
        %v1729 = vadd.f32 %v1336, %v1728
        %v1730 = vpop.f32.mrf.mxu0
        %v1731 = vadd.f32 %v1340, %v1730
        %v1732 = vpop.f32.mrf.mxu0
        %v1733 = vadd.f32 %v1336, %v1732
        %v1734 = vpop.f32.mrf.mxu0
        %v1735 = vadd.f32 %v1340, %v1734
        %1736 = vmatprep.mubr.bf16.mxu0 %v1674
        %1737 = vmatmul.mubr.bf16.gmra.mxu0 %v1245
        %v1738 = vpop.f32.mrf.mxu0
        %v1739 = vadd.f32 %v1336, %v1738
        %v1740 = vpop.f32.mrf.mxu0
        %v1741 = vadd.f32 %v1340, %v1740
        %v1742 = vpop.f32.mrf.mxu0
        %v1743 = vadd.f32 %v1336, %v1742
        %v1744 = vpop.f32.mrf.mxu0
        %v1745 = vadd.f32 %v1340, %v1744
        %1746 = vmatprep.mubr.bf16.mxu0 %v1677
        %1747 = vmatmul.mubr.bf16.gmra.mxu0 %v1247
        %v1748 = vpop.f32.mrf.mxu0
        %v1749 = vadd.f32 %v1336, %v1748
        %v1750 = vpop.f32.mrf.mxu0
        %v1751 = vadd.f32 %v1340, %v1750
        %v1752 = vpop.f32.mrf.mxu0
        %v1753 = vadd.f32 %v1336, %v1752
        %v1754 = vpop.f32.mrf.mxu0
        %v1755 = vadd.f32 %v1340, %v1754
        %1756 = vmatprep.mubr.bf16.mxu0 %v1680
        %1757 = vmatmul.mubr.bf16.gmra.mxu0 %v1249
        %v1758 = vpop.f32.mrf.mxu0
        %v1759 = vadd.f32 %v1336, %v1758
        %v1760 = vpop.f32.mrf.mxu0
        %v1761 = vadd.f32 %v1340, %v1760
        %v1762 = vpop.f32.mrf.mxu0
        %v1763 = vadd.f32 %v1336, %v1762
        %v1764 = vpop.f32.mrf.mxu0
        %v1765 = vadd.f32 %v1340, %v1764
        %1766 = vmatprep.mubr.bf16.mxu0 %v1683
        %1767 = vmatmul.mubr.bf16.gmra.mxu0 %v1251
        %v1768 = vpop.f32.mrf.mxu0
        %v1769 = vadd.f32 %v1336, %v1768
        %v1770 = vpop.f32.mrf.mxu0
        %v1771 = vadd.f32 %v1340, %v1770
        %v1772 = vpop.f32.mrf.mxu0
        %v1773 = vadd.f32 %v1336, %v1772
        %v1774 = vpop.f32.mrf.mxu0
        %v1775 = vadd.f32 %v1340, %v1774
        %1776 = vmatprep.mubr.bf16.mxu0 %v1686
        %1777 = vmatmul.mubr.bf16.gmra.mxu0 %v1253
        %v1778 = vpop.f32.mrf.mxu0
        %v1779 = vadd.f32 %v1336, %v1778
        %v1780 = vpop.f32.mrf.mxu0
        %v1781 = vadd.f32 %v1340, %v1780
        %v1782 = vpop.f32.mrf.mxu0
        %v1783 = vadd.f32 %v1336, %v1782
        %v1784 = vpop.f32.mrf.mxu0
        %v1785 = vadd.f32 %v1340, %v1784
        %1786 = vmatprep.mubr.bf16.mxu0 %v1689
        %1787 = vmatmul.mubr.bf16.gmra.mxu0 %v1255
        %v1788 = vpop.f32.mrf.mxu0
        %v1789 = vadd.f32 %v1336, %v1788
        %v1790 = vpop.f32.mrf.mxu0
        %v1791 = vadd.f32 %v1340, %v1790
        %v1792 = vpop.f32.mrf.mxu0
        %v1793 = vadd.f32 %v1336, %v1792
        %v1794 = vpop.f32.mrf.mxu0
        %v1795 = vadd.f32 %v1340, %v1794
        %1796 = vmatprep.mubr.bf16.mxu0 %v1692
        %1797 = vmatmul.mubr.bf16.gmra.mxu0 %v1257
        %v1798 = vpop.f32.mrf.mxu0
        %v1799 = vadd.f32 %v1336, %v1798
        %v1800 = vpop.f32.mrf.mxu0
        %v1801 = vadd.f32 %v1340, %v1800
        %v1802 = vpop.f32.mrf.mxu0
        %v1803 = vadd.f32 %v1336, %v1802
        %v1804 = vpop.f32.mrf.mxu0
        %v1805 = vadd.f32 %v1340, %v1804
        %1806 = vdwg.mxu0
        %1807 = vmatprep.subr.bf16.mxu0 %v1588
        %1808 = vmatpush1.bf16.msra.mxu0 %v1587
        %1809 = vmatprep.subr.bf16.mxu0 %v1583
        %1810 = vmatpush1.bf16.msra.mxu0 %v1582
        %1811 = vmatprep.subr.bf16.mxu0 %v1578
        %1812 = vmatpush1.bf16.msra.mxu0 %v1577
        %1813 = vmatprep.subr.bf16.mxu0 %v1573
        %1814 = vmatpush1.bf16.msra.mxu0 %v1572
        %1815 = vmatprep.subr.bf16.mxu0 %v1568
        %1816 = vmatpush1.bf16.msra.mxu0 %v1567
        %1817 = vmatprep.subr.bf16.mxu0 %v1563
        %1818 = vmatpush1.bf16.msra.mxu0 %v1562
        %1819 = vmatprep.subr.bf16.mxu0 %v1558
        %1820 = vmatpush1.bf16.msra.mxu0 %v1557
        %1821 = vmatprep.subr.bf16.mxu0 %v1553
        %1822 = vmatpush1.bf16.msra.mxu0 %v1552
        %1823 = vmatprep.subr.bf16.mxu0 0
        %1824 = vmatpush2.bf16.msra.mxu0 0
        %1825 = vmatprep.subr.bf16.mxu0 0
        %1826 = vmatpush2.bf16.msra.mxu0 0
        %1827 = vmatprep.subr.bf16.mxu0 0
        %1828 = vmatpush2.bf16.msra.mxu0 0
        %1829 = vmatprep.subr.bf16.mxu0 0
        %1830 = vmatpush2.bf16.msra.mxu0 0
        %1831 = vmatprep.subr.bf16.mxu0 %v1608
        %1832 = vmatpush2.bf16.msra.mxu0 %v1607
        %1833 = vmatprep.subr.bf16.mxu0 %v1603
        %1834 = vmatpush2.bf16.msra.mxu0 %v1602
        %1835 = vmatprep.subr.bf16.mxu0 %v1598
        %1836 = vmatpush2.bf16.msra.mxu0 %v1597
        %1837 = vmatprep.subr.bf16.mxu0 %v1593
        %1838 = vmatpush2.bf16.msra.mxu0 %v1592
        %1839 = vmatprep.mubr.bf16.mxu0 %v1671
        %1840 = vmatmul.mubr.bf16.gmra.mxu0 %v1243
        %v1841 = vpop.f32.mrf.mxu0
        %v1842 = vadd.f32 %v1344, %v1841
        %v1843 = vpop.f32.mrf.mxu0
        %v1844 = vadd.f32 %v1348, %v1843
        %v1845 = vpop.f32.mrf.mxu0
        %v1846 = vadd.f32 %v1344, %v1845
        %v1847 = vpop.f32.mrf.mxu0
        %v1848 = vadd.f32 %v1348, %v1847
        %1849 = vmatprep.mubr.bf16.mxu0 %v1674
        %1850 = vmatmul.mubr.bf16.gmra.mxu0 %v1245
        %v1851 = vpop.f32.mrf.mxu0
        %v1852 = vadd.f32 %v1344, %v1851
        %v1853 = vpop.f32.mrf.mxu0
        %v1854 = vadd.f32 %v1348, %v1853
        %v1855 = vpop.f32.mrf.mxu0
        %v1856 = vadd.f32 %v1344, %v1855
        %v1857 = vpop.f32.mrf.mxu0
        %v1858 = vadd.f32 %v1348, %v1857
        %1859 = vmatprep.mubr.bf16.mxu0 %v1677
        %1860 = vmatmul.mubr.bf16.gmra.mxu0 %v1247
        %v1861 = vpop.f32.mrf.mxu0
        %v1862 = vadd.f32 %v1344, %v1861
        %v1863 = vpop.f32.mrf.mxu0
        %v1864 = vadd.f32 %v1348, %v1863
        %v1865 = vpop.f32.mrf.mxu0
        %v1866 = vadd.f32 %v1344, %v1865
        %v1867 = vpop.f32.mrf.mxu0
        %v1868 = vadd.f32 %v1348, %v1867
        %1869 = vmatprep.mubr.bf16.mxu0 %v1680
        %1870 = vmatmul.mubr.bf16.gmra.mxu0 %v1249
        %v1871 = vpop.f32.mrf.mxu0
        %v1872 = vadd.f32 %v1344, %v1871
        %v1873 = vpop.f32.mrf.mxu0
        %v1874 = vadd.f32 %v1348, %v1873
        %v1875 = vpop.f32.mrf.mxu0
        %v1876 = vadd.f32 %v1344, %v1875
        %v1877 = vpop.f32.mrf.mxu0
        %v1878 = vadd.f32 %v1348, %v1877
        %1879 = vmatprep.mubr.bf16.mxu0 %v1683
        %1880 = vmatmul.mubr.bf16.gmra.mxu0 %v1251
        %v1881 = vpop.f32.mrf.mxu0
        %v1882 = vadd.f32 %v1344, %v1881
        %v1883 = vpop.f32.mrf.mxu0
        %v1884 = vadd.f32 %v1348, %v1883
        %v1885 = vpop.f32.mrf.mxu0
        %v1886 = vadd.f32 %v1344, %v1885
        %v1887 = vpop.f32.mrf.mxu0
        %v1888 = vadd.f32 %v1348, %v1887
        %1889 = vmatprep.mubr.bf16.mxu0 %v1686
        %1890 = vmatmul.mubr.bf16.gmra.mxu0 %v1253
        %v1891 = vpop.f32.mrf.mxu0
        %v1892 = vadd.f32 %v1344, %v1891
        %v1893 = vpop.f32.mrf.mxu0
        %v1894 = vadd.f32 %v1348, %v1893
        %v1895 = vpop.f32.mrf.mxu0
        %v1896 = vadd.f32 %v1344, %v1895
        %v1897 = vpop.f32.mrf.mxu0
        %v1898 = vadd.f32 %v1348, %v1897
        %1899 = vmatprep.mubr.bf16.mxu0 %v1689
        %1900 = vmatmul.mubr.bf16.gmra.mxu0 %v1255
        %v1901 = vpop.f32.mrf.mxu0
        %v1902 = vadd.f32 %v1344, %v1901
        %v1903 = vpop.f32.mrf.mxu0
        %v1904 = vadd.f32 %v1348, %v1903
        %v1905 = vpop.f32.mrf.mxu0
        %v1906 = vadd.f32 %v1344, %v1905
        %v1907 = vpop.f32.mrf.mxu0
        %v1908 = vadd.f32 %v1348, %v1907
        %1909 = vmatprep.mubr.bf16.mxu0 %v1692
        %1910 = vmatmul.mubr.bf16.gmra.mxu0 %v1257
        %v1911 = vpop.f32.mrf.mxu0
        %v1912 = vadd.f32 %v1344, %v1911
        %v1913 = vpop.f32.mrf.mxu0
        %v1914 = vadd.f32 %v1348, %v1913
        %v1915 = vpop.f32.mrf.mxu0
        %v1916 = vadd.f32 %v1344, %v1915
        %v1917 = vpop.f32.mrf.mxu0
        %v1918 = vadd.f32 %v1348, %v1917
        %1919 = vdwg.mxu0
        %1920 = vmatprep.subr.bf16.mxu0 0
        %1921 = vmatpush1.bf16.msra.mxu0 %v1589
        %1922 = vmatprep.subr.bf16.mxu0 0
        %1923 = vmatpush1.bf16.msra.mxu0 %v1584
        %1924 = vmatprep.subr.bf16.mxu0 0
        %1925 = vmatpush1.bf16.msra.mxu0 %v1579
        %1926 = vmatprep.subr.bf16.mxu0 0
        %1927 = vmatpush1.bf16.msra.mxu0 %v1574
        %1928 = vmatprep.subr.bf16.mxu0 0
        %1929 = vmatpush1.bf16.msra.mxu0 %v1569
        %1930 = vmatprep.subr.bf16.mxu0 0
        %1931 = vmatpush1.bf16.msra.mxu0 %v1564
        %1932 = vmatprep.subr.bf16.mxu0 0
        %1933 = vmatpush1.bf16.msra.mxu0 %v1559
        %1934 = vmatprep.subr.bf16.mxu0 0
        %1935 = vmatpush1.bf16.msra.mxu0 %v1554
        %1936 = vmatprep.subr.bf16.mxu0 0
        %1937 = vmatpush2.bf16.msra.mxu0 0
        %1938 = vmatprep.subr.bf16.mxu0 0
        %1939 = vmatpush2.bf16.msra.mxu0 0
        %1940 = vmatprep.subr.bf16.mxu0 0
        %1941 = vmatpush2.bf16.msra.mxu0 0
        %1942 = vmatprep.subr.bf16.mxu0 0
        %1943 = vmatpush2.bf16.msra.mxu0 0
        %1944 = vmatprep.subr.bf16.mxu0 0
        %1945 = vmatpush2.bf16.msra.mxu0 %v1609
        %1946 = vmatprep.subr.bf16.mxu0 0
        %1947 = vmatpush2.bf16.msra.mxu0 %v1604
        %1948 = vmatprep.subr.bf16.mxu0 0
        %1949 = vmatpush2.bf16.msra.mxu0 %v1599
        %1950 = vmatprep.subr.bf16.mxu0 0
        %1951 = vmatpush2.bf16.msra.mxu0 %v1594
        %1952 = vmatprep.mubr.bf16.mxu0 %v1671
        %1953 = vmatmul.mubr.bf16.gmra.mxu0 %v1243
        %v1954 = vpop.f32.mrf.mxu0
        %v1955 = vadd.f32 %v1352, %v1954
        %v1956 = vpop.f32.mrf.mxu0
        %v1957 = vpop.f32.mrf.mxu0
        %v1958 = vadd.f32 %v1352, %v1957
        %v1959 = vpop.f32.mrf.mxu0
        %1960 = vmatprep.mubr.bf16.mxu0 %v1674
        %1961 = vmatmul.mubr.bf16.gmra.mxu0 %v1245
        %v1962 = vpop.f32.mrf.mxu0
        %v1963 = vadd.f32 %v1352, %v1962
        %v1964 = vpop.f32.mrf.mxu0
        %v1965 = vpop.f32.mrf.mxu0
        %v1966 = vadd.f32 %v1352, %v1965
        %v1967 = vpop.f32.mrf.mxu0
        %1968 = vmatprep.mubr.bf16.mxu0 %v1677
        %1969 = vmatmul.mubr.bf16.gmra.mxu0 %v1247
        %v1970 = vpop.f32.mrf.mxu0
        %v1971 = vadd.f32 %v1352, %v1970
        %v1972 = vpop.f32.mrf.mxu0
        %v1973 = vpop.f32.mrf.mxu0
        %v1974 = vadd.f32 %v1352, %v1973
        %v1975 = vpop.f32.mrf.mxu0
        %1976 = vmatprep.mubr.bf16.mxu0 %v1680
        %1977 = vmatmul.mubr.bf16.gmra.mxu0 %v1249
        %v1978 = vpop.f32.mrf.mxu0
        %v1979 = vadd.f32 %v1352, %v1978
        %v1980 = vpop.f32.mrf.mxu0
        %v1981 = vpop.f32.mrf.mxu0
        %v1982 = vadd.f32 %v1352, %v1981
        %v1983 = vpop.f32.mrf.mxu0
        %1984 = vmatprep.mubr.bf16.mxu0 %v1683
        %1985 = vmatmul.mubr.bf16.gmra.mxu0 %v1251
        %v1986 = vpop.f32.mrf.mxu0
        %v1987 = vadd.f32 %v1352, %v1986
        %v1988 = vpop.f32.mrf.mxu0
        %v1989 = vpop.f32.mrf.mxu0
        %v1990 = vadd.f32 %v1352, %v1989
        %v1991 = vpop.f32.mrf.mxu0
        %1992 = vmatprep.mubr.bf16.mxu0 %v1686
        %1993 = vmatmul.mubr.bf16.gmra.mxu0 %v1253
        %v1994 = vpop.f32.mrf.mxu0
        %v1995 = vadd.f32 %v1352, %v1994
        %v1996 = vpop.f32.mrf.mxu0
        %v1997 = vpop.f32.mrf.mxu0
        %v1998 = vadd.f32 %v1352, %v1997
        %v1999 = vpop.f32.mrf.mxu0
        %2000 = vmatprep.mubr.bf16.mxu0 %v1689
        %2001 = vmatmul.mubr.bf16.gmra.mxu0 %v1255
        %v2002 = vpop.f32.mrf.mxu0
        %v2003 = vadd.f32 %v1352, %v2002
        %v2004 = vpop.f32.mrf.mxu0
        %v2005 = vpop.f32.mrf.mxu0
        %v2006 = vadd.f32 %v1352, %v2005
        %v2007 = vpop.f32.mrf.mxu0
        %2008 = vmatprep.mubr.bf16.mxu0 %v1692
        %2009 = vmatmul.mubr.bf16.gmra.mxu0 %v1257
        %v2010 = vpop.f32.mrf.mxu0
        %v2011 = vadd.f32 %v1352, %v2010
        %v2012 = vpop.f32.mrf.mxu0
        %v2013 = vpop.f32.mrf.mxu0
        %v2014 = vadd.f32 %v1352, %v2013
        %v2015 = vpop.f32.mrf.mxu0
        %2016 = vdwg.mxu0
        %v2017 = vmul.f32 %v1729, 0.17677669
        %v2018 = vmul.f32 %v1733, 0.17677669
        %v2019 = vmul.f32 %v1739, 0.17677669
        %v2020 = vmul.f32 %v1743, 0.17677669
        %v2021 = vmul.f32 %v1749, 0.17677669
        %v2022 = vmul.f32 %v1753, 0.17677669
        %v2023 = vmul.f32 %v1759, 0.17677669
        %v2024 = vmul.f32 %v1763, 0.17677669
        %v2025 = vmul.f32 %v1769, 0.17677669
        %v2026 = vmul.f32 %v1773, 0.17677669
        %v2027 = vmul.f32 %v1779, 0.17677669
        %v2028 = vmul.f32 %v1783, 0.17677669
        %v2029 = vmul.f32 %v1789, 0.17677669
        %v2030 = vmul.f32 %v1793, 0.17677669
        %v2031 = vmul.f32 %v1799, 0.17677669
        %v2032 = vmul.f32 %v1803, 0.17677669
        %v2033 = vpack.c.bf16 %v2018, %v2017
        %v2034 = vpack.c.bf16 %v2020, %v2019
        %v2035 = vpack.c.bf16 %v2022, %v2021
        %v2036 = vpack.c.bf16 %v2024, %v2023
        %v2037 = vpack.c.bf16 %v2026, %v2025
        %v2038 = vpack.c.bf16 %v2028, %v2027
        %v2039 = vpack.c.bf16 %v2030, %v2029
        %v2040 = vpack.c.bf16 %v2032, %v2031
        %v2041 = vpack.c.bf16 %v1735, %v1731
        %v2042 = vpack.c.bf16 %v1745, %v1741
        %v2043 = vpack.c.bf16 %v1755, %v1751
        %v2044 = vpack.c.bf16 %v1765, %v1761
        %v2045 = vpack.c.bf16 %v1775, %v1771
        %v2046 = vpack.c.bf16 %v1785, %v1781
        %v2047 = vpack.c.bf16 %v1795, %v1791
        %v2048 = vpack.c.bf16 %v1805, %v1801
        %v2049 = vpack.c.bf16 %v1848, %v1844
        %v2050 = vpack.c.bf16 %v1858, %v1854
        %v2051 = vpack.c.bf16 %v1868, %v1864
        %v2052 = vpack.c.bf16 %v1878, %v1874
        %v2053 = vpack.c.bf16 %v1888, %v1884
        %v2054 = vpack.c.bf16 %v1898, %v1894
        %v2055 = vpack.c.bf16 %v1908, %v1904
        %v2056 = vpack.c.bf16 %v1918, %v1914
        %v2058 = vlaneseq
        %v2059 = vshrl.u32 %v2058, 7
        %v2060 = vsub.s32 0, %v2059
        %v2061 = vrot.slane %v864, %v2060
        %2071 = vrot.lane.b32.xlu0 %v2041, 64
        %v2072 = vpop.permute.xlu0 %2071
        %2073 = vrot.lane.b32.xlu0 %v2042, 64
        %v2074 = vpop.permute.xlu0 %2073
        %2075 = vrot.lane.b32.xlu0 %v2043, 64
        %v2076 = vpop.permute.xlu0 %2075
        %2077 = vrot.lane.b32.xlu0 %v2044, 64
        %v2078 = vpop.permute.xlu0 %2077
        %2079 = vrot.lane.b32.xlu0 %v2045, 64
        %v2080 = vpop.permute.xlu0 %2079
        %2081 = vrot.lane.b32.xlu0 %v2046, 64
        %v2082 = vpop.permute.xlu0 %2081
        %2083 = vrot.lane.b32.xlu0 %v2047, 64
        %v2084 = vpop.permute.xlu0 %2083
        %2085 = vrot.lane.b32.xlu0 %v2048, 64
        %v2086 = vpop.permute.xlu0 %2085
        %vm2087 = vcmask 261120
        %v2089 = vsel %vm2087, %v2033, 0
        %v2092 = vsel %vm2087, %v2034, 0
        %v2095 = vsel %vm2087, %v2035, 0
        %v2098 = vsel %vm2087, %v2036, 0
        %v2101 = vsel %vm2087, %v2037, 0
        %v2104 = vsel %vm2087, %v2038, 0
        %v2107 = vsel %vm2087, %v2039, 0
        %v2110 = vsel %vm2087, %v2040, 0
        %v2113 = vsel %vm2087, %v2072, 0
        %v2116 = vsel %vm2087, %v2074, 0
        %v2119 = vsel %vm2087, %v2076, 0
        %v2122 = vsel %vm2087, %v2078, 0
        %v2125 = vsel %vm2087, %v2080, 0
        %v2128 = vsel %vm2087, %v2082, 0
        %v2131 = vsel %vm2087, %v2084, 0
        %v2134 = vsel %vm2087, %v2086, 0
        %2136 = vmatprep.subr.bf16.mxu0 0
        %2137 = vmatpush1.bf16.xpose.msra.mxu0 %v2134
        %2138 = vmatprep.subr.bf16.mxu0 0
        %2139 = vmatpush1.bf16.xpose.msra.mxu0 %v2131
        %2140 = vmatprep.subr.bf16.mxu0 0
        %2141 = vmatpush1.bf16.xpose.msra.mxu0 %v2128
        %2142 = vmatprep.subr.bf16.mxu0 0
        %2143 = vmatpush1.bf16.xpose.msra.mxu0 %v2125
        %2144 = vmatprep.subr.bf16.mxu0 0
        %2145 = vmatpush1.bf16.xpose.msra.mxu0 %v2122
        %2146 = vmatprep.subr.bf16.mxu0 0
        %2147 = vmatpush1.bf16.xpose.msra.mxu0 %v2119
        %2148 = vmatprep.subr.bf16.mxu0 0
        %2149 = vmatpush1.bf16.xpose.msra.mxu0 %v2116
        %2150 = vmatprep.subr.bf16.mxu0 0
        %2151 = vmatpush1.bf16.xpose.msra.mxu0 %v2113
        %2152 = vmatprep.subr.bf16.mxu0 0
        %2153 = vmatpush2.bf16.xpose.msra.mxu0 0
        %2154 = vmatprep.subr.bf16.mxu0 0
        %2155 = vmatpush2.bf16.xpose.msra.mxu0 0
        %2156 = vmatprep.subr.bf16.mxu0 0
        %2157 = vmatpush2.bf16.xpose.msra.mxu0 0
        %2158 = vmatprep.subr.bf16.mxu0 0
        %2159 = vmatpush2.bf16.xpose.msra.mxu0 0
        %2160 = vmatprep.subr.bf16.mxu0 0
        %2161 = vmatpush2.bf16.xpose.msra.mxu0 0
        %2162 = vmatprep.subr.bf16.mxu0 0
        %2163 = vmatpush2.bf16.xpose.msra.mxu0 0
        %2164 = vmatprep.subr.bf16.mxu0 0
        %2165 = vmatpush2.bf16.xpose.msra.mxu0 0
        %2166 = vmatprep.subr.bf16.mxu0 0
        %2167 = vmatpush2.bf16.xpose.msra.mxu0 0
        %2168 = vmatprep.mubr.bf16.mxu0 0
        %2169 = vmatmul.mubr.bf16.gmra.mxu0 %v2089
        %v2170 = vpop.f32.mrf.mxu0
        %v2171 = vadd.f32 %v2061, %v2170
        %v2172 = vpop.f32.mrf.mxu0
        %v2173 = vpop.f32.mrf.mxu0
        %v2174 = vadd.f32 %v2061, %v2173
        %v2175 = vpop.f32.mrf.mxu0
        %2176 = vmatprep.mubr.bf16.mxu0 0
        %2177 = vmatmul.mubr.bf16.gmra.mxu0 %v2092
        %v2178 = vpop.f32.mrf.mxu0
        %v2179 = vadd.f32 %v2061, %v2178
        %v2180 = vpop.f32.mrf.mxu0
        %v2181 = vpop.f32.mrf.mxu0
        %v2182 = vadd.f32 %v2061, %v2181
        %v2183 = vpop.f32.mrf.mxu0
        %2184 = vmatprep.mubr.bf16.mxu0 0
        %2185 = vmatmul.mubr.bf16.gmra.mxu0 %v2095
        %v2186 = vpop.f32.mrf.mxu0
        %v2187 = vadd.f32 %v2061, %v2186
        %v2188 = vpop.f32.mrf.mxu0
        %v2189 = vpop.f32.mrf.mxu0
        %v2190 = vadd.f32 %v2061, %v2189
        %v2191 = vpop.f32.mrf.mxu0
        %2192 = vmatprep.mubr.bf16.mxu0 0
        %2193 = vmatmul.mubr.bf16.gmra.mxu0 %v2098
        %v2194 = vpop.f32.mrf.mxu0
        %v2195 = vadd.f32 %v2061, %v2194
        %v2196 = vpop.f32.mrf.mxu0
        %v2197 = vpop.f32.mrf.mxu0
        %v2198 = vadd.f32 %v2061, %v2197
        %v2199 = vpop.f32.mrf.mxu0
        %2200 = vmatprep.mubr.bf16.mxu0 0
        %2201 = vmatmul.mubr.bf16.gmra.mxu0 %v2101
        %v2202 = vpop.f32.mrf.mxu0
        %v2203 = vadd.f32 %v2061, %v2202
        %v2204 = vpop.f32.mrf.mxu0
        %v2205 = vpop.f32.mrf.mxu0
        %v2206 = vadd.f32 %v2061, %v2205
        %v2207 = vpop.f32.mrf.mxu0
        %2208 = vmatprep.mubr.bf16.mxu0 0
        %2209 = vmatmul.mubr.bf16.gmra.mxu0 %v2104
        %v2210 = vpop.f32.mrf.mxu0
        %v2211 = vadd.f32 %v2061, %v2210
        %v2212 = vpop.f32.mrf.mxu0
        %v2213 = vpop.f32.mrf.mxu0
        %v2214 = vadd.f32 %v2061, %v2213
        %v2215 = vpop.f32.mrf.mxu0
        %2216 = vmatprep.mubr.bf16.mxu0 0
        %2217 = vmatmul.mubr.bf16.gmra.mxu0 %v2107
        %v2218 = vpop.f32.mrf.mxu0
        %v2219 = vadd.f32 %v2061, %v2218
        %v2220 = vpop.f32.mrf.mxu0
        %v2221 = vpop.f32.mrf.mxu0
        %v2222 = vadd.f32 %v2061, %v2221
        %v2223 = vpop.f32.mrf.mxu0
        %2224 = vmatprep.mubr.bf16.mxu0 0
        %2225 = vmatmul.mubr.bf16.gmra.mxu0 %v2110
        %v2226 = vpop.f32.mrf.mxu0
        %v2227 = vadd.f32 %v2061, %v2226
        %v2228 = vpop.f32.mrf.mxu0
        %v2229 = vpop.f32.mrf.mxu0
        %v2230 = vadd.f32 %v2061, %v2229
        %v2231 = vpop.f32.mrf.mxu0
        %2232 = vdwg.mxu0
        %2233 = vmax.xlane.f32.xlu0 %v2171
        %v2234 = vpop.xlane.xlu0 %2233
        %2235 = vmax.xlane.f32.xlu0 %v2174
        %v2236 = vpop.xlane.xlu0 %2235
        %2237 = vmax.xlane.f32.xlu0 %v2179
        %v2238 = vpop.xlane.xlu0 %2237
        %2239 = vmax.xlane.f32.xlu0 %v2182
        %v2240 = vpop.xlane.xlu0 %2239
        %2241 = vmax.xlane.f32.xlu0 %v2187
        %v2242 = vpop.xlane.xlu0 %2241
        %2243 = vmax.xlane.f32.xlu0 %v2190
        %v2244 = vpop.xlane.xlu0 %2243
        %2245 = vmax.xlane.f32.xlu0 %v2195
        %v2246 = vpop.xlane.xlu0 %2245
        %2247 = vmax.xlane.f32.xlu0 %v2198
        %v2248 = vpop.xlane.xlu0 %2247
        %2249 = vmax.xlane.f32.xlu0 %v2203
        %v2250 = vpop.xlane.xlu0 %2249
        %2251 = vmax.xlane.f32.xlu0 %v2206
        %v2252 = vpop.xlane.xlu0 %2251
        %2253 = vmax.xlane.f32.xlu0 %v2211
        %v2254 = vpop.xlane.xlu0 %2253
        %2255 = vmax.xlane.f32.xlu0 %v2214
        %v2256 = vpop.xlane.xlu0 %2255
        %2257 = vmax.xlane.f32.xlu0 %v2219
        %v2258 = vpop.xlane.xlu0 %2257
        %2259 = vmax.xlane.f32.xlu0 %v2222
        %v2260 = vpop.xlane.xlu0 %2259
        %2261 = vmax.xlane.f32.xlu0 %v2227
        %v2262 = vpop.xlane.xlu0 %2261
        %2263 = vmax.xlane.f32.xlu0 %v2230
        %v2264 = vpop.xlane.xlu0 %2263
        %v2265 = vsub.f32 %v2171, %v2234
        %v2266 = vsub.f32 %v2174, %v2236
        %v2267 = vsub.f32 %v2179, %v2238
        %v2268 = vsub.f32 %v2182, %v2240
        %v2269 = vsub.f32 %v2187, %v2242
        %v2270 = vsub.f32 %v2190, %v2244
        %v2271 = vsub.f32 %v2195, %v2246
        %v2272 = vsub.f32 %v2198, %v2248
        %v2273 = vsub.f32 %v2203, %v2250
        %v2274 = vsub.f32 %v2206, %v2252
        %v2275 = vsub.f32 %v2211, %v2254
        %v2276 = vsub.f32 %v2214, %v2256
        %v2277 = vsub.f32 %v2219, %v2258
        %v2278 = vsub.f32 %v2222, %v2260
        %v2279 = vsub.f32 %v2227, %v2262
        %v2280 = vsub.f32 %v2230, %v2264
        %v2281 = vmul.f32 %v2265, 1.442695
        %v2282 = vpow.pop %v2281
        %v2283 = vmul.f32 %v2266, 1.442695
        %v2284 = vpow.pop %v2283
        %v2285 = vmul.f32 %v2267, 1.442695
        %v2286 = vpow.pop %v2285
        %v2287 = vmul.f32 %v2268, 1.442695
        %v2288 = vpow.pop %v2287
        %v2289 = vmul.f32 %v2269, 1.442695
        %v2290 = vpow.pop %v2289
        %v2291 = vmul.f32 %v2270, 1.442695
        %v2292 = vpow.pop %v2291
        %v2293 = vmul.f32 %v2271, 1.442695
        %v2294 = vpow.pop %v2293
        %v2295 = vmul.f32 %v2272, 1.442695
        %v2296 = vpow.pop %v2295
        %v2297 = vmul.f32 %v2273, 1.442695
        %v2298 = vpow.pop %v2297
        %v2299 = vmul.f32 %v2274, 1.442695
        %v2300 = vpow.pop %v2299
        %v2301 = vmul.f32 %v2275, 1.442695
        %v2302 = vpow.pop %v2301
        %v2303 = vmul.f32 %v2276, 1.442695
        %v2304 = vpow.pop %v2303
        %v2305 = vmul.f32 %v2277, 1.442695
        %v2306 = vpow.pop %v2305
        %v2307 = vmul.f32 %v2278, 1.442695
        %v2308 = vpow.pop %v2307
        %v2309 = vmul.f32 %v2279, 1.442695
        %v2310 = vpow.pop %v2309
        %v2311 = vmul.f32 %v2280, 1.442695
        %v2312 = vpow.pop %v2311
        %2313 = vadd.xlane.f32.xlu0 %v2282
        %v2314 = vpop.xlane.xlu0 %2313
        %2315 = vadd.xlane.f32.xlu0 %v2284
        %v2316 = vpop.xlane.xlu0 %2315
        %2317 = vadd.xlane.f32.xlu0 %v2286
        %v2318 = vpop.xlane.xlu0 %2317
        %2319 = vadd.xlane.f32.xlu0 %v2288
        %v2320 = vpop.xlane.xlu0 %2319
        %2321 = vadd.xlane.f32.xlu0 %v2290
        %v2322 = vpop.xlane.xlu0 %2321
        %2323 = vadd.xlane.f32.xlu0 %v2292
        %v2324 = vpop.xlane.xlu0 %2323
        %2325 = vadd.xlane.f32.xlu0 %v2294
        %v2326 = vpop.xlane.xlu0 %2325
        %2327 = vadd.xlane.f32.xlu0 %v2296
        %v2328 = vpop.xlane.xlu0 %2327
        %2329 = vadd.xlane.f32.xlu0 %v2298
        %v2330 = vpop.xlane.xlu0 %2329
        %2331 = vadd.xlane.f32.xlu0 %v2300
        %v2332 = vpop.xlane.xlu0 %2331
        %2333 = vadd.xlane.f32.xlu0 %v2302
        %v2334 = vpop.xlane.xlu0 %2333
        %2335 = vadd.xlane.f32.xlu0 %v2304
        %v2336 = vpop.xlane.xlu0 %2335
        %2337 = vadd.xlane.f32.xlu0 %v2306
        %v2338 = vpop.xlane.xlu0 %2337
        %2339 = vadd.xlane.f32.xlu0 %v2308
        %v2340 = vpop.xlane.xlu0 %2339
        %2341 = vadd.xlane.f32.xlu0 %v2310
        %v2342 = vpop.xlane.xlu0 %2341
        %2343 = vadd.xlane.f32.xlu0 %v2312
        %v2344 = vpop.xlane.xlu0 %2343
        %v2345 = vrcp.pop %v2314
        %v2346 = vrcp.pop %v2316
        %v2347 = vrcp.pop %v2318
        %v2348 = vrcp.pop %v2320
        %v2349 = vrcp.pop %v2322
        %v2350 = vrcp.pop %v2324
        %v2351 = vrcp.pop %v2326
        %v2352 = vrcp.pop %v2328
        %v2353 = vrcp.pop %v2330
        %v2354 = vrcp.pop %v2332
        %v2355 = vrcp.pop %v2334
        %v2356 = vrcp.pop %v2336
        %v2357 = vrcp.pop %v2338
        %v2358 = vrcp.pop %v2340
        %v2359 = vrcp.pop %v2342
        %v2360 = vrcp.pop %v2344
        %v2361 = vmul.f32 %v2282, %v2345
        %v2362 = vmul.f32 %v2284, %v2346
        %v2363 = vmul.f32 %v2286, %v2347
        %v2364 = vmul.f32 %v2288, %v2348
        %v2365 = vmul.f32 %v2290, %v2349
        %v2366 = vmul.f32 %v2292, %v2350
        %v2367 = vmul.f32 %v2294, %v2351
        %v2368 = vmul.f32 %v2296, %v2352
        %v2369 = vmul.f32 %v2298, %v2353
        %v2370 = vmul.f32 %v2300, %v2354
        %v2371 = vmul.f32 %v2302, %v2355
        %v2372 = vmul.f32 %v2304, %v2356
        %v2373 = vmul.f32 %v2306, %v2357
        %v2374 = vmul.f32 %v2308, %v2358
        %v2375 = vmul.f32 %v2310, %v2359
        %v2376 = vmul.f32 %v2312, %v2360
        %v2377 = vpack.c.bf16 %v2362, %v2361
        %v2378 = vpack.c.bf16 %v2364, %v2363
        %v2379 = vpack.c.bf16 %v2366, %v2365
        %v2380 = vpack.c.bf16 %v2368, %v2367
        %v2381 = vpack.c.bf16 %v2370, %v2369
        %v2382 = vpack.c.bf16 %v2372, %v2371
        %v2383 = vpack.c.bf16 %v2374, %v2373
        %v2384 = vpack.c.bf16 %v2376, %v2375
        %2385 = vmatprep.subr.bf16.mxu0 0
        %2386 = vmatpush1.bf16.msra.mxu0 %v2056
        %2387 = vmatprep.subr.bf16.mxu0 0
        %2388 = vmatpush1.bf16.msra.mxu0 %v2055
        %2389 = vmatprep.subr.bf16.mxu0 0
        %2390 = vmatpush1.bf16.msra.mxu0 %v2054
        %2391 = vmatprep.subr.bf16.mxu0 0
        %2392 = vmatpush1.bf16.msra.mxu0 %v2053
        %2393 = vmatprep.subr.bf16.mxu0 0
        %2394 = vmatpush1.bf16.msra.mxu0 %v2052
        %2395 = vmatprep.subr.bf16.mxu0 0
        %2396 = vmatpush1.bf16.msra.mxu0 %v2051
        %2397 = vmatprep.subr.bf16.mxu0 0
        %2398 = vmatpush1.bf16.msra.mxu0 %v2050
        %2399 = vmatprep.subr.bf16.mxu0 0
        %2400 = vmatpush1.bf16.msra.mxu0 %v2049
        %2401 = vmatprep.subr.bf16.mxu0 0
        %2402 = vmatpush2.bf16.msra.mxu0 0
        %2403 = vmatprep.subr.bf16.mxu0 0
        %2404 = vmatpush2.bf16.msra.mxu0 0
        %2405 = vmatprep.subr.bf16.mxu0 0
        %2406 = vmatpush2.bf16.msra.mxu0 0
        %2407 = vmatprep.subr.bf16.mxu0 0
        %2408 = vmatpush2.bf16.msra.mxu0 0
        %2409 = vmatprep.subr.bf16.mxu0 0
        %2410 = vmatpush2.bf16.msra.mxu0 0
        %2411 = vmatprep.subr.bf16.mxu0 0
        %2412 = vmatpush2.bf16.msra.mxu0 0
        %2413 = vmatprep.subr.bf16.mxu0 0
        %2414 = vmatpush2.bf16.msra.mxu0 0
        %2415 = vmatprep.subr.bf16.mxu0 0
        %2416 = vmatpush2.bf16.msra.mxu0 0
        %2417 = vmatprep.mubr.bf16.mxu0 0
        %2418 = vmatmul.mubr.bf16.gmra.mxu0 %v2377
        %v2419 = vpop.f32.mrf.mxu0
        %v2420 = vadd.f32 0.0, %v2419
        %v2421 = vpop.f32.mrf.mxu0
        %v2422 = vpop.f32.mrf.mxu0
        %v2423 = vadd.f32 0.0, %v2422
        %v2424 = vpop.f32.mrf.mxu0
        %2425 = vmatprep.mubr.bf16.mxu0 0
        %2426 = vmatmul.mubr.bf16.gmra.mxu0 %v2378
        %v2427 = vpop.f32.mrf.mxu0
        %v2428 = vadd.f32 0.0, %v2427
        %v2429 = vpop.f32.mrf.mxu0
        %v2430 = vpop.f32.mrf.mxu0
        %v2431 = vadd.f32 0.0, %v2430
        %v2432 = vpop.f32.mrf.mxu0
        %2433 = vmatprep.mubr.bf16.mxu0 0
        %2434 = vmatmul.mubr.bf16.gmra.mxu0 %v2379
        %v2435 = vpop.f32.mrf.mxu0
        %v2436 = vadd.f32 0.0, %v2435
        %v2437 = vpop.f32.mrf.mxu0
        %v2438 = vpop.f32.mrf.mxu0
        %v2439 = vadd.f32 0.0, %v2438
        %v2440 = vpop.f32.mrf.mxu0
        %2441 = vmatprep.mubr.bf16.mxu0 0
        %2442 = vmatmul.mubr.bf16.gmra.mxu0 %v2380
        %v2443 = vpop.f32.mrf.mxu0
        %v2444 = vadd.f32 0.0, %v2443
        %v2445 = vpop.f32.mrf.mxu0
        %v2446 = vpop.f32.mrf.mxu0
        %v2447 = vadd.f32 0.0, %v2446
        %v2448 = vpop.f32.mrf.mxu0
        %2449 = vmatprep.mubr.bf16.mxu0 0
        %2450 = vmatmul.mubr.bf16.gmra.mxu0 %v2381
        %v2451 = vpop.f32.mrf.mxu0
        %v2452 = vadd.f32 0.0, %v2451
        %v2453 = vpop.f32.mrf.mxu0
        %v2454 = vpop.f32.mrf.mxu0
        %v2455 = vadd.f32 0.0, %v2454
        %v2456 = vpop.f32.mrf.mxu0
        %2457 = vmatprep.mubr.bf16.mxu0 0
        %2458 = vmatmul.mubr.bf16.gmra.mxu0 %v2382
        %v2459 = vpop.f32.mrf.mxu0
        %v2460 = vadd.f32 0.0, %v2459
        %v2461 = vpop.f32.mrf.mxu0
        %v2462 = vpop.f32.mrf.mxu0
        %v2463 = vadd.f32 0.0, %v2462
        %v2464 = vpop.f32.mrf.mxu0
        %2465 = vmatprep.mubr.bf16.mxu0 0
        %2466 = vmatmul.mubr.bf16.gmra.mxu0 %v2383
        %v2467 = vpop.f32.mrf.mxu0
        %v2468 = vadd.f32 0.0, %v2467
        %v2469 = vpop.f32.mrf.mxu0
        %v2470 = vpop.f32.mrf.mxu0
        %v2471 = vadd.f32 0.0, %v2470
        %v2472 = vpop.f32.mrf.mxu0
        %2473 = vmatprep.mubr.bf16.mxu0 0
        %2474 = vmatmul.mubr.bf16.gmra.mxu0 %v2384
        %v2475 = vpop.f32.mrf.mxu0
        %v2476 = vadd.f32 0.0, %v2475
        %v2477 = vpop.f32.mrf.mxu0
        %v2478 = vpop.f32.mrf.mxu0
        %v2479 = vadd.f32 0.0, %v2478
        %v2480 = vpop.f32.mrf.mxu0
        %2481 = vdwg.mxu0
        %2490 = vrot.lane.b32.xlu0 %v2033, 96
        %v2491 = vpop.permute.xlu0 %2490
        %2492 = vrot.lane.b32.xlu0 %v2034, 96
        %v2493 = vpop.permute.xlu0 %2492
        %2494 = vrot.lane.b32.xlu0 %v2035, 96
        %v2495 = vpop.permute.xlu0 %2494
        %2496 = vrot.lane.b32.xlu0 %v2036, 96
        %v2497 = vpop.permute.xlu0 %2496
        %2498 = vrot.lane.b32.xlu0 %v2037, 96
        %v2499 = vpop.permute.xlu0 %2498
        %2500 = vrot.lane.b32.xlu0 %v2038, 96
        %v2501 = vpop.permute.xlu0 %2500
        %2502 = vrot.lane.b32.xlu0 %v2039, 96
        %v2503 = vpop.permute.xlu0 %2502
        %2504 = vrot.lane.b32.xlu0 %v2040, 96
        %v2505 = vpop.permute.xlu0 %2504
        %2506 = vrot.lane.b32.xlu0 %v2041, 32
        %v2507 = vpop.permute.xlu0 %2506
        %2508 = vrot.lane.b32.xlu0 %v2042, 32
        %v2509 = vpop.permute.xlu0 %2508
        %2510 = vrot.lane.b32.xlu0 %v2043, 32
        %v2511 = vpop.permute.xlu0 %2510
        %2512 = vrot.lane.b32.xlu0 %v2044, 32
        %v2513 = vpop.permute.xlu0 %2512
        %2514 = vrot.lane.b32.xlu0 %v2045, 32
        %v2515 = vpop.permute.xlu0 %2514
        %2516 = vrot.lane.b32.xlu0 %v2046, 32
        %v2517 = vpop.permute.xlu0 %2516
        %2518 = vrot.lane.b32.xlu0 %v2047, 32
        %v2519 = vpop.permute.xlu0 %2518
        %2520 = vrot.lane.b32.xlu0 %v2048, 32
        %v2521 = vpop.permute.xlu0 %2520
        %v2523 = vsel %vm2087, %v2491, 0
        %v2526 = vsel %vm2087, %v2493, 0
        %v2529 = vsel %vm2087, %v2495, 0
        %v2532 = vsel %vm2087, %v2497, 0
        %v2535 = vsel %vm2087, %v2499, 0
        %v2538 = vsel %vm2087, %v2501, 0
        %v2541 = vsel %vm2087, %v2503, 0
        %v2544 = vsel %vm2087, %v2505, 0
        %v2547 = vsel %vm2087, %v2507, 0
        %v2550 = vsel %vm2087, %v2509, 0
        %v2553 = vsel %vm2087, %v2511, 0
        %v2556 = vsel %vm2087, %v2513, 0
        %v2559 = vsel %vm2087, %v2515, 0
        %v2562 = vsel %vm2087, %v2517, 0
        %v2565 = vsel %vm2087, %v2519, 0
        %v2568 = vsel %vm2087, %v2521, 0
        %2570 = vmatprep.subr.bf16.mxu0 0
        %2571 = vmatpush1.bf16.xpose.msra.mxu0 %v2568
        %2572 = vmatprep.subr.bf16.mxu0 0
        %2573 = vmatpush1.bf16.xpose.msra.mxu0 %v2565
        %2574 = vmatprep.subr.bf16.mxu0 0
        %2575 = vmatpush1.bf16.xpose.msra.mxu0 %v2562
        %2576 = vmatprep.subr.bf16.mxu0 0
        %2577 = vmatpush1.bf16.xpose.msra.mxu0 %v2559
        %2578 = vmatprep.subr.bf16.mxu0 0
        %2579 = vmatpush1.bf16.xpose.msra.mxu0 %v2556
        %2580 = vmatprep.subr.bf16.mxu0 0
        %2581 = vmatpush1.bf16.xpose.msra.mxu0 %v2553
        %2582 = vmatprep.subr.bf16.mxu0 0
        %2583 = vmatpush1.bf16.xpose.msra.mxu0 %v2550
        %2584 = vmatprep.subr.bf16.mxu0 0
        %2585 = vmatpush1.bf16.xpose.msra.mxu0 %v2547
        %2586 = vmatprep.subr.bf16.mxu0 0
        %2587 = vmatpush2.bf16.xpose.msra.mxu0 0
        %2588 = vmatprep.subr.bf16.mxu0 0
        %2589 = vmatpush2.bf16.xpose.msra.mxu0 0
        %2590 = vmatprep.subr.bf16.mxu0 0
        %2591 = vmatpush2.bf16.xpose.msra.mxu0 0
        %2592 = vmatprep.subr.bf16.mxu0 0
        %2593 = vmatpush2.bf16.xpose.msra.mxu0 0
        %2594 = vmatprep.subr.bf16.mxu0 0
        %2595 = vmatpush2.bf16.xpose.msra.mxu0 0
        %2596 = vmatprep.subr.bf16.mxu0 0
        %2597 = vmatpush2.bf16.xpose.msra.mxu0 0
        %2598 = vmatprep.subr.bf16.mxu0 0
        %2599 = vmatpush2.bf16.xpose.msra.mxu0 0
        %2600 = vmatprep.subr.bf16.mxu0 0
        %2601 = vmatpush2.bf16.xpose.msra.mxu0 0
        %2602 = vmatprep.mubr.bf16.mxu0 0
        %2603 = vmatmul.mubr.bf16.gmra.mxu0 %v2523
        %v2604 = vpop.f32.mrf.mxu0
        %v2605 = vadd.f32 %v2061, %v2604
        %v2606 = vpop.f32.mrf.mxu0
        %v2607 = vpop.f32.mrf.mxu0
        %v2608 = vadd.f32 %v2061, %v2607
        %v2609 = vpop.f32.mrf.mxu0
        %2610 = vmatprep.mubr.bf16.mxu0 0
        %2611 = vmatmul.mubr.bf16.gmra.mxu0 %v2526
        %v2612 = vpop.f32.mrf.mxu0
        %v2613 = vadd.f32 %v2061, %v2612
        %v2614 = vpop.f32.mrf.mxu0
        %v2615 = vpop.f32.mrf.mxu0
        %v2616 = vadd.f32 %v2061, %v2615
        %v2617 = vpop.f32.mrf.mxu0
        %2618 = vmatprep.mubr.bf16.mxu0 0
        %2619 = vmatmul.mubr.bf16.gmra.mxu0 %v2529
        %v2620 = vpop.f32.mrf.mxu0
        %v2621 = vadd.f32 %v2061, %v2620
        %v2622 = vpop.f32.mrf.mxu0
        %v2623 = vpop.f32.mrf.mxu0
        %v2624 = vadd.f32 %v2061, %v2623
        %v2625 = vpop.f32.mrf.mxu0
        %2626 = vmatprep.mubr.bf16.mxu0 0
        %2627 = vmatmul.mubr.bf16.gmra.mxu0 %v2532
        %v2628 = vpop.f32.mrf.mxu0
        %v2629 = vadd.f32 %v2061, %v2628
        %v2630 = vpop.f32.mrf.mxu0
        %v2631 = vpop.f32.mrf.mxu0
        %v2632 = vadd.f32 %v2061, %v2631
        %v2633 = vpop.f32.mrf.mxu0
        %2634 = vmatprep.mubr.bf16.mxu0 0
        %2635 = vmatmul.mubr.bf16.gmra.mxu0 %v2535
        %v2636 = vpop.f32.mrf.mxu0
        %v2637 = vadd.f32 %v2061, %v2636
        %v2638 = vpop.f32.mrf.mxu0
        %v2639 = vpop.f32.mrf.mxu0
        %v2640 = vadd.f32 %v2061, %v2639
        %v2641 = vpop.f32.mrf.mxu0
        %2642 = vmatprep.mubr.bf16.mxu0 0
        %2643 = vmatmul.mubr.bf16.gmra.mxu0 %v2538
        %v2644 = vpop.f32.mrf.mxu0
        %v2645 = vadd.f32 %v2061, %v2644
        %v2646 = vpop.f32.mrf.mxu0
        %v2647 = vpop.f32.mrf.mxu0
        %v2648 = vadd.f32 %v2061, %v2647
        %v2649 = vpop.f32.mrf.mxu0
        %2650 = vmatprep.mubr.bf16.mxu0 0
        %2651 = vmatmul.mubr.bf16.gmra.mxu0 %v2541
        %v2652 = vpop.f32.mrf.mxu0
        %v2653 = vadd.f32 %v2061, %v2652
        %v2654 = vpop.f32.mrf.mxu0
        %v2655 = vpop.f32.mrf.mxu0
        %v2656 = vadd.f32 %v2061, %v2655
        %v2657 = vpop.f32.mrf.mxu0
        %2658 = vmatprep.mubr.bf16.mxu0 0
        %2659 = vmatmul.mubr.bf16.gmra.mxu0 %v2544
        %v2660 = vpop.f32.mrf.mxu0
        %v2661 = vadd.f32 %v2061, %v2660
        %v2662 = vpop.f32.mrf.mxu0
        %v2663 = vpop.f32.mrf.mxu0
        %v2664 = vadd.f32 %v2061, %v2663
        %v2665 = vpop.f32.mrf.mxu0
        %2666 = vdwg.mxu0
        %2667 = vmax.xlane.f32.xlu0 %v2605
        %v2668 = vpop.xlane.xlu0 %2667
        %2669 = vmax.xlane.f32.xlu0 %v2608
        %v2670 = vpop.xlane.xlu0 %2669
        %2671 = vmax.xlane.f32.xlu0 %v2613
        %v2672 = vpop.xlane.xlu0 %2671
        %2673 = vmax.xlane.f32.xlu0 %v2616
        %v2674 = vpop.xlane.xlu0 %2673
        %2675 = vmax.xlane.f32.xlu0 %v2621
        %v2676 = vpop.xlane.xlu0 %2675
        %2677 = vmax.xlane.f32.xlu0 %v2624
        %v2678 = vpop.xlane.xlu0 %2677
        %2679 = vmax.xlane.f32.xlu0 %v2629
        %v2680 = vpop.xlane.xlu0 %2679
        %2681 = vmax.xlane.f32.xlu0 %v2632
        %v2682 = vpop.xlane.xlu0 %2681
        %2683 = vmax.xlane.f32.xlu0 %v2637
        %v2684 = vpop.xlane.xlu0 %2683
        %2685 = vmax.xlane.f32.xlu0 %v2640
        %v2686 = vpop.xlane.xlu0 %2685
        %2687 = vmax.xlane.f32.xlu0 %v2645
        %v2688 = vpop.xlane.xlu0 %2687
        %2689 = vmax.xlane.f32.xlu0 %v2648
        %v2690 = vpop.xlane.xlu0 %2689
        %2691 = vmax.xlane.f32.xlu0 %v2653
        %v2692 = vpop.xlane.xlu0 %2691
        %2693 = vmax.xlane.f32.xlu0 %v2656
        %v2694 = vpop.xlane.xlu0 %2693
        %2695 = vmax.xlane.f32.xlu0 %v2661
        %v2696 = vpop.xlane.xlu0 %2695
        %2697 = vmax.xlane.f32.xlu0 %v2664
        %v2698 = vpop.xlane.xlu0 %2697
        %v2699 = vsub.f32 %v2605, %v2668
        %v2700 = vsub.f32 %v2608, %v2670
        %v2701 = vsub.f32 %v2613, %v2672
        %v2702 = vsub.f32 %v2616, %v2674
        %v2703 = vsub.f32 %v2621, %v2676
        %v2704 = vsub.f32 %v2624, %v2678
        %v2705 = vsub.f32 %v2629, %v2680
        %v2706 = vsub.f32 %v2632, %v2682
        %v2707 = vsub.f32 %v2637, %v2684
        %v2708 = vsub.f32 %v2640, %v2686
        %v2709 = vsub.f32 %v2645, %v2688
        %v2710 = vsub.f32 %v2648, %v2690
        %v2711 = vsub.f32 %v2653, %v2692
        %v2712 = vsub.f32 %v2656, %v2694
        %v2713 = vsub.f32 %v2661, %v2696
        %v2714 = vsub.f32 %v2664, %v2698
        %v2715 = vmul.f32 %v2699, 1.442695
        %v2716 = vpow.pop %v2715
        %v2717 = vmul.f32 %v2700, 1.442695
        %v2718 = vpow.pop %v2717
        %v2719 = vmul.f32 %v2701, 1.442695
        %v2720 = vpow.pop %v2719
        %v2721 = vmul.f32 %v2702, 1.442695
        %v2722 = vpow.pop %v2721
        %v2723 = vmul.f32 %v2703, 1.442695
        %v2724 = vpow.pop %v2723
        %v2725 = vmul.f32 %v2704, 1.442695
        %v2726 = vpow.pop %v2725
        %v2727 = vmul.f32 %v2705, 1.442695
        %v2728 = vpow.pop %v2727
        %v2729 = vmul.f32 %v2706, 1.442695
        %v2730 = vpow.pop %v2729
        %v2731 = vmul.f32 %v2707, 1.442695
        %v2732 = vpow.pop %v2731
        %v2733 = vmul.f32 %v2708, 1.442695
        %v2734 = vpow.pop %v2733
        %v2735 = vmul.f32 %v2709, 1.442695
        %v2736 = vpow.pop %v2735
        %v2737 = vmul.f32 %v2710, 1.442695
        %v2738 = vpow.pop %v2737
        %v2739 = vmul.f32 %v2711, 1.442695
        %v2740 = vpow.pop %v2739
        %v2741 = vmul.f32 %v2712, 1.442695
        %v2742 = vpow.pop %v2741
        %v2743 = vmul.f32 %v2713, 1.442695
        %v2744 = vpow.pop %v2743
        %v2745 = vmul.f32 %v2714, 1.442695
        %v2746 = vpow.pop %v2745
        %2747 = vadd.xlane.f32.xlu0 %v2716
        %v2748 = vpop.xlane.xlu0 %2747
        %2749 = vadd.xlane.f32.xlu0 %v2718
        %v2750 = vpop.xlane.xlu0 %2749
        %2751 = vadd.xlane.f32.xlu0 %v2720
        %v2752 = vpop.xlane.xlu0 %2751
        %2753 = vadd.xlane.f32.xlu0 %v2722
        %v2754 = vpop.xlane.xlu0 %2753
        %2755 = vadd.xlane.f32.xlu0 %v2724
        %v2756 = vpop.xlane.xlu0 %2755
        %2757 = vadd.xlane.f32.xlu0 %v2726
        %v2758 = vpop.xlane.xlu0 %2757
        %2759 = vadd.xlane.f32.xlu0 %v2728
        %v2760 = vpop.xlane.xlu0 %2759
        %2761 = vadd.xlane.f32.xlu0 %v2730
        %v2762 = vpop.xlane.xlu0 %2761
        %2763 = vadd.xlane.f32.xlu0 %v2732
        %v2764 = vpop.xlane.xlu0 %2763
        %2765 = vadd.xlane.f32.xlu0 %v2734
        %v2766 = vpop.xlane.xlu0 %2765
        %2767 = vadd.xlane.f32.xlu0 %v2736
        %v2768 = vpop.xlane.xlu0 %2767
        %2769 = vadd.xlane.f32.xlu0 %v2738
        %v2770 = vpop.xlane.xlu0 %2769
        %2771 = vadd.xlane.f32.xlu0 %v2740
        %v2772 = vpop.xlane.xlu0 %2771
        %2773 = vadd.xlane.f32.xlu0 %v2742
        %v2774 = vpop.xlane.xlu0 %2773
        %2775 = vadd.xlane.f32.xlu0 %v2744
        %v2776 = vpop.xlane.xlu0 %2775
        %2777 = vadd.xlane.f32.xlu0 %v2746
        %v2778 = vpop.xlane.xlu0 %2777
        %v2779 = vrcp.pop %v2748
        %v2780 = vrcp.pop %v2750
        %v2781 = vrcp.pop %v2752
        %v2782 = vrcp.pop %v2754
        %v2783 = vrcp.pop %v2756
        %v2784 = vrcp.pop %v2758
        %v2785 = vrcp.pop %v2760
        %v2786 = vrcp.pop %v2762
        %v2787 = vrcp.pop %v2764
        %v2788 = vrcp.pop %v2766
        %v2789 = vrcp.pop %v2768
        %v2790 = vrcp.pop %v2770
        %v2791 = vrcp.pop %v2772
        %v2792 = vrcp.pop %v2774
        %v2793 = vrcp.pop %v2776
        %v2794 = vrcp.pop %v2778
        %v2795 = vmul.f32 %v2716, %v2779
        %v2796 = vmul.f32 %v2718, %v2780
        %v2797 = vmul.f32 %v2720, %v2781
        %v2798 = vmul.f32 %v2722, %v2782
        %v2799 = vmul.f32 %v2724, %v2783
        %v2800 = vmul.f32 %v2726, %v2784
        %v2801 = vmul.f32 %v2728, %v2785
        %v2802 = vmul.f32 %v2730, %v2786
        %v2803 = vmul.f32 %v2732, %v2787
        %v2804 = vmul.f32 %v2734, %v2788
        %v2805 = vmul.f32 %v2736, %v2789
        %v2806 = vmul.f32 %v2738, %v2790
        %v2807 = vmul.f32 %v2740, %v2791
        %v2808 = vmul.f32 %v2742, %v2792
        %v2809 = vmul.f32 %v2744, %v2793
        %v2810 = vmul.f32 %v2746, %v2794
        %v2811 = vpack.c.bf16 %v2796, %v2795
        %v2812 = vpack.c.bf16 %v2798, %v2797
        %v2813 = vpack.c.bf16 %v2800, %v2799
        %v2814 = vpack.c.bf16 %v2802, %v2801
        %v2815 = vpack.c.bf16 %v2804, %v2803
        %v2816 = vpack.c.bf16 %v2806, %v2805
        %v2817 = vpack.c.bf16 %v2808, %v2807
        %v2818 = vpack.c.bf16 %v2810, %v2809
        %2827 = vrot.lane.b32.xlu0 %v2049, 96
        %v2828 = vpop.permute.xlu0 %2827
        %2829 = vrot.lane.b32.xlu0 %v2050, 96
        %v2830 = vpop.permute.xlu0 %2829
        %2831 = vrot.lane.b32.xlu0 %v2051, 96
        %v2832 = vpop.permute.xlu0 %2831
        %2833 = vrot.lane.b32.xlu0 %v2052, 96
        %v2834 = vpop.permute.xlu0 %2833
        %2835 = vrot.lane.b32.xlu0 %v2053, 96
        %v2836 = vpop.permute.xlu0 %2835
        %2837 = vrot.lane.b32.xlu0 %v2054, 96
        %v2838 = vpop.permute.xlu0 %2837
        %2839 = vrot.lane.b32.xlu0 %v2055, 96
        %v2840 = vpop.permute.xlu0 %2839
        %2841 = vrot.lane.b32.xlu0 %v2056, 96
        %v2842 = vpop.permute.xlu0 %2841
        %2851 = vmatprep.subr.bf16.mxu0 0
        %2852 = vmatpush1.bf16.msra.mxu0 %v2842
        %2853 = vmatprep.subr.bf16.mxu0 0
        %2854 = vmatpush1.bf16.msra.mxu0 %v2840
        %2855 = vmatprep.subr.bf16.mxu0 0
        %2856 = vmatpush1.bf16.msra.mxu0 %v2838
        %2857 = vmatprep.subr.bf16.mxu0 0
        %2858 = vmatpush1.bf16.msra.mxu0 %v2836
        %2859 = vmatprep.subr.bf16.mxu0 0
        %2860 = vmatpush1.bf16.msra.mxu0 %v2834
        %2861 = vmatprep.subr.bf16.mxu0 0
        %2862 = vmatpush1.bf16.msra.mxu0 %v2832
        %2863 = vmatprep.subr.bf16.mxu0 0
        %2864 = vmatpush1.bf16.msra.mxu0 %v2830
        %2865 = vmatprep.subr.bf16.mxu0 0
        %2866 = vmatpush1.bf16.msra.mxu0 %v2828
        %2867 = vmatprep.subr.bf16.mxu0 0
        %2868 = vmatpush2.bf16.msra.mxu0 0
        %2869 = vmatprep.subr.bf16.mxu0 0
        %2870 = vmatpush2.bf16.msra.mxu0 0
        %2871 = vmatprep.subr.bf16.mxu0 0
        %2872 = vmatpush2.bf16.msra.mxu0 0
        %2873 = vmatprep.subr.bf16.mxu0 0
        %2874 = vmatpush2.bf16.msra.mxu0 0
        %2875 = vmatprep.subr.bf16.mxu0 0
        %2876 = vmatpush2.bf16.msra.mxu0 0
        %2877 = vmatprep.subr.bf16.mxu0 0
        %2878 = vmatpush2.bf16.msra.mxu0 0
        %2879 = vmatprep.subr.bf16.mxu0 0
        %2880 = vmatpush2.bf16.msra.mxu0 0
        %2881 = vmatprep.subr.bf16.mxu0 0
        %2882 = vmatpush2.bf16.msra.mxu0 0
        %2883 = vmatprep.mubr.bf16.mxu0 0
        %2884 = vmatmul.mubr.bf16.gmra.mxu0 %v2811
        %v2885 = vpop.f32.mrf.mxu0
        %v2886 = vadd.f32 0.0, %v2885
        %v2887 = vpop.f32.mrf.mxu0
        %v2888 = vpop.f32.mrf.mxu0
        %v2889 = vadd.f32 0.0, %v2888
        %v2890 = vpop.f32.mrf.mxu0
        %2891 = vmatprep.mubr.bf16.mxu0 0
        %2892 = vmatmul.mubr.bf16.gmra.mxu0 %v2812
        %v2893 = vpop.f32.mrf.mxu0
        %v2894 = vadd.f32 0.0, %v2893
        %v2895 = vpop.f32.mrf.mxu0
        %v2896 = vpop.f32.mrf.mxu0
        %v2897 = vadd.f32 0.0, %v2896
        %v2898 = vpop.f32.mrf.mxu0
        %2899 = vmatprep.mubr.bf16.mxu0 0
        %2900 = vmatmul.mubr.bf16.gmra.mxu0 %v2813
        %v2901 = vpop.f32.mrf.mxu0
        %v2902 = vadd.f32 0.0, %v2901
        %v2903 = vpop.f32.mrf.mxu0
        %v2904 = vpop.f32.mrf.mxu0
        %v2905 = vadd.f32 0.0, %v2904
        %v2906 = vpop.f32.mrf.mxu0
        %2907 = vmatprep.mubr.bf16.mxu0 0
        %2908 = vmatmul.mubr.bf16.gmra.mxu0 %v2814
        %v2909 = vpop.f32.mrf.mxu0
        %v2910 = vadd.f32 0.0, %v2909
        %v2911 = vpop.f32.mrf.mxu0
        %v2912 = vpop.f32.mrf.mxu0
        %v2913 = vadd.f32 0.0, %v2912
        %v2914 = vpop.f32.mrf.mxu0
        %2915 = vmatprep.mubr.bf16.mxu0 0
        %2916 = vmatmul.mubr.bf16.gmra.mxu0 %v2815
        %v2917 = vpop.f32.mrf.mxu0
        %v2918 = vadd.f32 0.0, %v2917
        %v2919 = vpop.f32.mrf.mxu0
        %v2920 = vpop.f32.mrf.mxu0
        %v2921 = vadd.f32 0.0, %v2920
        %v2922 = vpop.f32.mrf.mxu0
        %2923 = vmatprep.mubr.bf16.mxu0 0
        %2924 = vmatmul.mubr.bf16.gmra.mxu0 %v2816
        %v2925 = vpop.f32.mrf.mxu0
        %v2926 = vadd.f32 0.0, %v2925
        %v2927 = vpop.f32.mrf.mxu0
        %v2928 = vpop.f32.mrf.mxu0
        %v2929 = vadd.f32 0.0, %v2928
        %v2930 = vpop.f32.mrf.mxu0
        %2931 = vmatprep.mubr.bf16.mxu0 0
        %2932 = vmatmul.mubr.bf16.gmra.mxu0 %v2817
        %v2933 = vpop.f32.mrf.mxu0
        %v2934 = vadd.f32 0.0, %v2933
        %v2935 = vpop.f32.mrf.mxu0
        %v2936 = vpop.f32.mrf.mxu0
        %v2937 = vadd.f32 0.0, %v2936
        %v2938 = vpop.f32.mrf.mxu0
        %2939 = vmatprep.mubr.bf16.mxu0 0
        %2940 = vmatmul.mubr.bf16.gmra.mxu0 %v2818
        %v2941 = vpop.f32.mrf.mxu0
        %v2942 = vadd.f32 0.0, %v2941
        %v2943 = vpop.f32.mrf.mxu0
        %v2944 = vpop.f32.mrf.mxu0
        %v2945 = vadd.f32 0.0, %v2944
        %v2946 = vpop.f32.mrf.mxu0
        %2947 = vdwg.mxu0
        %v2948 = vpack.c.bf16 %v1846, %v1842
        %v2949 = vpack.c.bf16 %v1856, %v1852
        %v2950 = vpack.c.bf16 %v1866, %v1862
        %v2951 = vpack.c.bf16 %v1876, %v1872
        %v2952 = vpack.c.bf16 %v1886, %v1882
        %v2953 = vpack.c.bf16 %v1896, %v1892
        %v2954 = vpack.c.bf16 %v1906, %v1902
        %v2955 = vpack.c.bf16 %v1916, %v1912
        %2956 = vrot.lane.b32.xlu0 %v2033, 64
        %v2957 = vpop.permute.xlu0 %2956
        %2958 = vrot.lane.b32.xlu0 %v2034, 64
        %v2959 = vpop.permute.xlu0 %2958
        %2960 = vrot.lane.b32.xlu0 %v2035, 64
        %v2961 = vpop.permute.xlu0 %2960
        %2962 = vrot.lane.b32.xlu0 %v2036, 64
        %v2963 = vpop.permute.xlu0 %2962
        %2964 = vrot.lane.b32.xlu0 %v2037, 64
        %v2965 = vpop.permute.xlu0 %2964
        %2966 = vrot.lane.b32.xlu0 %v2038, 64
        %v2967 = vpop.permute.xlu0 %2966
        %2968 = vrot.lane.b32.xlu0 %v2039, 64
        %v2969 = vpop.permute.xlu0 %2968
        %2970 = vrot.lane.b32.xlu0 %v2040, 64
        %v2971 = vpop.permute.xlu0 %2970
        %v2973 = vsel %vm2087, %v2957, 0
        %v2976 = vsel %vm2087, %v2959, 0
        %v2979 = vsel %vm2087, %v2961, 0
        %v2982 = vsel %vm2087, %v2963, 0
        %v2985 = vsel %vm2087, %v2965, 0
        %v2988 = vsel %vm2087, %v2967, 0
        %v2991 = vsel %vm2087, %v2969, 0
        %v2994 = vsel %vm2087, %v2971, 0
        %v2997 = vsel %vm2087, %v2948, 0
        %v3000 = vsel %vm2087, %v2949, 0
        %v3003 = vsel %vm2087, %v2950, 0
        %v3006 = vsel %vm2087, %v2951, 0
        %v3009 = vsel %vm2087, %v2952, 0
        %v3012 = vsel %vm2087, %v2953, 0
        %v3015 = vsel %vm2087, %v2954, 0
        %v3018 = vsel %vm2087, %v2955, 0
        %3020 = vmatprep.subr.bf16.mxu0 0
        %3021 = vmatpush1.bf16.xpose.msra.mxu0 %v3018
        %3022 = vmatprep.subr.bf16.mxu0 0
        %3023 = vmatpush1.bf16.xpose.msra.mxu0 %v3015
        %3024 = vmatprep.subr.bf16.mxu0 0
        %3025 = vmatpush1.bf16.xpose.msra.mxu0 %v3012
        %3026 = vmatprep.subr.bf16.mxu0 0
        %3027 = vmatpush1.bf16.xpose.msra.mxu0 %v3009
        %3028 = vmatprep.subr.bf16.mxu0 0
        %3029 = vmatpush1.bf16.xpose.msra.mxu0 %v3006
        %3030 = vmatprep.subr.bf16.mxu0 0
        %3031 = vmatpush1.bf16.xpose.msra.mxu0 %v3003
        %3032 = vmatprep.subr.bf16.mxu0 0
        %3033 = vmatpush1.bf16.xpose.msra.mxu0 %v3000
        %3034 = vmatprep.subr.bf16.mxu0 0
        %3035 = vmatpush1.bf16.xpose.msra.mxu0 %v2997
        %3036 = vmatprep.subr.bf16.mxu0 0
        %3037 = vmatpush2.bf16.xpose.msra.mxu0 0
        %3038 = vmatprep.subr.bf16.mxu0 0
        %3039 = vmatpush2.bf16.xpose.msra.mxu0 0
        %3040 = vmatprep.subr.bf16.mxu0 0
        %3041 = vmatpush2.bf16.xpose.msra.mxu0 0
        %3042 = vmatprep.subr.bf16.mxu0 0
        %3043 = vmatpush2.bf16.xpose.msra.mxu0 0
        %3044 = vmatprep.subr.bf16.mxu0 0
        %3045 = vmatpush2.bf16.xpose.msra.mxu0 0
        %3046 = vmatprep.subr.bf16.mxu0 0
        %3047 = vmatpush2.bf16.xpose.msra.mxu0 0
        %3048 = vmatprep.subr.bf16.mxu0 0
        %3049 = vmatpush2.bf16.xpose.msra.mxu0 0
        %3050 = vmatprep.subr.bf16.mxu0 0
        %3051 = vmatpush2.bf16.xpose.msra.mxu0 0
        %3052 = vmatprep.mubr.bf16.mxu0 0
        %3053 = vmatmul.mubr.bf16.gmra.mxu0 %v2973
        %v3054 = vpop.f32.mrf.mxu0
        %v3055 = vadd.f32 %v2061, %v3054
        %v3056 = vpop.f32.mrf.mxu0
        %v3057 = vpop.f32.mrf.mxu0
        %v3058 = vadd.f32 %v2061, %v3057
        %v3059 = vpop.f32.mrf.mxu0
        %3060 = vmatprep.mubr.bf16.mxu0 0
        %3061 = vmatmul.mubr.bf16.gmra.mxu0 %v2976
        %v3062 = vpop.f32.mrf.mxu0
        %v3063 = vadd.f32 %v2061, %v3062
        %v3064 = vpop.f32.mrf.mxu0
        %v3065 = vpop.f32.mrf.mxu0
        %v3066 = vadd.f32 %v2061, %v3065
        %v3067 = vpop.f32.mrf.mxu0
        %3068 = vmatprep.mubr.bf16.mxu0 0
        %3069 = vmatmul.mubr.bf16.gmra.mxu0 %v2979
        %v3070 = vpop.f32.mrf.mxu0
        %v3071 = vadd.f32 %v2061, %v3070
        %v3072 = vpop.f32.mrf.mxu0
        %v3073 = vpop.f32.mrf.mxu0
        %v3074 = vadd.f32 %v2061, %v3073
        %v3075 = vpop.f32.mrf.mxu0
        %3076 = vmatprep.mubr.bf16.mxu0 0
        %3077 = vmatmul.mubr.bf16.gmra.mxu0 %v2982
        %v3078 = vpop.f32.mrf.mxu0
        %v3079 = vadd.f32 %v2061, %v3078
        %v3080 = vpop.f32.mrf.mxu0
        %v3081 = vpop.f32.mrf.mxu0
        %v3082 = vadd.f32 %v2061, %v3081
        %v3083 = vpop.f32.mrf.mxu0
        %3084 = vmatprep.mubr.bf16.mxu0 0
        %3085 = vmatmul.mubr.bf16.gmra.mxu0 %v2985
        %v3086 = vpop.f32.mrf.mxu0
        %v3087 = vadd.f32 %v2061, %v3086
        %v3088 = vpop.f32.mrf.mxu0
        %v3089 = vpop.f32.mrf.mxu0
        %v3090 = vadd.f32 %v2061, %v3089
        %v3091 = vpop.f32.mrf.mxu0
        %3092 = vmatprep.mubr.bf16.mxu0 0
        %3093 = vmatmul.mubr.bf16.gmra.mxu0 %v2988
        %v3094 = vpop.f32.mrf.mxu0
        %v3095 = vadd.f32 %v2061, %v3094
        %v3096 = vpop.f32.mrf.mxu0
        %v3097 = vpop.f32.mrf.mxu0
        %v3098 = vadd.f32 %v2061, %v3097
        %v3099 = vpop.f32.mrf.mxu0
        %3100 = vmatprep.mubr.bf16.mxu0 0
        %3101 = vmatmul.mubr.bf16.gmra.mxu0 %v2991
        %v3102 = vpop.f32.mrf.mxu0
        %v3103 = vadd.f32 %v2061, %v3102
        %v3104 = vpop.f32.mrf.mxu0
        %v3105 = vpop.f32.mrf.mxu0
        %v3106 = vadd.f32 %v2061, %v3105
        %v3107 = vpop.f32.mrf.mxu0
        %3108 = vmatprep.mubr.bf16.mxu0 0
        %3109 = vmatmul.mubr.bf16.gmra.mxu0 %v2994
        %v3110 = vpop.f32.mrf.mxu0
        %v3111 = vadd.f32 %v2061, %v3110
        %v3112 = vpop.f32.mrf.mxu0
        %v3113 = vpop.f32.mrf.mxu0
        %v3114 = vadd.f32 %v2061, %v3113
        %v3115 = vpop.f32.mrf.mxu0
        %3116 = vdwg.mxu0
        %3117 = vmax.xlane.f32.xlu0 %v3055
        %v3118 = vpop.xlane.xlu0 %3117
        %3119 = vmax.xlane.f32.xlu0 %v3058
        %v3120 = vpop.xlane.xlu0 %3119
        %3121 = vmax.xlane.f32.xlu0 %v3063
        %v3122 = vpop.xlane.xlu0 %3121
        %3123 = vmax.xlane.f32.xlu0 %v3066
        %v3124 = vpop.xlane.xlu0 %3123
        %3125 = vmax.xlane.f32.xlu0 %v3071
        %v3126 = vpop.xlane.xlu0 %3125
        %3127 = vmax.xlane.f32.xlu0 %v3074
        %v3128 = vpop.xlane.xlu0 %3127
        %3129 = vmax.xlane.f32.xlu0 %v3079
        %v3130 = vpop.xlane.xlu0 %3129
        %3131 = vmax.xlane.f32.xlu0 %v3082
        %v3132 = vpop.xlane.xlu0 %3131
        %3133 = vmax.xlane.f32.xlu0 %v3087
        %v3134 = vpop.xlane.xlu0 %3133
        %3135 = vmax.xlane.f32.xlu0 %v3090
        %v3136 = vpop.xlane.xlu0 %3135
        %3137 = vmax.xlane.f32.xlu0 %v3095
        %v3138 = vpop.xlane.xlu0 %3137
        %3139 = vmax.xlane.f32.xlu0 %v3098
        %v3140 = vpop.xlane.xlu0 %3139
        %3141 = vmax.xlane.f32.xlu0 %v3103
        %v3142 = vpop.xlane.xlu0 %3141
        %3143 = vmax.xlane.f32.xlu0 %v3106
        %v3144 = vpop.xlane.xlu0 %3143
        %3145 = vmax.xlane.f32.xlu0 %v3111
        %v3146 = vpop.xlane.xlu0 %3145
        %3147 = vmax.xlane.f32.xlu0 %v3114
        %v3148 = vpop.xlane.xlu0 %3147
        %v3149 = vsub.f32 %v3055, %v3118
        %v3150 = vsub.f32 %v3058, %v3120
        %v3151 = vsub.f32 %v3063, %v3122
        %v3152 = vsub.f32 %v3066, %v3124
        %v3153 = vsub.f32 %v3071, %v3126
        %v3154 = vsub.f32 %v3074, %v3128
        %v3155 = vsub.f32 %v3079, %v3130
        %v3156 = vsub.f32 %v3082, %v3132
        %v3157 = vsub.f32 %v3087, %v3134
        %v3158 = vsub.f32 %v3090, %v3136
        %v3159 = vsub.f32 %v3095, %v3138
        %v3160 = vsub.f32 %v3098, %v3140
        %v3161 = vsub.f32 %v3103, %v3142
        %v3162 = vsub.f32 %v3106, %v3144
        %v3163 = vsub.f32 %v3111, %v3146
        %v3164 = vsub.f32 %v3114, %v3148
        %v3165 = vmul.f32 %v3149, 1.442695
        %v3166 = vpow.pop %v3165
        %v3167 = vmul.f32 %v3150, 1.442695
        %v3168 = vpow.pop %v3167
        %v3169 = vmul.f32 %v3151, 1.442695
        %v3170 = vpow.pop %v3169
        %v3171 = vmul.f32 %v3152, 1.442695
        %v3172 = vpow.pop %v3171
        %v3173 = vmul.f32 %v3153, 1.442695
        %v3174 = vpow.pop %v3173
        %v3175 = vmul.f32 %v3154, 1.442695
        %v3176 = vpow.pop %v3175
        %v3177 = vmul.f32 %v3155, 1.442695
        %v3178 = vpow.pop %v3177
        %v3179 = vmul.f32 %v3156, 1.442695
        %v3180 = vpow.pop %v3179
        %v3181 = vmul.f32 %v3157, 1.442695
        %v3182 = vpow.pop %v3181
        %v3183 = vmul.f32 %v3158, 1.442695
        %v3184 = vpow.pop %v3183
        %v3185 = vmul.f32 %v3159, 1.442695
        %v3186 = vpow.pop %v3185
        %v3187 = vmul.f32 %v3160, 1.442695
        %v3188 = vpow.pop %v3187
        %v3189 = vmul.f32 %v3161, 1.442695
        %v3190 = vpow.pop %v3189
        %v3191 = vmul.f32 %v3162, 1.442695
        %v3192 = vpow.pop %v3191
        %v3193 = vmul.f32 %v3163, 1.442695
        %v3194 = vpow.pop %v3193
        %v3195 = vmul.f32 %v3164, 1.442695
        %v3196 = vpow.pop %v3195
        %3197 = vadd.xlane.f32.xlu0 %v3166
        %v3198 = vpop.xlane.xlu0 %3197
        %3199 = vadd.xlane.f32.xlu0 %v3168
        %v3200 = vpop.xlane.xlu0 %3199
        %3201 = vadd.xlane.f32.xlu0 %v3170
        %v3202 = vpop.xlane.xlu0 %3201
        %3203 = vadd.xlane.f32.xlu0 %v3172
        %v3204 = vpop.xlane.xlu0 %3203
        %3205 = vadd.xlane.f32.xlu0 %v3174
        %v3206 = vpop.xlane.xlu0 %3205
        %3207 = vadd.xlane.f32.xlu0 %v3176
        %v3208 = vpop.xlane.xlu0 %3207
        %3209 = vadd.xlane.f32.xlu0 %v3178
        %v3210 = vpop.xlane.xlu0 %3209
        %3211 = vadd.xlane.f32.xlu0 %v3180
        %v3212 = vpop.xlane.xlu0 %3211
        %3213 = vadd.xlane.f32.xlu0 %v3182
        %v3214 = vpop.xlane.xlu0 %3213
        %3215 = vadd.xlane.f32.xlu0 %v3184
        %v3216 = vpop.xlane.xlu0 %3215
        %3217 = vadd.xlane.f32.xlu0 %v3186
        %v3218 = vpop.xlane.xlu0 %3217
        %3219 = vadd.xlane.f32.xlu0 %v3188
        %v3220 = vpop.xlane.xlu0 %3219
        %3221 = vadd.xlane.f32.xlu0 %v3190
        %v3222 = vpop.xlane.xlu0 %3221
        %3223 = vadd.xlane.f32.xlu0 %v3192
        %v3224 = vpop.xlane.xlu0 %3223
        %3225 = vadd.xlane.f32.xlu0 %v3194
        %v3226 = vpop.xlane.xlu0 %3225
        %3227 = vadd.xlane.f32.xlu0 %v3196
        %v3228 = vpop.xlane.xlu0 %3227
        %v3229 = vrcp.pop %v3198
        %v3230 = vrcp.pop %v3200
        %v3231 = vrcp.pop %v3202
        %v3232 = vrcp.pop %v3204
        %v3233 = vrcp.pop %v3206
        %v3234 = vrcp.pop %v3208
        %v3235 = vrcp.pop %v3210
        %v3236 = vrcp.pop %v3212
        %v3237 = vrcp.pop %v3214
        %v3238 = vrcp.pop %v3216
        %v3239 = vrcp.pop %v3218
        %v3240 = vrcp.pop %v3220
        %v3241 = vrcp.pop %v3222
        %v3242 = vrcp.pop %v3224
        %v3243 = vrcp.pop %v3226
        %v3244 = vrcp.pop %v3228
        %v3245 = vmul.f32 %v3166, %v3229
        %v3246 = vmul.f32 %v3168, %v3230
        %v3247 = vmul.f32 %v3170, %v3231
        %v3248 = vmul.f32 %v3172, %v3232
        %v3249 = vmul.f32 %v3174, %v3233
        %v3250 = vmul.f32 %v3176, %v3234
        %v3251 = vmul.f32 %v3178, %v3235
        %v3252 = vmul.f32 %v3180, %v3236
        %v3253 = vmul.f32 %v3182, %v3237
        %v3254 = vmul.f32 %v3184, %v3238
        %v3255 = vmul.f32 %v3186, %v3239
        %v3256 = vmul.f32 %v3188, %v3240
        %v3257 = vmul.f32 %v3190, %v3241
        %v3258 = vmul.f32 %v3192, %v3242
        %v3259 = vmul.f32 %v3194, %v3243
        %v3260 = vmul.f32 %v3196, %v3244
        %v3261 = vpack.c.bf16 %v3246, %v3245
        %v3262 = vpack.c.bf16 %v3248, %v3247
        %v3263 = vpack.c.bf16 %v3250, %v3249
        %v3264 = vpack.c.bf16 %v3252, %v3251
        %v3265 = vpack.c.bf16 %v3254, %v3253
        %v3266 = vpack.c.bf16 %v3256, %v3255
        %v3267 = vpack.c.bf16 %v3258, %v3257
        %v3268 = vpack.c.bf16 %v3260, %v3259
        %3269 = vrot.lane.b32.xlu0 %v2049, 64
        %v3270 = vpop.permute.xlu0 %3269
        %3271 = vrot.lane.b32.xlu0 %v2050, 64
        %v3272 = vpop.permute.xlu0 %3271
        %3273 = vrot.lane.b32.xlu0 %v2051, 64
        %v3274 = vpop.permute.xlu0 %3273
        %3275 = vrot.lane.b32.xlu0 %v2052, 64
        %v3276 = vpop.permute.xlu0 %3275
        %3277 = vrot.lane.b32.xlu0 %v2053, 64
        %v3278 = vpop.permute.xlu0 %3277
        %3279 = vrot.lane.b32.xlu0 %v2054, 64
        %v3280 = vpop.permute.xlu0 %3279
        %3281 = vrot.lane.b32.xlu0 %v2055, 64
        %v3282 = vpop.permute.xlu0 %3281
        %3283 = vrot.lane.b32.xlu0 %v2056, 64
        %v3284 = vpop.permute.xlu0 %3283
        %3293 = vmatprep.subr.bf16.mxu0 0
        %3294 = vmatpush1.bf16.msra.mxu0 %v3284
        %3295 = vmatprep.subr.bf16.mxu0 0
        %3296 = vmatpush1.bf16.msra.mxu0 %v3282
        %3297 = vmatprep.subr.bf16.mxu0 0
        %3298 = vmatpush1.bf16.msra.mxu0 %v3280
        %3299 = vmatprep.subr.bf16.mxu0 0
        %3300 = vmatpush1.bf16.msra.mxu0 %v3278
        %3301 = vmatprep.subr.bf16.mxu0 0
        %3302 = vmatpush1.bf16.msra.mxu0 %v3276
        %3303 = vmatprep.subr.bf16.mxu0 0
        %3304 = vmatpush1.bf16.msra.mxu0 %v3274
        %3305 = vmatprep.subr.bf16.mxu0 0
        %3306 = vmatpush1.bf16.msra.mxu0 %v3272
        %3307 = vmatprep.subr.bf16.mxu0 0
        %3308 = vmatpush1.bf16.msra.mxu0 %v3270
        %3309 = vmatprep.subr.bf16.mxu0 0
        %3310 = vmatpush2.bf16.msra.mxu0 0
        %3311 = vmatprep.subr.bf16.mxu0 0
        %3312 = vmatpush2.bf16.msra.mxu0 0
        %3313 = vmatprep.subr.bf16.mxu0 0
        %3314 = vmatpush2.bf16.msra.mxu0 0
        %3315 = vmatprep.subr.bf16.mxu0 0
        %3316 = vmatpush2.bf16.msra.mxu0 0
        %3317 = vmatprep.subr.bf16.mxu0 0
        %3318 = vmatpush2.bf16.msra.mxu0 0
        %3319 = vmatprep.subr.bf16.mxu0 0
        %3320 = vmatpush2.bf16.msra.mxu0 0
        %3321 = vmatprep.subr.bf16.mxu0 0
        %3322 = vmatpush2.bf16.msra.mxu0 0
        %3323 = vmatprep.subr.bf16.mxu0 0
        %3324 = vmatpush2.bf16.msra.mxu0 0
        %3325 = vmatprep.mubr.bf16.mxu0 0
        %3326 = vmatmul.mubr.bf16.gmra.mxu0 %v3261
        %v3327 = vpop.f32.mrf.mxu0
        %v3328 = vadd.f32 0.0, %v3327
        %v3329 = vpop.f32.mrf.mxu0
        %v3330 = vpop.f32.mrf.mxu0
        %v3331 = vadd.f32 0.0, %v3330
        %v3332 = vpop.f32.mrf.mxu0
        %3333 = vmatprep.mubr.bf16.mxu0 0
        %3334 = vmatmul.mubr.bf16.gmra.mxu0 %v3262
        %v3335 = vpop.f32.mrf.mxu0
        %v3336 = vadd.f32 0.0, %v3335
        %v3337 = vpop.f32.mrf.mxu0
        %v3338 = vpop.f32.mrf.mxu0
        %v3339 = vadd.f32 0.0, %v3338
        %v3340 = vpop.f32.mrf.mxu0
        %3341 = vmatprep.mubr.bf16.mxu0 0
        %3342 = vmatmul.mubr.bf16.gmra.mxu0 %v3263
        %v3343 = vpop.f32.mrf.mxu0
        %v3344 = vadd.f32 0.0, %v3343
        %v3345 = vpop.f32.mrf.mxu0
        %v3346 = vpop.f32.mrf.mxu0
        %v3347 = vadd.f32 0.0, %v3346
        %v3348 = vpop.f32.mrf.mxu0
        %3349 = vmatprep.mubr.bf16.mxu0 0
        %3350 = vmatmul.mubr.bf16.gmra.mxu0 %v3264
        %v3351 = vpop.f32.mrf.mxu0
        %v3352 = vadd.f32 0.0, %v3351
        %v3353 = vpop.f32.mrf.mxu0
        %v3354 = vpop.f32.mrf.mxu0
        %v3355 = vadd.f32 0.0, %v3354
        %v3356 = vpop.f32.mrf.mxu0
        %3357 = vmatprep.mubr.bf16.mxu0 0
        %3358 = vmatmul.mubr.bf16.gmra.mxu0 %v3265
        %v3359 = vpop.f32.mrf.mxu0
        %v3360 = vadd.f32 0.0, %v3359
        %v3361 = vpop.f32.mrf.mxu0
        %v3362 = vpop.f32.mrf.mxu0
        %v3363 = vadd.f32 0.0, %v3362
        %v3364 = vpop.f32.mrf.mxu0
        %3365 = vmatprep.mubr.bf16.mxu0 0
        %3366 = vmatmul.mubr.bf16.gmra.mxu0 %v3266
        %v3367 = vpop.f32.mrf.mxu0
        %v3368 = vadd.f32 0.0, %v3367
        %v3369 = vpop.f32.mrf.mxu0
        %v3370 = vpop.f32.mrf.mxu0
        %v3371 = vadd.f32 0.0, %v3370
        %v3372 = vpop.f32.mrf.mxu0
        %3373 = vmatprep.mubr.bf16.mxu0 0
        %3374 = vmatmul.mubr.bf16.gmra.mxu0 %v3267
        %v3375 = vpop.f32.mrf.mxu0
        %v3376 = vadd.f32 0.0, %v3375
        %v3377 = vpop.f32.mrf.mxu0
        %v3378 = vpop.f32.mrf.mxu0
        %v3379 = vadd.f32 0.0, %v3378
        %v3380 = vpop.f32.mrf.mxu0
        %3381 = vmatprep.mubr.bf16.mxu0 0
        %3382 = vmatmul.mubr.bf16.gmra.mxu0 %v3268
        %v3383 = vpop.f32.mrf.mxu0
        %v3384 = vadd.f32 0.0, %v3383
        %v3385 = vpop.f32.mrf.mxu0
        %v3386 = vpop.f32.mrf.mxu0
        %v3387 = vadd.f32 0.0, %v3386
        %v3388 = vpop.f32.mrf.mxu0
        %3389 = vdwg.mxu0
        %3390 = vrot.lane.b32.xlu0 %v2033, 32
        %v3391 = vpop.permute.xlu0 %3390
        %3392 = vrot.lane.b32.xlu0 %v2034, 32
        %v3393 = vpop.permute.xlu0 %3392
        %3394 = vrot.lane.b32.xlu0 %v2035, 32
        %v3395 = vpop.permute.xlu0 %3394
        %3396 = vrot.lane.b32.xlu0 %v2036, 32
        %v3397 = vpop.permute.xlu0 %3396
        %3398 = vrot.lane.b32.xlu0 %v2037, 32
        %v3399 = vpop.permute.xlu0 %3398
        %3400 = vrot.lane.b32.xlu0 %v2038, 32
        %v3401 = vpop.permute.xlu0 %3400
        %3402 = vrot.lane.b32.xlu0 %v2039, 32
        %v3403 = vpop.permute.xlu0 %3402
        %3404 = vrot.lane.b32.xlu0 %v2040, 32
        %v3405 = vpop.permute.xlu0 %3404
        %3414 = vrot.lane.b32.xlu0 %v2948, 96
        %v3415 = vpop.permute.xlu0 %3414
        %3416 = vrot.lane.b32.xlu0 %v2949, 96
        %v3417 = vpop.permute.xlu0 %3416
        %3418 = vrot.lane.b32.xlu0 %v2950, 96
        %v3419 = vpop.permute.xlu0 %3418
        %3420 = vrot.lane.b32.xlu0 %v2951, 96
        %v3421 = vpop.permute.xlu0 %3420
        %3422 = vrot.lane.b32.xlu0 %v2952, 96
        %v3423 = vpop.permute.xlu0 %3422
        %3424 = vrot.lane.b32.xlu0 %v2953, 96
        %v3425 = vpop.permute.xlu0 %3424
        %3426 = vrot.lane.b32.xlu0 %v2954, 96
        %v3427 = vpop.permute.xlu0 %3426
        %3428 = vrot.lane.b32.xlu0 %v2955, 96
        %v3429 = vpop.permute.xlu0 %3428
        %v3431 = vsel %vm2087, %v3391, 0
        %v3434 = vsel %vm2087, %v3393, 0
        %v3437 = vsel %vm2087, %v3395, 0
        %v3440 = vsel %vm2087, %v3397, 0
        %v3443 = vsel %vm2087, %v3399, 0
        %v3446 = vsel %vm2087, %v3401, 0
        %v3449 = vsel %vm2087, %v3403, 0
        %v3452 = vsel %vm2087, %v3405, 0
        %v3455 = vsel %vm2087, %v3415, 0
        %v3458 = vsel %vm2087, %v3417, 0
        %v3461 = vsel %vm2087, %v3419, 0
        %v3464 = vsel %vm2087, %v3421, 0
        %v3467 = vsel %vm2087, %v3423, 0
        %v3470 = vsel %vm2087, %v3425, 0
        %v3473 = vsel %vm2087, %v3427, 0
        %v3476 = vsel %vm2087, %v3429, 0
        %3478 = vmatprep.subr.bf16.mxu0 0
        %3479 = vmatpush1.bf16.xpose.msra.mxu0 %v3476
        %3480 = vmatprep.subr.bf16.mxu0 0
        %3481 = vmatpush1.bf16.xpose.msra.mxu0 %v3473
        %3482 = vmatprep.subr.bf16.mxu0 0
        %3483 = vmatpush1.bf16.xpose.msra.mxu0 %v3470
        %3484 = vmatprep.subr.bf16.mxu0 0
        %3485 = vmatpush1.bf16.xpose.msra.mxu0 %v3467
        %3486 = vmatprep.subr.bf16.mxu0 0
        %3487 = vmatpush1.bf16.xpose.msra.mxu0 %v3464
        %3488 = vmatprep.subr.bf16.mxu0 0
        %3489 = vmatpush1.bf16.xpose.msra.mxu0 %v3461
        %3490 = vmatprep.subr.bf16.mxu0 0
        %3491 = vmatpush1.bf16.xpose.msra.mxu0 %v3458
        %3492 = vmatprep.subr.bf16.mxu0 0
        %3493 = vmatpush1.bf16.xpose.msra.mxu0 %v3455
        %3494 = vmatprep.subr.bf16.mxu0 0
        %3495 = vmatpush2.bf16.xpose.msra.mxu0 0
        %3496 = vmatprep.subr.bf16.mxu0 0
        %3497 = vmatpush2.bf16.xpose.msra.mxu0 0
        %3498 = vmatprep.subr.bf16.mxu0 0
        %3499 = vmatpush2.bf16.xpose.msra.mxu0 0
        %3500 = vmatprep.subr.bf16.mxu0 0
        %3501 = vmatpush2.bf16.xpose.msra.mxu0 0
        %3502 = vmatprep.subr.bf16.mxu0 0
        %3503 = vmatpush2.bf16.xpose.msra.mxu0 0
        %3504 = vmatprep.subr.bf16.mxu0 0
        %3505 = vmatpush2.bf16.xpose.msra.mxu0 0
        %3506 = vmatprep.subr.bf16.mxu0 0
        %3507 = vmatpush2.bf16.xpose.msra.mxu0 0
        %3508 = vmatprep.subr.bf16.mxu0 0
        %3509 = vmatpush2.bf16.xpose.msra.mxu0 0
        %3510 = vmatprep.mubr.bf16.mxu0 0
        %3511 = vmatmul.mubr.bf16.gmra.mxu0 %v3431
        %v3512 = vpop.f32.mrf.mxu0
        %v3513 = vadd.f32 %v2061, %v3512
        %v3514 = vpop.f32.mrf.mxu0
        %v3515 = vpop.f32.mrf.mxu0
        %v3516 = vadd.f32 %v2061, %v3515
        %v3517 = vpop.f32.mrf.mxu0
        %3518 = vmatprep.mubr.bf16.mxu0 0
        %3519 = vmatmul.mubr.bf16.gmra.mxu0 %v3434
        %v3520 = vpop.f32.mrf.mxu0
        %v3521 = vadd.f32 %v2061, %v3520
        %v3522 = vpop.f32.mrf.mxu0
        %v3523 = vpop.f32.mrf.mxu0
        %v3524 = vadd.f32 %v2061, %v3523
        %v3525 = vpop.f32.mrf.mxu0
        %3526 = vmatprep.mubr.bf16.mxu0 0
        %3527 = vmatmul.mubr.bf16.gmra.mxu0 %v3437
        %v3528 = vpop.f32.mrf.mxu0
        %v3529 = vadd.f32 %v2061, %v3528
        %v3530 = vpop.f32.mrf.mxu0
        %v3531 = vpop.f32.mrf.mxu0
        %v3532 = vadd.f32 %v2061, %v3531
        %v3533 = vpop.f32.mrf.mxu0
        %3534 = vmatprep.mubr.bf16.mxu0 0
        %3535 = vmatmul.mubr.bf16.gmra.mxu0 %v3440
        %v3536 = vpop.f32.mrf.mxu0
        %v3537 = vadd.f32 %v2061, %v3536
        %v3538 = vpop.f32.mrf.mxu0
        %v3539 = vpop.f32.mrf.mxu0
        %v3540 = vadd.f32 %v2061, %v3539
        %v3541 = vpop.f32.mrf.mxu0
        %3542 = vmatprep.mubr.bf16.mxu0 0
        %3543 = vmatmul.mubr.bf16.gmra.mxu0 %v3443
        %v3544 = vpop.f32.mrf.mxu0
        %v3545 = vadd.f32 %v2061, %v3544
        %v3546 = vpop.f32.mrf.mxu0
        %v3547 = vpop.f32.mrf.mxu0
        %v3548 = vadd.f32 %v2061, %v3547
        %v3549 = vpop.f32.mrf.mxu0
        %3550 = vmatprep.mubr.bf16.mxu0 0
        %3551 = vmatmul.mubr.bf16.gmra.mxu0 %v3446
        %v3552 = vpop.f32.mrf.mxu0
        %v3553 = vadd.f32 %v2061, %v3552
        %v3554 = vpop.f32.mrf.mxu0
        %v3555 = vpop.f32.mrf.mxu0
        %v3556 = vadd.f32 %v2061, %v3555
        %v3557 = vpop.f32.mrf.mxu0
        %3558 = vmatprep.mubr.bf16.mxu0 0
        %3559 = vmatmul.mubr.bf16.gmra.mxu0 %v3449
        %v3560 = vpop.f32.mrf.mxu0
        %v3561 = vadd.f32 %v2061, %v3560
        %v3562 = vpop.f32.mrf.mxu0
        %v3563 = vpop.f32.mrf.mxu0
        %v3564 = vadd.f32 %v2061, %v3563
        %v3565 = vpop.f32.mrf.mxu0
        %3566 = vmatprep.mubr.bf16.mxu0 0
        %3567 = vmatmul.mubr.bf16.gmra.mxu0 %v3452
        %v3568 = vpop.f32.mrf.mxu0
        %v3569 = vadd.f32 %v2061, %v3568
        %v3570 = vpop.f32.mrf.mxu0
        %v3571 = vpop.f32.mrf.mxu0
        %v3572 = vadd.f32 %v2061, %v3571
        %v3573 = vpop.f32.mrf.mxu0
        %3574 = vdwg.mxu0
        %3575 = vmax.xlane.f32.xlu0 %v3513
        %v3576 = vpop.xlane.xlu0 %3575
        %3577 = vmax.xlane.f32.xlu0 %v3516
        %v3578 = vpop.xlane.xlu0 %3577
        %3579 = vmax.xlane.f32.xlu0 %v3521
        %v3580 = vpop.xlane.xlu0 %3579
        %3581 = vmax.xlane.f32.xlu0 %v3524
        %v3582 = vpop.xlane.xlu0 %3581
        %3583 = vmax.xlane.f32.xlu0 %v3529
        %v3584 = vpop.xlane.xlu0 %3583
        %3585 = vmax.xlane.f32.xlu0 %v3532
        %v3586 = vpop.xlane.xlu0 %3585
        %3587 = vmax.xlane.f32.xlu0 %v3537
        %v3588 = vpop.xlane.xlu0 %3587
        %3589 = vmax.xlane.f32.xlu0 %v3540
        %v3590 = vpop.xlane.xlu0 %3589
        %3591 = vmax.xlane.f32.xlu0 %v3545
        %v3592 = vpop.xlane.xlu0 %3591
        %3593 = vmax.xlane.f32.xlu0 %v3548
        %v3594 = vpop.xlane.xlu0 %3593
        %3595 = vmax.xlane.f32.xlu0 %v3553
        %v3596 = vpop.xlane.xlu0 %3595
        %3597 = vmax.xlane.f32.xlu0 %v3556
        %v3598 = vpop.xlane.xlu0 %3597
        %3599 = vmax.xlane.f32.xlu0 %v3561
        %v3600 = vpop.xlane.xlu0 %3599
        %3601 = vmax.xlane.f32.xlu0 %v3564
        %v3602 = vpop.xlane.xlu0 %3601
        %3603 = vmax.xlane.f32.xlu0 %v3569
        %v3604 = vpop.xlane.xlu0 %3603
        %3605 = vmax.xlane.f32.xlu0 %v3572
        %v3606 = vpop.xlane.xlu0 %3605
        %v3607 = vsub.f32 %v3513, %v3576
        %v3608 = vsub.f32 %v3516, %v3578
        %v3609 = vsub.f32 %v3521, %v3580
        %v3610 = vsub.f32 %v3524, %v3582
        %v3611 = vsub.f32 %v3529, %v3584
        %v3612 = vsub.f32 %v3532, %v3586
        %v3613 = vsub.f32 %v3537, %v3588
        %v3614 = vsub.f32 %v3540, %v3590
        %v3615 = vsub.f32 %v3545, %v3592
        %v3616 = vsub.f32 %v3548, %v3594
        %v3617 = vsub.f32 %v3553, %v3596
        %v3618 = vsub.f32 %v3556, %v3598
        %v3619 = vsub.f32 %v3561, %v3600
        %v3620 = vsub.f32 %v3564, %v3602
        %v3621 = vsub.f32 %v3569, %v3604
        %v3622 = vsub.f32 %v3572, %v3606
        %v3623 = vmul.f32 %v3607, 1.442695
        %v3624 = vpow.pop %v3623
        %v3625 = vmul.f32 %v3608, 1.442695
        %v3626 = vpow.pop %v3625
        %v3627 = vmul.f32 %v3609, 1.442695
        %v3628 = vpow.pop %v3627
        %v3629 = vmul.f32 %v3610, 1.442695
        %v3630 = vpow.pop %v3629
        %v3631 = vmul.f32 %v3611, 1.442695
        %v3632 = vpow.pop %v3631
        %v3633 = vmul.f32 %v3612, 1.442695
        %v3634 = vpow.pop %v3633
        %v3635 = vmul.f32 %v3613, 1.442695
        %v3636 = vpow.pop %v3635
        %v3637 = vmul.f32 %v3614, 1.442695
        %v3638 = vpow.pop %v3637
        %v3639 = vmul.f32 %v3615, 1.442695
        %v3640 = vpow.pop %v3639
        %v3641 = vmul.f32 %v3616, 1.442695
        %v3642 = vpow.pop %v3641
        %v3643 = vmul.f32 %v3617, 1.442695
        %v3644 = vpow.pop %v3643
        %v3645 = vmul.f32 %v3618, 1.442695
        %v3646 = vpow.pop %v3645
        %v3647 = vmul.f32 %v3619, 1.442695
        %v3648 = vpow.pop %v3647
        %v3649 = vmul.f32 %v3620, 1.442695
        %v3650 = vpow.pop %v3649
        %v3651 = vmul.f32 %v3621, 1.442695
        %v3652 = vpow.pop %v3651
        %v3653 = vmul.f32 %v3622, 1.442695
        %v3654 = vpow.pop %v3653
        %3655 = vadd.xlane.f32.xlu0 %v3624
        %v3656 = vpop.xlane.xlu0 %3655
        %3657 = vadd.xlane.f32.xlu0 %v3626
        %v3658 = vpop.xlane.xlu0 %3657
        %3659 = vadd.xlane.f32.xlu0 %v3628
        %v3660 = vpop.xlane.xlu0 %3659
        %3661 = vadd.xlane.f32.xlu0 %v3630
        %v3662 = vpop.xlane.xlu0 %3661
        %3663 = vadd.xlane.f32.xlu0 %v3632
        %v3664 = vpop.xlane.xlu0 %3663
        %3665 = vadd.xlane.f32.xlu0 %v3634
        %v3666 = vpop.xlane.xlu0 %3665
        %3667 = vadd.xlane.f32.xlu0 %v3636
        %v3668 = vpop.xlane.xlu0 %3667
        %3669 = vadd.xlane.f32.xlu0 %v3638
        %v3670 = vpop.xlane.xlu0 %3669
        %3671 = vadd.xlane.f32.xlu0 %v3640
        %v3672 = vpop.xlane.xlu0 %3671
        %3673 = vadd.xlane.f32.xlu0 %v3642
        %v3674 = vpop.xlane.xlu0 %3673
        %3675 = vadd.xlane.f32.xlu0 %v3644
        %v3676 = vpop.xlane.xlu0 %3675
        %3677 = vadd.xlane.f32.xlu0 %v3646
        %v3678 = vpop.xlane.xlu0 %3677
        %3679 = vadd.xlane.f32.xlu0 %v3648
        %v3680 = vpop.xlane.xlu0 %3679
        %3681 = vadd.xlane.f32.xlu0 %v3650
        %v3682 = vpop.xlane.xlu0 %3681
        %3683 = vadd.xlane.f32.xlu0 %v3652
        %v3684 = vpop.xlane.xlu0 %3683
        %3685 = vadd.xlane.f32.xlu0 %v3654
        %v3686 = vpop.xlane.xlu0 %3685
        %v3687 = vrcp.pop %v3656
        %v3688 = vrcp.pop %v3658
        %v3689 = vrcp.pop %v3660
        %v3690 = vrcp.pop %v3662
        %v3691 = vrcp.pop %v3664
        %v3692 = vrcp.pop %v3666
        %v3693 = vrcp.pop %v3668
        %v3694 = vrcp.pop %v3670
        %v3695 = vrcp.pop %v3672
        %v3696 = vrcp.pop %v3674
        %v3697 = vrcp.pop %v3676
        %v3698 = vrcp.pop %v3678
        %v3699 = vrcp.pop %v3680
        %v3700 = vrcp.pop %v3682
        %v3701 = vrcp.pop %v3684
        %v3702 = vrcp.pop %v3686
        %v3703 = vmul.f32 %v3624, %v3687
        %v3704 = vmul.f32 %v3626, %v3688
        %v3705 = vmul.f32 %v3628, %v3689
        %v3706 = vmul.f32 %v3630, %v3690
        %v3707 = vmul.f32 %v3632, %v3691
        %v3708 = vmul.f32 %v3634, %v3692
        %v3709 = vmul.f32 %v3636, %v3693
        %v3710 = vmul.f32 %v3638, %v3694
        %v3711 = vmul.f32 %v3640, %v3695
        %v3712 = vmul.f32 %v3642, %v3696
        %v3713 = vmul.f32 %v3644, %v3697
        %v3714 = vmul.f32 %v3646, %v3698
        %v3715 = vmul.f32 %v3648, %v3699
        %v3716 = vmul.f32 %v3650, %v3700
        %v3717 = vmul.f32 %v3652, %v3701
        %v3718 = vmul.f32 %v3654, %v3702
        %v3719 = vpack.c.bf16 %v3704, %v3703
        %v3720 = vpack.c.bf16 %v3706, %v3705
        %v3721 = vpack.c.bf16 %v3708, %v3707
        %v3722 = vpack.c.bf16 %v3710, %v3709
        %v3723 = vpack.c.bf16 %v3712, %v3711
        %v3724 = vpack.c.bf16 %v3714, %v3713
        %v3725 = vpack.c.bf16 %v3716, %v3715
        %v3726 = vpack.c.bf16 %v3718, %v3717
        %3727 = vrot.lane.b32.xlu0 %v2049, 32
        %v3728 = vpop.permute.xlu0 %3727
        %3729 = vrot.lane.b32.xlu0 %v2050, 32
        %v3730 = vpop.permute.xlu0 %3729
        %3731 = vrot.lane.b32.xlu0 %v2051, 32
        %v3732 = vpop.permute.xlu0 %3731
        %3733 = vrot.lane.b32.xlu0 %v2052, 32
        %v3734 = vpop.permute.xlu0 %3733
        %3735 = vrot.lane.b32.xlu0 %v2053, 32
        %v3736 = vpop.permute.xlu0 %3735
        %3737 = vrot.lane.b32.xlu0 %v2054, 32
        %v3738 = vpop.permute.xlu0 %3737
        %3739 = vrot.lane.b32.xlu0 %v2055, 32
        %v3740 = vpop.permute.xlu0 %3739
        %3741 = vrot.lane.b32.xlu0 %v2056, 32
        %v3742 = vpop.permute.xlu0 %3741
        %3751 = vmatprep.subr.bf16.mxu0 0
        %3752 = vmatpush1.bf16.msra.mxu0 %v3742
        %3753 = vmatprep.subr.bf16.mxu0 0
        %3754 = vmatpush1.bf16.msra.mxu0 %v3740
        %3755 = vmatprep.subr.bf16.mxu0 0
        %3756 = vmatpush1.bf16.msra.mxu0 %v3738
        %3757 = vmatprep.subr.bf16.mxu0 0
        %3758 = vmatpush1.bf16.msra.mxu0 %v3736
        %3759 = vmatprep.subr.bf16.mxu0 0
        %3760 = vmatpush1.bf16.msra.mxu0 %v3734
        %3761 = vmatprep.subr.bf16.mxu0 0
        %3762 = vmatpush1.bf16.msra.mxu0 %v3732
        %3763 = vmatprep.subr.bf16.mxu0 0
        %3764 = vmatpush1.bf16.msra.mxu0 %v3730
        %3765 = vmatprep.subr.bf16.mxu0 0
        %3766 = vmatpush1.bf16.msra.mxu0 %v3728
        %3767 = vmatprep.subr.bf16.mxu0 0
        %3768 = vmatpush2.bf16.msra.mxu0 0
        %3769 = vmatprep.subr.bf16.mxu0 0
        %3770 = vmatpush2.bf16.msra.mxu0 0
        %3771 = vmatprep.subr.bf16.mxu0 0
        %3772 = vmatpush2.bf16.msra.mxu0 0
        %3773 = vmatprep.subr.bf16.mxu0 0
        %3774 = vmatpush2.bf16.msra.mxu0 0
        %3775 = vmatprep.subr.bf16.mxu0 0
        %3776 = vmatpush2.bf16.msra.mxu0 0
        %3777 = vmatprep.subr.bf16.mxu0 0
        %3778 = vmatpush2.bf16.msra.mxu0 0
        %3779 = vmatprep.subr.bf16.mxu0 0
        %3780 = vmatpush2.bf16.msra.mxu0 0
        %3781 = vmatprep.subr.bf16.mxu0 0
        %3782 = vmatpush2.bf16.msra.mxu0 0
        %3783 = vmatprep.mubr.bf16.mxu0 0
        %3784 = vmatmul.mubr.bf16.gmra.mxu0 %v3719
        %v3785 = vpop.f32.mrf.mxu0
        %v3786 = vadd.f32 0.0, %v3785
        %v3787 = vpop.f32.mrf.mxu0
        %v3788 = vpop.f32.mrf.mxu0
        %v3789 = vadd.f32 0.0, %v3788
        %v3790 = vpop.f32.mrf.mxu0
        %3791 = vmatprep.mubr.bf16.mxu0 0
        %3792 = vmatmul.mubr.bf16.gmra.mxu0 %v3720
        %v3793 = vpop.f32.mrf.mxu0
        %v3794 = vadd.f32 0.0, %v3793
        %v3795 = vpop.f32.mrf.mxu0
        %v3796 = vpop.f32.mrf.mxu0
        %v3797 = vadd.f32 0.0, %v3796
        %v3798 = vpop.f32.mrf.mxu0
        %3799 = vmatprep.mubr.bf16.mxu0 0
        %3800 = vmatmul.mubr.bf16.gmra.mxu0 %v3721
        %v3801 = vpop.f32.mrf.mxu0
        %v3802 = vadd.f32 0.0, %v3801
        %v3803 = vpop.f32.mrf.mxu0
        %v3804 = vpop.f32.mrf.mxu0
        %v3805 = vadd.f32 0.0, %v3804
        %v3806 = vpop.f32.mrf.mxu0
        %3807 = vmatprep.mubr.bf16.mxu0 0
        %3808 = vmatmul.mubr.bf16.gmra.mxu0 %v3722
        %v3809 = vpop.f32.mrf.mxu0
        %v3810 = vadd.f32 0.0, %v3809
        %v3811 = vpop.f32.mrf.mxu0
        %v3812 = vpop.f32.mrf.mxu0
        %v3813 = vadd.f32 0.0, %v3812
        %v3814 = vpop.f32.mrf.mxu0
        %3815 = vmatprep.mubr.bf16.mxu0 0
        %3816 = vmatmul.mubr.bf16.gmra.mxu0 %v3723
        %v3817 = vpop.f32.mrf.mxu0
        %v3818 = vadd.f32 0.0, %v3817
        %v3819 = vpop.f32.mrf.mxu0
        %v3820 = vpop.f32.mrf.mxu0
        %v3821 = vadd.f32 0.0, %v3820
        %v3822 = vpop.f32.mrf.mxu0
        %3823 = vmatprep.mubr.bf16.mxu0 0
        %3824 = vmatmul.mubr.bf16.gmra.mxu0 %v3724
        %v3825 = vpop.f32.mrf.mxu0
        %v3826 = vadd.f32 0.0, %v3825
        %v3827 = vpop.f32.mrf.mxu0
        %v3828 = vpop.f32.mrf.mxu0
        %v3829 = vadd.f32 0.0, %v3828
        %v3830 = vpop.f32.mrf.mxu0
        %3831 = vmatprep.mubr.bf16.mxu0 0
        %3832 = vmatmul.mubr.bf16.gmra.mxu0 %v3725
        %v3833 = vpop.f32.mrf.mxu0
        %v3834 = vadd.f32 0.0, %v3833
        %v3835 = vpop.f32.mrf.mxu0
        %v3836 = vpop.f32.mrf.mxu0
        %v3837 = vadd.f32 0.0, %v3836
        %v3838 = vpop.f32.mrf.mxu0
        %3839 = vmatprep.mubr.bf16.mxu0 0
        %3840 = vmatmul.mubr.bf16.gmra.mxu0 %v3726
        %v3841 = vpop.f32.mrf.mxu0
        %v3842 = vadd.f32 0.0, %v3841
        %v3843 = vpop.f32.mrf.mxu0
        %v3844 = vpop.f32.mrf.mxu0
        %v3845 = vadd.f32 0.0, %v3844
        %v3846 = vpop.f32.mrf.mxu0
        %3847 = vdwg.mxu0
        %v3848 = vmul.f32 %v1731, 0.17677669
        %v3849 = vmul.f32 %v1735, 0.17677669
        %v3850 = vmul.f32 %v1741, 0.17677669
        %v3851 = vmul.f32 %v1745, 0.17677669
        %v3852 = vmul.f32 %v1751, 0.17677669
        %v3853 = vmul.f32 %v1755, 0.17677669
        %v3854 = vmul.f32 %v1761, 0.17677669
        %v3855 = vmul.f32 %v1765, 0.17677669
        %v3856 = vmul.f32 %v1771, 0.17677669
        %v3857 = vmul.f32 %v1775, 0.17677669
        %v3858 = vmul.f32 %v1781, 0.17677669
        %v3859 = vmul.f32 %v1785, 0.17677669
        %v3860 = vmul.f32 %v1791, 0.17677669
        %v3861 = vmul.f32 %v1795, 0.17677669
        %v3862 = vmul.f32 %v1801, 0.17677669
        %v3863 = vmul.f32 %v1805, 0.17677669
        %v3864 = vpack.c.bf16 %v3849, %v3848
        %v3865 = vpack.c.bf16 %v3851, %v3850
        %v3866 = vpack.c.bf16 %v3853, %v3852
        %v3867 = vpack.c.bf16 %v3855, %v3854
        %v3868 = vpack.c.bf16 %v3857, %v3856
        %v3869 = vpack.c.bf16 %v3859, %v3858
        %v3870 = vpack.c.bf16 %v3861, %v3860
        %v3871 = vpack.c.bf16 %v3863, %v3862
        %v3872 = vpack.c.bf16 %v1958, %v1955
        %v3873 = vpack.c.bf16 %v1966, %v1963
        %v3874 = vpack.c.bf16 %v1974, %v1971
        %v3875 = vpack.c.bf16 %v1982, %v1979
        %v3876 = vpack.c.bf16 %v1990, %v1987
        %v3877 = vpack.c.bf16 %v1998, %v1995
        %v3878 = vpack.c.bf16 %v2006, %v2003
        %v3879 = vpack.c.bf16 %v2014, %v2011
        %3880 = vrot.lane.b32.xlu0 %v2948, 64
        %v3881 = vpop.permute.xlu0 %3880
        %3882 = vrot.lane.b32.xlu0 %v2949, 64
        %v3883 = vpop.permute.xlu0 %3882
        %3884 = vrot.lane.b32.xlu0 %v2950, 64
        %v3885 = vpop.permute.xlu0 %3884
        %3886 = vrot.lane.b32.xlu0 %v2951, 64
        %v3887 = vpop.permute.xlu0 %3886
        %3888 = vrot.lane.b32.xlu0 %v2952, 64
        %v3889 = vpop.permute.xlu0 %3888
        %3890 = vrot.lane.b32.xlu0 %v2953, 64
        %v3891 = vpop.permute.xlu0 %3890
        %3892 = vrot.lane.b32.xlu0 %v2954, 64
        %v3893 = vpop.permute.xlu0 %3892
        %3894 = vrot.lane.b32.xlu0 %v2955, 64
        %v3895 = vpop.permute.xlu0 %3894
        %v3897 = vsel %vm2087, %v3864, 0
        %v3900 = vsel %vm2087, %v3865, 0
        %v3903 = vsel %vm2087, %v3866, 0
        %v3906 = vsel %vm2087, %v3867, 0
        %v3909 = vsel %vm2087, %v3868, 0
        %v3912 = vsel %vm2087, %v3869, 0
        %v3915 = vsel %vm2087, %v3870, 0
        %v3918 = vsel %vm2087, %v3871, 0
        %v3921 = vsel %vm2087, %v3881, 0
        %v3924 = vsel %vm2087, %v3883, 0
        %v3927 = vsel %vm2087, %v3885, 0
        %v3930 = vsel %vm2087, %v3887, 0
        %v3933 = vsel %vm2087, %v3889, 0
        %v3936 = vsel %vm2087, %v3891, 0
        %v3939 = vsel %vm2087, %v3893, 0
        %v3942 = vsel %vm2087, %v3895, 0
        %3944 = vmatprep.subr.bf16.mxu0 0
        %3945 = vmatpush1.bf16.xpose.msra.mxu0 %v3942
        %3946 = vmatprep.subr.bf16.mxu0 0
        %3947 = vmatpush1.bf16.xpose.msra.mxu0 %v3939
        %3948 = vmatprep.subr.bf16.mxu0 0
        %3949 = vmatpush1.bf16.xpose.msra.mxu0 %v3936
        %3950 = vmatprep.subr.bf16.mxu0 0
        %3951 = vmatpush1.bf16.xpose.msra.mxu0 %v3933
        %3952 = vmatprep.subr.bf16.mxu0 0
        %3953 = vmatpush1.bf16.xpose.msra.mxu0 %v3930
        %3954 = vmatprep.subr.bf16.mxu0 0
        %3955 = vmatpush1.bf16.xpose.msra.mxu0 %v3927
        %3956 = vmatprep.subr.bf16.mxu0 0
        %3957 = vmatpush1.bf16.xpose.msra.mxu0 %v3924
        %3958 = vmatprep.subr.bf16.mxu0 0
        %3959 = vmatpush1.bf16.xpose.msra.mxu0 %v3921
        %3960 = vmatprep.subr.bf16.mxu0 0
        %3961 = vmatpush2.bf16.xpose.msra.mxu0 0
        %3962 = vmatprep.subr.bf16.mxu0 0
        %3963 = vmatpush2.bf16.xpose.msra.mxu0 0
        %3964 = vmatprep.subr.bf16.mxu0 0
        %3965 = vmatpush2.bf16.xpose.msra.mxu0 0
        %3966 = vmatprep.subr.bf16.mxu0 0
        %3967 = vmatpush2.bf16.xpose.msra.mxu0 0
        %3968 = vmatprep.subr.bf16.mxu0 0
        %3969 = vmatpush2.bf16.xpose.msra.mxu0 0
        %3970 = vmatprep.subr.bf16.mxu0 0
        %3971 = vmatpush2.bf16.xpose.msra.mxu0 0
        %3972 = vmatprep.subr.bf16.mxu0 0
        %3973 = vmatpush2.bf16.xpose.msra.mxu0 0
        %3974 = vmatprep.subr.bf16.mxu0 0
        %3975 = vmatpush2.bf16.xpose.msra.mxu0 0
        %3976 = vmatprep.mubr.bf16.mxu0 0
        %3977 = vmatmul.mubr.bf16.gmra.mxu0 %v3897
        %v3978 = vpop.f32.mrf.mxu0
        %v3979 = vadd.f32 %v2061, %v3978
        %v3980 = vpop.f32.mrf.mxu0
        %v3981 = vpop.f32.mrf.mxu0
        %v3982 = vadd.f32 %v2061, %v3981
        %v3983 = vpop.f32.mrf.mxu0
        %3984 = vmatprep.mubr.bf16.mxu0 0
        %3985 = vmatmul.mubr.bf16.gmra.mxu0 %v3900
        %v3986 = vpop.f32.mrf.mxu0
        %v3987 = vadd.f32 %v2061, %v3986
        %v3988 = vpop.f32.mrf.mxu0
        %v3989 = vpop.f32.mrf.mxu0
        %v3990 = vadd.f32 %v2061, %v3989
        %v3991 = vpop.f32.mrf.mxu0
        %3992 = vmatprep.mubr.bf16.mxu0 0
        %3993 = vmatmul.mubr.bf16.gmra.mxu0 %v3903
        %v3994 = vpop.f32.mrf.mxu0
        %v3995 = vadd.f32 %v2061, %v3994
        %v3996 = vpop.f32.mrf.mxu0
        %v3997 = vpop.f32.mrf.mxu0
        %v3998 = vadd.f32 %v2061, %v3997
        %v3999 = vpop.f32.mrf.mxu0
        %4000 = vmatprep.mubr.bf16.mxu0 0
        %4001 = vmatmul.mubr.bf16.gmra.mxu0 %v3906
        %v4002 = vpop.f32.mrf.mxu0
        %v4003 = vadd.f32 %v2061, %v4002
        %v4004 = vpop.f32.mrf.mxu0
        %v4005 = vpop.f32.mrf.mxu0
        %v4006 = vadd.f32 %v2061, %v4005
        %v4007 = vpop.f32.mrf.mxu0
        %4008 = vmatprep.mubr.bf16.mxu0 0
        %4009 = vmatmul.mubr.bf16.gmra.mxu0 %v3909
        %v4010 = vpop.f32.mrf.mxu0
        %v4011 = vadd.f32 %v2061, %v4010
        %v4012 = vpop.f32.mrf.mxu0
        %v4013 = vpop.f32.mrf.mxu0
        %v4014 = vadd.f32 %v2061, %v4013
        %v4015 = vpop.f32.mrf.mxu0
        %4016 = vmatprep.mubr.bf16.mxu0 0
        %4017 = vmatmul.mubr.bf16.gmra.mxu0 %v3912
        %v4018 = vpop.f32.mrf.mxu0
        %v4019 = vadd.f32 %v2061, %v4018
        %v4020 = vpop.f32.mrf.mxu0
        %v4021 = vpop.f32.mrf.mxu0
        %v4022 = vadd.f32 %v2061, %v4021
        %v4023 = vpop.f32.mrf.mxu0
        %4024 = vmatprep.mubr.bf16.mxu0 0
        %4025 = vmatmul.mubr.bf16.gmra.mxu0 %v3915
        %v4026 = vpop.f32.mrf.mxu0
        %v4027 = vadd.f32 %v2061, %v4026
        %v4028 = vpop.f32.mrf.mxu0
        %v4029 = vpop.f32.mrf.mxu0
        %v4030 = vadd.f32 %v2061, %v4029
        %v4031 = vpop.f32.mrf.mxu0
        %4032 = vmatprep.mubr.bf16.mxu0 0
        %4033 = vmatmul.mubr.bf16.gmra.mxu0 %v3918
        %v4034 = vpop.f32.mrf.mxu0
        %v4035 = vadd.f32 %v2061, %v4034
        %v4036 = vpop.f32.mrf.mxu0
        %v4037 = vpop.f32.mrf.mxu0
        %v4038 = vadd.f32 %v2061, %v4037
        %v4039 = vpop.f32.mrf.mxu0
        %4040 = vdwg.mxu0
        %4041 = vmax.xlane.f32.xlu0 %v3979
        %v4042 = vpop.xlane.xlu0 %4041
        %4043 = vmax.xlane.f32.xlu0 %v3982
        %v4044 = vpop.xlane.xlu0 %4043
        %4045 = vmax.xlane.f32.xlu0 %v3987
        %v4046 = vpop.xlane.xlu0 %4045
        %4047 = vmax.xlane.f32.xlu0 %v3990
        %v4048 = vpop.xlane.xlu0 %4047
        %4049 = vmax.xlane.f32.xlu0 %v3995
        %v4050 = vpop.xlane.xlu0 %4049
        %4051 = vmax.xlane.f32.xlu0 %v3998
        %v4052 = vpop.xlane.xlu0 %4051
        %4053 = vmax.xlane.f32.xlu0 %v4003
        %v4054 = vpop.xlane.xlu0 %4053
        %4055 = vmax.xlane.f32.xlu0 %v4006
        %v4056 = vpop.xlane.xlu0 %4055
        %4057 = vmax.xlane.f32.xlu0 %v4011
        %v4058 = vpop.xlane.xlu0 %4057
        %4059 = vmax.xlane.f32.xlu0 %v4014
        %v4060 = vpop.xlane.xlu0 %4059
        %4061 = vmax.xlane.f32.xlu0 %v4019
        %v4062 = vpop.xlane.xlu0 %4061
        %4063 = vmax.xlane.f32.xlu0 %v4022
        %v4064 = vpop.xlane.xlu0 %4063
        %4065 = vmax.xlane.f32.xlu0 %v4027
        %v4066 = vpop.xlane.xlu0 %4065
        %4067 = vmax.xlane.f32.xlu0 %v4030
        %v4068 = vpop.xlane.xlu0 %4067
        %4069 = vmax.xlane.f32.xlu0 %v4035
        %v4070 = vpop.xlane.xlu0 %4069
        %4071 = vmax.xlane.f32.xlu0 %v4038
        %v4072 = vpop.xlane.xlu0 %4071
        %v4073 = vsub.f32 %v3979, %v4042
        %v4074 = vsub.f32 %v3982, %v4044
        %v4075 = vsub.f32 %v3987, %v4046
        %v4076 = vsub.f32 %v3990, %v4048
        %v4077 = vsub.f32 %v3995, %v4050
        %v4078 = vsub.f32 %v3998, %v4052
        %v4079 = vsub.f32 %v4003, %v4054
        %v4080 = vsub.f32 %v4006, %v4056
        %v4081 = vsub.f32 %v4011, %v4058
        %v4082 = vsub.f32 %v4014, %v4060
        %v4083 = vsub.f32 %v4019, %v4062
        %v4084 = vsub.f32 %v4022, %v4064
        %v4085 = vsub.f32 %v4027, %v4066
        %v4086 = vsub.f32 %v4030, %v4068
        %v4087 = vsub.f32 %v4035, %v4070
        %v4088 = vsub.f32 %v4038, %v4072
        %v4089 = vmul.f32 %v4073, 1.442695
        %v4090 = vpow.pop %v4089
        %v4091 = vmul.f32 %v4074, 1.442695
        %v4092 = vpow.pop %v4091
        %v4093 = vmul.f32 %v4075, 1.442695
        %v4094 = vpow.pop %v4093
        %v4095 = vmul.f32 %v4076, 1.442695
        %v4096 = vpow.pop %v4095
        %v4097 = vmul.f32 %v4077, 1.442695
        %v4098 = vpow.pop %v4097
        %v4099 = vmul.f32 %v4078, 1.442695
        %v4100 = vpow.pop %v4099
        %v4101 = vmul.f32 %v4079, 1.442695
        %v4102 = vpow.pop %v4101
        %v4103 = vmul.f32 %v4080, 1.442695
        %v4104 = vpow.pop %v4103
        %v4105 = vmul.f32 %v4081, 1.442695
        %v4106 = vpow.pop %v4105
        %v4107 = vmul.f32 %v4082, 1.442695
        %v4108 = vpow.pop %v4107
        %v4109 = vmul.f32 %v4083, 1.442695
        %v4110 = vpow.pop %v4109
        %v4111 = vmul.f32 %v4084, 1.442695
        %v4112 = vpow.pop %v4111
        %v4113 = vmul.f32 %v4085, 1.442695
        %v4114 = vpow.pop %v4113
        %v4115 = vmul.f32 %v4086, 1.442695
        %v4116 = vpow.pop %v4115
        %v4117 = vmul.f32 %v4087, 1.442695
        %v4118 = vpow.pop %v4117
        %v4119 = vmul.f32 %v4088, 1.442695
        %v4120 = vpow.pop %v4119
        %4121 = vadd.xlane.f32.xlu0 %v4090
        %v4122 = vpop.xlane.xlu0 %4121
        %4123 = vadd.xlane.f32.xlu0 %v4092
        %v4124 = vpop.xlane.xlu0 %4123
        %4125 = vadd.xlane.f32.xlu0 %v4094
        %v4126 = vpop.xlane.xlu0 %4125
        %4127 = vadd.xlane.f32.xlu0 %v4096
        %v4128 = vpop.xlane.xlu0 %4127
        %4129 = vadd.xlane.f32.xlu0 %v4098
        %v4130 = vpop.xlane.xlu0 %4129
        %4131 = vadd.xlane.f32.xlu0 %v4100
        %v4132 = vpop.xlane.xlu0 %4131
        %4133 = vadd.xlane.f32.xlu0 %v4102
        %v4134 = vpop.xlane.xlu0 %4133
        %4135 = vadd.xlane.f32.xlu0 %v4104
        %v4136 = vpop.xlane.xlu0 %4135
        %4137 = vadd.xlane.f32.xlu0 %v4106
        %v4138 = vpop.xlane.xlu0 %4137
        %4139 = vadd.xlane.f32.xlu0 %v4108
        %v4140 = vpop.xlane.xlu0 %4139
        %4141 = vadd.xlane.f32.xlu0 %v4110
        %v4142 = vpop.xlane.xlu0 %4141
        %4143 = vadd.xlane.f32.xlu0 %v4112
        %v4144 = vpop.xlane.xlu0 %4143
        %4145 = vadd.xlane.f32.xlu0 %v4114
        %v4146 = vpop.xlane.xlu0 %4145
        %4147 = vadd.xlane.f32.xlu0 %v4116
        %v4148 = vpop.xlane.xlu0 %4147
        %4149 = vadd.xlane.f32.xlu0 %v4118
        %v4150 = vpop.xlane.xlu0 %4149
        %4151 = vadd.xlane.f32.xlu0 %v4120
        %v4152 = vpop.xlane.xlu0 %4151
        %v4153 = vrcp.pop %v4122
        %v4154 = vrcp.pop %v4124
        %v4155 = vrcp.pop %v4126
        %v4156 = vrcp.pop %v4128
        %v4157 = vrcp.pop %v4130
        %v4158 = vrcp.pop %v4132
        %v4159 = vrcp.pop %v4134
        %v4160 = vrcp.pop %v4136
        %v4161 = vrcp.pop %v4138
        %v4162 = vrcp.pop %v4140
        %v4163 = vrcp.pop %v4142
        %v4164 = vrcp.pop %v4144
        %v4165 = vrcp.pop %v4146
        %v4166 = vrcp.pop %v4148
        %v4167 = vrcp.pop %v4150
        %v4168 = vrcp.pop %v4152
        %v4169 = vmul.f32 %v4090, %v4153
        %v4170 = vmul.f32 %v4092, %v4154
        %v4171 = vmul.f32 %v4094, %v4155
        %v4172 = vmul.f32 %v4096, %v4156
        %v4173 = vmul.f32 %v4098, %v4157
        %v4174 = vmul.f32 %v4100, %v4158
        %v4175 = vmul.f32 %v4102, %v4159
        %v4176 = vmul.f32 %v4104, %v4160
        %v4177 = vmul.f32 %v4106, %v4161
        %v4178 = vmul.f32 %v4108, %v4162
        %v4179 = vmul.f32 %v4110, %v4163
        %v4180 = vmul.f32 %v4112, %v4164
        %v4181 = vmul.f32 %v4114, %v4165
        %v4182 = vmul.f32 %v4116, %v4166
        %v4183 = vmul.f32 %v4118, %v4167
        %v4184 = vmul.f32 %v4120, %v4168
        %v4185 = vpack.c.bf16 %v4170, %v4169
        %v4186 = vpack.c.bf16 %v4172, %v4171
        %v4187 = vpack.c.bf16 %v4174, %v4173
        %v4188 = vpack.c.bf16 %v4176, %v4175
        %v4189 = vpack.c.bf16 %v4178, %v4177
        %v4190 = vpack.c.bf16 %v4180, %v4179
        %v4191 = vpack.c.bf16 %v4182, %v4181
        %v4192 = vpack.c.bf16 %v4184, %v4183
        %4193 = vmatprep.subr.bf16.mxu0 0
        %4194 = vmatpush1.bf16.msra.mxu0 %v3879
        %4195 = vmatprep.subr.bf16.mxu0 0
        %4196 = vmatpush1.bf16.msra.mxu0 %v3878
        %4197 = vmatprep.subr.bf16.mxu0 0
        %4198 = vmatpush1.bf16.msra.mxu0 %v3877
        %4199 = vmatprep.subr.bf16.mxu0 0
        %4200 = vmatpush1.bf16.msra.mxu0 %v3876
        %4201 = vmatprep.subr.bf16.mxu0 0
        %4202 = vmatpush1.bf16.msra.mxu0 %v3875
        %4203 = vmatprep.subr.bf16.mxu0 0
        %4204 = vmatpush1.bf16.msra.mxu0 %v3874
        %4205 = vmatprep.subr.bf16.mxu0 0
        %4206 = vmatpush1.bf16.msra.mxu0 %v3873
        %4207 = vmatprep.subr.bf16.mxu0 0
        %4208 = vmatpush1.bf16.msra.mxu0 %v3872
        %4209 = vmatprep.subr.bf16.mxu0 0
        %4210 = vmatpush2.bf16.msra.mxu0 0
        %4211 = vmatprep.subr.bf16.mxu0 0
        %4212 = vmatpush2.bf16.msra.mxu0 0
        %4213 = vmatprep.subr.bf16.mxu0 0
        %4214 = vmatpush2.bf16.msra.mxu0 0
        %4215 = vmatprep.subr.bf16.mxu0 0
        %4216 = vmatpush2.bf16.msra.mxu0 0
        %4217 = vmatprep.subr.bf16.mxu0 0
        %4218 = vmatpush2.bf16.msra.mxu0 0
        %4219 = vmatprep.subr.bf16.mxu0 0
        %4220 = vmatpush2.bf16.msra.mxu0 0
        %4221 = vmatprep.subr.bf16.mxu0 0
        %4222 = vmatpush2.bf16.msra.mxu0 0
        %4223 = vmatprep.subr.bf16.mxu0 0
        %4224 = vmatpush2.bf16.msra.mxu0 0
        %4225 = vmatprep.mubr.bf16.mxu0 0
        %4226 = vmatmul.mubr.bf16.gmra.mxu0 %v4185
        %v4227 = vpop.f32.mrf.mxu0
        %v4228 = vadd.f32 0.0, %v4227
        %v4229 = vpop.f32.mrf.mxu0
        %v4230 = vpop.f32.mrf.mxu0
        %v4231 = vadd.f32 0.0, %v4230
        %v4232 = vpop.f32.mrf.mxu0
        %4233 = vmatprep.mubr.bf16.mxu0 0
        %4234 = vmatmul.mubr.bf16.gmra.mxu0 %v4186
        %v4235 = vpop.f32.mrf.mxu0
        %v4236 = vadd.f32 0.0, %v4235
        %v4237 = vpop.f32.mrf.mxu0
        %v4238 = vpop.f32.mrf.mxu0
        %v4239 = vadd.f32 0.0, %v4238
        %v4240 = vpop.f32.mrf.mxu0
        %4241 = vmatprep.mubr.bf16.mxu0 0
        %4242 = vmatmul.mubr.bf16.gmra.mxu0 %v4187
        %v4243 = vpop.f32.mrf.mxu0
        %v4244 = vadd.f32 0.0, %v4243
        %v4245 = vpop.f32.mrf.mxu0
        %v4246 = vpop.f32.mrf.mxu0
        %v4247 = vadd.f32 0.0, %v4246
        %v4248 = vpop.f32.mrf.mxu0
        %4249 = vmatprep.mubr.bf16.mxu0 0
        %4250 = vmatmul.mubr.bf16.gmra.mxu0 %v4188
        %v4251 = vpop.f32.mrf.mxu0
        %v4252 = vadd.f32 0.0, %v4251
        %v4253 = vpop.f32.mrf.mxu0
        %v4254 = vpop.f32.mrf.mxu0
        %v4255 = vadd.f32 0.0, %v4254
        %v4256 = vpop.f32.mrf.mxu0
        %4257 = vmatprep.mubr.bf16.mxu0 0
        %4258 = vmatmul.mubr.bf16.gmra.mxu0 %v4189
        %v4259 = vpop.f32.mrf.mxu0
        %v4260 = vadd.f32 0.0, %v4259
        %v4261 = vpop.f32.mrf.mxu0
        %v4262 = vpop.f32.mrf.mxu0
        %v4263 = vadd.f32 0.0, %v4262
        %v4264 = vpop.f32.mrf.mxu0
        %4265 = vmatprep.mubr.bf16.mxu0 0
        %4266 = vmatmul.mubr.bf16.gmra.mxu0 %v4190
        %v4267 = vpop.f32.mrf.mxu0
        %v4268 = vadd.f32 0.0, %v4267
        %v4269 = vpop.f32.mrf.mxu0
        %v4270 = vpop.f32.mrf.mxu0
        %v4271 = vadd.f32 0.0, %v4270
        %v4272 = vpop.f32.mrf.mxu0
        %4273 = vmatprep.mubr.bf16.mxu0 0
        %4274 = vmatmul.mubr.bf16.gmra.mxu0 %v4191
        %v4275 = vpop.f32.mrf.mxu0
        %v4276 = vadd.f32 0.0, %v4275
        %v4277 = vpop.f32.mrf.mxu0
        %v4278 = vpop.f32.mrf.mxu0
        %v4279 = vadd.f32 0.0, %v4278
        %v4280 = vpop.f32.mrf.mxu0
        %4281 = vmatprep.mubr.bf16.mxu0 0
        %4282 = vmatmul.mubr.bf16.gmra.mxu0 %v4192
        %v4283 = vpop.f32.mrf.mxu0
        %v4284 = vadd.f32 0.0, %v4283
        %v4285 = vpop.f32.mrf.mxu0
        %v4286 = vpop.f32.mrf.mxu0
        %v4287 = vadd.f32 0.0, %v4286
        %v4288 = vpop.f32.mrf.mxu0
        %4289 = vdwg.mxu0
        %4298 = vrot.lane.b32.xlu0 %v3864, 96
        %v4299 = vpop.permute.xlu0 %4298
        %4300 = vrot.lane.b32.xlu0 %v3865, 96
        %v4301 = vpop.permute.xlu0 %4300
        %4302 = vrot.lane.b32.xlu0 %v3866, 96
        %v4303 = vpop.permute.xlu0 %4302
        %4304 = vrot.lane.b32.xlu0 %v3867, 96
        %v4305 = vpop.permute.xlu0 %4304
        %4306 = vrot.lane.b32.xlu0 %v3868, 96
        %v4307 = vpop.permute.xlu0 %4306
        %4308 = vrot.lane.b32.xlu0 %v3869, 96
        %v4309 = vpop.permute.xlu0 %4308
        %4310 = vrot.lane.b32.xlu0 %v3870, 96
        %v4311 = vpop.permute.xlu0 %4310
        %4312 = vrot.lane.b32.xlu0 %v3871, 96
        %v4313 = vpop.permute.xlu0 %4312
        %4314 = vrot.lane.b32.xlu0 %v2948, 32
        %v4315 = vpop.permute.xlu0 %4314
        %4316 = vrot.lane.b32.xlu0 %v2949, 32
        %v4317 = vpop.permute.xlu0 %4316
        %4318 = vrot.lane.b32.xlu0 %v2950, 32
        %v4319 = vpop.permute.xlu0 %4318
        %4320 = vrot.lane.b32.xlu0 %v2951, 32
        %v4321 = vpop.permute.xlu0 %4320
        %4322 = vrot.lane.b32.xlu0 %v2952, 32
        %v4323 = vpop.permute.xlu0 %4322
        %4324 = vrot.lane.b32.xlu0 %v2953, 32
        %v4325 = vpop.permute.xlu0 %4324
        %4326 = vrot.lane.b32.xlu0 %v2954, 32
        %v4327 = vpop.permute.xlu0 %4326
        %4328 = vrot.lane.b32.xlu0 %v2955, 32
        %v4329 = vpop.permute.xlu0 %4328
        %v4331 = vsel %vm2087, %v4299, 0
        %v4334 = vsel %vm2087, %v4301, 0
        %v4337 = vsel %vm2087, %v4303, 0
        %v4340 = vsel %vm2087, %v4305, 0
        %v4343 = vsel %vm2087, %v4307, 0
        %v4346 = vsel %vm2087, %v4309, 0
        %v4349 = vsel %vm2087, %v4311, 0
        %v4352 = vsel %vm2087, %v4313, 0
        %v4355 = vsel %vm2087, %v4315, 0
        %v4358 = vsel %vm2087, %v4317, 0
        %v4361 = vsel %vm2087, %v4319, 0
        %v4364 = vsel %vm2087, %v4321, 0
        %v4367 = vsel %vm2087, %v4323, 0
        %v4370 = vsel %vm2087, %v4325, 0
        %v4373 = vsel %vm2087, %v4327, 0
        %v4376 = vsel %vm2087, %v4329, 0
        %4378 = vmatprep.subr.bf16.mxu0 0
        %4379 = vmatpush1.bf16.xpose.msra.mxu0 %v4376
        %4380 = vmatprep.subr.bf16.mxu0 0
        %4381 = vmatpush1.bf16.xpose.msra.mxu0 %v4373
        %4382 = vmatprep.subr.bf16.mxu0 0
        %4383 = vmatpush1.bf16.xpose.msra.mxu0 %v4370
        %4384 = vmatprep.subr.bf16.mxu0 0
        %4385 = vmatpush1.bf16.xpose.msra.mxu0 %v4367
        %4386 = vmatprep.subr.bf16.mxu0 0
        %4387 = vmatpush1.bf16.xpose.msra.mxu0 %v4364
        %4388 = vmatprep.subr.bf16.mxu0 0
        %4389 = vmatpush1.bf16.xpose.msra.mxu0 %v4361
        %4390 = vmatprep.subr.bf16.mxu0 0
        %4391 = vmatpush1.bf16.xpose.msra.mxu0 %v4358
        %4392 = vmatprep.subr.bf16.mxu0 0
        %4393 = vmatpush1.bf16.xpose.msra.mxu0 %v4355
        %4394 = vmatprep.subr.bf16.mxu0 0
        %4395 = vmatpush2.bf16.xpose.msra.mxu0 0
        %4396 = vmatprep.subr.bf16.mxu0 0
        %4397 = vmatpush2.bf16.xpose.msra.mxu0 0
        %4398 = vmatprep.subr.bf16.mxu0 0
        %4399 = vmatpush2.bf16.xpose.msra.mxu0 0
        %4400 = vmatprep.subr.bf16.mxu0 0
        %4401 = vmatpush2.bf16.xpose.msra.mxu0 0
        %4402 = vmatprep.subr.bf16.mxu0 0
        %4403 = vmatpush2.bf16.xpose.msra.mxu0 0
        %4404 = vmatprep.subr.bf16.mxu0 0
        %4405 = vmatpush2.bf16.xpose.msra.mxu0 0
        %4406 = vmatprep.subr.bf16.mxu0 0
        %4407 = vmatpush2.bf16.xpose.msra.mxu0 0
        %4408 = vmatprep.subr.bf16.mxu0 0
        %4409 = vmatpush2.bf16.xpose.msra.mxu0 0
        %4410 = vmatprep.mubr.bf16.mxu0 0
        %4411 = vmatmul.mubr.bf16.gmra.mxu0 %v4331
        %v4412 = vpop.f32.mrf.mxu0
        %v4413 = vadd.f32 %v2061, %v4412
        %v4414 = vpop.f32.mrf.mxu0
        %v4415 = vpop.f32.mrf.mxu0
        %v4416 = vadd.f32 %v2061, %v4415
        %v4417 = vpop.f32.mrf.mxu0
        %4418 = vmatprep.mubr.bf16.mxu0 0
        %4419 = vmatmul.mubr.bf16.gmra.mxu0 %v4334
        %v4420 = vpop.f32.mrf.mxu0
        %v4421 = vadd.f32 %v2061, %v4420
        %v4422 = vpop.f32.mrf.mxu0
        %v4423 = vpop.f32.mrf.mxu0
        %v4424 = vadd.f32 %v2061, %v4423
        %v4425 = vpop.f32.mrf.mxu0
        %4426 = vmatprep.mubr.bf16.mxu0 0
        %4427 = vmatmul.mubr.bf16.gmra.mxu0 %v4337
        %v4428 = vpop.f32.mrf.mxu0
        %v4429 = vadd.f32 %v2061, %v4428
        %v4430 = vpop.f32.mrf.mxu0
        %v4431 = vpop.f32.mrf.mxu0
        %v4432 = vadd.f32 %v2061, %v4431
        %v4433 = vpop.f32.mrf.mxu0
        %4434 = vmatprep.mubr.bf16.mxu0 0
        %4435 = vmatmul.mubr.bf16.gmra.mxu0 %v4340
        %v4436 = vpop.f32.mrf.mxu0
        %v4437 = vadd.f32 %v2061, %v4436
        %v4438 = vpop.f32.mrf.mxu0
        %v4439 = vpop.f32.mrf.mxu0
        %v4440 = vadd.f32 %v2061, %v4439
        %v4441 = vpop.f32.mrf.mxu0
        %4442 = vmatprep.mubr.bf16.mxu0 0
        %4443 = vmatmul.mubr.bf16.gmra.mxu0 %v4343
        %v4444 = vpop.f32.mrf.mxu0
        %v4445 = vadd.f32 %v2061, %v4444
        %v4446 = vpop.f32.mrf.mxu0
        %v4447 = vpop.f32.mrf.mxu0
        %v4448 = vadd.f32 %v2061, %v4447
        %v4449 = vpop.f32.mrf.mxu0
        %4450 = vmatprep.mubr.bf16.mxu0 0
        %4451 = vmatmul.mubr.bf16.gmra.mxu0 %v4346
        %v4452 = vpop.f32.mrf.mxu0
        %v4453 = vadd.f32 %v2061, %v4452
        %v4454 = vpop.f32.mrf.mxu0
        %v4455 = vpop.f32.mrf.mxu0
        %v4456 = vadd.f32 %v2061, %v4455
        %v4457 = vpop.f32.mrf.mxu0
        %4458 = vmatprep.mubr.bf16.mxu0 0
        %4459 = vmatmul.mubr.bf16.gmra.mxu0 %v4349
        %v4460 = vpop.f32.mrf.mxu0
        %v4461 = vadd.f32 %v2061, %v4460
        %v4462 = vpop.f32.mrf.mxu0
        %v4463 = vpop.f32.mrf.mxu0
        %v4464 = vadd.f32 %v2061, %v4463
        %v4465 = vpop.f32.mrf.mxu0
        %4466 = vmatprep.mubr.bf16.mxu0 0
        %4467 = vmatmul.mubr.bf16.gmra.mxu0 %v4352
        %v4468 = vpop.f32.mrf.mxu0
        %v4469 = vadd.f32 %v2061, %v4468
        %v4470 = vpop.f32.mrf.mxu0
        %v4471 = vpop.f32.mrf.mxu0
        %v4472 = vadd.f32 %v2061, %v4471
        %v4473 = vpop.f32.mrf.mxu0
        %4474 = vdwg.mxu0
        %4475 = vmax.xlane.f32.xlu0 %v4413
        %v4476 = vpop.xlane.xlu0 %4475
        %4477 = vmax.xlane.f32.xlu0 %v4416
        %v4478 = vpop.xlane.xlu0 %4477
        %4479 = vmax.xlane.f32.xlu0 %v4421
        %v4480 = vpop.xlane.xlu0 %4479
        %4481 = vmax.xlane.f32.xlu0 %v4424
        %v4482 = vpop.xlane.xlu0 %4481
        %4483 = vmax.xlane.f32.xlu0 %v4429
        %v4484 = vpop.xlane.xlu0 %4483
        %4485 = vmax.xlane.f32.xlu0 %v4432
        %v4486 = vpop.xlane.xlu0 %4485
        %4487 = vmax.xlane.f32.xlu0 %v4437
        %v4488 = vpop.xlane.xlu0 %4487
        %4489 = vmax.xlane.f32.xlu0 %v4440
        %v4490 = vpop.xlane.xlu0 %4489
        %4491 = vmax.xlane.f32.xlu0 %v4445
        %v4492 = vpop.xlane.xlu0 %4491
        %4493 = vmax.xlane.f32.xlu0 %v4448
        %v4494 = vpop.xlane.xlu0 %4493
        %4495 = vmax.xlane.f32.xlu0 %v4453
        %v4496 = vpop.xlane.xlu0 %4495
        %4497 = vmax.xlane.f32.xlu0 %v4456
        %v4498 = vpop.xlane.xlu0 %4497
        %4499 = vmax.xlane.f32.xlu0 %v4461
        %v4500 = vpop.xlane.xlu0 %4499
        %4501 = vmax.xlane.f32.xlu0 %v4464
        %v4502 = vpop.xlane.xlu0 %4501
        %4503 = vmax.xlane.f32.xlu0 %v4469
        %v4504 = vpop.xlane.xlu0 %4503
        %4505 = vmax.xlane.f32.xlu0 %v4472
        %v4506 = vpop.xlane.xlu0 %4505
        %v4507 = vsub.f32 %v4413, %v4476
        %v4508 = vsub.f32 %v4416, %v4478
        %v4509 = vsub.f32 %v4421, %v4480
        %v4510 = vsub.f32 %v4424, %v4482
        %v4511 = vsub.f32 %v4429, %v4484
        %v4512 = vsub.f32 %v4432, %v4486
        %v4513 = vsub.f32 %v4437, %v4488
        %v4514 = vsub.f32 %v4440, %v4490
        %v4515 = vsub.f32 %v4445, %v4492
        %v4516 = vsub.f32 %v4448, %v4494
        %v4517 = vsub.f32 %v4453, %v4496
        %v4518 = vsub.f32 %v4456, %v4498
        %v4519 = vsub.f32 %v4461, %v4500
        %v4520 = vsub.f32 %v4464, %v4502
        %v4521 = vsub.f32 %v4469, %v4504
        %v4522 = vsub.f32 %v4472, %v4506
        %v4523 = vmul.f32 %v4507, 1.442695
        %v4524 = vpow.pop %v4523
        %v4525 = vmul.f32 %v4508, 1.442695
        %v4526 = vpow.pop %v4525
        %v4527 = vmul.f32 %v4509, 1.442695
        %v4528 = vpow.pop %v4527
        %v4529 = vmul.f32 %v4510, 1.442695
        %v4530 = vpow.pop %v4529
        %v4531 = vmul.f32 %v4511, 1.442695
        %v4532 = vpow.pop %v4531
        %v4533 = vmul.f32 %v4512, 1.442695
        %v4534 = vpow.pop %v4533
        %v4535 = vmul.f32 %v4513, 1.442695
        %v4536 = vpow.pop %v4535
        %v4537 = vmul.f32 %v4514, 1.442695
        %v4538 = vpow.pop %v4537
        %v4539 = vmul.f32 %v4515, 1.442695
        %v4540 = vpow.pop %v4539
        %v4541 = vmul.f32 %v4516, 1.442695
        %v4542 = vpow.pop %v4541
        %v4543 = vmul.f32 %v4517, 1.442695
        %v4544 = vpow.pop %v4543
        %v4545 = vmul.f32 %v4518, 1.442695
        %v4546 = vpow.pop %v4545
        %v4547 = vmul.f32 %v4519, 1.442695
        %v4548 = vpow.pop %v4547
        %v4549 = vmul.f32 %v4520, 1.442695
        %v4550 = vpow.pop %v4549
        %v4551 = vmul.f32 %v4521, 1.442695
        %v4552 = vpow.pop %v4551
        %v4553 = vmul.f32 %v4522, 1.442695
        %v4554 = vpow.pop %v4553
        %4555 = vadd.xlane.f32.xlu0 %v4524
        %v4556 = vpop.xlane.xlu0 %4555
        %4557 = vadd.xlane.f32.xlu0 %v4526
        %v4558 = vpop.xlane.xlu0 %4557
        %4559 = vadd.xlane.f32.xlu0 %v4528
        %v4560 = vpop.xlane.xlu0 %4559
        %4561 = vadd.xlane.f32.xlu0 %v4530
        %v4562 = vpop.xlane.xlu0 %4561
        %4563 = vadd.xlane.f32.xlu0 %v4532
        %v4564 = vpop.xlane.xlu0 %4563
        %4565 = vadd.xlane.f32.xlu0 %v4534
        %v4566 = vpop.xlane.xlu0 %4565
        %4567 = vadd.xlane.f32.xlu0 %v4536
        %v4568 = vpop.xlane.xlu0 %4567
        %4569 = vadd.xlane.f32.xlu0 %v4538
        %v4570 = vpop.xlane.xlu0 %4569
        %4571 = vadd.xlane.f32.xlu0 %v4540
        %v4572 = vpop.xlane.xlu0 %4571
        %4573 = vadd.xlane.f32.xlu0 %v4542
        %v4574 = vpop.xlane.xlu0 %4573
        %4575 = vadd.xlane.f32.xlu0 %v4544
        %v4576 = vpop.xlane.xlu0 %4575
        %4577 = vadd.xlane.f32.xlu0 %v4546
        %v4578 = vpop.xlane.xlu0 %4577
        %4579 = vadd.xlane.f32.xlu0 %v4548
        %v4580 = vpop.xlane.xlu0 %4579
        %4581 = vadd.xlane.f32.xlu0 %v4550
        %v4582 = vpop.xlane.xlu0 %4581
        %4583 = vadd.xlane.f32.xlu0 %v4552
        %v4584 = vpop.xlane.xlu0 %4583
        %4585 = vadd.xlane.f32.xlu0 %v4554
        %v4586 = vpop.xlane.xlu0 %4585
        %v4587 = vrcp.pop %v4556
        %v4588 = vrcp.pop %v4558
        %v4589 = vrcp.pop %v4560
        %v4590 = vrcp.pop %v4562
        %v4591 = vrcp.pop %v4564
        %v4592 = vrcp.pop %v4566
        %v4593 = vrcp.pop %v4568
        %v4594 = vrcp.pop %v4570
        %v4595 = vrcp.pop %v4572
        %v4596 = vrcp.pop %v4574
        %v4597 = vrcp.pop %v4576
        %v4598 = vrcp.pop %v4578
        %v4599 = vrcp.pop %v4580
        %v4600 = vrcp.pop %v4582
        %v4601 = vrcp.pop %v4584
        %v4602 = vrcp.pop %v4586
        %v4603 = vmul.f32 %v4524, %v4587
        %v4604 = vmul.f32 %v4526, %v4588
        %v4605 = vmul.f32 %v4528, %v4589
        %v4606 = vmul.f32 %v4530, %v4590
        %v4607 = vmul.f32 %v4532, %v4591
        %v4608 = vmul.f32 %v4534, %v4592
        %v4609 = vmul.f32 %v4536, %v4593
        %v4610 = vmul.f32 %v4538, %v4594
        %v4611 = vmul.f32 %v4540, %v4595
        %v4612 = vmul.f32 %v4542, %v4596
        %v4613 = vmul.f32 %v4544, %v4597
        %v4614 = vmul.f32 %v4546, %v4598
        %v4615 = vmul.f32 %v4548, %v4599
        %v4616 = vmul.f32 %v4550, %v4600
        %v4617 = vmul.f32 %v4552, %v4601
        %v4618 = vmul.f32 %v4554, %v4602
        %v4619 = vpack.c.bf16 %v4604, %v4603
        %v4620 = vpack.c.bf16 %v4606, %v4605
        %v4621 = vpack.c.bf16 %v4608, %v4607
        %v4622 = vpack.c.bf16 %v4610, %v4609
        %v4623 = vpack.c.bf16 %v4612, %v4611
        %v4624 = vpack.c.bf16 %v4614, %v4613
        %v4625 = vpack.c.bf16 %v4616, %v4615
        %v4626 = vpack.c.bf16 %v4618, %v4617
        %4635 = vrot.lane.b32.xlu0 %v3872, 96
        %v4636 = vpop.permute.xlu0 %4635
        %4637 = vrot.lane.b32.xlu0 %v3873, 96
        %v4638 = vpop.permute.xlu0 %4637
        %4639 = vrot.lane.b32.xlu0 %v3874, 96
        %v4640 = vpop.permute.xlu0 %4639
        %4641 = vrot.lane.b32.xlu0 %v3875, 96
        %v4642 = vpop.permute.xlu0 %4641
        %4643 = vrot.lane.b32.xlu0 %v3876, 96
        %v4644 = vpop.permute.xlu0 %4643
        %4645 = vrot.lane.b32.xlu0 %v3877, 96
        %v4646 = vpop.permute.xlu0 %4645
        %4647 = vrot.lane.b32.xlu0 %v3878, 96
        %v4648 = vpop.permute.xlu0 %4647
        %4649 = vrot.lane.b32.xlu0 %v3879, 96
        %v4650 = vpop.permute.xlu0 %4649
        %4659 = vmatprep.subr.bf16.mxu0 0
        %4660 = vmatpush1.bf16.msra.mxu0 %v4650
        %4661 = vmatprep.subr.bf16.mxu0 0
        %4662 = vmatpush1.bf16.msra.mxu0 %v4648
        %4663 = vmatprep.subr.bf16.mxu0 0
        %4664 = vmatpush1.bf16.msra.mxu0 %v4646
        %4665 = vmatprep.subr.bf16.mxu0 0
        %4666 = vmatpush1.bf16.msra.mxu0 %v4644
        %4667 = vmatprep.subr.bf16.mxu0 0
        %4668 = vmatpush1.bf16.msra.mxu0 %v4642
        %4669 = vmatprep.subr.bf16.mxu0 0
        %4670 = vmatpush1.bf16.msra.mxu0 %v4640
        %4671 = vmatprep.subr.bf16.mxu0 0
        %4672 = vmatpush1.bf16.msra.mxu0 %v4638
        %4673 = vmatprep.subr.bf16.mxu0 0
        %4674 = vmatpush1.bf16.msra.mxu0 %v4636
        %4675 = vmatprep.subr.bf16.mxu0 0
        %4676 = vmatpush2.bf16.msra.mxu0 0
        %4677 = vmatprep.subr.bf16.mxu0 0
        %4678 = vmatpush2.bf16.msra.mxu0 0
        %4679 = vmatprep.subr.bf16.mxu0 0
        %4680 = vmatpush2.bf16.msra.mxu0 0
        %4681 = vmatprep.subr.bf16.mxu0 0
        %4682 = vmatpush2.bf16.msra.mxu0 0
        %4683 = vmatprep.subr.bf16.mxu0 0
        %4684 = vmatpush2.bf16.msra.mxu0 0
        %4685 = vmatprep.subr.bf16.mxu0 0
        %4686 = vmatpush2.bf16.msra.mxu0 0
        %4687 = vmatprep.subr.bf16.mxu0 0
        %4688 = vmatpush2.bf16.msra.mxu0 0
        %4689 = vmatprep.subr.bf16.mxu0 0
        %4690 = vmatpush2.bf16.msra.mxu0 0
        %4691 = vmatprep.mubr.bf16.mxu0 0
        %4692 = vmatmul.mubr.bf16.gmra.mxu0 %v4619
        %v4693 = vpop.f32.mrf.mxu0
        %v4694 = vadd.f32 0.0, %v4693
        %v4695 = vpop.f32.mrf.mxu0
        %v4696 = vpop.f32.mrf.mxu0
        %v4697 = vadd.f32 0.0, %v4696
        %v4698 = vpop.f32.mrf.mxu0
        %4699 = vmatprep.mubr.bf16.mxu0 0
        %4700 = vmatmul.mubr.bf16.gmra.mxu0 %v4620
        %v4701 = vpop.f32.mrf.mxu0
        %v4702 = vadd.f32 0.0, %v4701
        %v4703 = vpop.f32.mrf.mxu0
        %v4704 = vpop.f32.mrf.mxu0
        %v4705 = vadd.f32 0.0, %v4704
        %v4706 = vpop.f32.mrf.mxu0
        %4707 = vmatprep.mubr.bf16.mxu0 0
        %4708 = vmatmul.mubr.bf16.gmra.mxu0 %v4621
        %v4709 = vpop.f32.mrf.mxu0
        %v4710 = vadd.f32 0.0, %v4709
        %v4711 = vpop.f32.mrf.mxu0
        %v4712 = vpop.f32.mrf.mxu0
        %v4713 = vadd.f32 0.0, %v4712
        %v4714 = vpop.f32.mrf.mxu0
        %4715 = vmatprep.mubr.bf16.mxu0 0
        %4716 = vmatmul.mubr.bf16.gmra.mxu0 %v4622
        %v4717 = vpop.f32.mrf.mxu0
        %v4718 = vadd.f32 0.0, %v4717
        %v4719 = vpop.f32.mrf.mxu0
        %v4720 = vpop.f32.mrf.mxu0
        %v4721 = vadd.f32 0.0, %v4720
        %v4722 = vpop.f32.mrf.mxu0
        %4723 = vmatprep.mubr.bf16.mxu0 0
        %4724 = vmatmul.mubr.bf16.gmra.mxu0 %v4623
        %v4725 = vpop.f32.mrf.mxu0
        %v4726 = vadd.f32 0.0, %v4725
        %v4727 = vpop.f32.mrf.mxu0
        %v4728 = vpop.f32.mrf.mxu0
        %v4729 = vadd.f32 0.0, %v4728
        %v4730 = vpop.f32.mrf.mxu0
        %4731 = vmatprep.mubr.bf16.mxu0 0
        %4732 = vmatmul.mubr.bf16.gmra.mxu0 %v4624
        %v4733 = vpop.f32.mrf.mxu0
        %v4734 = vadd.f32 0.0, %v4733
        %v4735 = vpop.f32.mrf.mxu0
        %v4736 = vpop.f32.mrf.mxu0
        %v4737 = vadd.f32 0.0, %v4736
        %v4738 = vpop.f32.mrf.mxu0
        %4739 = vmatprep.mubr.bf16.mxu0 0
        %4740 = vmatmul.mubr.bf16.gmra.mxu0 %v4625
        %v4741 = vpop.f32.mrf.mxu0
        %v4742 = vadd.f32 0.0, %v4741
        %v4743 = vpop.f32.mrf.mxu0
        %v4744 = vpop.f32.mrf.mxu0
        %v4745 = vadd.f32 0.0, %v4744
        %v4746 = vpop.f32.mrf.mxu0
        %4747 = vmatprep.mubr.bf16.mxu0 0
        %4748 = vmatmul.mubr.bf16.gmra.mxu0 %v4626
        %v4749 = vpop.f32.mrf.mxu0
        %v4750 = vadd.f32 0.0, %v4749
        %v4751 = vpop.f32.mrf.mxu0
        %v4752 = vpop.f32.mrf.mxu0
        %v4753 = vadd.f32 0.0, %v4752
        %v4754 = vpop.f32.mrf.mxu0
        %4755 = vdwg.mxu0
        %4772 = vrot.lane.b32.xlu0 %v2886, 32
        %v4773 = vpop.permute.xlu0 %4772
        %4774 = vrot.lane.b32.xlu0 %v2889, 32
        %v4775 = vpop.permute.xlu0 %4774
        %4776 = vrot.lane.b32.xlu0 %v2894, 32
        %v4777 = vpop.permute.xlu0 %4776
        %4778 = vrot.lane.b32.xlu0 %v2897, 32
        %v4779 = vpop.permute.xlu0 %4778
        %4780 = vrot.lane.b32.xlu0 %v2902, 32
        %v4781 = vpop.permute.xlu0 %4780
        %4782 = vrot.lane.b32.xlu0 %v2905, 32
        %v4783 = vpop.permute.xlu0 %4782
        %4784 = vrot.lane.b32.xlu0 %v2910, 32
        %v4785 = vpop.permute.xlu0 %4784
        %4786 = vrot.lane.b32.xlu0 %v2913, 32
        %v4787 = vpop.permute.xlu0 %4786
        %4788 = vrot.lane.b32.xlu0 %v2918, 32
        %v4789 = vpop.permute.xlu0 %4788
        %4790 = vrot.lane.b32.xlu0 %v2921, 32
        %v4791 = vpop.permute.xlu0 %4790
        %4792 = vrot.lane.b32.xlu0 %v2926, 32
        %v4793 = vpop.permute.xlu0 %4792
        %4794 = vrot.lane.b32.xlu0 %v2929, 32
        %v4795 = vpop.permute.xlu0 %4794
        %4796 = vrot.lane.b32.xlu0 %v2934, 32
        %v4797 = vpop.permute.xlu0 %4796
        %4798 = vrot.lane.b32.xlu0 %v2937, 32
        %v4799 = vpop.permute.xlu0 %4798
        %4800 = vrot.lane.b32.xlu0 %v2942, 32
        %v4801 = vpop.permute.xlu0 %4800
        %4802 = vrot.lane.b32.xlu0 %v2945, 32
        %v4803 = vpop.permute.xlu0 %4802
        %4836 = vrot.lane.b32.xlu0 %v3328, 64
        %v4837 = vpop.permute.xlu0 %4836
        %4838 = vrot.lane.b32.xlu0 %v3331, 64
        %v4839 = vpop.permute.xlu0 %4838
        %4840 = vrot.lane.b32.xlu0 %v3336, 64
        %v4841 = vpop.permute.xlu0 %4840
        %4842 = vrot.lane.b32.xlu0 %v3339, 64
        %v4843 = vpop.permute.xlu0 %4842
        %4844 = vrot.lane.b32.xlu0 %v3344, 64
        %v4845 = vpop.permute.xlu0 %4844
        %4846 = vrot.lane.b32.xlu0 %v3347, 64
        %v4847 = vpop.permute.xlu0 %4846
        %4848 = vrot.lane.b32.xlu0 %v3352, 64
        %v4849 = vpop.permute.xlu0 %4848
        %4850 = vrot.lane.b32.xlu0 %v3355, 64
        %v4851 = vpop.permute.xlu0 %4850
        %4852 = vrot.lane.b32.xlu0 %v3360, 64
        %v4853 = vpop.permute.xlu0 %4852
        %4854 = vrot.lane.b32.xlu0 %v3363, 64
        %v4855 = vpop.permute.xlu0 %4854
        %4856 = vrot.lane.b32.xlu0 %v3368, 64
        %v4857 = vpop.permute.xlu0 %4856
        %4858 = vrot.lane.b32.xlu0 %v3371, 64
        %v4859 = vpop.permute.xlu0 %4858
        %4860 = vrot.lane.b32.xlu0 %v3376, 64
        %v4861 = vpop.permute.xlu0 %4860
        %4862 = vrot.lane.b32.xlu0 %v3379, 64
        %v4863 = vpop.permute.xlu0 %4862
        %4864 = vrot.lane.b32.xlu0 %v3384, 64
        %v4865 = vpop.permute.xlu0 %4864
        %4866 = vrot.lane.b32.xlu0 %v3387, 64
        %v4867 = vpop.permute.xlu0 %4866
        %4900 = vrot.lane.b32.xlu0 %v3786, 96
        %v4901 = vpop.permute.xlu0 %4900
        %4902 = vrot.lane.b32.xlu0 %v3789, 96
        %v4903 = vpop.permute.xlu0 %4902
        %4904 = vrot.lane.b32.xlu0 %v3794, 96
        %v4905 = vpop.permute.xlu0 %4904
        %4906 = vrot.lane.b32.xlu0 %v3797, 96
        %v4907 = vpop.permute.xlu0 %4906
        %4908 = vrot.lane.b32.xlu0 %v3802, 96
        %v4909 = vpop.permute.xlu0 %4908
        %4910 = vrot.lane.b32.xlu0 %v3805, 96
        %v4911 = vpop.permute.xlu0 %4910
        %4912 = vrot.lane.b32.xlu0 %v3810, 96
        %v4913 = vpop.permute.xlu0 %4912
        %4914 = vrot.lane.b32.xlu0 %v3813, 96
        %v4915 = vpop.permute.xlu0 %4914
        %4916 = vrot.lane.b32.xlu0 %v3818, 96
        %v4917 = vpop.permute.xlu0 %4916
        %4918 = vrot.lane.b32.xlu0 %v3821, 96
        %v4919 = vpop.permute.xlu0 %4918
        %4920 = vrot.lane.b32.xlu0 %v3826, 96
        %v4921 = vpop.permute.xlu0 %4920
        %4922 = vrot.lane.b32.xlu0 %v3829, 96
        %v4923 = vpop.permute.xlu0 %4922
        %4924 = vrot.lane.b32.xlu0 %v3834, 96
        %v4925 = vpop.permute.xlu0 %4924
        %4926 = vrot.lane.b32.xlu0 %v3837, 96
        %v4927 = vpop.permute.xlu0 %4926
        %4928 = vrot.lane.b32.xlu0 %v3842, 96
        %v4929 = vpop.permute.xlu0 %4928
        %4930 = vrot.lane.b32.xlu0 %v3845, 96
        %v4931 = vpop.permute.xlu0 %4930
        %4964 = vrot.lane.b32.xlu0 %v4694, 32
        %v4965 = vpop.permute.xlu0 %4964
        %4966 = vrot.lane.b32.xlu0 %v4697, 32
        %v4967 = vpop.permute.xlu0 %4966
        %4968 = vrot.lane.b32.xlu0 %v4702, 32
        %v4969 = vpop.permute.xlu0 %4968
        %4970 = vrot.lane.b32.xlu0 %v4705, 32
        %v4971 = vpop.permute.xlu0 %4970
        %4972 = vrot.lane.b32.xlu0 %v4710, 32
        %v4973 = vpop.permute.xlu0 %4972
        %4974 = vrot.lane.b32.xlu0 %v4713, 32
        %v4975 = vpop.permute.xlu0 %4974
        %4976 = vrot.lane.b32.xlu0 %v4718, 32
        %v4977 = vpop.permute.xlu0 %4976
        %4978 = vrot.lane.b32.xlu0 %v4721, 32
        %v4979 = vpop.permute.xlu0 %4978
        %4980 = vrot.lane.b32.xlu0 %v4726, 32
        %v4981 = vpop.permute.xlu0 %4980
        %4982 = vrot.lane.b32.xlu0 %v4729, 32
        %v4983 = vpop.permute.xlu0 %4982
        %4984 = vrot.lane.b32.xlu0 %v4734, 32
        %v4985 = vpop.permute.xlu0 %4984
        %4986 = vrot.lane.b32.xlu0 %v4737, 32
        %v4987 = vpop.permute.xlu0 %4986
        %4988 = vrot.lane.b32.xlu0 %v4742, 32
        %v4989 = vpop.permute.xlu0 %4988
        %4990 = vrot.lane.b32.xlu0 %v4745, 32
        %v4991 = vpop.permute.xlu0 %4990
        %4992 = vrot.lane.b32.xlu0 %v4750, 32
        %v4993 = vpop.permute.xlu0 %4992
        %4994 = vrot.lane.b32.xlu0 %v4753, 32
        %v4995 = vpop.permute.xlu0 %4994
        %v5012 = vsel %vm2087, %v2420, %v4773
        %v5013 = vsel %vm2087, %v2423, %v4775
        %v5014 = vsel %vm2087, %v2428, %v4777
        %v5015 = vsel %vm2087, %v2431, %v4779
        %v5016 = vsel %vm2087, %v2436, %v4781
        %v5017 = vsel %vm2087, %v2439, %v4783
        %v5018 = vsel %vm2087, %v2444, %v4785
        %v5019 = vsel %vm2087, %v2447, %v4787
        %v5020 = vsel %vm2087, %v2452, %v4789
        %v5021 = vsel %vm2087, %v2455, %v4791
        %v5022 = vsel %vm2087, %v2460, %v4793
        %v5023 = vsel %vm2087, %v2463, %v4795
        %v5024 = vsel %vm2087, %v2468, %v4797
        %v5025 = vsel %vm2087, %v2471, %v4799
        %v5026 = vsel %vm2087, %v2476, %v4801
        %v5027 = vsel %vm2087, %v2479, %v4803
        %v5028 = vsel %vm867, %v5012, %v4837
        %v5029 = vsel %vm867, %v5013, %v4839
        %v5030 = vsel %vm867, %v5014, %v4841
        %v5031 = vsel %vm867, %v5015, %v4843
        %v5032 = vsel %vm867, %v5016, %v4845
        %v5033 = vsel %vm867, %v5017, %v4847
        %v5034 = vsel %vm867, %v5018, %v4849
        %v5035 = vsel %vm867, %v5019, %v4851
        %v5036 = vsel %vm867, %v5020, %v4853
        %v5037 = vsel %vm867, %v5021, %v4855
        %v5038 = vsel %vm867, %v5022, %v4857
        %v5039 = vsel %vm867, %v5023, %v4859
        %v5040 = vsel %vm867, %v5024, %v4861
        %v5041 = vsel %vm867, %v5025, %v4863
        %v5042 = vsel %vm867, %v5026, %v4865
        %v5043 = vsel %vm867, %v5027, %v4867
        %vm5044 = vcmask 785408
        %v5045 = vsel %vm5044, %v5028, %v4901
        %v5046 = vsel %vm5044, %v5029, %v4903
        %v5047 = vsel %vm5044, %v5030, %v4905
        %v5048 = vsel %vm5044, %v5031, %v4907
        %v5049 = vsel %vm5044, %v5032, %v4909
        %v5050 = vsel %vm5044, %v5033, %v4911
        %v5051 = vsel %vm5044, %v5034, %v4913
        %v5052 = vsel %vm5044, %v5035, %v4915
        %v5053 = vsel %vm5044, %v5036, %v4917
        %v5054 = vsel %vm5044, %v5037, %v4919
        %v5055 = vsel %vm5044, %v5038, %v4921
        %v5056 = vsel %vm5044, %v5039, %v4923
        %v5057 = vsel %vm5044, %v5040, %v4925
        %v5058 = vsel %vm5044, %v5041, %v4927
        %v5059 = vsel %vm5044, %v5042, %v4929
        %v5060 = vsel %vm5044, %v5043, %v4931
        %v5061 = vsel %vm2087, %v4228, %v4965
        %v5062 = vsel %vm2087, %v4231, %v4967
        %v5063 = vsel %vm2087, %v4236, %v4969
        %v5064 = vsel %vm2087, %v4239, %v4971
        %v5065 = vsel %vm2087, %v4244, %v4973
        %v5066 = vsel %vm2087, %v4247, %v4975
        %v5067 = vsel %vm2087, %v4252, %v4977
        %v5068 = vsel %vm2087, %v4255, %v4979
        %v5069 = vsel %vm2087, %v4260, %v4981
        %v5070 = vsel %vm2087, %v4263, %v4983
        %v5071 = vsel %vm2087, %v4268, %v4985
        %v5072 = vsel %vm2087, %v4271, %v4987
        %v5073 = vsel %vm2087, %v4276, %v4989
        %v5074 = vsel %vm2087, %v4279, %v4991
        %v5075 = vsel %vm2087, %v4284, %v4993
        %v5076 = vsel %vm2087, %v4287, %v4995
        %v5077 = vpack.c.bf16 %v5046, %v5045
        %v5078 = vpack.c.bf16 %v5062, %v5061
        %v5079 = vpack.c.bf16 %v5048, %v5047
        %v5080 = vpack.c.bf16 %v5064, %v5063
        %v5081 = vpack.c.bf16 %v5050, %v5049
        %v5082 = vpack.c.bf16 %v5066, %v5065
        %v5083 = vpack.c.bf16 %v5052, %v5051
        %v5084 = vpack.c.bf16 %v5068, %v5067
        %v5085 = vpack.c.bf16 %v5054, %v5053
        %v5086 = vpack.c.bf16 %v5070, %v5069
        %v5087 = vpack.c.bf16 %v5056, %v5055
        %v5088 = vpack.c.bf16 %v5072, %v5071
        %v5089 = vpack.c.bf16 %v5058, %v5057
        %v5090 = vpack.c.bf16 %v5074, %v5073
        %v5091 = vpack.c.bf16 %v5060, %v5059
        %v5092 = vpack.c.bf16 %v5076, %v5075
        %v5093 = vld [vmem:[%s731] sm:$0xff]
        %v5094 = vld [vmem:[%s731 + $0x8] sm:$0xff]
        %v5095 = vld [vmem:[%s731 + $0x10] sm:$0xff]
        %v5096 = vld [vmem:[%s731 + $0x18] sm:$0xff]
        %v5097 = vld [vmem:[%s731 + $0x20] sm:$0xff]
        %v5098 = vld [vmem:[%s731 + $0x28] sm:$0xff]
        %v5099 = vld [vmem:[%s731 + $0x30] sm:$0xff]
        %v5100 = vld [vmem:[%s731 + $0x38] sm:$0xff]
        %v5101 = vld [vmem:[%s731 + $0x40] sm:$0xff]
        %v5102 = vld [vmem:[%s731 + $0x48] sm:$0xff]
        %v5103 = vld [vmem:[%s731 + $0x50] sm:$0xff]
        %v5104 = vld [vmem:[%s731 + $0x58] sm:$0xff]
        %v5105 = vld [vmem:[%s731 + $0x60] sm:$0xff]
        %v5106 = vld [vmem:[%s731 + $0x68] sm:$0xff]
        %v5107 = vld [vmem:[%s731 + $0x70] sm:$0xff]
        %v5108 = vld [vmem:[%s731 + $0x78] sm:$0xff]
        %v5109 = vld [vmem:[%s731 + $0x80] sm:$0xff]
        %v5110 = vld [vmem:[%s731 + $0x88] sm:$0xff]
        %v5111 = vld [vmem:[%s731 + $0x90] sm:$0xff]
        %v5112 = vld [vmem:[%s731 + $0x98] sm:$0xff]
        %v5113 = vld [vmem:[%s731 + $0xa0] sm:$0xff]
        %v5114 = vld [vmem:[%s731 + $0xa8] sm:$0xff]
        %v5115 = vld [vmem:[%s731 + $0xb0] sm:$0xff]
        %v5116 = vld [vmem:[%s731 + $0xb8] sm:$0xff]
        %v5117 = vld [vmem:[%s735] sm:$0x3]
        %v5119 = vlaneseq
        %v5120 = vshrl.u32 %v5119, 7
        %v5121 = vsub.s32 0, %v5120
        %v5122 = vrot.slane %v5117, %v5121
        %v5123 = vlaneseq
        %v5124 = vshrl.u32 %v5123, 7
        %v5125 = vsub.s32 1, %v5124
        %v5126 = vrot.slane %v5117, %v5125
        %v5153 = vunpack.c.l.b16 %v5093
        %v5154 = vunpack.c.h.b16 %v5093
        %v5155 = vunpack.c.l.b16 %v5094
        %v5156 = vunpack.c.h.b16 %v5094
        %v5157 = vunpack.c.l.b16 %v5095
        %v5158 = vunpack.c.h.b16 %v5095
        %v5159 = vunpack.c.l.b16 %v5096
        %v5160 = vunpack.c.h.b16 %v5096
        %v5161 = vunpack.c.l.b16 %v5097
        %v5162 = vunpack.c.h.b16 %v5097
        %v5163 = vunpack.c.l.b16 %v5098
        %v5164 = vunpack.c.h.b16 %v5098
        %v5165 = vunpack.c.l.b16 %v5099
        %v5166 = vunpack.c.h.b16 %v5099
        %v5167 = vunpack.c.l.b16 %v5100
        %v5168 = vunpack.c.h.b16 %v5100
        %v5169 = vunpack.c.l.b16 %v5101
        %v5170 = vunpack.c.h.b16 %v5101
        %v5171 = vunpack.c.l.b16 %v5102
        %v5172 = vunpack.c.h.b16 %v5102
        %v5173 = vunpack.c.l.b16 %v5103
        %v5174 = vunpack.c.h.b16 %v5103
        %v5175 = vunpack.c.l.b16 %v5104
        %v5176 = vunpack.c.h.b16 %v5104
        %v5177 = vunpack.c.l.b16 %v5105
        %v5178 = vunpack.c.h.b16 %v5105
        %v5179 = vunpack.c.l.b16 %v5106
        %v5180 = vunpack.c.h.b16 %v5106
        %v5181 = vunpack.c.l.b16 %v5107
        %v5182 = vunpack.c.h.b16 %v5107
        %v5183 = vunpack.c.l.b16 %v5108
        %v5184 = vunpack.c.h.b16 %v5108
        %v5185 = vunpack.c.l.b16 %v5109
        %v5186 = vunpack.c.h.b16 %v5109
        %v5187 = vunpack.c.l.b16 %v5110
        %v5188 = vunpack.c.h.b16 %v5110
        %v5189 = vunpack.c.l.b16 %v5111
        %v5190 = vunpack.c.h.b16 %v5111
        %v5191 = vunpack.c.l.b16 %v5112
        %v5192 = vunpack.c.h.b16 %v5112
        %v5193 = vunpack.c.l.b16 %v5113
        %v5194 = vunpack.c.h.b16 %v5113
        %v5195 = vunpack.c.l.b16 %v5114
        %v5196 = vunpack.c.h.b16 %v5114
        %v5197 = vunpack.c.l.b16 %v5115
        %v5198 = vunpack.c.h.b16 %v5115
        %v5199 = vunpack.c.l.b16 %v5116
        %v5200 = vunpack.c.h.b16 %v5116
        %v5201 = vpack.c.b16 %v5155, %v5153
        %v5202 = vpack.c.b16 %v5156, %v5154
        %v5203 = vpack.c.b16 %v5159, %v5157
        %v5204 = vpack.c.b16 %v5160, %v5158
        %v5205 = vpack.c.b16 %v5163, %v5161
        %v5206 = vpack.c.b16 %v5164, %v5162
        %v5207 = vpack.c.b16 %v5167, %v5165
        %v5208 = vpack.c.b16 %v5168, %v5166
        %v5209 = vpack.c.b16 %v5171, %v5169
        %v5210 = vpack.c.b16 %v5172, %v5170
        %v5211 = vpack.c.b16 %v5175, %v5173
        %v5212 = vpack.c.b16 %v5176, %v5174
        %v5213 = vpack.c.b16 %v5179, %v5177
        %v5214 = vpack.c.b16 %v5180, %v5178
        %v5215 = vpack.c.b16 %v5183, %v5181
        %v5216 = vpack.c.b16 %v5184, %v5182
        %v5217 = vpack.c.b16 %v5187, %v5185
        %v5218 = vpack.c.b16 %v5188, %v5186
        %v5219 = vpack.c.b16 %v5191, %v5189
        %v5220 = vpack.c.b16 %v5192, %v5190
        %v5221 = vpack.c.b16 %v5195, %v5193
        %v5222 = vpack.c.b16 %v5196, %v5194
        %v5223 = vpack.c.b16 %v5199, %v5197
        %v5224 = vpack.c.b16 %v5200, %v5198
        %v5250 = vsel %vm867, %v5078, 0
        %v5253 = vsel %vm867, %v5080, 0
        %v5256 = vsel %vm867, %v5082, 0
        %v5259 = vsel %vm867, %v5084, 0
        %v5262 = vsel %vm867, %v5086, 0
        %v5265 = vsel %vm867, %v5088, 0
        %v5268 = vsel %vm867, %v5090, 0
        %v5271 = vsel %vm867, %v5092, 0
        %5273 = vmatprep.subr.bf16.mxu0 %v5216
        %5274 = vmatpush1.bf16.msra.mxu0 %v5215
        %5275 = vmatprep.subr.bf16.mxu0 %v5214
        %5276 = vmatpush1.bf16.msra.mxu0 %v5213
        %5277 = vmatprep.subr.bf16.mxu0 %v5212
        %5278 = vmatpush1.bf16.msra.mxu0 %v5211
        %5279 = vmatprep.subr.bf16.mxu0 %v5210
        %5280 = vmatpush1.bf16.msra.mxu0 %v5209
        %5281 = vmatprep.subr.bf16.mxu0 %v5208
        %5282 = vmatpush1.bf16.msra.mxu0 %v5207
        %5283 = vmatprep.subr.bf16.mxu0 %v5206
        %5284 = vmatpush1.bf16.msra.mxu0 %v5205
        %5285 = vmatprep.subr.bf16.mxu0 %v5204
        %5286 = vmatpush1.bf16.msra.mxu0 %v5203
        %5287 = vmatprep.subr.bf16.mxu0 %v5202
        %5288 = vmatpush1.bf16.msra.mxu0 %v5201
        %5289 = vmatprep.subr.bf16.mxu0 0
        %5290 = vmatpush2.bf16.msra.mxu0 0
        %5291 = vmatprep.subr.bf16.mxu0 0
        %5292 = vmatpush2.bf16.msra.mxu0 0
        %5293 = vmatprep.subr.bf16.mxu0 0
        %5294 = vmatpush2.bf16.msra.mxu0 0
        %5295 = vmatprep.subr.bf16.mxu0 0
        %5296 = vmatpush2.bf16.msra.mxu0 0
        %5297 = vmatprep.subr.bf16.mxu0 %v5224
        %5298 = vmatpush2.bf16.msra.mxu0 %v5223
        %5299 = vmatprep.subr.bf16.mxu0 %v5222
        %5300 = vmatpush2.bf16.msra.mxu0 %v5221
        %5301 = vmatprep.subr.bf16.mxu0 %v5220
        %5302 = vmatpush2.bf16.msra.mxu0 %v5219
        %5303 = vmatprep.subr.bf16.mxu0 %v5218
        %5304 = vmatpush2.bf16.msra.mxu0 %v5217
        %5305 = vmatprep.mubr.bf16.mxu0 %v5250
        %5306 = vmatmul.mubr.bf16.gmra.mxu0 %v5077
        %v5307 = vpop.f32.mrf.mxu0
        %v5308 = vadd.f32 %v5122, %v5307
        %v5309 = vpop.f32.mrf.mxu0
        %v5310 = vadd.f32 %v5126, %v5309
        %v5311 = vpop.f32.mrf.mxu0
        %v5312 = vadd.f32 %v5122, %v5311
        %v5313 = vpop.f32.mrf.mxu0
        %v5314 = vadd.f32 %v5126, %v5313
        %5315 = vmatprep.mubr.bf16.mxu0 %v5253
        %5316 = vmatmul.mubr.bf16.gmra.mxu0 %v5079
        %v5317 = vpop.f32.mrf.mxu0
        %v5318 = vadd.f32 %v5122, %v5317
        %v5319 = vpop.f32.mrf.mxu0
        %v5320 = vadd.f32 %v5126, %v5319
        %v5321 = vpop.f32.mrf.mxu0
        %v5322 = vadd.f32 %v5122, %v5321
        %v5323 = vpop.f32.mrf.mxu0
        %v5324 = vadd.f32 %v5126, %v5323
        %5325 = vmatprep.mubr.bf16.mxu0 %v5256
        %5326 = vmatmul.mubr.bf16.gmra.mxu0 %v5081
        %v5327 = vpop.f32.mrf.mxu0
        %v5328 = vadd.f32 %v5122, %v5327
        %v5329 = vpop.f32.mrf.mxu0
        %v5330 = vadd.f32 %v5126, %v5329
        %v5331 = vpop.f32.mrf.mxu0
        %v5332 = vadd.f32 %v5122, %v5331
        %v5333 = vpop.f32.mrf.mxu0
        %v5334 = vadd.f32 %v5126, %v5333
        %5335 = vmatprep.mubr.bf16.mxu0 %v5259
        %5336 = vmatmul.mubr.bf16.gmra.mxu0 %v5083
        %v5337 = vpop.f32.mrf.mxu0
        %v5338 = vadd.f32 %v5122, %v5337
        %v5339 = vpop.f32.mrf.mxu0
        %v5340 = vadd.f32 %v5126, %v5339
        %v5341 = vpop.f32.mrf.mxu0
        %v5342 = vadd.f32 %v5122, %v5341
        %v5343 = vpop.f32.mrf.mxu0
        %v5344 = vadd.f32 %v5126, %v5343
        %5345 = vmatprep.mubr.bf16.mxu0 %v5262
        %5346 = vmatmul.mubr.bf16.gmra.mxu0 %v5085
        %v5347 = vpop.f32.mrf.mxu0
        %v5348 = vadd.f32 %v5122, %v5347
        %v5349 = vpop.f32.mrf.mxu0
        %v5350 = vadd.f32 %v5126, %v5349
        %v5351 = vpop.f32.mrf.mxu0
        %v5352 = vadd.f32 %v5122, %v5351
        %v5353 = vpop.f32.mrf.mxu0
        %v5354 = vadd.f32 %v5126, %v5353
        %5355 = vmatprep.mubr.bf16.mxu0 %v5265
        %5356 = vmatmul.mubr.bf16.gmra.mxu0 %v5087
        %v5357 = vpop.f32.mrf.mxu0
        %v5358 = vadd.f32 %v5122, %v5357
        %v5359 = vpop.f32.mrf.mxu0
        %v5360 = vadd.f32 %v5126, %v5359
        %v5361 = vpop.f32.mrf.mxu0
        %v5362 = vadd.f32 %v5122, %v5361
        %v5363 = vpop.f32.mrf.mxu0
        %v5364 = vadd.f32 %v5126, %v5363
        %5365 = vmatprep.mubr.bf16.mxu0 %v5268
        %5366 = vmatmul.mubr.bf16.gmra.mxu0 %v5089
        %v5367 = vpop.f32.mrf.mxu0
        %v5368 = vadd.f32 %v5122, %v5367
        %v5369 = vpop.f32.mrf.mxu0
        %v5370 = vadd.f32 %v5126, %v5369
        %v5371 = vpop.f32.mrf.mxu0
        %v5372 = vadd.f32 %v5122, %v5371
        %v5373 = vpop.f32.mrf.mxu0
        %v5374 = vadd.f32 %v5126, %v5373
        %5375 = vmatprep.mubr.bf16.mxu0 %v5271
        %5376 = vmatmul.mubr.bf16.gmra.mxu0 %v5091
        %v5377 = vpop.f32.mrf.mxu0
        %v5378 = vadd.f32 %v5122, %v5377
        %v5379 = vpop.f32.mrf.mxu0
        %v5380 = vadd.f32 %v5126, %v5379
        %v5381 = vpop.f32.mrf.mxu0
        %v5382 = vadd.f32 %v5122, %v5381
        %v5383 = vpop.f32.mrf.mxu0
        %v5384 = vadd.f32 %v5126, %v5383
        %5385 = vdwg.mxu0
        %v5386 = vadd.f32 %v832, %v5308
        %v5387 = vadd.f32 %v833, %v5310
        %v5388 = vadd.f32 %v834, %v5312
        %v5389 = vadd.f32 %v835, %v5314
        %v5390 = vadd.f32 %v836, %v5318
        %v5391 = vadd.f32 %v837, %v5320
        %v5392 = vadd.f32 %v838, %v5322
        %v5393 = vadd.f32 %v839, %v5324
        %v5394 = vadd.f32 %v840, %v5328
        %v5395 = vadd.f32 %v841, %v5330
        %v5396 = vadd.f32 %v842, %v5332
        %v5397 = vadd.f32 %v843, %v5334
        %v5398 = vadd.f32 %v844, %v5338
        %v5399 = vadd.f32 %v845, %v5340
        %v5400 = vadd.f32 %v846, %v5342
        %v5401 = vadd.f32 %v847, %v5344
        %v5402 = vadd.f32 %v848, %v5348
        %v5403 = vadd.f32 %v849, %v5350
        %v5404 = vadd.f32 %v850, %v5352
        %v5405 = vadd.f32 %v851, %v5354
        %v5406 = vadd.f32 %v852, %v5358
        %v5407 = vadd.f32 %v853, %v5360
        %v5408 = vadd.f32 %v854, %v5362
        %v5409 = vadd.f32 %v855, %v5364
        %v5410 = vadd.f32 %v856, %v5368
        %v5411 = vadd.f32 %v857, %v5370
        %v5412 = vadd.f32 %v858, %v5372
        %v5413 = vadd.f32 %v859, %v5374
        %v5414 = vadd.f32 %v860, %v5378
        %v5415 = vadd.f32 %v861, %v5380
        %v5416 = vadd.f32 %v862, %v5382
        %v5417 = vadd.f32 %v863, %v5384
        %v5418 = vld [vmem:[%s739] sm:$0x3]
        %v5419 = vld [vmem:[%s743] sm:$0x3]
        %v5420 = vsel %vm867, %v5387, 0.0
        %v5421 = vadd.f32 %v5386, %v5420
        %5422 = vadd.xlane.f32.xlu0 %v5421
        %v5423 = vpop.xlane.xlu0 %5422
        %v5424 = vsel %vm867, %v5389, 0.0
        %v5425 = vadd.f32 %v5388, %v5424
        %5426 = vadd.xlane.f32.xlu0 %v5425
        %v5427 = vpop.xlane.xlu0 %5426
        %v5428 = vsel %vm867, %v5391, 0.0
        %v5429 = vadd.f32 %v5390, %v5428
        %5430 = vadd.xlane.f32.xlu0 %v5429
        %v5431 = vpop.xlane.xlu0 %5430
        %v5432 = vsel %vm867, %v5393, 0.0
        %v5433 = vadd.f32 %v5392, %v5432
        %5434 = vadd.xlane.f32.xlu0 %v5433
        %v5435 = vpop.xlane.xlu0 %5434
        %v5436 = vsel %vm867, %v5395, 0.0
        %v5437 = vadd.f32 %v5394, %v5436
        %5438 = vadd.xlane.f32.xlu0 %v5437
        %v5439 = vpop.xlane.xlu0 %5438
        %v5440 = vsel %vm867, %v5397, 0.0
        %v5441 = vadd.f32 %v5396, %v5440
        %5442 = vadd.xlane.f32.xlu0 %v5441
        %v5443 = vpop.xlane.xlu0 %5442
        %v5444 = vsel %vm867, %v5399, 0.0
        %v5445 = vadd.f32 %v5398, %v5444
        %5446 = vadd.xlane.f32.xlu0 %v5445
        %v5447 = vpop.xlane.xlu0 %5446
        %v5448 = vsel %vm867, %v5401, 0.0
        %v5449 = vadd.f32 %v5400, %v5448
        %5450 = vadd.xlane.f32.xlu0 %v5449
        %v5451 = vpop.xlane.xlu0 %5450
        %v5452 = vsel %vm867, %v5403, 0.0
        %v5453 = vadd.f32 %v5402, %v5452
        %5454 = vadd.xlane.f32.xlu0 %v5453
        %v5455 = vpop.xlane.xlu0 %5454
        %v5456 = vsel %vm867, %v5405, 0.0
        %v5457 = vadd.f32 %v5404, %v5456
        %5458 = vadd.xlane.f32.xlu0 %v5457
        %v5459 = vpop.xlane.xlu0 %5458
        %v5460 = vsel %vm867, %v5407, 0.0
        %v5461 = vadd.f32 %v5406, %v5460
        %5462 = vadd.xlane.f32.xlu0 %v5461
        %v5463 = vpop.xlane.xlu0 %5462
        %v5464 = vsel %vm867, %v5409, 0.0
        %v5465 = vadd.f32 %v5408, %v5464
        %5466 = vadd.xlane.f32.xlu0 %v5465
        %v5467 = vpop.xlane.xlu0 %5466
        %v5468 = vsel %vm867, %v5411, 0.0
        %v5469 = vadd.f32 %v5410, %v5468
        %5470 = vadd.xlane.f32.xlu0 %v5469
        %v5471 = vpop.xlane.xlu0 %5470
        %v5472 = vsel %vm867, %v5413, 0.0
        %v5473 = vadd.f32 %v5412, %v5472
        %5474 = vadd.xlane.f32.xlu0 %v5473
        %v5475 = vpop.xlane.xlu0 %5474
        %v5476 = vsel %vm867, %v5415, 0.0
        %v5477 = vadd.f32 %v5414, %v5476
        %5478 = vadd.xlane.f32.xlu0 %v5477
        %v5479 = vpop.xlane.xlu0 %5478
        %v5480 = vsel %vm867, %v5417, 0.0
        %v5481 = vadd.f32 %v5416, %v5480
        %5482 = vadd.xlane.f32.xlu0 %v5481
        %v5483 = vpop.xlane.xlu0 %5482
        %v5484 = vmul.f32 %v5423, %v932
        %v5485 = vmul.f32 %v5427, %v932
        %v5486 = vmul.f32 %v5431, %v932
        %v5487 = vmul.f32 %v5435, %v932
        %v5488 = vmul.f32 %v5439, %v932
        %v5489 = vmul.f32 %v5443, %v932
        %v5490 = vmul.f32 %v5447, %v932
        %v5491 = vmul.f32 %v5451, %v932
        %v5492 = vmul.f32 %v5455, %v932
        %v5493 = vmul.f32 %v5459, %v932
        %v5494 = vmul.f32 %v5463, %v932
        %v5495 = vmul.f32 %v5467, %v932
        %v5496 = vmul.f32 %v5471, %v932
        %v5497 = vmul.f32 %v5475, %v932
        %v5498 = vmul.f32 %v5479, %v932
        %v5499 = vmul.f32 %v5483, %v932
        %v5500 = vsub.f32 %v5386, %v5484
        %v5501 = vsub.f32 %v5387, %v5484
        %v5502 = vsub.f32 %v5388, %v5485
        %v5503 = vsub.f32 %v5389, %v5485
        %v5504 = vsub.f32 %v5390, %v5486
        %v5505 = vsub.f32 %v5391, %v5486
        %v5506 = vsub.f32 %v5392, %v5487
        %v5507 = vsub.f32 %v5393, %v5487
        %v5508 = vsub.f32 %v5394, %v5488
        %v5509 = vsub.f32 %v5395, %v5488
        %v5510 = vsub.f32 %v5396, %v5489
        %v5511 = vsub.f32 %v5397, %v5489
        %v5512 = vsub.f32 %v5398, %v5490
        %v5513 = vsub.f32 %v5399, %v5490
        %v5514 = vsub.f32 %v5400, %v5491
        %v5515 = vsub.f32 %v5401, %v5491
        %v5516 = vsub.f32 %v5402, %v5492
        %v5517 = vsub.f32 %v5403, %v5492
        %v5518 = vsub.f32 %v5404, %v5493
        %v5519 = vsub.f32 %v5405, %v5493
        %v5520 = vsub.f32 %v5406, %v5494
        %v5521 = vsub.f32 %v5407, %v5494
        %v5522 = vsub.f32 %v5408, %v5495
        %v5523 = vsub.f32 %v5409, %v5495
        %v5524 = vsub.f32 %v5410, %v5496
        %v5525 = vsub.f32 %v5411, %v5496
        %v5526 = vsub.f32 %v5412, %v5497
        %v5527 = vsub.f32 %v5413, %v5497
        %v5528 = vsub.f32 %v5414, %v5498
        %v5529 = vsub.f32 %v5415, %v5498
        %v5530 = vsub.f32 %v5416, %v5499
        %v5531 = vsub.f32 %v5417, %v5499
        %v5532 = vmul.f32 %v5500, %v5500
        %v5533 = vmul.f32 %v5501, %v5501
        %v5534 = vmul.f32 %v5502, %v5502
        %v5535 = vmul.f32 %v5503, %v5503
        %v5536 = vmul.f32 %v5504, %v5504
        %v5537 = vmul.f32 %v5505, %v5505
        %v5538 = vmul.f32 %v5506, %v5506
        %v5539 = vmul.f32 %v5507, %v5507
        %v5540 = vmul.f32 %v5508, %v5508
        %v5541 = vmul.f32 %v5509, %v5509
        %v5542 = vmul.f32 %v5510, %v5510
        %v5543 = vmul.f32 %v5511, %v5511
        %v5544 = vmul.f32 %v5512, %v5512
        %v5545 = vmul.f32 %v5513, %v5513
        %v5546 = vmul.f32 %v5514, %v5514
        %v5547 = vmul.f32 %v5515, %v5515
        %v5548 = vmul.f32 %v5516, %v5516
        %v5549 = vmul.f32 %v5517, %v5517
        %v5550 = vmul.f32 %v5518, %v5518
        %v5551 = vmul.f32 %v5519, %v5519
        %v5552 = vmul.f32 %v5520, %v5520
        %v5553 = vmul.f32 %v5521, %v5521
        %v5554 = vmul.f32 %v5522, %v5522
        %v5555 = vmul.f32 %v5523, %v5523
        %v5556 = vmul.f32 %v5524, %v5524
        %v5557 = vmul.f32 %v5525, %v5525
        %v5558 = vmul.f32 %v5526, %v5526
        %v5559 = vmul.f32 %v5527, %v5527
        %v5560 = vmul.f32 %v5528, %v5528
        %v5561 = vmul.f32 %v5529, %v5529
        %v5562 = vmul.f32 %v5530, %v5530
        %v5563 = vmul.f32 %v5531, %v5531
        %v5564 = vsel %vm867, %v5533, 0.0
        %v5565 = vadd.f32 %v5532, %v5564
        %5566 = vadd.xlane.f32.xlu0 %v5565
        %v5567 = vpop.xlane.xlu0 %5566
        %v5568 = vsel %vm867, %v5535, 0.0
        %v5569 = vadd.f32 %v5534, %v5568
        %5570 = vadd.xlane.f32.xlu0 %v5569
        %v5571 = vpop.xlane.xlu0 %5570
        %v5572 = vsel %vm867, %v5537, 0.0
        %v5573 = vadd.f32 %v5536, %v5572
        %5574 = vadd.xlane.f32.xlu0 %v5573
        %v5575 = vpop.xlane.xlu0 %5574
        %v5576 = vsel %vm867, %v5539, 0.0
        %v5577 = vadd.f32 %v5538, %v5576
        %5578 = vadd.xlane.f32.xlu0 %v5577
        %v5579 = vpop.xlane.xlu0 %5578
        %v5580 = vsel %vm867, %v5541, 0.0
        %v5581 = vadd.f32 %v5540, %v5580
        %5582 = vadd.xlane.f32.xlu0 %v5581
        %v5583 = vpop.xlane.xlu0 %5582
        %v5584 = vsel %vm867, %v5543, 0.0
        %v5585 = vadd.f32 %v5542, %v5584
        %5586 = vadd.xlane.f32.xlu0 %v5585
        %v5587 = vpop.xlane.xlu0 %5586
        %v5588 = vsel %vm867, %v5545, 0.0
        %v5589 = vadd.f32 %v5544, %v5588
        %5590 = vadd.xlane.f32.xlu0 %v5589
        %v5591 = vpop.xlane.xlu0 %5590
        %v5592 = vsel %vm867, %v5547, 0.0
        %v5593 = vadd.f32 %v5546, %v5592
        %5594 = vadd.xlane.f32.xlu0 %v5593
        %v5595 = vpop.xlane.xlu0 %5594
        %v5596 = vsel %vm867, %v5549, 0.0
        %v5597 = vadd.f32 %v5548, %v5596
        %5598 = vadd.xlane.f32.xlu0 %v5597
        %v5599 = vpop.xlane.xlu0 %5598
        %v5600 = vsel %vm867, %v5551, 0.0
        %v5601 = vadd.f32 %v5550, %v5600
        %5602 = vadd.xlane.f32.xlu0 %v5601
        %v5603 = vpop.xlane.xlu0 %5602
        %v5604 = vsel %vm867, %v5553, 0.0
        %v5605 = vadd.f32 %v5552, %v5604
        %5606 = vadd.xlane.f32.xlu0 %v5605
        %v5607 = vpop.xlane.xlu0 %5606
        %v5608 = vsel %vm867, %v5555, 0.0
        %v5609 = vadd.f32 %v5554, %v5608
        %5610 = vadd.xlane.f32.xlu0 %v5609
        %v5611 = vpop.xlane.xlu0 %5610
        %v5612 = vsel %vm867, %v5557, 0.0
        %v5613 = vadd.f32 %v5556, %v5612
        %5614 = vadd.xlane.f32.xlu0 %v5613
        %v5615 = vpop.xlane.xlu0 %5614
        %v5616 = vsel %vm867, %v5559, 0.0
        %v5617 = vadd.f32 %v5558, %v5616
        %5618 = vadd.xlane.f32.xlu0 %v5617
        %v5619 = vpop.xlane.xlu0 %5618
        %v5620 = vsel %vm867, %v5561, 0.0
        %v5621 = vadd.f32 %v5560, %v5620
        %5622 = vadd.xlane.f32.xlu0 %v5621
        %v5623 = vpop.xlane.xlu0 %5622
        %v5624 = vsel %vm867, %v5563, 0.0
        %v5625 = vadd.f32 %v5562, %v5624
        %5626 = vadd.xlane.f32.xlu0 %v5625
        %v5627 = vpop.xlane.xlu0 %5626
        %v5628 = vmul.f32 %v5567, %v932
        %v5629 = vmul.f32 %v5571, %v932
        %v5630 = vmul.f32 %v5575, %v932
        %v5631 = vmul.f32 %v5579, %v932
        %v5632 = vmul.f32 %v5583, %v932
        %v5633 = vmul.f32 %v5587, %v932
        %v5634 = vmul.f32 %v5591, %v932
        %v5635 = vmul.f32 %v5595, %v932
        %v5636 = vmul.f32 %v5599, %v932
        %v5637 = vmul.f32 %v5603, %v932
        %v5638 = vmul.f32 %v5607, %v932
        %v5639 = vmul.f32 %v5611, %v932
        %v5640 = vmul.f32 %v5615, %v932
        %v5641 = vmul.f32 %v5619, %v932
        %v5642 = vmul.f32 %v5623, %v932
        %v5643 = vmul.f32 %v5627, %v932
        %v5644 = vadd.f32 %v5628, 1e-05
        %v5645 = vadd.f32 %v5629, 1e-05
        %v5646 = vadd.f32 %v5630, 1e-05
        %v5647 = vadd.f32 %v5631, 1e-05
        %v5648 = vadd.f32 %v5632, 1e-05
        %v5649 = vadd.f32 %v5633, 1e-05
        %v5650 = vadd.f32 %v5634, 1e-05
        %v5651 = vadd.f32 %v5635, 1e-05
        %v5652 = vadd.f32 %v5636, 1e-05
        %v5653 = vadd.f32 %v5637, 1e-05
        %v5654 = vadd.f32 %v5638, 1e-05
        %v5655 = vadd.f32 %v5639, 1e-05
        %v5656 = vadd.f32 %v5640, 1e-05
        %v5657 = vadd.f32 %v5641, 1e-05
        %v5658 = vadd.f32 %v5642, 1e-05
        %v5659 = vadd.f32 %v5643, 1e-05
        %v5660 = vrsqrt.pop %v5644
        %v5661 = vrsqrt.pop %v5645
        %v5662 = vrsqrt.pop %v5646
        %v5663 = vrsqrt.pop %v5647
        %v5664 = vrsqrt.pop %v5648
        %v5665 = vrsqrt.pop %v5649
        %v5666 = vrsqrt.pop %v5650
        %v5667 = vrsqrt.pop %v5651
        %v5668 = vrsqrt.pop %v5652
        %v5669 = vrsqrt.pop %v5653
        %v5670 = vrsqrt.pop %v5654
        %v5671 = vrsqrt.pop %v5655
        %v5672 = vrsqrt.pop %v5656
        %v5673 = vrsqrt.pop %v5657
        %v5674 = vrsqrt.pop %v5658
        %v5675 = vrsqrt.pop %v5659
        %v5676 = vmul.f32 %v5500, %v5660
        %v5677 = vmul.f32 %v5501, %v5660
        %v5678 = vmul.f32 %v5502, %v5661
        %v5679 = vmul.f32 %v5503, %v5661
        %v5680 = vmul.f32 %v5504, %v5662
        %v5681 = vmul.f32 %v5505, %v5662
        %v5682 = vmul.f32 %v5506, %v5663
        %v5683 = vmul.f32 %v5507, %v5663
        %v5684 = vmul.f32 %v5508, %v5664
        %v5685 = vmul.f32 %v5509, %v5664
        %v5686 = vmul.f32 %v5510, %v5665
        %v5687 = vmul.f32 %v5511, %v5665
        %v5688 = vmul.f32 %v5512, %v5666
        %v5689 = vmul.f32 %v5513, %v5666
        %v5690 = vmul.f32 %v5514, %v5667
        %v5691 = vmul.f32 %v5515, %v5667
        %v5692 = vmul.f32 %v5516, %v5668
        %v5693 = vmul.f32 %v5517, %v5668
        %v5694 = vmul.f32 %v5518, %v5669
        %v5695 = vmul.f32 %v5519, %v5669
        %v5696 = vmul.f32 %v5520, %v5670
        %v5697 = vmul.f32 %v5521, %v5670
        %v5698 = vmul.f32 %v5522, %v5671
        %v5699 = vmul.f32 %v5523, %v5671
        %v5700 = vmul.f32 %v5524, %v5672
        %v5701 = vmul.f32 %v5525, %v5672
        %v5702 = vmul.f32 %v5526, %v5673
        %v5703 = vmul.f32 %v5527, %v5673
        %v5704 = vmul.f32 %v5528, %v5674
        %v5705 = vmul.f32 %v5529, %v5674
        %v5706 = vmul.f32 %v5530, %v5675
        %v5707 = vmul.f32 %v5531, %v5675
        %v5709 = vlaneseq
        %v5710 = vshrl.u32 %v5709, 7
        %v5711 = vsub.s32 0, %v5710
        %v5712 = vrot.slane %v5418, %v5711
        %v5713 = vlaneseq
        %v5714 = vshrl.u32 %v5713, 7
        %v5715 = vsub.s32 1, %v5714
        %v5716 = vrot.slane %v5418, %v5715
        %v5719 = vmul.f32 %v5676, %v5712
        %v5720 = vmul.f32 %v5677, %v5716
        %v5721 = vmul.f32 %v5678, %v5712
        %v5722 = vmul.f32 %v5679, %v5716
        %v5723 = vmul.f32 %v5680, %v5712
        %v5724 = vmul.f32 %v5681, %v5716
        %v5725 = vmul.f32 %v5682, %v5712
        %v5726 = vmul.f32 %v5683, %v5716
        %v5727 = vmul.f32 %v5684, %v5712
        %v5728 = vmul.f32 %v5685, %v5716
        %v5729 = vmul.f32 %v5686, %v5712
        %v5730 = vmul.f32 %v5687, %v5716
        %v5731 = vmul.f32 %v5688, %v5712
        %v5732 = vmul.f32 %v5689, %v5716
        %v5733 = vmul.f32 %v5690, %v5712
        %v5734 = vmul.f32 %v5691, %v5716
        %v5735 = vmul.f32 %v5692, %v5712
        %v5736 = vmul.f32 %v5693, %v5716
        %v5737 = vmul.f32 %v5694, %v5712
        %v5738 = vmul.f32 %v5695, %v5716
        %v5739 = vmul.f32 %v5696, %v5712
        %v5740 = vmul.f32 %v5697, %v5716
        %v5741 = vmul.f32 %v5698, %v5712
        %v5742 = vmul.f32 %v5699, %v5716
        %v5743 = vmul.f32 %v5700, %v5712
        %v5744 = vmul.f32 %v5701, %v5716
        %v5745 = vmul.f32 %v5702, %v5712
        %v5746 = vmul.f32 %v5703, %v5716
        %v5747 = vmul.f32 %v5704, %v5712
        %v5748 = vmul.f32 %v5705, %v5716
        %v5749 = vmul.f32 %v5706, %v5712
        %v5750 = vmul.f32 %v5707, %v5716
        %v5752 = vlaneseq
        %v5753 = vshrl.u32 %v5752, 7
        %v5754 = vsub.s32 0, %v5753
        %v5755 = vrot.slane %v5419, %v5754
        %v5756 = vlaneseq
        %v5757 = vshrl.u32 %v5756, 7
        %v5758 = vsub.s32 1, %v5757
        %v5759 = vrot.slane %v5419, %v5758
        %v5762 = vadd.f32 %v5719, %v5755
        %v5763 = vadd.f32 %v5720, %v5759
        %v5764 = vadd.f32 %v5721, %v5755
        %v5765 = vadd.f32 %v5722, %v5759
        %v5766 = vadd.f32 %v5723, %v5755
        %v5767 = vadd.f32 %v5724, %v5759
        %v5768 = vadd.f32 %v5725, %v5755
        %v5769 = vadd.f32 %v5726, %v5759
        %v5770 = vadd.f32 %v5727, %v5755
        %v5771 = vadd.f32 %v5728, %v5759
        %v5772 = vadd.f32 %v5729, %v5755
        %v5773 = vadd.f32 %v5730, %v5759
        %v5774 = vadd.f32 %v5731, %v5755
        %v5775 = vadd.f32 %v5732, %v5759
        %v5776 = vadd.f32 %v5733, %v5755
        %v5777 = vadd.f32 %v5734, %v5759
        %v5778 = vadd.f32 %v5735, %v5755
        %v5779 = vadd.f32 %v5736, %v5759
        %v5780 = vadd.f32 %v5737, %v5755
        %v5781 = vadd.f32 %v5738, %v5759
        %v5782 = vadd.f32 %v5739, %v5755
        %v5783 = vadd.f32 %v5740, %v5759
        %v5784 = vadd.f32 %v5741, %v5755
        %v5785 = vadd.f32 %v5742, %v5759
        %v5786 = vadd.f32 %v5743, %v5755
        %v5787 = vadd.f32 %v5744, %v5759
        %v5788 = vadd.f32 %v5745, %v5755
        %v5789 = vadd.f32 %v5746, %v5759
        %v5790 = vadd.f32 %v5747, %v5755
        %v5791 = vadd.f32 %v5748, %v5759
        %v5792 = vadd.f32 %v5749, %v5755
        %v5793 = vadd.f32 %v5750, %v5759
        %v5794 = vpack.c.bf16 %v5764, %v5762
        %v5795 = vpack.c.bf16 %v5765, %v5763
        %v5796 = vpack.c.bf16 %v5768, %v5766
        %v5797 = vpack.c.bf16 %v5769, %v5767
        %v5798 = vpack.c.bf16 %v5772, %v5770
        %v5799 = vpack.c.bf16 %v5773, %v5771
        %v5800 = vpack.c.bf16 %v5776, %v5774
        %v5801 = vpack.c.bf16 %v5777, %v5775
        %v5802 = vpack.c.bf16 %v5780, %v5778
        %v5803 = vpack.c.bf16 %v5781, %v5779
        %v5804 = vpack.c.bf16 %v5784, %v5782
        %v5805 = vpack.c.bf16 %v5785, %v5783
        %v5806 = vpack.c.bf16 %v5788, %v5786
        %v5807 = vpack.c.bf16 %v5789, %v5787
        %v5808 = vpack.c.bf16 %v5792, %v5790
        %v5809 = vpack.c.bf16 %v5793, %v5791
        %v5810 = vld [vmem:[%s748] sm:$0xff]
        %v5811 = vld [vmem:[%s748 + $0x8] sm:$0xff]
        %v5812 = vld [vmem:[%s748 + $0x10] sm:$0xff]
        %v5813 = vld [vmem:[%s748 + $0x18] sm:$0xff]
        %v5814 = vld [vmem:[%s748 + $0x20] sm:$0xff]
        %v5815 = vld [vmem:[%s748 + $0x28] sm:$0xff]
        %v5816 = vld [vmem:[%s748 + $0x30] sm:$0xff]
        %v5817 = vld [vmem:[%s748 + $0x38] sm:$0xff]
        %v5818 = vld [vmem:[%s748 + $0x40] sm:$0xff]
        %v5819 = vld [vmem:[%s748 + $0x48] sm:$0xff]
        %v5820 = vld [vmem:[%s748 + $0x50] sm:$0xff]
        %v5821 = vld [vmem:[%s748 + $0x58] sm:$0xff]
        %v5822 = vld [vmem:[%s748 + $0x60] sm:$0xff]
        %v5823 = vld [vmem:[%s748 + $0x68] sm:$0xff]
        %v5824 = vld [vmem:[%s748 + $0x70] sm:$0xff]
        %v5825 = vld [vmem:[%s748 + $0x78] sm:$0xff]
        %v5826 = vld [vmem:[%s748 + $0x80] sm:$0xff]
        %v5827 = vld [vmem:[%s748 + $0x88] sm:$0xff]
        %v5828 = vld [vmem:[%s748 + $0x90] sm:$0xff]
        %v5829 = vld [vmem:[%s748 + $0x98] sm:$0xff]
        %v5830 = vld [vmem:[%s748 + $0xa0] sm:$0xff]
        %v5831 = vld [vmem:[%s748 + $0xa8] sm:$0xff]
        %v5832 = vld [vmem:[%s748 + $0xb0] sm:$0xff]
        %v5833 = vld [vmem:[%s748 + $0xb8] sm:$0xff]
        %v5834 = vld [vmem:[%s748 + $0xc0] sm:$0xff]
        %v5835 = vld [vmem:[%s748 + $0xc8] sm:$0xff]
        %v5836 = vld [vmem:[%s748 + $0xd0] sm:$0xff]
        %v5837 = vld [vmem:[%s748 + $0xd8] sm:$0xff]
        %v5838 = vld [vmem:[%s748 + $0xe0] sm:$0xff]
        %v5839 = vld [vmem:[%s748 + $0xe8] sm:$0xff]
        %v5840 = vld [vmem:[%s748 + $0xf0] sm:$0xff]
        %v5841 = vld [vmem:[%s748 + $0xf8] sm:$0xff]
        %v5842 = vld [vmem:[%s748 + $0x100] sm:$0xff]
        %v5843 = vld [vmem:[%s748 + $0x108] sm:$0xff]
        %v5844 = vld [vmem:[%s748 + $0x110] sm:$0xff]
        %v5845 = vld [vmem:[%s748 + $0x118] sm:$0xff]
        %v5846 = vld [vmem:[%s748 + $0x120] sm:$0xff]
        %v5847 = vld [vmem:[%s748 + $0x128] sm:$0xff]
        %v5848 = vld [vmem:[%s748 + $0x130] sm:$0xff]
        %v5849 = vld [vmem:[%s748 + $0x138] sm:$0xff]
        %v5850 = vld [vmem:[%s748 + $0x140] sm:$0xff]
        %v5851 = vld [vmem:[%s748 + $0x148] sm:$0xff]
        %v5852 = vld [vmem:[%s748 + $0x150] sm:$0xff]
        %v5853 = vld [vmem:[%s748 + $0x158] sm:$0xff]
        %v5854 = vld [vmem:[%s748 + $0x160] sm:$0xff]
        %v5855 = vld [vmem:[%s748 + $0x168] sm:$0xff]
        %v5856 = vld [vmem:[%s748 + $0x170] sm:$0xff]
        %v5857 = vld [vmem:[%s748 + $0x178] sm:$0xff]
        %v5858 = vld [vmem:[%s748 + $0x180] sm:$0xff]
        %v5859 = vld [vmem:[%s748 + $0x188] sm:$0xff]
        %v5860 = vld [vmem:[%s748 + $0x190] sm:$0xff]
        %v5861 = vld [vmem:[%s748 + $0x198] sm:$0xff]
        %v5862 = vld [vmem:[%s748 + $0x1a0] sm:$0xff]
        %v5863 = vld [vmem:[%s748 + $0x1a8] sm:$0xff]
        %v5864 = vld [vmem:[%s748 + $0x1b0] sm:$0xff]
        %v5865 = vld [vmem:[%s748 + $0x1b8] sm:$0xff]
        %v5866 = vld [vmem:[%s748 + $0x1c0] sm:$0xff]
        %v5867 = vld [vmem:[%s748 + $0x1c8] sm:$0xff]
        %v5868 = vld [vmem:[%s748 + $0x1d0] sm:$0xff]
        %v5869 = vld [vmem:[%s748 + $0x1d8] sm:$0xff]
        %v5870 = vld [vmem:[%s748 + $0x1e0] sm:$0xff]
        %v5871 = vld [vmem:[%s748 + $0x1e8] sm:$0xff]
        %v5872 = vld [vmem:[%s748 + $0x1f0] sm:$0xff]
        %v5873 = vld [vmem:[%s748 + $0x1f8] sm:$0xff]
        %v5874 = vld [vmem:[%s748 + $0x200] sm:$0xff]
        %v5875 = vld [vmem:[%s748 + $0x208] sm:$0xff]
        %v5876 = vld [vmem:[%s748 + $0x210] sm:$0xff]
        %v5877 = vld [vmem:[%s748 + $0x218] sm:$0xff]
        %v5878 = vld [vmem:[%s748 + $0x220] sm:$0xff]
        %v5879 = vld [vmem:[%s748 + $0x228] sm:$0xff]
        %v5880 = vld [vmem:[%s748 + $0x230] sm:$0xff]
        %v5881 = vld [vmem:[%s748 + $0x238] sm:$0xff]
        %v5882 = vld [vmem:[%s752] sm:$0x3f]
        %v5884 = vlaneseq
        %v5885 = vshrl.u32 %v5884, 7
        %v5886 = vsub.s32 0, %v5885
        %v5887 = vrot.slane %v5882, %v5886
        %v5888 = vlaneseq
        %v5889 = vshrl.u32 %v5888, 7
        %v5890 = vsub.s32 1, %v5889
        %v5891 = vrot.slane %v5882, %v5890
        %v5892 = vlaneseq
        %v5893 = vshrl.u32 %v5892, 7
        %v5894 = vsub.s32 2, %v5893
        %v5895 = vrot.slane %v5882, %v5894
        %v5896 = vlaneseq
        %v5897 = vshrl.u32 %v5896, 7
        %v5898 = vsub.s32 3, %v5897
        %v5899 = vrot.slane %v5882, %v5898
        %v5900 = vlaneseq
        %v5901 = vshrl.u32 %v5900, 7
        %v5902 = vsub.s32 4, %v5901
        %v5903 = vrot.slane %v5882, %v5902
        %v5904 = vlaneseq
        %v5905 = vshrl.u32 %v5904, 7
        %v5906 = vsub.s32 5, %v5905
        %v5907 = vrot.slane %v5882, %v5906
        %v5986 = vunpack.c.l.b16 %v5810
        %v5987 = vunpack.c.h.b16 %v5810
        %v5988 = vunpack.c.l.b16 %v5811
        %v5989 = vunpack.c.h.b16 %v5811
        %v5990 = vunpack.c.l.b16 %v5812
        %v5991 = vunpack.c.h.b16 %v5812
        %v5992 = vunpack.c.l.b16 %v5813
        %v5993 = vunpack.c.h.b16 %v5813
        %v5994 = vunpack.c.l.b16 %v5814
        %v5995 = vunpack.c.h.b16 %v5814
        %v5996 = vunpack.c.l.b16 %v5815
        %v5997 = vunpack.c.h.b16 %v5815
        %v5998 = vunpack.c.l.b16 %v5816
        %v5999 = vunpack.c.h.b16 %v5816
        %v6000 = vunpack.c.l.b16 %v5817
        %v6001 = vunpack.c.h.b16 %v5817
        %v6002 = vunpack.c.l.b16 %v5818
        %v6003 = vunpack.c.h.b16 %v5818
        %v6004 = vunpack.c.l.b16 %v5819
        %v6005 = vunpack.c.h.b16 %v5819
        %v6006 = vunpack.c.l.b16 %v5820
        %v6007 = vunpack.c.h.b16 %v5820
        %v6008 = vunpack.c.l.b16 %v5821
        %v6009 = vunpack.c.h.b16 %v5821
        %v6010 = vunpack.c.l.b16 %v5822
        %v6011 = vunpack.c.h.b16 %v5822
        %v6012 = vunpack.c.l.b16 %v5823
        %v6013 = vunpack.c.h.b16 %v5823
        %v6014 = vunpack.c.l.b16 %v5824
        %v6015 = vunpack.c.h.b16 %v5824
        %v6016 = vunpack.c.l.b16 %v5825
        %v6017 = vunpack.c.h.b16 %v5825
        %v6018 = vunpack.c.l.b16 %v5826
        %v6019 = vunpack.c.h.b16 %v5826
        %v6020 = vunpack.c.l.b16 %v5827
        %v6021 = vunpack.c.h.b16 %v5827
        %v6022 = vunpack.c.l.b16 %v5828
        %v6023 = vunpack.c.h.b16 %v5828
        %v6024 = vunpack.c.l.b16 %v5829
        %v6025 = vunpack.c.h.b16 %v5829
        %v6026 = vunpack.c.l.b16 %v5830
        %v6027 = vunpack.c.h.b16 %v5830
        %v6028 = vunpack.c.l.b16 %v5831
        %v6029 = vunpack.c.h.b16 %v5831
        %v6030 = vunpack.c.l.b16 %v5832
        %v6031 = vunpack.c.h.b16 %v5832
        %v6032 = vunpack.c.l.b16 %v5833
        %v6033 = vunpack.c.h.b16 %v5833
        %v6034 = vunpack.c.l.b16 %v5834
        %v6035 = vunpack.c.h.b16 %v5834
        %v6036 = vunpack.c.l.b16 %v5835
        %v6037 = vunpack.c.h.b16 %v5835
        %v6038 = vunpack.c.l.b16 %v5836
        %v6039 = vunpack.c.h.b16 %v5836
        %v6040 = vunpack.c.l.b16 %v5837
        %v6041 = vunpack.c.h.b16 %v5837
        %v6042 = vunpack.c.l.b16 %v5838
        %v6043 = vunpack.c.h.b16 %v5838
        %v6044 = vunpack.c.l.b16 %v5839
        %v6045 = vunpack.c.h.b16 %v5839
        %v6046 = vunpack.c.l.b16 %v5840
        %v6047 = vunpack.c.h.b16 %v5840
        %v6048 = vunpack.c.l.b16 %v5841
        %v6049 = vunpack.c.h.b16 %v5841
        %v6050 = vunpack.c.l.b16 %v5842
        %v6051 = vunpack.c.h.b16 %v5842
        %v6052 = vunpack.c.l.b16 %v5843
        %v6053 = vunpack.c.h.b16 %v5843
        %v6054 = vunpack.c.l.b16 %v5844
        %v6055 = vunpack.c.h.b16 %v5844
        %v6056 = vunpack.c.l.b16 %v5845
        %v6057 = vunpack.c.h.b16 %v5845
        %v6058 = vunpack.c.l.b16 %v5846
        %v6059 = vunpack.c.h.b16 %v5846
        %v6060 = vunpack.c.l.b16 %v5847
        %v6061 = vunpack.c.h.b16 %v5847
        %v6062 = vunpack.c.l.b16 %v5848
        %v6063 = vunpack.c.h.b16 %v5848
        %v6064 = vunpack.c.l.b16 %v5849
        %v6065 = vunpack.c.h.b16 %v5849
        %v6066 = vunpack.c.l.b16 %v5850
        %v6067 = vunpack.c.h.b16 %v5850
        %v6068 = vunpack.c.l.b16 %v5851
        %v6069 = vunpack.c.h.b16 %v5851
        %v6070 = vunpack.c.l.b16 %v5852
        %v6071 = vunpack.c.h.b16 %v5852
        %v6072 = vunpack.c.l.b16 %v5853
        %v6073 = vunpack.c.h.b16 %v5853
        %v6074 = vunpack.c.l.b16 %v5854
        %v6075 = vunpack.c.h.b16 %v5854
        %v6076 = vunpack.c.l.b16 %v5855
        %v6077 = vunpack.c.h.b16 %v5855
        %v6078 = vunpack.c.l.b16 %v5856
        %v6079 = vunpack.c.h.b16 %v5856
        %v6080 = vunpack.c.l.b16 %v5857
        %v6081 = vunpack.c.h.b16 %v5857
        %v6082 = vunpack.c.l.b16 %v5858
        %v6083 = vunpack.c.h.b16 %v5858
        %v6084 = vunpack.c.l.b16 %v5859
        %v6085 = vunpack.c.h.b16 %v5859
        %v6086 = vunpack.c.l.b16 %v5860
        %v6087 = vunpack.c.h.b16 %v5860
        %v6088 = vunpack.c.l.b16 %v5861
        %v6089 = vunpack.c.h.b16 %v5861
        %v6090 = vunpack.c.l.b16 %v5862
        %v6091 = vunpack.c.h.b16 %v5862
        %v6092 = vunpack.c.l.b16 %v5863
        %v6093 = vunpack.c.h.b16 %v5863
        %v6094 = vunpack.c.l.b16 %v5864
        %v6095 = vunpack.c.h.b16 %v5864
        %v6096 = vunpack.c.l.b16 %v5865
        %v6097 = vunpack.c.h.b16 %v5865
        %v6098 = vunpack.c.l.b16 %v5866
        %v6099 = vunpack.c.h.b16 %v5866
        %v6100 = vunpack.c.l.b16 %v5867
        %v6101 = vunpack.c.h.b16 %v5867
        %v6102 = vunpack.c.l.b16 %v5868
        %v6103 = vunpack.c.h.b16 %v5868
        %v6104 = vunpack.c.l.b16 %v5869
        %v6105 = vunpack.c.h.b16 %v5869
        %v6106 = vunpack.c.l.b16 %v5870
        %v6107 = vunpack.c.h.b16 %v5870
        %v6108 = vunpack.c.l.b16 %v5871
        %v6109 = vunpack.c.h.b16 %v5871
        %v6110 = vunpack.c.l.b16 %v5872
        %v6111 = vunpack.c.h.b16 %v5872
        %v6112 = vunpack.c.l.b16 %v5873
        %v6113 = vunpack.c.h.b16 %v5873
        %v6114 = vunpack.c.l.b16 %v5874
        %v6115 = vunpack.c.h.b16 %v5874
        %v6116 = vunpack.c.l.b16 %v5875
        %v6117 = vunpack.c.h.b16 %v5875
        %v6118 = vunpack.c.l.b16 %v5876
        %v6119 = vunpack.c.h.b16 %v5876
        %v6120 = vunpack.c.l.b16 %v5877
        %v6121 = vunpack.c.h.b16 %v5877
        %v6122 = vunpack.c.l.b16 %v5878
        %v6123 = vunpack.c.h.b16 %v5878
        %v6124 = vunpack.c.l.b16 %v5879
        %v6125 = vunpack.c.h.b16 %v5879
        %v6126 = vunpack.c.l.b16 %v5880
        %v6127 = vunpack.c.h.b16 %v5880
        %v6128 = vunpack.c.l.b16 %v5881
        %v6129 = vunpack.c.h.b16 %v5881
        %v6130 = vpack.c.b16 %v5992, %v5986
        %v6131 = vpack.c.b16 %v5993, %v5987
        %v6132 = vpack.c.b16 %v5994, %v5988
        %v6133 = vpack.c.b16 %v5995, %v5989
        %v6134 = vpack.c.b16 %v5996, %v5990
        %v6135 = vpack.c.b16 %v5997, %v5991
        %v6136 = vpack.c.b16 %v6004, %v5998
        %v6137 = vpack.c.b16 %v6005, %v5999
        %v6138 = vpack.c.b16 %v6006, %v6000
        %v6139 = vpack.c.b16 %v6007, %v6001
        %v6140 = vpack.c.b16 %v6008, %v6002
        %v6141 = vpack.c.b16 %v6009, %v6003
        %v6142 = vpack.c.b16 %v6016, %v6010
        %v6143 = vpack.c.b16 %v6017, %v6011
        %v6144 = vpack.c.b16 %v6018, %v6012
        %v6145 = vpack.c.b16 %v6019, %v6013
        %v6146 = vpack.c.b16 %v6020, %v6014
        %v6147 = vpack.c.b16 %v6021, %v6015
        %v6148 = vpack.c.b16 %v6028, %v6022
        %v6149 = vpack.c.b16 %v6029, %v6023
        %v6150 = vpack.c.b16 %v6030, %v6024
        %v6151 = vpack.c.b16 %v6031, %v6025
        %v6152 = vpack.c.b16 %v6032, %v6026
        %v6153 = vpack.c.b16 %v6033, %v6027
        %v6154 = vpack.c.b16 %v6040, %v6034
        %v6155 = vpack.c.b16 %v6041, %v6035
        %v6156 = vpack.c.b16 %v6042, %v6036
        %v6157 = vpack.c.b16 %v6043, %v6037
        %v6158 = vpack.c.b16 %v6044, %v6038
        %v6159 = vpack.c.b16 %v6045, %v6039
        %v6160 = vpack.c.b16 %v6052, %v6046
        %v6161 = vpack.c.b16 %v6053, %v6047
        %v6162 = vpack.c.b16 %v6054, %v6048
        %v6163 = vpack.c.b16 %v6055, %v6049
        %v6164 = vpack.c.b16 %v6056, %v6050
        %v6165 = vpack.c.b16 %v6057, %v6051
        %v6166 = vpack.c.b16 %v6064, %v6058
        %v6167 = vpack.c.b16 %v6065, %v6059
        %v6168 = vpack.c.b16 %v6066, %v6060
        %v6169 = vpack.c.b16 %v6067, %v6061
        %v6170 = vpack.c.b16 %v6068, %v6062
        %v6171 = vpack.c.b16 %v6069, %v6063
        %v6172 = vpack.c.b16 %v6076, %v6070
        %v6173 = vpack.c.b16 %v6077, %v6071
        %v6174 = vpack.c.b16 %v6078, %v6072
        %v6175 = vpack.c.b16 %v6079, %v6073
        %v6176 = vpack.c.b16 %v6080, %v6074
        %v6177 = vpack.c.b16 %v6081, %v6075
        %v6178 = vpack.c.b16 %v6088, %v6082
        %v6179 = vpack.c.b16 %v6089, %v6083
        %v6180 = vpack.c.b16 %v6090, %v6084
        %v6181 = vpack.c.b16 %v6091, %v6085
        %v6182 = vpack.c.b16 %v6092, %v6086
        %v6183 = vpack.c.b16 %v6093, %v6087
        %v6184 = vpack.c.b16 %v6100, %v6094
        %v6185 = vpack.c.b16 %v6101, %v6095
        %v6186 = vpack.c.b16 %v6102, %v6096
        %v6187 = vpack.c.b16 %v6103, %v6097
        %v6188 = vpack.c.b16 %v6104, %v6098
        %v6189 = vpack.c.b16 %v6105, %v6099
        %v6190 = vpack.c.b16 %v6112, %v6106
        %v6191 = vpack.c.b16 %v6113, %v6107
        %v6192 = vpack.c.b16 %v6114, %v6108
        %v6193 = vpack.c.b16 %v6115, %v6109
        %v6194 = vpack.c.b16 %v6116, %v6110
        %v6195 = vpack.c.b16 %v6117, %v6111
        %v6196 = vpack.c.b16 %v6124, %v6118
        %v6197 = vpack.c.b16 %v6125, %v6119
        %v6198 = vpack.c.b16 %v6126, %v6120
        %v6199 = vpack.c.b16 %v6127, %v6121
        %v6200 = vpack.c.b16 %v6128, %v6122
        %v6201 = vpack.c.b16 %v6129, %v6123
        %v6275 = vsel %vm867, %v5795, 0
        %v6278 = vsel %vm867, %v5797, 0
        %v6281 = vsel %vm867, %v5799, 0
        %v6284 = vsel %vm867, %v5801, 0
        %v6287 = vsel %vm867, %v5803, 0
        %v6290 = vsel %vm867, %v5805, 0
        %v6293 = vsel %vm867, %v5807, 0
        %v6296 = vsel %vm867, %v5809, 0
        %6298 = vmatprep.subr.bf16.mxu0 %v6173
        %6299 = vmatpush1.bf16.msra.mxu0 %v6172
        %6300 = vmatprep.subr.bf16.mxu0 %v6167
        %6301 = vmatpush1.bf16.msra.mxu0 %v6166
        %6302 = vmatprep.subr.bf16.mxu0 %v6161
        %6303 = vmatpush1.bf16.msra.mxu0 %v6160
        %6304 = vmatprep.subr.bf16.mxu0 %v6155
        %6305 = vmatpush1.bf16.msra.mxu0 %v6154
        %6306 = vmatprep.subr.bf16.mxu0 %v6149
        %6307 = vmatpush1.bf16.msra.mxu0 %v6148
        %6308 = vmatprep.subr.bf16.mxu0 %v6143
        %6309 = vmatpush1.bf16.msra.mxu0 %v6142
        %6310 = vmatprep.subr.bf16.mxu0 %v6137
        %6311 = vmatpush1.bf16.msra.mxu0 %v6136
        %6312 = vmatprep.subr.bf16.mxu0 %v6131
        %6313 = vmatpush1.bf16.msra.mxu0 %v6130
        %6314 = vmatprep.subr.bf16.mxu0 0
        %6315 = vmatpush2.bf16.msra.mxu0 0
        %6316 = vmatprep.subr.bf16.mxu0 0
        %6317 = vmatpush2.bf16.msra.mxu0 0
        %6318 = vmatprep.subr.bf16.mxu0 0
        %6319 = vmatpush2.bf16.msra.mxu0 0
        %6320 = vmatprep.subr.bf16.mxu0 0
        %6321 = vmatpush2.bf16.msra.mxu0 0
        %6322 = vmatprep.subr.bf16.mxu0 %v6197
        %6323 = vmatpush2.bf16.msra.mxu0 %v6196
        %6324 = vmatprep.subr.bf16.mxu0 %v6191
        %6325 = vmatpush2.bf16.msra.mxu0 %v6190
        %6326 = vmatprep.subr.bf16.mxu0 %v6185
        %6327 = vmatpush2.bf16.msra.mxu0 %v6184
        %6328 = vmatprep.subr.bf16.mxu0 %v6179
        %6329 = vmatpush2.bf16.msra.mxu0 %v6178
        %6330 = vmatprep.mubr.bf16.mxu0 %v6275
        %6331 = vmatmul.mubr.bf16.gmra.mxu0 %v5794
        %v6332 = vpop.f32.mrf.mxu0
        %v6333 = vadd.f32 %v5887, %v6332
        %v6334 = vpop.f32.mrf.mxu0
        %v6335 = vadd.f32 %v5891, %v6334
        %v6336 = vpop.f32.mrf.mxu0
        %v6337 = vadd.f32 %v5887, %v6336
        %v6338 = vpop.f32.mrf.mxu0
        %v6339 = vadd.f32 %v5891, %v6338
        %6340 = vmatprep.mubr.bf16.mxu0 %v6278
        %6341 = vmatmul.mubr.bf16.gmra.mxu0 %v5796
        %v6342 = vpop.f32.mrf.mxu0
        %v6343 = vadd.f32 %v5887, %v6342
        %v6344 = vpop.f32.mrf.mxu0
        %v6345 = vadd.f32 %v5891, %v6344
        %v6346 = vpop.f32.mrf.mxu0
        %v6347 = vadd.f32 %v5887, %v6346
        %v6348 = vpop.f32.mrf.mxu0
        %v6349 = vadd.f32 %v5891, %v6348
        %6350 = vmatprep.mubr.bf16.mxu0 %v6281
        %6351 = vmatmul.mubr.bf16.gmra.mxu0 %v5798
        %v6352 = vpop.f32.mrf.mxu0
        %v6353 = vadd.f32 %v5887, %v6352
        %v6354 = vpop.f32.mrf.mxu0
        %v6355 = vadd.f32 %v5891, %v6354
        %v6356 = vpop.f32.mrf.mxu0
        %v6357 = vadd.f32 %v5887, %v6356
        %v6358 = vpop.f32.mrf.mxu0
        %v6359 = vadd.f32 %v5891, %v6358
        %6360 = vmatprep.mubr.bf16.mxu0 %v6284
        %6361 = vmatmul.mubr.bf16.gmra.mxu0 %v5800
        %v6362 = vpop.f32.mrf.mxu0
        %v6363 = vadd.f32 %v5887, %v6362
        %v6364 = vpop.f32.mrf.mxu0
        %v6365 = vadd.f32 %v5891, %v6364
        %v6366 = vpop.f32.mrf.mxu0
        %v6367 = vadd.f32 %v5887, %v6366
        %v6368 = vpop.f32.mrf.mxu0
        %v6369 = vadd.f32 %v5891, %v6368
        %6370 = vmatprep.mubr.bf16.mxu0 %v6287
        %6371 = vmatmul.mubr.bf16.gmra.mxu0 %v5802
        %v6372 = vpop.f32.mrf.mxu0
        %v6373 = vadd.f32 %v5887, %v6372
        %v6374 = vpop.f32.mrf.mxu0
        %v6375 = vadd.f32 %v5891, %v6374
        %v6376 = vpop.f32.mrf.mxu0
        %v6377 = vadd.f32 %v5887, %v6376
        %v6378 = vpop.f32.mrf.mxu0
        %v6379 = vadd.f32 %v5891, %v6378
        %6380 = vmatprep.mubr.bf16.mxu0 %v6290
        %6381 = vmatmul.mubr.bf16.gmra.mxu0 %v5804
        %v6382 = vpop.f32.mrf.mxu0
        %v6383 = vadd.f32 %v5887, %v6382
        %v6384 = vpop.f32.mrf.mxu0
        %v6385 = vadd.f32 %v5891, %v6384
        %v6386 = vpop.f32.mrf.mxu0
        %v6387 = vadd.f32 %v5887, %v6386
        %v6388 = vpop.f32.mrf.mxu0
        %v6389 = vadd.f32 %v5891, %v6388
        %6390 = vmatprep.mubr.bf16.mxu0 %v6293
        %6391 = vmatmul.mubr.bf16.gmra.mxu0 %v5806
        %v6392 = vpop.f32.mrf.mxu0
        %v6393 = vadd.f32 %v5887, %v6392
        %v6394 = vpop.f32.mrf.mxu0
        %v6395 = vadd.f32 %v5891, %v6394
        %v6396 = vpop.f32.mrf.mxu0
        %v6397 = vadd.f32 %v5887, %v6396
        %v6398 = vpop.f32.mrf.mxu0
        %v6399 = vadd.f32 %v5891, %v6398
        %6400 = vmatprep.mubr.bf16.mxu0 %v6296
        %6401 = vmatmul.mubr.bf16.gmra.mxu0 %v5808
        %v6402 = vpop.f32.mrf.mxu0
        %v6403 = vadd.f32 %v5887, %v6402
        %v6404 = vpop.f32.mrf.mxu0
        %v6405 = vadd.f32 %v5891, %v6404
        %v6406 = vpop.f32.mrf.mxu0
        %v6407 = vadd.f32 %v5887, %v6406
        %v6408 = vpop.f32.mrf.mxu0
        %v6409 = vadd.f32 %v5891, %v6408
        %6410 = vdwg.mxu0
        %6411 = vmatprep.subr.bf16.mxu0 %v6175
        %6412 = vmatpush1.bf16.msra.mxu0 %v6174
        %6413 = vmatprep.subr.bf16.mxu0 %v6169
        %6414 = vmatpush1.bf16.msra.mxu0 %v6168
        %6415 = vmatprep.subr.bf16.mxu0 %v6163
        %6416 = vmatpush1.bf16.msra.mxu0 %v6162
        %6417 = vmatprep.subr.bf16.mxu0 %v6157
        %6418 = vmatpush1.bf16.msra.mxu0 %v6156
        %6419 = vmatprep.subr.bf16.mxu0 %v6151
        %6420 = vmatpush1.bf16.msra.mxu0 %v6150
        %6421 = vmatprep.subr.bf16.mxu0 %v6145
        %6422 = vmatpush1.bf16.msra.mxu0 %v6144
        %6423 = vmatprep.subr.bf16.mxu0 %v6139
        %6424 = vmatpush1.bf16.msra.mxu0 %v6138
        %6425 = vmatprep.subr.bf16.mxu0 %v6133
        %6426 = vmatpush1.bf16.msra.mxu0 %v6132
        %6427 = vmatprep.subr.bf16.mxu0 0
        %6428 = vmatpush2.bf16.msra.mxu0 0
        %6429 = vmatprep.subr.bf16.mxu0 0
        %6430 = vmatpush2.bf16.msra.mxu0 0
        %6431 = vmatprep.subr.bf16.mxu0 0
        %6432 = vmatpush2.bf16.msra.mxu0 0
        %6433 = vmatprep.subr.bf16.mxu0 0
        %6434 = vmatpush2.bf16.msra.mxu0 0
        %6435 = vmatprep.subr.bf16.mxu0 %v6199
        %6436 = vmatpush2.bf16.msra.mxu0 %v6198
        %6437 = vmatprep.subr.bf16.mxu0 %v6193
        %6438 = vmatpush2.bf16.msra.mxu0 %v6192
        %6439 = vmatprep.subr.bf16.mxu0 %v6187
        %6440 = vmatpush2.bf16.msra.mxu0 %v6186
        %6441 = vmatprep.subr.bf16.mxu0 %v6181
        %6442 = vmatpush2.bf16.msra.mxu0 %v6180
        %6443 = vmatprep.mubr.bf16.mxu0 %v6275
        %6444 = vmatmul.mubr.bf16.gmra.mxu0 %v5794
        %v6445 = vpop.f32.mrf.mxu0
        %v6446 = vadd.f32 %v5895, %v6445
        %v6447 = vpop.f32.mrf.mxu0
        %v6448 = vadd.f32 %v5899, %v6447
        %v6449 = vpop.f32.mrf.mxu0
        %v6450 = vadd.f32 %v5895, %v6449
        %v6451 = vpop.f32.mrf.mxu0
        %v6452 = vadd.f32 %v5899, %v6451
        %6453 = vmatprep.mubr.bf16.mxu0 %v6278
        %6454 = vmatmul.mubr.bf16.gmra.mxu0 %v5796
        %v6455 = vpop.f32.mrf.mxu0
        %v6456 = vadd.f32 %v5895, %v6455
        %v6457 = vpop.f32.mrf.mxu0
        %v6458 = vadd.f32 %v5899, %v6457
        %v6459 = vpop.f32.mrf.mxu0
        %v6460 = vadd.f32 %v5895, %v6459
        %v6461 = vpop.f32.mrf.mxu0
        %v6462 = vadd.f32 %v5899, %v6461
        %6463 = vmatprep.mubr.bf16.mxu0 %v6281
        %6464 = vmatmul.mubr.bf16.gmra.mxu0 %v5798
        %v6465 = vpop.f32.mrf.mxu0
        %v6466 = vadd.f32 %v5895, %v6465
        %v6467 = vpop.f32.mrf.mxu0
        %v6468 = vadd.f32 %v5899, %v6467
        %v6469 = vpop.f32.mrf.mxu0
        %v6470 = vadd.f32 %v5895, %v6469
        %v6471 = vpop.f32.mrf.mxu0
        %v6472 = vadd.f32 %v5899, %v6471
        %6473 = vmatprep.mubr.bf16.mxu0 %v6284
        %6474 = vmatmul.mubr.bf16.gmra.mxu0 %v5800
        %v6475 = vpop.f32.mrf.mxu0
        %v6476 = vadd.f32 %v5895, %v6475
        %v6477 = vpop.f32.mrf.mxu0
        %v6478 = vadd.f32 %v5899, %v6477
        %v6479 = vpop.f32.mrf.mxu0
        %v6480 = vadd.f32 %v5895, %v6479
        %v6481 = vpop.f32.mrf.mxu0
        %v6482 = vadd.f32 %v5899, %v6481
        %6483 = vmatprep.mubr.bf16.mxu0 %v6287
        %6484 = vmatmul.mubr.bf16.gmra.mxu0 %v5802
        %v6485 = vpop.f32.mrf.mxu0
        %v6486 = vadd.f32 %v5895, %v6485
        %v6487 = vpop.f32.mrf.mxu0
        %v6488 = vadd.f32 %v5899, %v6487
        %v6489 = vpop.f32.mrf.mxu0
        %v6490 = vadd.f32 %v5895, %v6489
        %v6491 = vpop.f32.mrf.mxu0
        %v6492 = vadd.f32 %v5899, %v6491
        %6493 = vmatprep.mubr.bf16.mxu0 %v6290
        %6494 = vmatmul.mubr.bf16.gmra.mxu0 %v5804
        %v6495 = vpop.f32.mrf.mxu0
        %v6496 = vadd.f32 %v5895, %v6495
        %v6497 = vpop.f32.mrf.mxu0
        %v6498 = vadd.f32 %v5899, %v6497
        %v6499 = vpop.f32.mrf.mxu0
        %v6500 = vadd.f32 %v5895, %v6499
        %v6501 = vpop.f32.mrf.mxu0
        %v6502 = vadd.f32 %v5899, %v6501
        %6503 = vmatprep.mubr.bf16.mxu0 %v6293
        %6504 = vmatmul.mubr.bf16.gmra.mxu0 %v5806
        %v6505 = vpop.f32.mrf.mxu0
        %v6506 = vadd.f32 %v5895, %v6505
        %v6507 = vpop.f32.mrf.mxu0
        %v6508 = vadd.f32 %v5899, %v6507
        %v6509 = vpop.f32.mrf.mxu0
        %v6510 = vadd.f32 %v5895, %v6509
        %v6511 = vpop.f32.mrf.mxu0
        %v6512 = vadd.f32 %v5899, %v6511
        %6513 = vmatprep.mubr.bf16.mxu0 %v6296
        %6514 = vmatmul.mubr.bf16.gmra.mxu0 %v5808
        %v6515 = vpop.f32.mrf.mxu0
        %v6516 = vadd.f32 %v5895, %v6515
        %v6517 = vpop.f32.mrf.mxu0
        %v6518 = vadd.f32 %v5899, %v6517
        %v6519 = vpop.f32.mrf.mxu0
        %v6520 = vadd.f32 %v5895, %v6519
        %v6521 = vpop.f32.mrf.mxu0
        %v6522 = vadd.f32 %v5899, %v6521
        %6523 = vdwg.mxu0
        %6524 = vmatprep.subr.bf16.mxu0 %v6177
        %6525 = vmatpush1.bf16.msra.mxu0 %v6176
        %6526 = vmatprep.subr.bf16.mxu0 %v6171
        %6527 = vmatpush1.bf16.msra.mxu0 %v6170
        %6528 = vmatprep.subr.bf16.mxu0 %v6165
        %6529 = vmatpush1.bf16.msra.mxu0 %v6164
        %6530 = vmatprep.subr.bf16.mxu0 %v6159
        %6531 = vmatpush1.bf16.msra.mxu0 %v6158
        %6532 = vmatprep.subr.bf16.mxu0 %v6153
        %6533 = vmatpush1.bf16.msra.mxu0 %v6152
        %6534 = vmatprep.subr.bf16.mxu0 %v6147
        %6535 = vmatpush1.bf16.msra.mxu0 %v6146
        %6536 = vmatprep.subr.bf16.mxu0 %v6141
        %6537 = vmatpush1.bf16.msra.mxu0 %v6140
        %6538 = vmatprep.subr.bf16.mxu0 %v6135
        %6539 = vmatpush1.bf16.msra.mxu0 %v6134
        %6540 = vmatprep.subr.bf16.mxu0 0
        %6541 = vmatpush2.bf16.msra.mxu0 0
        %6542 = vmatprep.subr.bf16.mxu0 0
        %6543 = vmatpush2.bf16.msra.mxu0 0
        %6544 = vmatprep.subr.bf16.mxu0 0
        %6545 = vmatpush2.bf16.msra.mxu0 0
        %6546 = vmatprep.subr.bf16.mxu0 0
        %6547 = vmatpush2.bf16.msra.mxu0 0
        %6548 = vmatprep.subr.bf16.mxu0 %v6201
        %6549 = vmatpush2.bf16.msra.mxu0 %v6200
        %6550 = vmatprep.subr.bf16.mxu0 %v6195
        %6551 = vmatpush2.bf16.msra.mxu0 %v6194
        %6552 = vmatprep.subr.bf16.mxu0 %v6189
        %6553 = vmatpush2.bf16.msra.mxu0 %v6188
        %6554 = vmatprep.subr.bf16.mxu0 %v6183
        %6555 = vmatpush2.bf16.msra.mxu0 %v6182
        %6556 = vmatprep.mubr.bf16.mxu0 %v6275
        %6557 = vmatmul.mubr.bf16.gmra.mxu0 %v5794
        %v6558 = vpop.f32.mrf.mxu0
        %v6559 = vadd.f32 %v5903, %v6558
        %v6560 = vpop.f32.mrf.mxu0
        %v6561 = vadd.f32 %v5907, %v6560
        %v6562 = vpop.f32.mrf.mxu0
        %v6563 = vadd.f32 %v5903, %v6562
        %v6564 = vpop.f32.mrf.mxu0
        %v6565 = vadd.f32 %v5907, %v6564
        %6566 = vmatprep.mubr.bf16.mxu0 %v6278
        %6567 = vmatmul.mubr.bf16.gmra.mxu0 %v5796
        %v6568 = vpop.f32.mrf.mxu0
        %v6569 = vadd.f32 %v5903, %v6568
        %v6570 = vpop.f32.mrf.mxu0
        %v6571 = vadd.f32 %v5907, %v6570
        %v6572 = vpop.f32.mrf.mxu0
        %v6573 = vadd.f32 %v5903, %v6572
        %v6574 = vpop.f32.mrf.mxu0
        %v6575 = vadd.f32 %v5907, %v6574
        %6576 = vmatprep.mubr.bf16.mxu0 %v6281
        %6577 = vmatmul.mubr.bf16.gmra.mxu0 %v5798
        %v6578 = vpop.f32.mrf.mxu0
        %v6579 = vadd.f32 %v5903, %v6578
        %v6580 = vpop.f32.mrf.mxu0
        %v6581 = vadd.f32 %v5907, %v6580
        %v6582 = vpop.f32.mrf.mxu0
        %v6583 = vadd.f32 %v5903, %v6582
        %v6584 = vpop.f32.mrf.mxu0
        %v6585 = vadd.f32 %v5907, %v6584
        %6586 = vmatprep.mubr.bf16.mxu0 %v6284
        %6587 = vmatmul.mubr.bf16.gmra.mxu0 %v5800
        %v6588 = vpop.f32.mrf.mxu0
        %v6589 = vadd.f32 %v5903, %v6588
        %v6590 = vpop.f32.mrf.mxu0
        %v6591 = vadd.f32 %v5907, %v6590
        %v6592 = vpop.f32.mrf.mxu0
        %v6593 = vadd.f32 %v5903, %v6592
        %v6594 = vpop.f32.mrf.mxu0
        %v6595 = vadd.f32 %v5907, %v6594
        %6596 = vmatprep.mubr.bf16.mxu0 %v6287
        %6597 = vmatmul.mubr.bf16.gmra.mxu0 %v5802
        %v6598 = vpop.f32.mrf.mxu0
        %v6599 = vadd.f32 %v5903, %v6598
        %v6600 = vpop.f32.mrf.mxu0
        %v6601 = vadd.f32 %v5907, %v6600
        %v6602 = vpop.f32.mrf.mxu0
        %v6603 = vadd.f32 %v5903, %v6602
        %v6604 = vpop.f32.mrf.mxu0
        %v6605 = vadd.f32 %v5907, %v6604
        %6606 = vmatprep.mubr.bf16.mxu0 %v6290
        %6607 = vmatmul.mubr.bf16.gmra.mxu0 %v5804
        %v6608 = vpop.f32.mrf.mxu0
        %v6609 = vadd.f32 %v5903, %v6608
        %v6610 = vpop.f32.mrf.mxu0
        %v6611 = vadd.f32 %v5907, %v6610
        %v6612 = vpop.f32.mrf.mxu0
        %v6613 = vadd.f32 %v5903, %v6612
        %v6614 = vpop.f32.mrf.mxu0
        %v6615 = vadd.f32 %v5907, %v6614
        %6616 = vmatprep.mubr.bf16.mxu0 %v6293
        %6617 = vmatmul.mubr.bf16.gmra.mxu0 %v5806
        %v6618 = vpop.f32.mrf.mxu0
        %v6619 = vadd.f32 %v5903, %v6618
        %v6620 = vpop.f32.mrf.mxu0
        %v6621 = vadd.f32 %v5907, %v6620
        %v6622 = vpop.f32.mrf.mxu0
        %v6623 = vadd.f32 %v5903, %v6622
        %v6624 = vpop.f32.mrf.mxu0
        %v6625 = vadd.f32 %v5907, %v6624
        %6626 = vmatprep.mubr.bf16.mxu0 %v6296
        %6627 = vmatmul.mubr.bf16.gmra.mxu0 %v5808
        %v6628 = vpop.f32.mrf.mxu0
        %v6629 = vadd.f32 %v5903, %v6628
        %v6630 = vpop.f32.mrf.mxu0
        %v6631 = vadd.f32 %v5907, %v6630
        %v6632 = vpop.f32.mrf.mxu0
        %v6633 = vadd.f32 %v5903, %v6632
        %v6634 = vpop.f32.mrf.mxu0
        %v6635 = vadd.f32 %v5907, %v6634
        %6636 = vdwg.mxu0
        %v6637 = vmul.f32 %v6333, 0.5
        %v6638 = vmul.f32 %v6335, 0.5
        %v6639 = vmul.f32 %v6446, 0.5
        %v6640 = vmul.f32 %v6448, 0.5
        %v6641 = vmul.f32 %v6559, 0.5
        %v6642 = vmul.f32 %v6561, 0.5
        %v6643 = vmul.f32 %v6337, 0.5
        %v6644 = vmul.f32 %v6339, 0.5
        %v6645 = vmul.f32 %v6450, 0.5
        %v6646 = vmul.f32 %v6452, 0.5
        %v6647 = vmul.f32 %v6563, 0.5
        %v6648 = vmul.f32 %v6565, 0.5
        %v6649 = vmul.f32 %v6343, 0.5
        %v6650 = vmul.f32 %v6345, 0.5
        %v6651 = vmul.f32 %v6456, 0.5
        %v6652 = vmul.f32 %v6458, 0.5
        %v6653 = vmul.f32 %v6569, 0.5
        %v6654 = vmul.f32 %v6571, 0.5
        %v6655 = vmul.f32 %v6347, 0.5
        %v6656 = vmul.f32 %v6349, 0.5
        %v6657 = vmul.f32 %v6460, 0.5
        %v6658 = vmul.f32 %v6462, 0.5
        %v6659 = vmul.f32 %v6573, 0.5
        %v6660 = vmul.f32 %v6575, 0.5
        %v6661 = vmul.f32 %v6353, 0.5
        %v6662 = vmul.f32 %v6355, 0.5
        %v6663 = vmul.f32 %v6466, 0.5
        %v6664 = vmul.f32 %v6468, 0.5
        %v6665 = vmul.f32 %v6579, 0.5
        %v6666 = vmul.f32 %v6581, 0.5
        %v6667 = vmul.f32 %v6357, 0.5
        %v6668 = vmul.f32 %v6359, 0.5
        %v6669 = vmul.f32 %v6470, 0.5
        %v6670 = vmul.f32 %v6472, 0.5
        %v6671 = vmul.f32 %v6583, 0.5
        %v6672 = vmul.f32 %v6585, 0.5
        %v6673 = vmul.f32 %v6363, 0.5
        %v6674 = vmul.f32 %v6365, 0.5
        %v6675 = vmul.f32 %v6476, 0.5
        %v6676 = vmul.f32 %v6478, 0.5
        %v6677 = vmul.f32 %v6589, 0.5
        %v6678 = vmul.f32 %v6591, 0.5
        %v6679 = vmul.f32 %v6367, 0.5
        %v6680 = vmul.f32 %v6369, 0.5
        %v6681 = vmul.f32 %v6480, 0.5
        %v6682 = vmul.f32 %v6482, 0.5
        %v6683 = vmul.f32 %v6593, 0.5
        %v6684 = vmul.f32 %v6595, 0.5
        %v6685 = vmul.f32 %v6373, 0.5
        %v6686 = vmul.f32 %v6375, 0.5
        %v6687 = vmul.f32 %v6486, 0.5
        %v6688 = vmul.f32 %v6488, 0.5
        %v6689 = vmul.f32 %v6599, 0.5
        %v6690 = vmul.f32 %v6601, 0.5
        %v6691 = vmul.f32 %v6377, 0.5
        %v6692 = vmul.f32 %v6379, 0.5
        %v6693 = vmul.f32 %v6490, 0.5
        %v6694 = vmul.f32 %v6492, 0.5
        %v6695 = vmul.f32 %v6603, 0.5
        %v6696 = vmul.f32 %v6605, 0.5
        %v6697 = vmul.f32 %v6383, 0.5
        %v6698 = vmul.f32 %v6385, 0.5
        %v6699 = vmul.f32 %v6496, 0.5
        %v6700 = vmul.f32 %v6498, 0.5
        %v6701 = vmul.f32 %v6609, 0.5
        %v6702 = vmul.f32 %v6611, 0.5
        %v6703 = vmul.f32 %v6387, 0.5
        %v6704 = vmul.f32 %v6389, 0.5
        %v6705 = vmul.f32 %v6500, 0.5
        %v6706 = vmul.f32 %v6502, 0.5
        %v6707 = vmul.f32 %v6613, 0.5
        %v6708 = vmul.f32 %v6615, 0.5
        %v6709 = vmul.f32 %v6393, 0.5
        %v6710 = vmul.f32 %v6395, 0.5
        %v6711 = vmul.f32 %v6506, 0.5
        %v6712 = vmul.f32 %v6508, 0.5
        %v6713 = vmul.f32 %v6619, 0.5
        %v6714 = vmul.f32 %v6621, 0.5
        %v6715 = vmul.f32 %v6397, 0.5
        %v6716 = vmul.f32 %v6399, 0.5
        %v6717 = vmul.f32 %v6510, 0.5
        %v6718 = vmul.f32 %v6512, 0.5
        %v6719 = vmul.f32 %v6623, 0.5
        %v6720 = vmul.f32 %v6625, 0.5
        %v6721 = vmul.f32 %v6403, 0.5
        %v6722 = vmul.f32 %v6405, 0.5
        %v6723 = vmul.f32 %v6516, 0.5
        %v6724 = vmul.f32 %v6518, 0.5
        %v6725 = vmul.f32 %v6629, 0.5
        %v6726 = vmul.f32 %v6631, 0.5
        %v6727 = vmul.f32 %v6407, 0.5
        %v6728 = vmul.f32 %v6409, 0.5
        %v6729 = vmul.f32 %v6520, 0.5
        %v6730 = vmul.f32 %v6522, 0.5
        %v6731 = vmul.f32 %v6633, 0.5
        %v6732 = vmul.f32 %v6635, 0.5
        %v6733 = vmul.f32 %v6333, 0.70710677
        %v6734 = vmul.f32 %v6335, 0.70710677
        %v6735 = vmul.f32 %v6446, 0.70710677
        %v6736 = vmul.f32 %v6448, 0.70710677
        %v6737 = vmul.f32 %v6559, 0.70710677
        %v6738 = vmul.f32 %v6561, 0.70710677
        %v6739 = vmul.f32 %v6337, 0.70710677
        %v6740 = vmul.f32 %v6339, 0.70710677
        %v6741 = vmul.f32 %v6450, 0.70710677
        %v6742 = vmul.f32 %v6452, 0.70710677
        %v6743 = vmul.f32 %v6563, 0.70710677
        %v6744 = vmul.f32 %v6565, 0.70710677
        %v6745 = vmul.f32 %v6343, 0.70710677
        %v6746 = vmul.f32 %v6345, 0.70710677
        %v6747 = vmul.f32 %v6456, 0.70710677
        %v6748 = vmul.f32 %v6458, 0.70710677
        %v6749 = vmul.f32 %v6569, 0.70710677
        %v6750 = vmul.f32 %v6571, 0.70710677
        %v6751 = vmul.f32 %v6347, 0.70710677
        %v6752 = vmul.f32 %v6349, 0.70710677
        %v6753 = vmul.f32 %v6460, 0.70710677
        %v6754 = vmul.f32 %v6462, 0.70710677
        %v6755 = vmul.f32 %v6573, 0.70710677
        %v6756 = vmul.f32 %v6575, 0.70710677
        %v6757 = vmul.f32 %v6353, 0.70710677
        %v6758 = vmul.f32 %v6355, 0.70710677
        %v6759 = vmul.f32 %v6466, 0.70710677
        %v6760 = vmul.f32 %v6468, 0.70710677
        %v6761 = vmul.f32 %v6579, 0.70710677
        %v6762 = vmul.f32 %v6581, 0.70710677
        %v6763 = vmul.f32 %v6357, 0.70710677
        %v6764 = vmul.f32 %v6359, 0.70710677
        %v6765 = vmul.f32 %v6470, 0.70710677
        %v6766 = vmul.f32 %v6472, 0.70710677
        %v6767 = vmul.f32 %v6583, 0.70710677
        %v6768 = vmul.f32 %v6585, 0.70710677
        %v6769 = vmul.f32 %v6363, 0.70710677
        %v6770 = vmul.f32 %v6365, 0.70710677
        %v6771 = vmul.f32 %v6476, 0.70710677
        %v6772 = vmul.f32 %v6478, 0.70710677
        %v6773 = vmul.f32 %v6589, 0.70710677
        %v6774 = vmul.f32 %v6591, 0.70710677
        %v6775 = vmul.f32 %v6367, 0.70710677
        %v6776 = vmul.f32 %v6369, 0.70710677
        %v6777 = vmul.f32 %v6480, 0.70710677
        %v6778 = vmul.f32 %v6482, 0.70710677
        %v6779 = vmul.f32 %v6593, 0.70710677
        %v6780 = vmul.f32 %v6595, 0.70710677
        %v6781 = vmul.f32 %v6373, 0.70710677
        %v6782 = vmul.f32 %v6375, 0.70710677
        %v6783 = vmul.f32 %v6486, 0.70710677
        %v6784 = vmul.f32 %v6488, 0.70710677
        %v6785 = vmul.f32 %v6599, 0.70710677
        %v6786 = vmul.f32 %v6601, 0.70710677
        %v6787 = vmul.f32 %v6377, 0.70710677
        %v6788 = vmul.f32 %v6379, 0.70710677
        %v6789 = vmul.f32 %v6490, 0.70710677
        %v6790 = vmul.f32 %v6492, 0.70710677
        %v6791 = vmul.f32 %v6603, 0.70710677
        %v6792 = vmul.f32 %v6605, 0.70710677
        %v6793 = vmul.f32 %v6383, 0.70710677
        %v6794 = vmul.f32 %v6385, 0.70710677
        %v6795 = vmul.f32 %v6496, 0.70710677
        %v6796 = vmul.f32 %v6498, 0.70710677
        %v6797 = vmul.f32 %v6609, 0.70710677
        %v6798 = vmul.f32 %v6611, 0.70710677
        %v6799 = vmul.f32 %v6387, 0.70710677
        %v6800 = vmul.f32 %v6389, 0.70710677
        %v6801 = vmul.f32 %v6500, 0.70710677
        %v6802 = vmul.f32 %v6502, 0.70710677
        %v6803 = vmul.f32 %v6613, 0.70710677
        %v6804 = vmul.f32 %v6615, 0.70710677
        %v6805 = vmul.f32 %v6393, 0.70710677
        %v6806 = vmul.f32 %v6395, 0.70710677
        %v6807 = vmul.f32 %v6506, 0.70710677
        %v6808 = vmul.f32 %v6508, 0.70710677
        %v6809 = vmul.f32 %v6619, 0.70710677
        %v6810 = vmul.f32 %v6621, 0.70710677
        %v6811 = vmul.f32 %v6397, 0.70710677
        %v6812 = vmul.f32 %v6399, 0.70710677
        %v6813 = vmul.f32 %v6510, 0.70710677
        %v6814 = vmul.f32 %v6512, 0.70710677
        %v6815 = vmul.f32 %v6623, 0.70710677
        %v6816 = vmul.f32 %v6625, 0.70710677
        %v6817 = vmul.f32 %v6403, 0.70710677
        %v6818 = vmul.f32 %v6405, 0.70710677
        %v6819 = vmul.f32 %v6516, 0.70710677
        %v6820 = vmul.f32 %v6518, 0.70710677
        %v6821 = vmul.f32 %v6629, 0.70710677
        %v6822 = vmul.f32 %v6631, 0.70710677
        %v6823 = vmul.f32 %v6407, 0.70710677
        %v6824 = vmul.f32 %v6409, 0.70710677
        %v6825 = vmul.f32 %v6520, 0.70710677
        %v6826 = vmul.f32 %v6522, 0.70710677
        %v6827 = vmul.f32 %v6633, 0.70710677
        %v6828 = vmul.f32 %v6635, 0.70710677
        %v6829 = verf.f32.pop %v6733
        %v6830 = verf.f32.pop %v6734
        %v6831 = verf.f32.pop %v6735
        %v6832 = verf.f32.pop %v6736
        %v6833 = verf.f32.pop %v6737
        %v6834 = verf.f32.pop %v6738
        %v6835 = verf.f32.pop %v6739
        %v6836 = verf.f32.pop %v6740
        %v6837 = verf.f32.pop %v6741
        %v6838 = verf.f32.pop %v6742
        %v6839 = verf.f32.pop %v6743
        %v6840 = verf.f32.pop %v6744
        %v6841 = verf.f32.pop %v6745
        %v6842 = verf.f32.pop %v6746
        %v6843 = verf.f32.pop %v6747
        %v6844 = verf.f32.pop %v6748
        %v6845 = verf.f32.pop %v6749
        %v6846 = verf.f32.pop %v6750
        %v6847 = verf.f32.pop %v6751
        %v6848 = verf.f32.pop %v6752
        %v6849 = verf.f32.pop %v6753
        %v6850 = verf.f32.pop %v6754
        %v6851 = verf.f32.pop %v6755
        %v6852 = verf.f32.pop %v6756
        %v6853 = verf.f32.pop %v6757
        %v6854 = verf.f32.pop %v6758
        %v6855 = verf.f32.pop %v6759
        %v6856 = verf.f32.pop %v6760
        %v6857 = verf.f32.pop %v6761
        %v6858 = verf.f32.pop %v6762
        %v6859 = verf.f32.pop %v6763
        %v6860 = verf.f32.pop %v6764
        %v6861 = verf.f32.pop %v6765
        %v6862 = verf.f32.pop %v6766
        %v6863 = verf.f32.pop %v6767
        %v6864 = verf.f32.pop %v6768
        %v6865 = verf.f32.pop %v6769
        %v6866 = verf.f32.pop %v6770
        %v6867 = verf.f32.pop %v6771
        %v6868 = verf.f32.pop %v6772
        %v6869 = verf.f32.pop %v6773
        %v6870 = verf.f32.pop %v6774
        %v6871 = verf.f32.pop %v6775
        %v6872 = verf.f32.pop %v6776
        %v6873 = verf.f32.pop %v6777
        %v6874 = verf.f32.pop %v6778
        %v6875 = verf.f32.pop %v6779
        %v6876 = verf.f32.pop %v6780
        %v6877 = verf.f32.pop %v6781
        %v6878 = verf.f32.pop %v6782
        %v6879 = verf.f32.pop %v6783
        %v6880 = verf.f32.pop %v6784
        %v6881 = verf.f32.pop %v6785
        %v6882 = verf.f32.pop %v6786
        %v6883 = verf.f32.pop %v6787
        %v6884 = verf.f32.pop %v6788
        %v6885 = verf.f32.pop %v6789
        %v6886 = verf.f32.pop %v6790
        %v6887 = verf.f32.pop %v6791
        %v6888 = verf.f32.pop %v6792
        %v6889 = verf.f32.pop %v6793
        %v6890 = verf.f32.pop %v6794
        %v6891 = verf.f32.pop %v6795
        %v6892 = verf.f32.pop %v6796
        %v6893 = verf.f32.pop %v6797
        %v6894 = verf.f32.pop %v6798
        %v6895 = verf.f32.pop %v6799
        %v6896 = verf.f32.pop %v6800
        %v6897 = verf.f32.pop %v6801
        %v6898 = verf.f32.pop %v6802
        %v6899 = verf.f32.pop %v6803
        %v6900 = verf.f32.pop %v6804
        %v6901 = verf.f32.pop %v6805
        %v6902 = verf.f32.pop %v6806
        %v6903 = verf.f32.pop %v6807
        %v6904 = verf.f32.pop %v6808
        %v6905 = verf.f32.pop %v6809
        %v6906 = verf.f32.pop %v6810
        %v6907 = verf.f32.pop %v6811
        %v6908 = verf.f32.pop %v6812
        %v6909 = verf.f32.pop %v6813
        %v6910 = verf.f32.pop %v6814
        %v6911 = verf.f32.pop %v6815
        %v6912 = verf.f32.pop %v6816
        %v6913 = verf.f32.pop %v6817
        %v6914 = verf.f32.pop %v6818
        %v6915 = verf.f32.pop %v6819
        %v6916 = verf.f32.pop %v6820
        %v6917 = verf.f32.pop %v6821
        %v6918 = verf.f32.pop %v6822
        %v6919 = verf.f32.pop %v6823
        %v6920 = verf.f32.pop %v6824
        %v6921 = verf.f32.pop %v6825
        %v6922 = verf.f32.pop %v6826
        %v6923 = verf.f32.pop %v6827
        %v6924 = verf.f32.pop %v6828
        %v6925 = vadd.f32 %v6829, 1.0
        %v6926 = vadd.f32 %v6830, 1.0
        %v6927 = vadd.f32 %v6831, 1.0
        %v6928 = vadd.f32 %v6832, 1.0
        %v6929 = vadd.f32 %v6833, 1.0
        %v6930 = vadd.f32 %v6834, 1.0
        %v6931 = vadd.f32 %v6835, 1.0
        %v6932 = vadd.f32 %v6836, 1.0
        %v6933 = vadd.f32 %v6837, 1.0
        %v6934 = vadd.f32 %v6838, 1.0
        %v6935 = vadd.f32 %v6839, 1.0
        %v6936 = vadd.f32 %v6840, 1.0
        %v6937 = vadd.f32 %v6841, 1.0
        %v6938 = vadd.f32 %v6842, 1.0
        %v6939 = vadd.f32 %v6843, 1.0
        %v6940 = vadd.f32 %v6844, 1.0
        %v6941 = vadd.f32 %v6845, 1.0
        %v6942 = vadd.f32 %v6846, 1.0
        %v6943 = vadd.f32 %v6847, 1.0
        %v6944 = vadd.f32 %v6848, 1.0
        %v6945 = vadd.f32 %v6849, 1.0
        %v6946 = vadd.f32 %v6850, 1.0
        %v6947 = vadd.f32 %v6851, 1.0
        %v6948 = vadd.f32 %v6852, 1.0
        %v6949 = vadd.f32 %v6853, 1.0
        %v6950 = vadd.f32 %v6854, 1.0
        %v6951 = vadd.f32 %v6855, 1.0
        %v6952 = vadd.f32 %v6856, 1.0
        %v6953 = vadd.f32 %v6857, 1.0
        %v6954 = vadd.f32 %v6858, 1.0
        %v6955 = vadd.f32 %v6859, 1.0
        %v6956 = vadd.f32 %v6860, 1.0
        %v6957 = vadd.f32 %v6861, 1.0
        %v6958 = vadd.f32 %v6862, 1.0
        %v6959 = vadd.f32 %v6863, 1.0
        %v6960 = vadd.f32 %v6864, 1.0
        %v6961 = vadd.f32 %v6865, 1.0
        %v6962 = vadd.f32 %v6866, 1.0
        %v6963 = vadd.f32 %v6867, 1.0
        %v6964 = vadd.f32 %v6868, 1.0
        %v6965 = vadd.f32 %v6869, 1.0
        %v6966 = vadd.f32 %v6870, 1.0
        %v6967 = vadd.f32 %v6871, 1.0
        %v6968 = vadd.f32 %v6872, 1.0
        %v6969 = vadd.f32 %v6873, 1.0
        %v6970 = vadd.f32 %v6874, 1.0
        %v6971 = vadd.f32 %v6875, 1.0
        %v6972 = vadd.f32 %v6876, 1.0
        %v6973 = vadd.f32 %v6877, 1.0
        %v6974 = vadd.f32 %v6878, 1.0
        %v6975 = vadd.f32 %v6879, 1.0
        %v6976 = vadd.f32 %v6880, 1.0
        %v6977 = vadd.f32 %v6881, 1.0
        %v6978 = vadd.f32 %v6882, 1.0
        %v6979 = vadd.f32 %v6883, 1.0
        %v6980 = vadd.f32 %v6884, 1.0
        %v6981 = vadd.f32 %v6885, 1.0
        %v6982 = vadd.f32 %v6886, 1.0
        %v6983 = vadd.f32 %v6887, 1.0
        %v6984 = vadd.f32 %v6888, 1.0
        %v6985 = vadd.f32 %v6889, 1.0
        %v6986 = vadd.f32 %v6890, 1.0
        %v6987 = vadd.f32 %v6891, 1.0
        %v6988 = vadd.f32 %v6892, 1.0
        %v6989 = vadd.f32 %v6893, 1.0
        %v6990 = vadd.f32 %v6894, 1.0
        %v6991 = vadd.f32 %v6895, 1.0
        %v6992 = vadd.f32 %v6896, 1.0
        %v6993 = vadd.f32 %v6897, 1.0
        %v6994 = vadd.f32 %v6898, 1.0
        %v6995 = vadd.f32 %v6899, 1.0
        %v6996 = vadd.f32 %v6900, 1.0
        %v6997 = vadd.f32 %v6901, 1.0
        %v6998 = vadd.f32 %v6902, 1.0
        %v6999 = vadd.f32 %v6903, 1.0
        %v7000 = vadd.f32 %v6904, 1.0
        %v7001 = vadd.f32 %v6905, 1.0
        %v7002 = vadd.f32 %v6906, 1.0
        %v7003 = vadd.f32 %v6907, 1.0
        %v7004 = vadd.f32 %v6908, 1.0
        %v7005 = vadd.f32 %v6909, 1.0
        %v7006 = vadd.f32 %v6910, 1.0
        %v7007 = vadd.f32 %v6911, 1.0
        %v7008 = vadd.f32 %v6912, 1.0
        %v7009 = vadd.f32 %v6913, 1.0
        %v7010 = vadd.f32 %v6914, 1.0
        %v7011 = vadd.f32 %v6915, 1.0
        %v7012 = vadd.f32 %v6916, 1.0
        %v7013 = vadd.f32 %v6917, 1.0
        %v7014 = vadd.f32 %v6918, 1.0
        %v7015 = vadd.f32 %v6919, 1.0
        %v7016 = vadd.f32 %v6920, 1.0
        %v7017 = vadd.f32 %v6921, 1.0
        %v7018 = vadd.f32 %v6922, 1.0
        %v7019 = vadd.f32 %v6923, 1.0
        %v7020 = vadd.f32 %v6924, 1.0
        %v7021 = vmul.f32 %v6637, %v6925
        %v7022 = vmul.f32 %v6638, %v6926
        %v7023 = vmul.f32 %v6639, %v6927
        %v7024 = vmul.f32 %v6640, %v6928
        %v7025 = vmul.f32 %v6641, %v6929
        %v7026 = vmul.f32 %v6642, %v6930
        %v7027 = vmul.f32 %v6643, %v6931
        %v7028 = vmul.f32 %v6644, %v6932
        %v7029 = vmul.f32 %v6645, %v6933
        %v7030 = vmul.f32 %v6646, %v6934
        %v7031 = vmul.f32 %v6647, %v6935
        %v7032 = vmul.f32 %v6648, %v6936
        %v7033 = vmul.f32 %v6649, %v6937
        %v7034 = vmul.f32 %v6650, %v6938
        %v7035 = vmul.f32 %v6651, %v6939
        %v7036 = vmul.f32 %v6652, %v6940
        %v7037 = vmul.f32 %v6653, %v6941
        %v7038 = vmul.f32 %v6654, %v6942
        %v7039 = vmul.f32 %v6655, %v6943
        %v7040 = vmul.f32 %v6656, %v6944
        %v7041 = vmul.f32 %v6657, %v6945
        %v7042 = vmul.f32 %v6658, %v6946
        %v7043 = vmul.f32 %v6659, %v6947
        %v7044 = vmul.f32 %v6660, %v6948
        %v7045 = vmul.f32 %v6661, %v6949
        %v7046 = vmul.f32 %v6662, %v6950
        %v7047 = vmul.f32 %v6663, %v6951
        %v7048 = vmul.f32 %v6664, %v6952
        %v7049 = vmul.f32 %v6665, %v6953
        %v7050 = vmul.f32 %v6666, %v6954
        %v7051 = vmul.f32 %v6667, %v6955
        %v7052 = vmul.f32 %v6668, %v6956
        %v7053 = vmul.f32 %v6669, %v6957
        %v7054 = vmul.f32 %v6670, %v6958
        %v7055 = vmul.f32 %v6671, %v6959
        %v7056 = vmul.f32 %v6672, %v6960
        %v7057 = vmul.f32 %v6673, %v6961
        %v7058 = vmul.f32 %v6674, %v6962
        %v7059 = vmul.f32 %v6675, %v6963
        %v7060 = vmul.f32 %v6676, %v6964
        %v7061 = vmul.f32 %v6677, %v6965
        %v7062 = vmul.f32 %v6678, %v6966
        %v7063 = vmul.f32 %v6679, %v6967
        %v7064 = vmul.f32 %v6680, %v6968
        %v7065 = vmul.f32 %v6681, %v6969
        %v7066 = vmul.f32 %v6682, %v6970
        %v7067 = vmul.f32 %v6683, %v6971
        %v7068 = vmul.f32 %v6684, %v6972
        %v7069 = vmul.f32 %v6685, %v6973
        %v7070 = vmul.f32 %v6686, %v6974
        %v7071 = vmul.f32 %v6687, %v6975
        %v7072 = vmul.f32 %v6688, %v6976
        %v7073 = vmul.f32 %v6689, %v6977
        %v7074 = vmul.f32 %v6690, %v6978
        %v7075 = vmul.f32 %v6691, %v6979
        %v7076 = vmul.f32 %v6692, %v6980
        %v7077 = vmul.f32 %v6693, %v6981
        %v7078 = vmul.f32 %v6694, %v6982
        %v7079 = vmul.f32 %v6695, %v6983
        %v7080 = vmul.f32 %v6696, %v6984
        %v7081 = vmul.f32 %v6697, %v6985
        %v7082 = vmul.f32 %v6698, %v6986
        %v7083 = vmul.f32 %v6699, %v6987
        %v7084 = vmul.f32 %v6700, %v6988
        %v7085 = vmul.f32 %v6701, %v6989
        %v7086 = vmul.f32 %v6702, %v6990
        %v7087 = vmul.f32 %v6703, %v6991
        %v7088 = vmul.f32 %v6704, %v6992
        %v7089 = vmul.f32 %v6705, %v6993
        %v7090 = vmul.f32 %v6706, %v6994
        %v7091 = vmul.f32 %v6707, %v6995
        %v7092 = vmul.f32 %v6708, %v6996
        %v7093 = vmul.f32 %v6709, %v6997
        %v7094 = vmul.f32 %v6710, %v6998
        %v7095 = vmul.f32 %v6711, %v6999
        %v7096 = vmul.f32 %v6712, %v7000
        %v7097 = vmul.f32 %v6713, %v7001
        %v7098 = vmul.f32 %v6714, %v7002
        %v7099 = vmul.f32 %v6715, %v7003
        %v7100 = vmul.f32 %v6716, %v7004
        %v7101 = vmul.f32 %v6717, %v7005
        %v7102 = vmul.f32 %v6718, %v7006
        %v7103 = vmul.f32 %v6719, %v7007
        %v7104 = vmul.f32 %v6720, %v7008
        %v7105 = vmul.f32 %v6721, %v7009
        %v7106 = vmul.f32 %v6722, %v7010
        %v7107 = vmul.f32 %v6723, %v7011
        %v7108 = vmul.f32 %v6724, %v7012
        %v7109 = vmul.f32 %v6725, %v7013
        %v7110 = vmul.f32 %v6726, %v7014
        %v7111 = vmul.f32 %v6727, %v7015
        %v7112 = vmul.f32 %v6728, %v7016
        %v7113 = vmul.f32 %v6729, %v7017
        %v7114 = vmul.f32 %v6730, %v7018
        %v7115 = vmul.f32 %v6731, %v7019
        %v7116 = vmul.f32 %v6732, %v7020
        %v7117 = vpack.c.bf16 %v7027, %v7021
        %v7118 = vpack.c.bf16 %v7028, %v7022
        %v7119 = vpack.c.bf16 %v7029, %v7023
        %v7120 = vpack.c.bf16 %v7030, %v7024
        %v7121 = vpack.c.bf16 %v7031, %v7025
        %v7122 = vpack.c.bf16 %v7032, %v7026
        %v7123 = vpack.c.bf16 %v7039, %v7033
        %v7124 = vpack.c.bf16 %v7040, %v7034
        %v7125 = vpack.c.bf16 %v7041, %v7035
        %v7126 = vpack.c.bf16 %v7042, %v7036
        %v7127 = vpack.c.bf16 %v7043, %v7037
        %v7128 = vpack.c.bf16 %v7044, %v7038
        %v7129 = vpack.c.bf16 %v7051, %v7045
        %v7130 = vpack.c.bf16 %v7052, %v7046
        %v7131 = vpack.c.bf16 %v7053, %v7047
        %v7132 = vpack.c.bf16 %v7054, %v7048
        %v7133 = vpack.c.bf16 %v7055, %v7049
        %v7134 = vpack.c.bf16 %v7056, %v7050
        %v7135 = vpack.c.bf16 %v7063, %v7057
        %v7136 = vpack.c.bf16 %v7064, %v7058
        %v7137 = vpack.c.bf16 %v7065, %v7059
        %v7138 = vpack.c.bf16 %v7066, %v7060
        %v7139 = vpack.c.bf16 %v7067, %v7061
        %v7140 = vpack.c.bf16 %v7068, %v7062
        %v7141 = vpack.c.bf16 %v7075, %v7069
        %v7142 = vpack.c.bf16 %v7076, %v7070
        %v7143 = vpack.c.bf16 %v7077, %v7071
        %v7144 = vpack.c.bf16 %v7078, %v7072
        %v7145 = vpack.c.bf16 %v7079, %v7073
        %v7146 = vpack.c.bf16 %v7080, %v7074
        %v7147 = vpack.c.bf16 %v7087, %v7081
        %v7148 = vpack.c.bf16 %v7088, %v7082
        %v7149 = vpack.c.bf16 %v7089, %v7083
        %v7150 = vpack.c.bf16 %v7090, %v7084
        %v7151 = vpack.c.bf16 %v7091, %v7085
        %v7152 = vpack.c.bf16 %v7092, %v7086
        %v7153 = vpack.c.bf16 %v7099, %v7093
        %v7154 = vpack.c.bf16 %v7100, %v7094
        %v7155 = vpack.c.bf16 %v7101, %v7095
        %v7156 = vpack.c.bf16 %v7102, %v7096
        %v7157 = vpack.c.bf16 %v7103, %v7097
        %v7158 = vpack.c.bf16 %v7104, %v7098
        %v7159 = vpack.c.bf16 %v7111, %v7105
        %v7160 = vpack.c.bf16 %v7112, %v7106
        %v7161 = vpack.c.bf16 %v7113, %v7107
        %v7162 = vpack.c.bf16 %v7114, %v7108
        %v7163 = vpack.c.bf16 %v7115, %v7109
        %v7164 = vpack.c.bf16 %v7116, %v7110
        %v7165 = vld [vmem:[%s757] sm:$0xff]
        %v7166 = vld [vmem:[%s757 + $0x8] sm:$0xff]
        %v7167 = vld [vmem:[%s757 + $0x10] sm:$0xff]
        %v7168 = vld [vmem:[%s757 + $0x18] sm:$0xff]
        %v7169 = vld [vmem:[%s757 + $0x20] sm:$0xff]
        %v7170 = vld [vmem:[%s757 + $0x28] sm:$0xff]
        %v7171 = vld [vmem:[%s757 + $0x30] sm:$0xff]
        %v7172 = vld [vmem:[%s757 + $0x38] sm:$0xff]
        %v7173 = vld [vmem:[%s757 + $0x40] sm:$0xff]
        %v7174 = vld [vmem:[%s757 + $0x48] sm:$0xff]
        %v7175 = vld [vmem:[%s757 + $0x50] sm:$0xff]
        %v7176 = vld [vmem:[%s757 + $0x58] sm:$0xff]
        %v7177 = vld [vmem:[%s757 + $0x60] sm:$0xff]
        %v7178 = vld [vmem:[%s757 + $0x68] sm:$0xff]
        %v7179 = vld [vmem:[%s757 + $0x70] sm:$0xff]
        %v7180 = vld [vmem:[%s757 + $0x78] sm:$0xff]
        %v7181 = vld [vmem:[%s757 + $0x80] sm:$0xff]
        %v7182 = vld [vmem:[%s757 + $0x88] sm:$0xff]
        %v7183 = vld [vmem:[%s757 + $0x90] sm:$0xff]
        %v7184 = vld [vmem:[%s757 + $0x98] sm:$0xff]
        %v7185 = vld [vmem:[%s757 + $0xa0] sm:$0xff]
        %v7186 = vld [vmem:[%s757 + $0xa8] sm:$0xff]
        %v7187 = vld [vmem:[%s757 + $0xb0] sm:$0xff]
        %v7188 = vld [vmem:[%s757 + $0xb8] sm:$0xff]
        %v7189 = vld [vmem:[%s757 + $0xc0] sm:$0xff]
        %v7190 = vld [vmem:[%s757 + $0xc8] sm:$0xff]
        %v7191 = vld [vmem:[%s757 + $0xd0] sm:$0xff]
        %v7192 = vld [vmem:[%s757 + $0xd8] sm:$0xff]
        %v7193 = vld [vmem:[%s757 + $0xe0] sm:$0xff]
        %v7194 = vld [vmem:[%s757 + $0xe8] sm:$0xff]
        %v7195 = vld [vmem:[%s757 + $0xf0] sm:$0xff]
        %v7196 = vld [vmem:[%s757 + $0xf8] sm:$0xff]
        %v7197 = vld [vmem:[%s757 + $0x100] sm:$0xff]
        %v7198 = vld [vmem:[%s757 + $0x108] sm:$0xff]
        %v7199 = vld [vmem:[%s757 + $0x110] sm:$0xff]
        %v7200 = vld [vmem:[%s757 + $0x118] sm:$0xff]
        %v7201 = vld [vmem:[%s757 + $0x120] sm:$0xff]
        %v7202 = vld [vmem:[%s757 + $0x128] sm:$0xff]
        %v7203 = vld [vmem:[%s757 + $0x130] sm:$0xff]
        %v7204 = vld [vmem:[%s757 + $0x138] sm:$0xff]
        %v7205 = vld [vmem:[%s757 + $0x140] sm:$0xff]
        %v7206 = vld [vmem:[%s757 + $0x148] sm:$0xff]
        %v7207 = vld [vmem:[%s757 + $0x150] sm:$0xff]
        %v7208 = vld [vmem:[%s757 + $0x158] sm:$0xff]
        %v7209 = vld [vmem:[%s757 + $0x160] sm:$0xff]
        %v7210 = vld [vmem:[%s757 + $0x168] sm:$0xff]
        %v7211 = vld [vmem:[%s757 + $0x170] sm:$0xff]
        %v7212 = vld [vmem:[%s757 + $0x178] sm:$0xff]
        %v7213 = vld [vmem:[%s757 + $0x180] sm:$0xff]
        %v7214 = vld [vmem:[%s757 + $0x188] sm:$0xff]
        %v7215 = vld [vmem:[%s757 + $0x190] sm:$0xff]
        %v7216 = vld [vmem:[%s757 + $0x198] sm:$0xff]
        %v7217 = vld [vmem:[%s757 + $0x1a0] sm:$0xff]
        %v7218 = vld [vmem:[%s757 + $0x1a8] sm:$0xff]
        %v7219 = vld [vmem:[%s757 + $0x1b0] sm:$0xff]
        %v7220 = vld [vmem:[%s757 + $0x1b8] sm:$0xff]
        %v7221 = vld [vmem:[%s757 + $0x1c0] sm:$0xff]
        %v7222 = vld [vmem:[%s757 + $0x1c8] sm:$0xff]
        %v7223 = vld [vmem:[%s757 + $0x1d0] sm:$0xff]
        %v7224 = vld [vmem:[%s757 + $0x1d8] sm:$0xff]
        %v7225 = vld [vmem:[%s757 + $0x1e0] sm:$0xff]
        %v7226 = vld [vmem:[%s757 + $0x1e8] sm:$0xff]
        %v7227 = vld [vmem:[%s757 + $0x1f0] sm:$0xff]
        %v7228 = vld [vmem:[%s757 + $0x1f8] sm:$0xff]
        %v7229 = vld [vmem:[%s757 + $0x200] sm:$0xff]
        %v7230 = vld [vmem:[%s757 + $0x208] sm:$0xff]
        %v7231 = vld [vmem:[%s757 + $0x210] sm:$0xff]
        %v7232 = vld [vmem:[%s757 + $0x218] sm:$0xff]
        %v7233 = vld [vmem:[%s757 + $0x220] sm:$0xff]
        %v7234 = vld [vmem:[%s757 + $0x228] sm:$0xff]
        %v7235 = vld [vmem:[%s757 + $0x230] sm:$0xff]
        %v7236 = vld [vmem:[%s757 + $0x238] sm:$0xff]
        %v7237 = vld [vmem:[%s757 + $0x240] sm:$0xff]
        %v7238 = vld [vmem:[%s757 + $0x248] sm:$0xff]
        %v7239 = vld [vmem:[%s757 + $0x250] sm:$0xff]
        %v7240 = vld [vmem:[%s757 + $0x258] sm:$0xff]
        %v7241 = vld [vmem:[%s757 + $0x260] sm:$0xff]
        %v7242 = vld [vmem:[%s757 + $0x268] sm:$0xff]
        %v7243 = vld [vmem:[%s757 + $0x270] sm:$0xff]
        %v7244 = vld [vmem:[%s757 + $0x278] sm:$0xff]
        %v7245 = vld [vmem:[%s757 + $0x280] sm:$0xff]
        %v7246 = vld [vmem:[%s757 + $0x288] sm:$0xff]
        %v7247 = vld [vmem:[%s757 + $0x290] sm:$0xff]
        %v7248 = vld [vmem:[%s757 + $0x298] sm:$0xff]
        %v7249 = vld [vmem:[%s757 + $0x2a0] sm:$0xff]
        %v7250 = vld [vmem:[%s757 + $0x2a8] sm:$0xff]
        %v7251 = vld [vmem:[%s757 + $0x2b0] sm:$0xff]
        %v7252 = vld [vmem:[%s757 + $0x2b8] sm:$0xff]
        %v7253 = vld [vmem:[%s757 + $0x2c0] sm:$0xff]
        %v7254 = vld [vmem:[%s757 + $0x2c8] sm:$0xff]
        %v7255 = vld [vmem:[%s757 + $0x2d0] sm:$0xff]
        %v7256 = vld [vmem:[%s757 + $0x2d8] sm:$0xff]
        %v7257 = vld [vmem:[%s757 + $0x2e0] sm:$0xff]
        %v7258 = vld [vmem:[%s757 + $0x2e8] sm:$0xff]
        %v7259 = vld [vmem:[%s757 + $0x2f0] sm:$0xff]
        %v7260 = vld [vmem:[%s757 + $0x2f8] sm:$0xff]
        %v7261 = vld [vmem:[%s761] sm:$0x3]
        %v7263 = vlaneseq
        %v7264 = vshrl.u32 %v7263, 7
        %v7265 = vsub.s32 0, %v7264
        %v7266 = vrot.slane %v7261, %v7265
        %v7267 = vlaneseq
        %v7268 = vshrl.u32 %v7267, 7
        %v7269 = vsub.s32 1, %v7268
        %v7270 = vrot.slane %v7261, %v7269
        %v7369 = vunpack.c.l.b16 %v7165
        %v7370 = vunpack.c.h.b16 %v7165
        %v7371 = vunpack.c.l.b16 %v7166
        %v7372 = vunpack.c.h.b16 %v7166
        %v7373 = vunpack.c.l.b16 %v7167
        %v7374 = vunpack.c.h.b16 %v7167
        %v7375 = vunpack.c.l.b16 %v7168
        %v7376 = vunpack.c.h.b16 %v7168
        %v7377 = vunpack.c.l.b16 %v7169
        %v7378 = vunpack.c.h.b16 %v7169
        %v7379 = vunpack.c.l.b16 %v7170
        %v7380 = vunpack.c.h.b16 %v7170
        %v7381 = vunpack.c.l.b16 %v7171
        %v7382 = vunpack.c.h.b16 %v7171
        %v7383 = vunpack.c.l.b16 %v7172
        %v7384 = vunpack.c.h.b16 %v7172
        %v7385 = vunpack.c.l.b16 %v7173
        %v7386 = vunpack.c.h.b16 %v7173
        %v7387 = vunpack.c.l.b16 %v7174
        %v7388 = vunpack.c.h.b16 %v7174
        %v7389 = vunpack.c.l.b16 %v7175
        %v7390 = vunpack.c.h.b16 %v7175
        %v7391 = vunpack.c.l.b16 %v7176
        %v7392 = vunpack.c.h.b16 %v7176
        %v7393 = vunpack.c.l.b16 %v7177
        %v7394 = vunpack.c.h.b16 %v7177
        %v7395 = vunpack.c.l.b16 %v7178
        %v7396 = vunpack.c.h.b16 %v7178
        %v7397 = vunpack.c.l.b16 %v7179
        %v7398 = vunpack.c.h.b16 %v7179
        %v7399 = vunpack.c.l.b16 %v7180
        %v7400 = vunpack.c.h.b16 %v7180
        %v7401 = vunpack.c.l.b16 %v7181
        %v7402 = vunpack.c.h.b16 %v7181
        %v7403 = vunpack.c.l.b16 %v7182
        %v7404 = vunpack.c.h.b16 %v7182
        %v7405 = vunpack.c.l.b16 %v7183
        %v7406 = vunpack.c.h.b16 %v7183
        %v7407 = vunpack.c.l.b16 %v7184
        %v7408 = vunpack.c.h.b16 %v7184
        %v7409 = vunpack.c.l.b16 %v7185
        %v7410 = vunpack.c.h.b16 %v7185
        %v7411 = vunpack.c.l.b16 %v7186
        %v7412 = vunpack.c.h.b16 %v7186
        %v7413 = vunpack.c.l.b16 %v7187
        %v7414 = vunpack.c.h.b16 %v7187
        %v7415 = vunpack.c.l.b16 %v7188
        %v7416 = vunpack.c.h.b16 %v7188
        %v7417 = vunpack.c.l.b16 %v7189
        %v7418 = vunpack.c.h.b16 %v7189
        %v7419 = vunpack.c.l.b16 %v7190
        %v7420 = vunpack.c.h.b16 %v7190
        %v7421 = vunpack.c.l.b16 %v7191
        %v7422 = vunpack.c.h.b16 %v7191
        %v7423 = vunpack.c.l.b16 %v7192
        %v7424 = vunpack.c.h.b16 %v7192
        %v7425 = vunpack.c.l.b16 %v7193
        %v7426 = vunpack.c.h.b16 %v7193
        %v7427 = vunpack.c.l.b16 %v7194
        %v7428 = vunpack.c.h.b16 %v7194
        %v7429 = vunpack.c.l.b16 %v7195
        %v7430 = vunpack.c.h.b16 %v7195
        %v7431 = vunpack.c.l.b16 %v7196
        %v7432 = vunpack.c.h.b16 %v7196
        %v7433 = vunpack.c.l.b16 %v7197
        %v7434 = vunpack.c.h.b16 %v7197
        %v7435 = vunpack.c.l.b16 %v7198
        %v7436 = vunpack.c.h.b16 %v7198
        %v7437 = vunpack.c.l.b16 %v7199
        %v7438 = vunpack.c.h.b16 %v7199
        %v7439 = vunpack.c.l.b16 %v7200
        %v7440 = vunpack.c.h.b16 %v7200
        %v7441 = vunpack.c.l.b16 %v7201
        %v7442 = vunpack.c.h.b16 %v7201
        %v7443 = vunpack.c.l.b16 %v7202
        %v7444 = vunpack.c.h.b16 %v7202
        %v7445 = vunpack.c.l.b16 %v7203
        %v7446 = vunpack.c.h.b16 %v7203
        %v7447 = vunpack.c.l.b16 %v7204
        %v7448 = vunpack.c.h.b16 %v7204
        %v7449 = vunpack.c.l.b16 %v7205
        %v7450 = vunpack.c.h.b16 %v7205
        %v7451 = vunpack.c.l.b16 %v7206
        %v7452 = vunpack.c.h.b16 %v7206
        %v7453 = vunpack.c.l.b16 %v7207
        %v7454 = vunpack.c.h.b16 %v7207
        %v7455 = vunpack.c.l.b16 %v7208
        %v7456 = vunpack.c.h.b16 %v7208
        %v7457 = vunpack.c.l.b16 %v7209
        %v7458 = vunpack.c.h.b16 %v7209
        %v7459 = vunpack.c.l.b16 %v7210
        %v7460 = vunpack.c.h.b16 %v7210
        %v7461 = vunpack.c.l.b16 %v7211
        %v7462 = vunpack.c.h.b16 %v7211
        %v7463 = vunpack.c.l.b16 %v7212
        %v7464 = vunpack.c.h.b16 %v7212
        %v7465 = vunpack.c.l.b16 %v7213
        %v7466 = vunpack.c.h.b16 %v7213
        %v7467 = vunpack.c.l.b16 %v7214
        %v7468 = vunpack.c.h.b16 %v7214
        %v7469 = vunpack.c.l.b16 %v7215
        %v7470 = vunpack.c.h.b16 %v7215
        %v7471 = vunpack.c.l.b16 %v7216
        %v7472 = vunpack.c.h.b16 %v7216
        %v7473 = vunpack.c.l.b16 %v7217
        %v7474 = vunpack.c.h.b16 %v7217
        %v7475 = vunpack.c.l.b16 %v7218
        %v7476 = vunpack.c.h.b16 %v7218
        %v7477 = vunpack.c.l.b16 %v7219
        %v7478 = vunpack.c.h.b16 %v7219
        %v7479 = vunpack.c.l.b16 %v7220
        %v7480 = vunpack.c.h.b16 %v7220
        %v7481 = vunpack.c.l.b16 %v7221
        %v7482 = vunpack.c.h.b16 %v7221
        %v7483 = vunpack.c.l.b16 %v7222
        %v7484 = vunpack.c.h.b16 %v7222
        %v7485 = vunpack.c.l.b16 %v7223
        %v7486 = vunpack.c.h.b16 %v7223
        %v7487 = vunpack.c.l.b16 %v7224
        %v7488 = vunpack.c.h.b16 %v7224
        %v7489 = vunpack.c.l.b16 %v7225
        %v7490 = vunpack.c.h.b16 %v7225
        %v7491 = vunpack.c.l.b16 %v7226
        %v7492 = vunpack.c.h.b16 %v7226
        %v7493 = vunpack.c.l.b16 %v7227
        %v7494 = vunpack.c.h.b16 %v7227
        %v7495 = vunpack.c.l.b16 %v7228
        %v7496 = vunpack.c.h.b16 %v7228
        %v7497 = vunpack.c.l.b16 %v7229
        %v7498 = vunpack.c.h.b16 %v7229
        %v7499 = vunpack.c.l.b16 %v7230
        %v7500 = vunpack.c.h.b16 %v7230
        %v7501 = vunpack.c.l.b16 %v7231
        %v7502 = vunpack.c.h.b16 %v7231
        %v7503 = vunpack.c.l.b16 %v7232
        %v7504 = vunpack.c.h.b16 %v7232
        %v7505 = vunpack.c.l.b16 %v7233
        %v7506 = vunpack.c.h.b16 %v7233
        %v7507 = vunpack.c.l.b16 %v7234
        %v7508 = vunpack.c.h.b16 %v7234
        %v7509 = vunpack.c.l.b16 %v7235
        %v7510 = vunpack.c.h.b16 %v7235
        %v7511 = vunpack.c.l.b16 %v7236
        %v7512 = vunpack.c.h.b16 %v7236
        %v7513 = vunpack.c.l.b16 %v7237
        %v7514 = vunpack.c.h.b16 %v7237
        %v7515 = vunpack.c.l.b16 %v7238
        %v7516 = vunpack.c.h.b16 %v7238
        %v7517 = vunpack.c.l.b16 %v7239
        %v7518 = vunpack.c.h.b16 %v7239
        %v7519 = vunpack.c.l.b16 %v7240
        %v7520 = vunpack.c.h.b16 %v7240
        %v7521 = vunpack.c.l.b16 %v7241
        %v7522 = vunpack.c.h.b16 %v7241
        %v7523 = vunpack.c.l.b16 %v7242
        %v7524 = vunpack.c.h.b16 %v7242
        %v7525 = vunpack.c.l.b16 %v7243
        %v7526 = vunpack.c.h.b16 %v7243
        %v7527 = vunpack.c.l.b16 %v7244
        %v7528 = vunpack.c.h.b16 %v7244
        %v7529 = vunpack.c.l.b16 %v7245
        %v7530 = vunpack.c.h.b16 %v7245
        %v7531 = vunpack.c.l.b16 %v7246
        %v7532 = vunpack.c.h.b16 %v7246
        %v7533 = vunpack.c.l.b16 %v7247
        %v7534 = vunpack.c.h.b16 %v7247
        %v7535 = vunpack.c.l.b16 %v7248
        %v7536 = vunpack.c.h.b16 %v7248
        %v7537 = vunpack.c.l.b16 %v7249
        %v7538 = vunpack.c.h.b16 %v7249
        %v7539 = vunpack.c.l.b16 %v7250
        %v7540 = vunpack.c.h.b16 %v7250
        %v7541 = vunpack.c.l.b16 %v7251
        %v7542 = vunpack.c.h.b16 %v7251
        %v7543 = vunpack.c.l.b16 %v7252
        %v7544 = vunpack.c.h.b16 %v7252
        %v7545 = vunpack.c.l.b16 %v7253
        %v7546 = vunpack.c.h.b16 %v7253
        %v7547 = vunpack.c.l.b16 %v7254
        %v7548 = vunpack.c.h.b16 %v7254
        %v7549 = vunpack.c.l.b16 %v7255
        %v7550 = vunpack.c.h.b16 %v7255
        %v7551 = vunpack.c.l.b16 %v7256
        %v7552 = vunpack.c.h.b16 %v7256
        %v7553 = vunpack.c.l.b16 %v7257
        %v7554 = vunpack.c.h.b16 %v7257
        %v7555 = vunpack.c.l.b16 %v7258
        %v7556 = vunpack.c.h.b16 %v7258
        %v7557 = vunpack.c.l.b16 %v7259
        %v7558 = vunpack.c.h.b16 %v7259
        %v7559 = vunpack.c.l.b16 %v7260
        %v7560 = vunpack.c.h.b16 %v7260
        %v7561 = vpack.c.b16 %v7371, %v7369
        %v7562 = vpack.c.b16 %v7372, %v7370
        %v7563 = vpack.c.b16 %v7375, %v7373
        %v7564 = vpack.c.b16 %v7376, %v7374
        %v7565 = vpack.c.b16 %v7379, %v7377
        %v7566 = vpack.c.b16 %v7380, %v7378
        %v7567 = vpack.c.b16 %v7383, %v7381
        %v7568 = vpack.c.b16 %v7384, %v7382
        %v7569 = vpack.c.b16 %v7387, %v7385
        %v7570 = vpack.c.b16 %v7388, %v7386
        %v7571 = vpack.c.b16 %v7391, %v7389
        %v7572 = vpack.c.b16 %v7392, %v7390
        %v7573 = vpack.c.b16 %v7395, %v7393
        %v7574 = vpack.c.b16 %v7396, %v7394
        %v7575 = vpack.c.b16 %v7399, %v7397
        %v7576 = vpack.c.b16 %v7400, %v7398
        %v7577 = vpack.c.b16 %v7403, %v7401
        %v7578 = vpack.c.b16 %v7404, %v7402
        %v7579 = vpack.c.b16 %v7407, %v7405
        %v7580 = vpack.c.b16 %v7408, %v7406
        %v7581 = vpack.c.b16 %v7411, %v7409
        %v7582 = vpack.c.b16 %v7412, %v7410
        %v7583 = vpack.c.b16 %v7415, %v7413
        %v7584 = vpack.c.b16 %v7416, %v7414
        %v7585 = vpack.c.b16 %v7419, %v7417
        %v7586 = vpack.c.b16 %v7420, %v7418
        %v7587 = vpack.c.b16 %v7423, %v7421
        %v7588 = vpack.c.b16 %v7424, %v7422
        %v7589 = vpack.c.b16 %v7427, %v7425
        %v7590 = vpack.c.b16 %v7428, %v7426
        %v7591 = vpack.c.b16 %v7431, %v7429
        %v7592 = vpack.c.b16 %v7432, %v7430
        %v7593 = vpack.c.b16 %v7435, %v7433
        %v7594 = vpack.c.b16 %v7436, %v7434
        %v7595 = vpack.c.b16 %v7439, %v7437
        %v7596 = vpack.c.b16 %v7440, %v7438
        %v7597 = vpack.c.b16 %v7443, %v7441
        %v7598 = vpack.c.b16 %v7444, %v7442
        %v7599 = vpack.c.b16 %v7447, %v7445
        %v7600 = vpack.c.b16 %v7448, %v7446
        %v7601 = vpack.c.b16 %v7451, %v7449
        %v7602 = vpack.c.b16 %v7452, %v7450
        %v7603 = vpack.c.b16 %v7455, %v7453
        %v7604 = vpack.c.b16 %v7456, %v7454
        %v7605 = vpack.c.b16 %v7459, %v7457
        %v7606 = vpack.c.b16 %v7460, %v7458
        %v7607 = vpack.c.b16 %v7463, %v7461
        %v7608 = vpack.c.b16 %v7464, %v7462
        %v7609 = vpack.c.b16 %v7467, %v7465
        %v7610 = vpack.c.b16 %v7468, %v7466
        %v7611 = vpack.c.b16 %v7471, %v7469
        %v7612 = vpack.c.b16 %v7472, %v7470
        %v7613 = vpack.c.b16 %v7475, %v7473
        %v7614 = vpack.c.b16 %v7476, %v7474
        %v7615 = vpack.c.b16 %v7479, %v7477
        %v7616 = vpack.c.b16 %v7480, %v7478
        %v7617 = vpack.c.b16 %v7483, %v7481
        %v7618 = vpack.c.b16 %v7484, %v7482
        %v7619 = vpack.c.b16 %v7487, %v7485
        %v7620 = vpack.c.b16 %v7488, %v7486
        %v7621 = vpack.c.b16 %v7491, %v7489
        %v7622 = vpack.c.b16 %v7492, %v7490
        %v7623 = vpack.c.b16 %v7495, %v7493
        %v7624 = vpack.c.b16 %v7496, %v7494
        %v7625 = vpack.c.b16 %v7499, %v7497
        %v7626 = vpack.c.b16 %v7500, %v7498
        %v7627 = vpack.c.b16 %v7503, %v7501
        %v7628 = vpack.c.b16 %v7504, %v7502
        %v7629 = vpack.c.b16 %v7507, %v7505
        %v7630 = vpack.c.b16 %v7508, %v7506
        %v7631 = vpack.c.b16 %v7511, %v7509
        %v7632 = vpack.c.b16 %v7512, %v7510
        %v7633 = vpack.c.b16 %v7515, %v7513
        %v7634 = vpack.c.b16 %v7516, %v7514
        %v7635 = vpack.c.b16 %v7519, %v7517
        %v7636 = vpack.c.b16 %v7520, %v7518
        %v7637 = vpack.c.b16 %v7523, %v7521
        %v7638 = vpack.c.b16 %v7524, %v7522
        %v7639 = vpack.c.b16 %v7527, %v7525
        %v7640 = vpack.c.b16 %v7528, %v7526
        %v7641 = vpack.c.b16 %v7531, %v7529
        %v7642 = vpack.c.b16 %v7532, %v7530
        %v7643 = vpack.c.b16 %v7535, %v7533
        %v7644 = vpack.c.b16 %v7536, %v7534
        %v7645 = vpack.c.b16 %v7539, %v7537
        %v7646 = vpack.c.b16 %v7540, %v7538
        %v7647 = vpack.c.b16 %v7543, %v7541
        %v7648 = vpack.c.b16 %v7544, %v7542
        %v7649 = vpack.c.b16 %v7547, %v7545
        %v7650 = vpack.c.b16 %v7548, %v7546
        %v7651 = vpack.c.b16 %v7551, %v7549
        %v7652 = vpack.c.b16 %v7552, %v7550
        %v7653 = vpack.c.b16 %v7555, %v7553
        %v7654 = vpack.c.b16 %v7556, %v7554
        %v7655 = vpack.c.b16 %v7559, %v7557
        %v7656 = vpack.c.b16 %v7560, %v7558
        %7753 = vmatprep.subr.bf16.mxu0 %v7576
        %7754 = vmatpush1.bf16.msra.mxu0 %v7575
        %7755 = vmatprep.subr.bf16.mxu0 %v7574
        %7756 = vmatpush1.bf16.msra.mxu0 %v7573
        %7757 = vmatprep.subr.bf16.mxu0 %v7572
        %7758 = vmatpush1.bf16.msra.mxu0 %v7571
        %7759 = vmatprep.subr.bf16.mxu0 %v7570
        %7760 = vmatpush1.bf16.msra.mxu0 %v7569
        %7761 = vmatprep.subr.bf16.mxu0 %v7568
        %7762 = vmatpush1.bf16.msra.mxu0 %v7567
        %7763 = vmatprep.subr.bf16.mxu0 %v7566
        %7764 = vmatpush1.bf16.msra.mxu0 %v7565
        %7765 = vmatprep.subr.bf16.mxu0 %v7564
        %7766 = vmatpush1.bf16.msra.mxu0 %v7563
        %7767 = vmatprep.subr.bf16.mxu0 %v7562
        %7768 = vmatpush1.bf16.msra.mxu0 %v7561
        %7769 = vmatprep.subr.bf16.mxu0 %v7592
        %7770 = vmatpush2.bf16.msra.mxu0 %v7591
        %7771 = vmatprep.subr.bf16.mxu0 %v7590
        %7772 = vmatpush2.bf16.msra.mxu0 %v7589
        %7773 = vmatprep.subr.bf16.mxu0 %v7588
        %7774 = vmatpush2.bf16.msra.mxu0 %v7587
        %7775 = vmatprep.subr.bf16.mxu0 %v7586
        %7776 = vmatpush2.bf16.msra.mxu0 %v7585
        %7777 = vmatprep.subr.bf16.mxu0 %v7584
        %7778 = vmatpush2.bf16.msra.mxu0 %v7583
        %7779 = vmatprep.subr.bf16.mxu0 %v7582
        %7780 = vmatpush2.bf16.msra.mxu0 %v7581
        %7781 = vmatprep.subr.bf16.mxu0 %v7580
        %7782 = vmatpush2.bf16.msra.mxu0 %v7579
        %7783 = vmatprep.subr.bf16.mxu0 %v7578
        %7784 = vmatpush2.bf16.msra.mxu0 %v7577
        %7785 = vmatprep.mubr.bf16.mxu0 %v7118
        %7786 = vmatmul.mubr.bf16.gmra.mxu0 %v7117
        %v7787 = vpop.f32.mrf.mxu0
        %v7788 = vadd.f32 %v7266, %v7787
        %v7789 = vpop.f32.mrf.mxu0
        %v7790 = vadd.f32 %v7270, %v7789
        %v7791 = vpop.f32.mrf.mxu0
        %v7792 = vadd.f32 %v7266, %v7791
        %v7793 = vpop.f32.mrf.mxu0
        %v7794 = vadd.f32 %v7270, %v7793
        %7795 = vmatprep.mubr.bf16.mxu0 %v7124
        %7796 = vmatmul.mubr.bf16.gmra.mxu0 %v7123
        %v7797 = vpop.f32.mrf.mxu0
        %v7798 = vadd.f32 %v7266, %v7797
        %v7799 = vpop.f32.mrf.mxu0
        %v7800 = vadd.f32 %v7270, %v7799
        %v7801 = vpop.f32.mrf.mxu0
        %v7802 = vadd.f32 %v7266, %v7801
        %v7803 = vpop.f32.mrf.mxu0
        %v7804 = vadd.f32 %v7270, %v7803
        %7805 = vmatprep.mubr.bf16.mxu0 %v7130
        %7806 = vmatmul.mubr.bf16.gmra.mxu0 %v7129
        %v7807 = vpop.f32.mrf.mxu0
        %v7808 = vadd.f32 %v7266, %v7807
        %v7809 = vpop.f32.mrf.mxu0
        %v7810 = vadd.f32 %v7270, %v7809
        %v7811 = vpop.f32.mrf.mxu0
        %v7812 = vadd.f32 %v7266, %v7811
        %v7813 = vpop.f32.mrf.mxu0
        %v7814 = vadd.f32 %v7270, %v7813
        %7815 = vmatprep.mubr.bf16.mxu0 %v7136
        %7816 = vmatmul.mubr.bf16.gmra.mxu0 %v7135
        %v7817 = vpop.f32.mrf.mxu0
        %v7818 = vadd.f32 %v7266, %v7817
        %v7819 = vpop.f32.mrf.mxu0
        %v7820 = vadd.f32 %v7270, %v7819
        %v7821 = vpop.f32.mrf.mxu0
        %v7822 = vadd.f32 %v7266, %v7821
        %v7823 = vpop.f32.mrf.mxu0
        %v7824 = vadd.f32 %v7270, %v7823
        %7825 = vmatprep.mubr.bf16.mxu0 %v7142
        %7826 = vmatmul.mubr.bf16.gmra.mxu0 %v7141
        %v7827 = vpop.f32.mrf.mxu0
        %v7828 = vadd.f32 %v7266, %v7827
        %v7829 = vpop.f32.mrf.mxu0
        %v7830 = vadd.f32 %v7270, %v7829
        %v7831 = vpop.f32.mrf.mxu0
        %v7832 = vadd.f32 %v7266, %v7831
        %v7833 = vpop.f32.mrf.mxu0
        %v7834 = vadd.f32 %v7270, %v7833
        %7835 = vmatprep.mubr.bf16.mxu0 %v7148
        %7836 = vmatmul.mubr.bf16.gmra.mxu0 %v7147
        %v7837 = vpop.f32.mrf.mxu0
        %v7838 = vadd.f32 %v7266, %v7837
        %v7839 = vpop.f32.mrf.mxu0
        %v7840 = vadd.f32 %v7270, %v7839
        %v7841 = vpop.f32.mrf.mxu0
        %v7842 = vadd.f32 %v7266, %v7841
        %v7843 = vpop.f32.mrf.mxu0
        %v7844 = vadd.f32 %v7270, %v7843
        %7845 = vmatprep.mubr.bf16.mxu0 %v7154
        %7846 = vmatmul.mubr.bf16.gmra.mxu0 %v7153
        %v7847 = vpop.f32.mrf.mxu0
        %v7848 = vadd.f32 %v7266, %v7847
        %v7849 = vpop.f32.mrf.mxu0
        %v7850 = vadd.f32 %v7270, %v7849
        %v7851 = vpop.f32.mrf.mxu0
        %v7852 = vadd.f32 %v7266, %v7851
        %v7853 = vpop.f32.mrf.mxu0
        %v7854 = vadd.f32 %v7270, %v7853
        %7855 = vmatprep.mubr.bf16.mxu0 %v7160
        %7856 = vmatmul.mubr.bf16.gmra.mxu0 %v7159
        %v7857 = vpop.f32.mrf.mxu0
        %v7858 = vadd.f32 %v7266, %v7857
        %v7859 = vpop.f32.mrf.mxu0
        %v7860 = vadd.f32 %v7270, %v7859
        %v7861 = vpop.f32.mrf.mxu0
        %v7862 = vadd.f32 %v7266, %v7861
        %v7863 = vpop.f32.mrf.mxu0
        %v7864 = vadd.f32 %v7270, %v7863
        %7865 = vdwg.mxu0
        %7866 = vmatprep.subr.bf16.mxu0 %v7608
        %7867 = vmatpush1.bf16.msra.mxu0 %v7607
        %7868 = vmatprep.subr.bf16.mxu0 %v7606
        %7869 = vmatpush1.bf16.msra.mxu0 %v7605
        %7870 = vmatprep.subr.bf16.mxu0 %v7604
        %7871 = vmatpush1.bf16.msra.mxu0 %v7603
        %7872 = vmatprep.subr.bf16.mxu0 %v7602
        %7873 = vmatpush1.bf16.msra.mxu0 %v7601
        %7874 = vmatprep.subr.bf16.mxu0 %v7600
        %7875 = vmatpush1.bf16.msra.mxu0 %v7599
        %7876 = vmatprep.subr.bf16.mxu0 %v7598
        %7877 = vmatpush1.bf16.msra.mxu0 %v7597
        %7878 = vmatprep.subr.bf16.mxu0 %v7596
        %7879 = vmatpush1.bf16.msra.mxu0 %v7595
        %7880 = vmatprep.subr.bf16.mxu0 %v7594
        %7881 = vmatpush1.bf16.msra.mxu0 %v7593
        %7882 = vmatprep.subr.bf16.mxu0 %v7624
        %7883 = vmatpush2.bf16.msra.mxu0 %v7623
        %7884 = vmatprep.subr.bf16.mxu0 %v7622
        %7885 = vmatpush2.bf16.msra.mxu0 %v7621
        %7886 = vmatprep.subr.bf16.mxu0 %v7620
        %7887 = vmatpush2.bf16.msra.mxu0 %v7619
        %7888 = vmatprep.subr.bf16.mxu0 %v7618
        %7889 = vmatpush2.bf16.msra.mxu0 %v7617
        %7890 = vmatprep.subr.bf16.mxu0 %v7616
        %7891 = vmatpush2.bf16.msra.mxu0 %v7615
        %7892 = vmatprep.subr.bf16.mxu0 %v7614
        %7893 = vmatpush2.bf16.msra.mxu0 %v7613
        %7894 = vmatprep.subr.bf16.mxu0 %v7612
        %7895 = vmatpush2.bf16.msra.mxu0 %v7611
        %7896 = vmatprep.subr.bf16.mxu0 %v7610
        %7897 = vmatpush2.bf16.msra.mxu0 %v7609
        %7898 = vmatprep.mubr.bf16.mxu0 %v7120
        %7899 = vmatmul.mubr.bf16.gmra.mxu0 %v7119
        %v7900 = vpop.f32.mrf.mxu0
        %v7901 = vadd.f32 %v7788, %v7900
        %v7902 = vpop.f32.mrf.mxu0
        %v7903 = vadd.f32 %v7790, %v7902
        %v7904 = vpop.f32.mrf.mxu0
        %v7905 = vadd.f32 %v7792, %v7904
        %v7906 = vpop.f32.mrf.mxu0
        %v7907 = vadd.f32 %v7794, %v7906
        %7908 = vmatprep.mubr.bf16.mxu0 %v7126
        %7909 = vmatmul.mubr.bf16.gmra.mxu0 %v7125
        %v7910 = vpop.f32.mrf.mxu0
        %v7911 = vadd.f32 %v7798, %v7910
        %v7912 = vpop.f32.mrf.mxu0
        %v7913 = vadd.f32 %v7800, %v7912
        %v7914 = vpop.f32.mrf.mxu0
        %v7915 = vadd.f32 %v7802, %v7914
        %v7916 = vpop.f32.mrf.mxu0
        %v7917 = vadd.f32 %v7804, %v7916
        %7918 = vmatprep.mubr.bf16.mxu0 %v7132
        %7919 = vmatmul.mubr.bf16.gmra.mxu0 %v7131
        %v7920 = vpop.f32.mrf.mxu0
        %v7921 = vadd.f32 %v7808, %v7920
        %v7922 = vpop.f32.mrf.mxu0
        %v7923 = vadd.f32 %v7810, %v7922
        %v7924 = vpop.f32.mrf.mxu0
        %v7925 = vadd.f32 %v7812, %v7924
        %v7926 = vpop.f32.mrf.mxu0
        %v7927 = vadd.f32 %v7814, %v7926
        %7928 = vmatprep.mubr.bf16.mxu0 %v7138
        %7929 = vmatmul.mubr.bf16.gmra.mxu0 %v7137
        %v7930 = vpop.f32.mrf.mxu0
        %v7931 = vadd.f32 %v7818, %v7930
        %v7932 = vpop.f32.mrf.mxu0
        %v7933 = vadd.f32 %v7820, %v7932
        %v7934 = vpop.f32.mrf.mxu0
        %v7935 = vadd.f32 %v7822, %v7934
        %v7936 = vpop.f32.mrf.mxu0
        %v7937 = vadd.f32 %v7824, %v7936
        %7938 = vmatprep.mubr.bf16.mxu0 %v7144
        %7939 = vmatmul.mubr.bf16.gmra.mxu0 %v7143
        %v7940 = vpop.f32.mrf.mxu0
        %v7941 = vadd.f32 %v7828, %v7940
        %v7942 = vpop.f32.mrf.mxu0
        %v7943 = vadd.f32 %v7830, %v7942
        %v7944 = vpop.f32.mrf.mxu0
        %v7945 = vadd.f32 %v7832, %v7944
        %v7946 = vpop.f32.mrf.mxu0
        %v7947 = vadd.f32 %v7834, %v7946
        %7948 = vmatprep.mubr.bf16.mxu0 %v7150
        %7949 = vmatmul.mubr.bf16.gmra.mxu0 %v7149
        %v7950 = vpop.f32.mrf.mxu0
        %v7951 = vadd.f32 %v7838, %v7950
        %v7952 = vpop.f32.mrf.mxu0
        %v7953 = vadd.f32 %v7840, %v7952
        %v7954 = vpop.f32.mrf.mxu0
        %v7955 = vadd.f32 %v7842, %v7954
        %v7956 = vpop.f32.mrf.mxu0
        %v7957 = vadd.f32 %v7844, %v7956
        %7958 = vmatprep.mubr.bf16.mxu0 %v7156
        %7959 = vmatmul.mubr.bf16.gmra.mxu0 %v7155
        %v7960 = vpop.f32.mrf.mxu0
        %v7961 = vadd.f32 %v7848, %v7960
        %v7962 = vpop.f32.mrf.mxu0
        %v7963 = vadd.f32 %v7850, %v7962
        %v7964 = vpop.f32.mrf.mxu0
        %v7965 = vadd.f32 %v7852, %v7964
        %v7966 = vpop.f32.mrf.mxu0
        %v7967 = vadd.f32 %v7854, %v7966
        %7968 = vmatprep.mubr.bf16.mxu0 %v7162
        %7969 = vmatmul.mubr.bf16.gmra.mxu0 %v7161
        %v7970 = vpop.f32.mrf.mxu0
        %v7971 = vadd.f32 %v7858, %v7970
        %v7972 = vpop.f32.mrf.mxu0
        %v7973 = vadd.f32 %v7860, %v7972
        %v7974 = vpop.f32.mrf.mxu0
        %v7975 = vadd.f32 %v7862, %v7974
        %v7976 = vpop.f32.mrf.mxu0
        %v7977 = vadd.f32 %v7864, %v7976
        %7978 = vdwg.mxu0
        %7979 = vmatprep.subr.bf16.mxu0 %v7640
        %7980 = vmatpush1.bf16.msra.mxu0 %v7639
        %7981 = vmatprep.subr.bf16.mxu0 %v7638
        %7982 = vmatpush1.bf16.msra.mxu0 %v7637
        %7983 = vmatprep.subr.bf16.mxu0 %v7636
        %7984 = vmatpush1.bf16.msra.mxu0 %v7635
        %7985 = vmatprep.subr.bf16.mxu0 %v7634
        %7986 = vmatpush1.bf16.msra.mxu0 %v7633
        %7987 = vmatprep.subr.bf16.mxu0 %v7632
        %7988 = vmatpush1.bf16.msra.mxu0 %v7631
        %7989 = vmatprep.subr.bf16.mxu0 %v7630
        %7990 = vmatpush1.bf16.msra.mxu0 %v7629
        %7991 = vmatprep.subr.bf16.mxu0 %v7628
        %7992 = vmatpush1.bf16.msra.mxu0 %v7627
        %7993 = vmatprep.subr.bf16.mxu0 %v7626
        %7994 = vmatpush1.bf16.msra.mxu0 %v7625
        %7995 = vmatprep.subr.bf16.mxu0 %v7656
        %7996 = vmatpush2.bf16.msra.mxu0 %v7655
        %7997 = vmatprep.subr.bf16.mxu0 %v7654
        %7998 = vmatpush2.bf16.msra.mxu0 %v7653
        %7999 = vmatprep.subr.bf16.mxu0 %v7652
        %8000 = vmatpush2.bf16.msra.mxu0 %v7651
        %8001 = vmatprep.subr.bf16.mxu0 %v7650
        %8002 = vmatpush2.bf16.msra.mxu0 %v7649
        %8003 = vmatprep.subr.bf16.mxu0 %v7648
        %8004 = vmatpush2.bf16.msra.mxu0 %v7647
        %8005 = vmatprep.subr.bf16.mxu0 %v7646
        %8006 = vmatpush2.bf16.msra.mxu0 %v7645
        %8007 = vmatprep.subr.bf16.mxu0 %v7644
        %8008 = vmatpush2.bf16.msra.mxu0 %v7643
        %8009 = vmatprep.subr.bf16.mxu0 %v7642
        %8010 = vmatpush2.bf16.msra.mxu0 %v7641
        %8011 = vmatprep.mubr.bf16.mxu0 %v7122
        %8012 = vmatmul.mubr.bf16.gmra.mxu0 %v7121
        %v8013 = vpop.f32.mrf.mxu0
        %v8014 = vadd.f32 %v7901, %v8013
        %v8015 = vpop.f32.mrf.mxu0
        %v8016 = vadd.f32 %v7903, %v8015
        %v8017 = vpop.f32.mrf.mxu0
        %v8018 = vadd.f32 %v7905, %v8017
        %v8019 = vpop.f32.mrf.mxu0
        %v8020 = vadd.f32 %v7907, %v8019
        %8021 = vmatprep.mubr.bf16.mxu0 %v7128
        %8022 = vmatmul.mubr.bf16.gmra.mxu0 %v7127
        %v8023 = vpop.f32.mrf.mxu0
        %v8024 = vadd.f32 %v7911, %v8023
        %v8025 = vpop.f32.mrf.mxu0
        %v8026 = vadd.f32 %v7913, %v8025
        %v8027 = vpop.f32.mrf.mxu0
        %v8028 = vadd.f32 %v7915, %v8027
        %v8029 = vpop.f32.mrf.mxu0
        %v8030 = vadd.f32 %v7917, %v8029
        %8031 = vmatprep.mubr.bf16.mxu0 %v7134
        %8032 = vmatmul.mubr.bf16.gmra.mxu0 %v7133
        %v8033 = vpop.f32.mrf.mxu0
        %v8034 = vadd.f32 %v7921, %v8033
        %v8035 = vpop.f32.mrf.mxu0
        %v8036 = vadd.f32 %v7923, %v8035
        %v8037 = vpop.f32.mrf.mxu0
        %v8038 = vadd.f32 %v7925, %v8037
        %v8039 = vpop.f32.mrf.mxu0
        %v8040 = vadd.f32 %v7927, %v8039
        %8041 = vmatprep.mubr.bf16.mxu0 %v7140
        %8042 = vmatmul.mubr.bf16.gmra.mxu0 %v7139
        %v8043 = vpop.f32.mrf.mxu0
        %v8044 = vadd.f32 %v7931, %v8043
        %v8045 = vpop.f32.mrf.mxu0
        %v8046 = vadd.f32 %v7933, %v8045
        %v8047 = vpop.f32.mrf.mxu0
        %v8048 = vadd.f32 %v7935, %v8047
        %v8049 = vpop.f32.mrf.mxu0
        %v8050 = vadd.f32 %v7937, %v8049
        %8051 = vmatprep.mubr.bf16.mxu0 %v7146
        %8052 = vmatmul.mubr.bf16.gmra.mxu0 %v7145
        %v8053 = vpop.f32.mrf.mxu0
        %v8054 = vadd.f32 %v7941, %v8053
        %v8055 = vpop.f32.mrf.mxu0
        %v8056 = vadd.f32 %v7943, %v8055
        %v8057 = vpop.f32.mrf.mxu0
        %v8058 = vadd.f32 %v7945, %v8057
        %v8059 = vpop.f32.mrf.mxu0
        %v8060 = vadd.f32 %v7947, %v8059
        %8061 = vmatprep.mubr.bf16.mxu0 %v7152
        %8062 = vmatmul.mubr.bf16.gmra.mxu0 %v7151
        %v8063 = vpop.f32.mrf.mxu0
        %v8064 = vadd.f32 %v7951, %v8063
        %v8065 = vpop.f32.mrf.mxu0
        %v8066 = vadd.f32 %v7953, %v8065
        %v8067 = vpop.f32.mrf.mxu0
        %v8068 = vadd.f32 %v7955, %v8067
        %v8069 = vpop.f32.mrf.mxu0
        %v8070 = vadd.f32 %v7957, %v8069
        %8071 = vmatprep.mubr.bf16.mxu0 %v7158
        %8072 = vmatmul.mubr.bf16.gmra.mxu0 %v7157
        %v8073 = vpop.f32.mrf.mxu0
        %v8074 = vadd.f32 %v7961, %v8073
        %v8075 = vpop.f32.mrf.mxu0
        %v8076 = vadd.f32 %v7963, %v8075
        %v8077 = vpop.f32.mrf.mxu0
        %v8078 = vadd.f32 %v7965, %v8077
        %v8079 = vpop.f32.mrf.mxu0
        %v8080 = vadd.f32 %v7967, %v8079
        %8081 = vmatprep.mubr.bf16.mxu0 %v7164
        %8082 = vmatmul.mubr.bf16.gmra.mxu0 %v7163
        %v8083 = vpop.f32.mrf.mxu0
        %v8084 = vadd.f32 %v7971, %v8083
        %v8085 = vpop.f32.mrf.mxu0
        %v8086 = vadd.f32 %v7973, %v8085
        %v8087 = vpop.f32.mrf.mxu0
        %v8088 = vadd.f32 %v7975, %v8087
        %v8089 = vpop.f32.mrf.mxu0
        %v8090 = vadd.f32 %v7977, %v8089
        %8091 = vdwg.mxu0
        %v8092 = vadd.f32 %v5386, %v8014
        %v8093 = vadd.f32 %v5387, %v8016
        %v8094 = vadd.f32 %v5388, %v8018
        %v8095 = vadd.f32 %v5389, %v8020
        %v8096 = vadd.f32 %v5390, %v8024
        %v8097 = vadd.f32 %v5391, %v8026
        %v8098 = vadd.f32 %v5392, %v8028
        %v8099 = vadd.f32 %v5393, %v8030
        %v8100 = vadd.f32 %v5394, %v8034
        %v8101 = vadd.f32 %v5395, %v8036
        %v8102 = vadd.f32 %v5396, %v8038
        %v8103 = vadd.f32 %v5397, %v8040
        %v8104 = vadd.f32 %v5398, %v8044
        %v8105 = vadd.f32 %v5399, %v8046
        %v8106 = vadd.f32 %v5400, %v8048
        %v8107 = vadd.f32 %v5401, %v8050
        %v8108 = vadd.f32 %v5402, %v8054
        %v8109 = vadd.f32 %v5403, %v8056
        %v8110 = vadd.f32 %v5404, %v8058
        %v8111 = vadd.f32 %v5405, %v8060
        %v8112 = vadd.f32 %v5406, %v8064
        %v8113 = vadd.f32 %v5407, %v8066
        %v8114 = vadd.f32 %v5408, %v8068
        %v8115 = vadd.f32 %v5409, %v8070
        %v8116 = vadd.f32 %v5410, %v8074
        %v8117 = vadd.f32 %v5411, %v8076
        %v8118 = vadd.f32 %v5412, %v8078
        %v8119 = vadd.f32 %v5413, %v8080
        %v8120 = vadd.f32 %v5414, %v8084
        %v8121 = vadd.f32 %v5415, %v8086
        %v8122 = vadd.f32 %v5416, %v8088
        %v8123 = vadd.f32 %v5417, %v8090
        %8124 = vst [vmem:[#allocation2] sm:$0xff] %v8092
        %8125 = vst.msk [vmem:[#allocation2 + $0x8] sm:$0xff] %vm867, %v8093
        %8126 = vst [vmem:[#allocation2 + $0x10] sm:$0xff] %v8094
        %8127 = vst.msk [vmem:[#allocation2 + $0x18] sm:$0xff] %vm867, %v8095
        %8128 = vst [vmem:[#allocation2 + $0x20] sm:$0xff] %v8096
        %8129 = vst.msk [vmem:[#allocation2 + $0x28] sm:$0xff] %vm867, %v8097
        %8130 = vst [vmem:[#allocation2 + $0x30] sm:$0xff] %v8098
        %8131 = vst.msk [vmem:[#allocation2 + $0x38] sm:$0xff] %vm867, %v8099
        %8132 = vst [vmem:[#allocation2 + $0x40] sm:$0xff] %v8100
        %8133 = vst.msk [vmem:[#allocation2 + $0x48] sm:$0xff] %vm867, %v8101
        %8134 = vst [vmem:[#allocation2 + $0x50] sm:$0xff] %v8102
        %8135 = vst.msk [vmem:[#allocation2 + $0x58] sm:$0xff] %vm867, %v8103
        %8136 = vst [vmem:[#allocation2 + $0x60] sm:$0xff] %v8104
        %8137 = vst.msk [vmem:[#allocation2 + $0x68] sm:$0xff] %vm867, %v8105
        %8138 = vst [vmem:[#allocation2 + $0x70] sm:$0xff] %v8106
        %8139 = vst.msk [vmem:[#allocation2 + $0x78] sm:$0xff] %vm867, %v8107
        %8140 = vst [vmem:[#allocation2 + $0x80] sm:$0xff] %v8108
        %8141 = vst.msk [vmem:[#allocation2 + $0x88] sm:$0xff] %vm867, %v8109
        %8142 = vst [vmem:[#allocation2 + $0x90] sm:$0xff] %v8110
        %8143 = vst.msk [vmem:[#allocation2 + $0x98] sm:$0xff] %vm867, %v8111
        %8144 = vst [vmem:[#allocation2 + $0xa0] sm:$0xff] %v8112
        %8145 = vst.msk [vmem:[#allocation2 + $0xa8] sm:$0xff] %vm867, %v8113
        %8146 = vst [vmem:[#allocation2 + $0xb0] sm:$0xff] %v8114
        %8147 = vst.msk [vmem:[#allocation2 + $0xb8] sm:$0xff] %vm867, %v8115
        %8148 = vst [vmem:[#allocation2 + $0xc0] sm:$0xff] %v8116
        %8149 = vst.msk [vmem:[#allocation2 + $0xc8] sm:$0xff] %vm867, %v8117
        %8150 = vst [vmem:[#allocation2 + $0xd0] sm:$0xff] %v8118
        %8151 = vst.msk [vmem:[#allocation2 + $0xd8] sm:$0xff] %vm867, %v8119
        %8152 = vst [vmem:[#allocation2 + $0xe0] sm:$0xff] %v8120
        %8153 = vst.msk [vmem:[#allocation2 + $0xe8] sm:$0xff] %vm867, %v8121
        %8154 = vst [vmem:[#allocation2 + $0xf0] sm:$0xff] %v8122
        %8155 = vst.msk [vmem:[#allocation2 + $0xf8] sm:$0xff] %vm867, %v8123
        %p8156 = scmp.eq.s32.totalorder %s35, 11
        // Predicated region
        $region89: #{tpu_custom_call.1} parent=83 // pred_check
          %p8157 = pneg %p8156
        $region90: #{tpu_custom_call.1} parent=83 // pred_check_branch
          %8159 = sbr.rel (%p8157) target = $region92
        $region91: #{tpu_custom_call.1} parent=83 // pred_region
          %v8160 = vpack.c.bf16 %v8094, %v8092
          %v8161 = vpack.c.bf16 %v8095, %v8093
          %v8162 = vpack.c.bf16 %v8098, %v8096
          %v8163 = vpack.c.bf16 %v8099, %v8097
          %v8164 = vpack.c.bf16 %v8102, %v8100
          %v8165 = vpack.c.bf16 %v8103, %v8101
          %v8166 = vpack.c.bf16 %v8106, %v8104
          %v8167 = vpack.c.bf16 %v8107, %v8105
          %v8168 = vpack.c.bf16 %v8110, %v8108
          %v8169 = vpack.c.bf16 %v8111, %v8109
          %v8170 = vpack.c.bf16 %v8114, %v8112
          %v8171 = vpack.c.bf16 %v8115, %v8113
          %v8172 = vpack.c.bf16 %v8118, %v8116
          %v8173 = vpack.c.bf16 %v8119, %v8117
          %v8174 = vpack.c.bf16 %v8122, %v8120
          %v8175 = vpack.c.bf16 %v8123, %v8121
          %v8176 = vld [vmem:[%s14] sm:$0xf]
          %v8177 = vld [vmem:[%s14 + $0x4] sm:$0xf]
          %v8178 = vld [vmem:[%s14 + $0x8] sm:$0xf]
          %v8179 = vld [vmem:[%s14 + $0xc] sm:$0xf]
          %v8180 = vld [vmem:[%s14 + $0x10] sm:$0xf]
          %v8181 = vld [vmem:[%s14 + $0x14] sm:$0xf]
          %v8182 = vld [vmem:[%s14 + $0x18] sm:$0xf]
          %v8183 = vld [vmem:[%s14 + $0x1c] sm:$0xf]
          %v8184 = vld [vmem:[%s14 + $0x20] sm:$0xf]
          %v8185 = vld [vmem:[%s14 + $0x24] sm:$0xf]
          %v8186 = vld [vmem:[%s14 + $0x28] sm:$0xf]
          %v8187 = vld [vmem:[%s14 + $0x2c] sm:$0xf]
          %v8188 = vld [vmem:[%s14 + $0x30] sm:$0xf]
          %v8189 = vld [vmem:[%s14 + $0x34] sm:$0xf]
          %v8190 = vld [vmem:[%s14 + $0x38] sm:$0xf]
          %v8191 = vld [vmem:[%s14 + $0x3c] sm:$0xf]
          %v8192 = vld [vmem:[%s14 + $0x40] sm:$0xf]
          %v8193 = vld [vmem:[%s14 + $0x44] sm:$0xf]
          %v8194 = vld [vmem:[%s14 + $0x48] sm:$0xf]
          %v8195 = vld [vmem:[%s14 + $0x4c] sm:$0xf]
          %v8196 = vld [vmem:[%s14 + $0x50] sm:$0xf]
          %v8197 = vld [vmem:[%s14 + $0x54] sm:$0xf]
          %v8198 = vld [vmem:[%s14 + $0x58] sm:$0xf]
          %v8199 = vld [vmem:[%s14 + $0x5c] sm:$0xf]
          %v8200 = vld [vmem:[%s15] sm:$0x1]
          %v8202 = vlaneseq
          %v8203 = vshrl.u32 %v8202, 7
          %v8204 = vsub.s32 0, %v8203
          %v8205 = vrot.slane %v8200, %v8204
          %v8231 = vunpack.c.l.b16 %v8176
          %v8232 = vunpack.c.l.b16 %v8177
          %v8233 = vunpack.c.l.b16 %v8178
          %v8234 = vunpack.c.l.b16 %v8179
          %v8235 = vunpack.c.l.b16 %v8180
          %v8236 = vunpack.c.l.b16 %v8181
          %v8237 = vunpack.c.l.b16 %v8182
          %v8238 = vunpack.c.l.b16 %v8183
          %v8239 = vunpack.c.l.b16 %v8184
          %v8240 = vunpack.c.l.b16 %v8185
          %v8241 = vunpack.c.l.b16 %v8186
          %v8242 = vunpack.c.l.b16 %v8187
          %v8243 = vunpack.c.l.b16 %v8188
          %v8244 = vunpack.c.l.b16 %v8189
          %v8245 = vunpack.c.l.b16 %v8190
          %v8246 = vunpack.c.l.b16 %v8191
          %v8247 = vunpack.c.l.b16 %v8192
          %v8248 = vunpack.c.l.b16 %v8193
          %v8249 = vunpack.c.l.b16 %v8194
          %v8250 = vunpack.c.l.b16 %v8195
          %v8251 = vunpack.c.l.b16 %v8196
          %v8252 = vunpack.c.l.b16 %v8197
          %v8253 = vunpack.c.l.b16 %v8198
          %v8254 = vunpack.c.l.b16 %v8199
          %v8255 = vpack.c.b16 %v8232, %v8231
          %v8256 = vpack.c.b16 %v8234, %v8233
          %v8257 = vpack.c.b16 %v8236, %v8235
          %v8258 = vpack.c.b16 %v8238, %v8237
          %v8259 = vpack.c.b16 %v8240, %v8239
          %v8260 = vpack.c.b16 %v8242, %v8241
          %v8261 = vpack.c.b16 %v8244, %v8243
          %v8262 = vpack.c.b16 %v8246, %v8245
          %v8263 = vpack.c.b16 %v8248, %v8247
          %v8264 = vpack.c.b16 %v8250, %v8249
          %v8265 = vpack.c.b16 %v8252, %v8251
          %v8266 = vpack.c.b16 %v8254, %v8253
          %v8280 = vsel %vm867, %v8161, 0
          %v8283 = vsel %vm867, %v8163, 0
          %v8286 = vsel %vm867, %v8165, 0
          %v8289 = vsel %vm867, %v8167, 0
          %v8292 = vsel %vm867, %v8169, 0
          %v8295 = vsel %vm867, %v8171, 0
          %v8298 = vsel %vm867, %v8173, 0
          %v8301 = vsel %vm867, %v8175, 0
          %8303 = vmatprep.subr.bf16.mxu0 0
          %8304 = vmatpush1.bf16.msra.mxu0 %v8262
          %8305 = vmatprep.subr.bf16.mxu0 0
          %8306 = vmatpush1.bf16.msra.mxu0 %v8261
          %8307 = vmatprep.subr.bf16.mxu0 0
          %8308 = vmatpush1.bf16.msra.mxu0 %v8260
          %8309 = vmatprep.subr.bf16.mxu0 0
          %8310 = vmatpush1.bf16.msra.mxu0 %v8259
          %8311 = vmatprep.subr.bf16.mxu0 0
          %8312 = vmatpush1.bf16.msra.mxu0 %v8258
          %8313 = vmatprep.subr.bf16.mxu0 0
          %8314 = vmatpush1.bf16.msra.mxu0 %v8257
          %8315 = vmatprep.subr.bf16.mxu0 0
          %8316 = vmatpush1.bf16.msra.mxu0 %v8256
          %8317 = vmatprep.subr.bf16.mxu0 0
          %8318 = vmatpush1.bf16.msra.mxu0 %v8255
          %8319 = vmatprep.subr.bf16.mxu0 0
          %8320 = vmatpush2.bf16.msra.mxu0 0
          %8321 = vmatprep.subr.bf16.mxu0 0
          %8322 = vmatpush2.bf16.msra.mxu0 0
          %8323 = vmatprep.subr.bf16.mxu0 0
          %8324 = vmatpush2.bf16.msra.mxu0 0
          %8325 = vmatprep.subr.bf16.mxu0 0
          %8326 = vmatpush2.bf16.msra.mxu0 0
          %8327 = vmatprep.subr.bf16.mxu0 0
          %8328 = vmatpush2.bf16.msra.mxu0 %v8266
          %8329 = vmatprep.subr.bf16.mxu0 0
          %8330 = vmatpush2.bf16.msra.mxu0 %v8265
          %8331 = vmatprep.subr.bf16.mxu0 0
          %8332 = vmatpush2.bf16.msra.mxu0 %v8264
          %8333 = vmatprep.subr.bf16.mxu0 0
          %8334 = vmatpush2.bf16.msra.mxu0 %v8263
          %8335 = vmatprep.mubr.bf16.mxu0 %v8280
          %8336 = vmatmul.mubr.bf16.gmra.mxu0 %v8160
          %v8337 = vpop.f32.mrf.mxu0
          %v8338 = vadd.f32 %v8205, %v8337
          %v8339 = vpop.f32.mrf.mxu0
          %v8340 = vpop.f32.mrf.mxu0
          %v8341 = vadd.f32 %v8205, %v8340
          %v8342 = vpop.f32.mrf.mxu0
          %8343 = vmatprep.mubr.bf16.mxu0 %v8283
          %8344 = vmatmul.mubr.bf16.gmra.mxu0 %v8162
          %v8345 = vpop.f32.mrf.mxu0
          %v8346 = vadd.f32 %v8205, %v8345
          %v8347 = vpop.f32.mrf.mxu0
          %v8348 = vpop.f32.mrf.mxu0
          %v8349 = vadd.f32 %v8205, %v8348
          %v8350 = vpop.f32.mrf.mxu0
          %8351 = vmatprep.mubr.bf16.mxu0 %v8286
          %8352 = vmatmul.mubr.bf16.gmra.mxu0 %v8164
          %v8353 = vpop.f32.mrf.mxu0
          %v8354 = vadd.f32 %v8205, %v8353
          %v8355 = vpop.f32.mrf.mxu0
          %v8356 = vpop.f32.mrf.mxu0
          %v8357 = vadd.f32 %v8205, %v8356
          %v8358 = vpop.f32.mrf.mxu0
          %8359 = vmatprep.mubr.bf16.mxu0 %v8289
          %8360 = vmatmul.mubr.bf16.gmra.mxu0 %v8166
          %v8361 = vpop.f32.mrf.mxu0
          %v8362 = vadd.f32 %v8205, %v8361
          %v8363 = vpop.f32.mrf.mxu0
          %v8364 = vpop.f32.mrf.mxu0
          %v8365 = vadd.f32 %v8205, %v8364
          %v8366 = vpop.f32.mrf.mxu0
          %8367 = vmatprep.mubr.bf16.mxu0 %v8292
          %8368 = vmatmul.mubr.bf16.gmra.mxu0 %v8168
          %v8369 = vpop.f32.mrf.mxu0
          %v8370 = vadd.f32 %v8205, %v8369
          %v8371 = vpop.f32.mrf.mxu0
          %v8372 = vpop.f32.mrf.mxu0
          %v8373 = vadd.f32 %v8205, %v8372
          %v8374 = vpop.f32.mrf.mxu0
          %8375 = vmatprep.mubr.bf16.mxu0 %v8295
          %8376 = vmatmul.mubr.bf16.gmra.mxu0 %v8170
          %v8377 = vpop.f32.mrf.mxu0
          %v8378 = vadd.f32 %v8205, %v8377
          %v8379 = vpop.f32.mrf.mxu0
          %v8380 = vpop.f32.mrf.mxu0
          %v8381 = vadd.f32 %v8205, %v8380
          %v8382 = vpop.f32.mrf.mxu0
          %8383 = vmatprep.mubr.bf16.mxu0 %v8298
          %8384 = vmatmul.mubr.bf16.gmra.mxu0 %v8172
          %v8385 = vpop.f32.mrf.mxu0
          %v8386 = vadd.f32 %v8205, %v8385
          %v8387 = vpop.f32.mrf.mxu0
          %v8388 = vpop.f32.mrf.mxu0
          %v8389 = vadd.f32 %v8205, %v8388
          %v8390 = vpop.f32.mrf.mxu0
          %8391 = vmatprep.mubr.bf16.mxu0 %v8301
          %8392 = vmatmul.mubr.bf16.gmra.mxu0 %v8174
          %v8393 = vpop.f32.mrf.mxu0
          %v8394 = vadd.f32 %v8205, %v8393
          %v8395 = vpop.f32.mrf.mxu0
          %v8396 = vpop.f32.mrf.mxu0
          %v8397 = vadd.f32 %v8205, %v8396
          %v8398 = vpop.f32.mrf.mxu0
          %8399 = vdwg.mxu0
          %8400 = vst [vmem:[%s701] sm:$0xff] %v8338
          %8401 = vst [vmem:[%s701 + $0x8] sm:$0xff] %v8341
          %8402 = vst [vmem:[%s701 + $0x10] sm:$0xff] %v8346
          %8403 = vst [vmem:[%s701 + $0x18] sm:$0xff] %v8349
          %8404 = vst [vmem:[%s701 + $0x20] sm:$0xff] %v8354
          %8405 = vst [vmem:[%s701 + $0x28] sm:$0xff] %v8357
          %8406 = vst [vmem:[%s701 + $0x30] sm:$0xff] %v8362
          %8407 = vst [vmem:[%s701 + $0x38] sm:$0xff] %v8365
          %8408 = vst [vmem:[%s701 + $0x40] sm:$0xff] %v8370
          %8409 = vst [vmem:[%s701 + $0x48] sm:$0xff] %v8373
          %8410 = vst [vmem:[%s701 + $0x50] sm:$0xff] %v8378
          %8411 = vst [vmem:[%s701 + $0x58] sm:$0xff] %v8381
          %8412 = vst [vmem:[%s701 + $0x60] sm:$0xff] %v8386
          %8413 = vst [vmem:[%s701 + $0x68] sm:$0xff] %v8389
          %8414 = vst [vmem:[%s701 + $0x70] sm:$0xff] %v8394
          %8415 = vst [vmem:[%s701 + $0x78] sm:$0xff] %v8397
        $region92: #{tpu_custom_call.1} parent=83 // pred_fallthru
          _
        %s8416 = sand.u32 %s456, 1
        %s8417 = scalar_lea.sflag [#allocation4], %s8416
        %s8418 = sand.u32 %s456, 1
        %s8419 = smul.addr %s8418, 128
        %s8420 = scalar_lea.vmem [#allocation3], %s8419
        // Predicated region
        $region93: #{tpu_custom_call.1} parent=83 // pred_check
          %p8421 = pneg %p466
        $region94: #{tpu_custom_call.1} parent=83 // pred_check_branch
          %8423 = sbr.rel (%p8421) target = $region96
        $region95: #{tpu_custom_call.1} parent=83 // pred_region
          %s8425 = ssub.s32 2048, 2048
          %8426 = vsyncadd %s8417, %s8425
          %s8427 = smul.addr %s34, 16
          %s8428 = smul.addr %s8427, 128
          %s8429 = scalar_lea.hbm %s16, %s8428
          %s8430 = sshll.u32 %s8420, 4
          %s8431 = int_to_ptr.vmem [resolvable:$true] %s8430
          %8436 = dma.vmem_to_hbm [thread:$0]  %s8431, 2048, %s8429, %s8417, 128, 128, 8
        $region96: #{tpu_custom_call.1} parent=83 // pred_fallthru
          _
      $region84: #{tpu_custom_call.1} parent=5 // pred_fallthru
        _
      %p8437 = scmp.le.s32.totalorder 2, %s25
      // Predicated region
      $region97: #{tpu_custom_call.1} parent=5 // pred_check
        %p8438 = pneg %p8437
      $region98: #{tpu_custom_call.1} parent=5 // pred_check_branch
        %8440 = sbr.rel (%p8438) target = $region100
      $region99: #{tpu_custom_call.1} parent=5 // pred_region
        %s8441 = ssub.s32 %s25, 2
        // Predicated region
        $region101: #{tpu_custom_call.1} parent=99 // pred_check
          %p8442 = pneg %p472
        $region102: #{tpu_custom_call.1} parent=99 // pred_check_branch
          %8444 = sbr.rel (%p8442) target = $region104
        $region103: #{tpu_custom_call.1} parent=99 // pred_region
          %s8445 = sand.u32 %s457, 1
          %s8446 = scalar_lea.sflag [#allocation4], %s8445
          %s8447 = sand.u32 %s457, 1
          %s8448 = smul.addr %s8447, 128
          %s8449 = scalar_lea.vmem [#allocation3], %s8448
          %8450 = dma.done %s8446, 2048
        $region104: #{tpu_custom_call.1} parent=99 // pred_fallthru
          _
      $region100: #{tpu_custom_call.1} parent=5 // pred_fallthru
        _
    $region6: #{tpu_custom_call.1} parent=1 // loop_footer
      %s29 = sadd.s32 1, %s25
    $region7: #{tpu_custom_call.1} parent=1 // loop_footer_branch
      %24 = sbr.rel target = $region3
    $region8: #{tpu_custom_call.1} parent=1 // loop_exit
      _
    %8451 = vsyncpa [#allocation4], 1
    %s8452 = scalar_lea.sflag [#allocation4], 1
    %8453 = vsyncpa %s8452, 1

</llo_original>
